<compile_context>
chip_gen: v6e
topology: v6e:2x2x1
jax: 0.10.0
libtpu: 0.0.40
codegen_flags: <defaults>
</compile_context>

<pallas_src>
import functools

import numpy as np
import jax
import jax.numpy as jnp
from jax import lax
from jax.experimental import pallas as pl
from jax.experimental.pallas import tpu as pltpu


# ----------------------------------------------------------------------------
# Host-side helpers
# ----------------------------------------------------------------------------
def _shift_matrices(H, W):
    """T[tap, q, p] = 1 iff input position q feeds output position p for that 3x3
    tap under zero ('same') padding, i.e. shifted_x = x @ T[tap]."""
    HW = H * W
    T = np.zeros((9, HW, HW), dtype=np.float32)
    for ky in range(3):
        for kx in range(3):
            dy, dx = ky - 1, kx - 1
            tap = ky * 3 + kx
            for ph in range(H):
                qh = ph + dy
                if qh < 0 or qh >= H:
                    continue
                for pw in range(W):
                    qw = pw + dx
                    if qw < 0 or qw >= W:
                        continue
                    T[tap, qh * W + qw, ph * W + pw] = 1.0
    return T


# ----------------------------------------------------------------------------
# Pallas kernel: full SSPN chain for one image per grid step
# ----------------------------------------------------------------------------
def _sspn_kernel(n_blocks, res_scale, C, HW, Crp,
                 taps_ref, w3_ref, b3_ref, w1_ref, b1_ref,
                 wd_ref, bd_ref, wu_ref, bu_ref, x_ref, o_ref):
    f32 = jnp.float32
    x0 = x_ref[0]                                           # (C, HW)

    def conv3x3(v, j):
        acc = jnp.zeros((C, HW), f32)
        for tap in range(9):
            a = jnp.dot(w3_ref[j, tap], v, preferred_element_type=f32)       # (C, HW)
            acc = acc + jnp.dot(a, taps_ref[tap], preferred_element_type=f32)
        return acc + b3_ref[j]                               # bias (C,1) broadcasts over lanes

    x = x0
    for blk in range(n_blocks):
        # ---- spa: ResBlock (3x3 -> ReLU -> 3x3), scaled residual ----
        h = conv3x3(x, 2 * blk + 0)
        h = jnp.maximum(h, 0.0)
        h = conv3x3(h, 2 * blk + 1)
        x = x + res_scale * h
        # ---- spc: ResAttentionBlock (1x1 -> ReLU -> 1x1 -> CALayer), scaled residual ----
        h = jnp.dot(w1_ref[2 * blk + 0], x, preferred_element_type=f32) + b1_ref[2 * blk + 0]
        h = jnp.maximum(h, 0.0)
        h = jnp.dot(w1_ref[2 * blk + 1], h, preferred_element_type=f32) + b1_ref[2 * blk + 1]
        # CALayer: squeeze matmul commutes with the (linear) global average pool.
        hd = jnp.dot(wd_ref[blk], h, preferred_element_type=f32)             # (Crp, HW)
        d = jnp.mean(hd, axis=1, keepdims=True) + bd_ref[blk]                # (Crp, 1)
        d = jnp.maximum(d, 0.0)
        u = jnp.dot(wu_ref[blk], jnp.broadcast_to(d, (Crp, HW)),
                    preferred_element_type=f32) + bu_ref[blk]                # (C, HW)
        att = 1.0 / (1.0 + jnp.exp(-u))                                      # sigmoid
        x = x + res_scale * (h * att)

    o_ref[0] = (x + x0).astype(o_ref.dtype)                 # SSPN: res = net(x) + x


# ----------------------------------------------------------------------------
# Wrapper
# ----------------------------------------------------------------------------
def sspn_forward(x, params, res_scale):
    """x: (N, C, H, W) float32; params: list of per-SSB dicts (PyTorch layout weights)."""
    N, C, H, W = x.shape
    HW = H * W
    n_blocks = len(params)
    Cr = params[0]["wd"].shape[0]
    Crp = max(8, ((Cr + 7) // 8) * 8)                       # pad squeeze dim to >= 8 rows

    taps = jnp.asarray(_shift_matrices(H, W))                                 # (9, HW, HW)
    # 3x3 conv kernels (Co,Ci,3,3) -> per-tap (9, Co, Ci) matrices.
    w3 = jnp.stack([jnp.asarray(p[k]).transpose(2, 3, 0, 1).reshape(9, C, C)
                    for p in params for k in ("k1", "k2")])                   # (2nb, 9, C, C)
    b3 = jnp.stack([jnp.asarray(p[k]).reshape(C, 1)
                    for p in params for k in ("kb1", "kb2")])                 # (2nb, C, 1)
    w1 = jnp.stack([jnp.asarray(p[k]) for p in params for k in ("w1", "w2")])  # (2nb, C, C)
    b1 = jnp.stack([jnp.asarray(p[k]).reshape(C, 1)
                    for p in params for k in ("wb1", "wb2")])                 # (2nb, C, 1)
    wd = jnp.stack([jnp.zeros((Crp, C), jnp.float32).at[:Cr].set(p["wd"]) for p in params])
    bd = jnp.stack([jnp.zeros((Crp, 1), jnp.float32).at[:Cr, 0].set(p["bd"]) for p in params])
    wu = jnp.stack([jnp.zeros((C, Crp), jnp.float32).at[:, :Cr].set(p["wu"]) for p in params])
    bu = jnp.stack([jnp.asarray(p["bu"]).reshape(C, 1) for p in params])

    xf = x.reshape(N, C, HW)

    conv3_flops = 9 * (2 * C * C * HW + 2 * C * HW * HW)
    blk_flops = 2 * conv3_flops + 2 * (2 * C * C * HW) + 2 * (2 * Crp * C * HW)
    flops = int(N * n_blocks * blk_flops)
    transcend = int(N * n_blocks * C * HW)
    bytes_accessed = int(4 * (2 * N * C * HW + taps.size + w3.size + b3.size + w1.size
                              + b1.size + wd.size + bd.size + wu.size + bu.size))

    kernel = functools.partial(_sspn_kernel, n_blocks, float(res_scale), C, HW, Crp)

    def resident(shape):
        return pl.BlockSpec(shape, lambda n: (0,) * len(shape))

    out = pl.pallas_call(
        kernel,
        out_shape=jax.ShapeDtypeStruct((N, C, HW), x.dtype),
        grid_spec=pltpu.PrefetchScalarGridSpec(
            num_scalar_prefetch=0,
            grid=(N,),
            in_specs=[
                resident(taps.shape),
                resident(w3.shape), resident(b3.shape),
                resident(w1.shape), resident(b1.shape),
                resident(wd.shape), resident(bd.shape),
                resident(wu.shape), resident(bu.shape),
                pl.BlockSpec((1, C, HW), lambda n: (n, 0, 0)),
            ],
            out_specs=pl.BlockSpec((1, C, HW), lambda n: (n, 0, 0)),
        ),
        compiler_params=pltpu.CompilerParams(
            dimension_semantics=("parallel",),
            vmem_limit_bytes=32 * 1024 * 1024,
        ),
        cost_estimate=pl.CostEstimate(flops=flops, transcendentals=transcend,
                                      bytes_accessed=bytes_accessed),
    )(taps, w3, b3, w1, b1, wd, bd, wu, bu, xf)

    return out.reshape(N, C, H, W)


# ----------------------------------------------------------------------------
# Pure-JAX reference (independent formulation: lax.conv + einsums)
# ----------------------------------------------------------------------------
def sspn_reference(x, params, res_scale):
    hp = lax.Precision.HIGHEST

    def conv3(v, k, b):
        out = lax.conv_general_dilated(v, k, (1, 1), ((1, 1), (1, 1)),
                                       dimension_numbers=("NCHW", "OIHW", "NCHW"),
                                       precision=hp)
        return out + b[None, :, None, None]

    y = x
    for p in params:
        h = jnp.maximum(conv3(y, p["k1"], p["kb1"]), 0.0)
        h = conv3(h, p["k2"], p["kb2"])
        y = y + res_scale * h
        h = jnp.einsum("oc,nchw->nohw", p["w1"], y, precision=hp) + p["wb1"][None, :, None, None]
        h = jnp.maximum(h, 0.0)
        h = jnp.einsum("oc,nchw->nohw", p["w2"], h, precision=hp) + p["wb2"][None, :, None, None]
        s = jnp.mean(h, axis=(2, 3), keepdims=True)
        d = jnp.einsum("rc,nchw->nrhw", p["wd"], s, precision=hp) + p["bd"][None, :, None, None]
        d = jnp.maximum(d, 0.0)
        u = jnp.einsum("cr,nrhw->nchw", p["wu"], d, precision=hp) + p["bu"][None, :, None, None]
        att = 1.0 / (1.0 + jnp.exp(-u))
        y = y + res_scale * (h * att)
    return y + x


if __name__ == "__main__":
    # Small shapes consistent with the module: n_feats must admit the CALayer
    # reduction of 16, so n_feats=32 (squeeze dim 2); act=ReLU, res_scale=0.1.
    N, C, H, W = 2, 32, 16, 16
    n_blocks, res_scale = 2, 0.1
    Cr = C // 16

    key = jax.random.PRNGKey(0)

    def nrm(k, shape, scale=0.1):
        return scale * jax.random.normal(k, shape, dtype=jnp.float32)

    params = []
    for b in range(n_blocks):
        ks = jax.random.split(jax.random.fold_in(key, b), 12)
        params.append(dict(
            k1=nrm(ks[0], (C, C, 3, 3)), kb1=nrm(ks[1], (C,)),
            k2=nrm(ks[2], (C, C, 3, 3)), kb2=nrm(ks[3], (C,)),
            w1=nrm(ks[4], (C, C)), wb1=nrm(ks[5], (C,)),
            w2=nrm(ks[6], (C, C)), wb2=nrm(ks[7], (C,)),
            wd=nrm(ks[8], (Cr, C)), bd=nrm(ks[9], (Cr,)),
            wu=nrm(ks[10], (C, Cr)), bu=nrm(ks[11], (C,)),
        ))
    x = jax.random.normal(jax.random.fold_in(key, 1000), (N, C, H, W), dtype=jnp.float32)

    y = sspn_forward(x, params, res_scale)
    y = jax.block_until_ready(y)

    ref = sspn_reference(x, params, res_scale)
    assert y.shape == x.shape, y.shape
    assert y.dtype == x.dtype
    assert jnp.allclose(y, ref, atol=2e-2, rtol=2e-2), float(jnp.max(jnp.abs(y - ref)))
    print("KERNEL_OK")
</pallas_src>

<mosaic_0001>
module attributes {stable_mosaic.version = 11 : i64} {
  func.func @_sspn_kernel(%arg0: i32, %arg1: memref<9x256x256xf32, #tpu.memory_space<vmem>>, %arg2: memref<4x9x32x32xf32, #tpu.memory_space<vmem>>, %arg3: memref<4x32x1xf32, #tpu.memory_space<vmem>>, %arg4: memref<4x32x32xf32, #tpu.memory_space<vmem>>, %arg5: memref<4x32x1xf32, #tpu.memory_space<vmem>>, %arg6: memref<2x8x32xf32, #tpu.memory_space<vmem>>, %arg7: memref<2x8x1xf32, #tpu.memory_space<vmem>>, %arg8: memref<2x32x8xf32, #tpu.memory_space<vmem>>, %arg9: memref<2x32x1xf32, #tpu.memory_space<vmem>>, %arg10: memref<1x32x256xf32, #tpu.memory_space<vmem>>, %arg11: memref<1x32x256xf32, #tpu.memory_space<vmem>>) attributes {dimension_semantics = [#tpu.dimension_semantics<parallel>], iteration_bounds = array<i64: 2>, scalar_prefetch = 0 : i64, scratch_operands = 0 : i64, tpu.core_type = #tpu.core_type<tc>, window_params = [{pipeline_mode = #tpu.pipeline_mode<synchronous>, transform_indices = @transform_0, window_bounds = array<i64: 9, 256, 256>}, {pipeline_mode = #tpu.pipeline_mode<synchronous>, transform_indices = @transform_1, window_bounds = array<i64: 4, 9, 32, 32>}, {pipeline_mode = #tpu.pipeline_mode<synchronous>, transform_indices = @transform_2, window_bounds = array<i64: 4, 32, 1>}, {pipeline_mode = #tpu.pipeline_mode<synchronous>, transform_indices = @transform_3, window_bounds = array<i64: 4, 32, 32>}, {pipeline_mode = #tpu.pipeline_mode<synchronous>, transform_indices = @transform_4, window_bounds = array<i64: 4, 32, 1>}, {pipeline_mode = #tpu.pipeline_mode<synchronous>, transform_indices = @transform_5, window_bounds = array<i64: 2, 8, 32>}, {pipeline_mode = #tpu.pipeline_mode<synchronous>, transform_indices = @transform_6, window_bounds = array<i64: 2, 8, 1>}, {pipeline_mode = #tpu.pipeline_mode<synchronous>, transform_indices = @transform_7, window_bounds = array<i64: 2, 32, 8>}, {pipeline_mode = #tpu.pipeline_mode<synchronous>, transform_indices = @transform_8, window_bounds = array<i64: 2, 32, 1>}, {transform_indices = @transform_9, window_bounds = array<i64: 1, 32, 256>}, {transform_indices = @transform_10, window_bounds = array<i64: 1, 32, 256>}]} {
    %c0 = arith.constant 0 : index
    %c0_0 = arith.constant 0 : index
    %c0_1 = arith.constant 0 : index
    %0 = vector.load %arg10[%c0, %c0_0, %c0_1] : memref<1x32x256xf32, #tpu.memory_space<vmem>>, vector<1x32x256xf32>
    %1 = vector.shape_cast %0 : vector<1x32x256xf32> to vector<32x256xf32>
    %cst = arith.constant 0.000000e+00 : f32
    %2 = vector.broadcast %cst : f32 to vector<32x256xf32>
    %c0_2 = arith.constant 0 : index
    %c0_3 = arith.constant 0 : index
    %c0_4 = arith.constant 0 : index
    %c0_5 = arith.constant 0 : index
    %3 = vector.load %arg2[%c0_2, %c0_3, %c0_4, %c0_5] : memref<4x9x32x32xf32, #tpu.memory_space<vmem>>, vector<1x1x32x32xf32>
    %4 = vector.shape_cast %3 : vector<1x1x32x32xf32> to vector<32x32xf32>
    %cst_6 = arith.constant dense<0.000000e+00> : vector<32x256xf32>
    %5 = tpu.matmul %4, %1, %cst_6 {dimension_numbers = #tpu.dot_dimension_numbers<[1], [0], [0], [1], [0, 0, 1, 1], [], []>} : vector<32x32xf32>, vector<32x256xf32>, vector<32x256xf32> -> vector<32x256xf32>
    %c0_7 = arith.constant 0 : index
    %c0_8 = arith.constant 0 : index
    %c0_9 = arith.constant 0 : index
    %6 = vector.load %arg1[%c0_7, %c0_8, %c0_9] : memref<9x256x256xf32, #tpu.memory_space<vmem>>, vector<1x256x256xf32>
    %7 = vector.shape_cast %6 : vector<1x256x256xf32> to vector<256x256xf32>
    %cst_10 = arith.constant dense<0.000000e+00> : vector<32x256xf32>
    %8 = tpu.matmul %5, %7, %cst_10 {dimension_numbers = #tpu.dot_dimension_numbers<[1], [0], [0], [1], [0, 0, 1, 1], [], []>} : vector<32x256xf32>, vector<256x256xf32>, vector<32x256xf32> -> vector<32x256xf32>
    %9 = arith.addf %2, %8 : vector<32x256xf32>
    %c0_11 = arith.constant 0 : index
    %c1 = arith.constant 1 : index
    %c0_12 = arith.constant 0 : index
    %c0_13 = arith.constant 0 : index
    %10 = vector.load %arg2[%c0_11, %c1, %c0_12, %c0_13] : memref<4x9x32x32xf32, #tpu.memory_space<vmem>>, vector<1x1x32x32xf32>
    %11 = vector.shape_cast %10 : vector<1x1x32x32xf32> to vector<32x32xf32>
    %cst_14 = arith.constant dense<0.000000e+00> : vector<32x256xf32>
    %12 = tpu.matmul %11, %1, %cst_14 {dimension_numbers = #tpu.dot_dimension_numbers<[1], [0], [0], [1], [0, 0, 1, 1], [], []>} : vector<32x32xf32>, vector<32x256xf32>, vector<32x256xf32> -> vector<32x256xf32>
    %c1_15 = arith.constant 1 : index
    %c0_16 = arith.constant 0 : index
    %c0_17 = arith.constant 0 : index
    %13 = vector.load %arg1[%c1_15, %c0_16, %c0_17] : memref<9x256x256xf32, #tpu.memory_space<vmem>>, vector<1x256x256xf32>
    %14 = vector.shape_cast %13 : vector<1x256x256xf32> to vector<256x256xf32>
    %cst_18 = arith.constant dense<0.000000e+00> : vector<32x256xf32>
    %15 = tpu.matmul %12, %14, %cst_18 {dimension_numbers = #tpu.dot_dimension_numbers<[1], [0], [0], [1], [0, 0, 1, 1], [], []>} : vector<32x256xf32>, vector<256x256xf32>, vector<32x256xf32> -> vector<32x256xf32>
    %16 = arith.addf %9, %15 : vector<32x256xf32>
    %c0_19 = arith.constant 0 : index
    %c2 = arith.constant 2 : index
    %c0_20 = arith.constant 0 : index
    %c0_21 = arith.constant 0 : index
    %17 = vector.load %arg2[%c0_19, %c2, %c0_20, %c0_21] : memref<4x9x32x32xf32, #tpu.memory_space<vmem>>, vector<1x1x32x32xf32>
    %18 = vector.shape_cast %17 : vector<1x1x32x32xf32> to vector<32x32xf32>
    %cst_22 = arith.constant dense<0.000000e+00> : vector<32x256xf32>
    %19 = tpu.matmul %18, %1, %cst_22 {dimension_numbers = #tpu.dot_dimension_numbers<[1], [0], [0], [1], [0, 0, 1, 1], [], []>} : vector<32x32xf32>, vector<32x256xf32>, vector<32x256xf32> -> vector<32x256xf32>
    %c2_23 = arith.constant 2 : index
    %c0_24 = arith.constant 0 : index
    %c0_25 = arith.constant 0 : index
    %20 = vector.load %arg1[%c2_23, %c0_24, %c0_25] : memref<9x256x256xf32, #tpu.memory_space<vmem>>, vector<1x256x256xf32>
    %21 = vector.shape_cast %20 : vector<1x256x256xf32> to vector<256x256xf32>
    %cst_26 = arith.constant dense<0.000000e+00> : vector<32x256xf32>
    %22 = tpu.matmul %19, %21, %cst_26 {dimension_numbers = #tpu.dot_dimension_numbers<[1], [0], [0], [1], [0, 0, 1, 1], [], []>} : vector<32x256xf32>, vector<256x256xf32>, vector<32x256xf32> -> vector<32x256xf32>
    %23 = arith.addf %16, %22 : vector<32x256xf32>
    %c0_27 = arith.constant 0 : index
    %c3 = arith.constant 3 : index
    %c0_28 = arith.constant 0 : index
    %c0_29 = arith.constant 0 : index
    %24 = vector.load %arg2[%c0_27, %c3, %c0_28, %c0_29] : memref<4x9x32x32xf32, #tpu.memory_space<vmem>>, vector<1x1x32x32xf32>
    %25 = vector.shape_cast %24 : vector<1x1x32x32xf32> to vector<32x32xf32>
    %cst_30 = arith.constant dense<0.000000e+00> : vector<32x256xf32>
    %26 = tpu.matmul %25, %1, %cst_30 {dimension_numbers = #tpu.dot_dimension_numbers<[1], [0], [0], [1], [0, 0, 1, 1], [], []>} : vector<32x32xf32>, vector<32x256xf32>, vector<32x256xf32> -> vector<32x256xf32>
    %c3_31 = arith.constant 3 : index
    %c0_32 = arith.constant 0 : index
    %c0_33 = arith.constant 0 : index
    %27 = vector.load %arg1[%c3_31, %c0_32, %c0_33] : memref<9x256x256xf32, #tpu.memory_space<vmem>>, vector<1x256x256xf32>
    %28 = vector.shape_cast %27 : vector<1x256x256xf32> to vector<256x256xf32>
    %cst_34 = arith.constant dense<0.000000e+00> : vector<32x256xf32>
    %29 = tpu.matmul %26, %28, %cst_34 {dimension_numbers = #tpu.dot_dimension_numbers<[1], [0], [0], [1], [0, 0, 1, 1], [], []>} : vector<32x256xf32>, vector<256x256xf32>, vector<32x256xf32> -> vector<32x256xf32>
    %30 = arith.addf %23, %29 : vector<32x256xf32>
    %c0_35 = arith.constant 0 : index
    %c4 = arith.constant 4 : index
    %c0_36 = arith.constant 0 : index
    %c0_37 = arith.constant 0 : index
    %31 = vector.load %arg2[%c0_35, %c4, %c0_36, %c0_37] : memref<4x9x32x32xf32, #tpu.memory_space<vmem>>, vector<1x1x32x32xf32>
    %32 = vector.shape_cast %31 : vector<1x1x32x32xf32> to vector<32x32xf32>
    %cst_38 = arith.constant dense<0.000000e+00> : vector<32x256xf32>
    %33 = tpu.matmul %32, %1, %cst_38 {dimension_numbers = #tpu.dot_dimension_numbers<[1], [0], [0], [1], [0, 0, 1, 1], [], []>} : vector<32x32xf32>, vector<32x256xf32>, vector<32x256xf32> -> vector<32x256xf32>
    %c4_39 = arith.constant 4 : index
    %c0_40 = arith.constant 0 : index
    %c0_41 = arith.constant 0 : index
    %34 = vector.load %arg1[%c4_39, %c0_40, %c0_41] : memref<9x256x256xf32, #tpu.memory_space<vmem>>, vector<1x256x256xf32>
    %35 = vector.shape_cast %34 : vector<1x256x256xf32> to vector<256x256xf32>
    %cst_42 = arith.constant dense<0.000000e+00> : vector<32x256xf32>
    %36 = tpu.matmul %33, %35, %cst_42 {dimension_numbers = #tpu.dot_dimension_numbers<[1], [0], [0], [1], [0, 0, 1, 1], [], []>} : vector<32x256xf32>, vector<256x256xf32>, vector<32x256xf32> -> vector<32x256xf32>
    %37 = arith.addf %30, %36 : vector<32x256xf32>
    %c0_43 = arith.constant 0 : index
    %c5 = arith.constant 5 : index
    %c0_44 = arith.constant 0 : index
    %c0_45 = arith.constant 0 : index
    %38 = vector.load %arg2[%c0_43, %c5, %c0_44, %c0_45] : memref<4x9x32x32xf32, #tpu.memory_space<vmem>>, vector<1x1x32x32xf32>
    %39 = vector.shape_cast %38 : vector<1x1x32x32xf32> to vector<32x32xf32>
    %cst_46 = arith.constant dense<0.000000e+00> : vector<32x256xf32>
    %40 = tpu.matmul %39, %1, %cst_46 {dimension_numbers = #tpu.dot_dimension_numbers<[1], [0], [0], [1], [0, 0, 1, 1], [], []>} : vector<32x32xf32>, vector<32x256xf32>, vector<32x256xf32> -> vector<32x256xf32>
    %c5_47 = arith.constant 5 : index
    %c0_48 = arith.constant 0 : index
    %c0_49 = arith.constant 0 : index
    %41 = vector.load %arg1[%c5_47, %c0_48, %c0_49] : memref<9x256x256xf32, #tpu.memory_space<vmem>>, vector<1x256x256xf32>
    %42 = vector.shape_cast %41 : vector<1x256x256xf32> to vector<256x256xf32>
    %cst_50 = arith.constant dense<0.000000e+00> : vector<32x256xf32>
    %43 = tpu.matmul %40, %42, %cst_50 {dimension_numbers = #tpu.dot_dimension_numbers<[1], [0], [0], [1], [0, 0, 1, 1], [], []>} : vector<32x256xf32>, vector<256x256xf32>, vector<32x256xf32> -> vector<32x256xf32>
    %44 = arith.addf %37, %43 : vector<32x256xf32>
    %c0_51 = arith.constant 0 : index
    %c6 = arith.constant 6 : index
    %c0_52 = arith.constant 0 : index
    %c0_53 = arith.constant 0 : index
    %45 = vector.load %arg2[%c0_51, %c6, %c0_52, %c0_53] : memref<4x9x32x32xf32, #tpu.memory_space<vmem>>, vector<1x1x32x32xf32>
    %46 = vector.shape_cast %45 : vector<1x1x32x32xf32> to vector<32x32xf32>
    %cst_54 = arith.constant dense<0.000000e+00> : vector<32x256xf32>
    %47 = tpu.matmul %46, %1, %cst_54 {dimension_numbers = #tpu.dot_dimension_numbers<[1], [0], [0], [1], [0, 0, 1, 1], [], []>} : vector<32x32xf32>, vector<32x256xf32>, vector<32x256xf32> -> vector<32x256xf32>
    %c6_55 = arith.constant 6 : index
    %c0_56 = arith.constant 0 : index
    %c0_57 = arith.constant 0 : index
    %48 = vector.load %arg1[%c6_55, %c0_56, %c0_57] : memref<9x256x256xf32, #tpu.memory_space<vmem>>, vector<1x256x256xf32>
    %49 = vector.shape_cast %48 : vector<1x256x256xf32> to vector<256x256xf32>
    %cst_58 = arith.constant dense<0.000000e+00> : vector<32x256xf32>
    %50 = tpu.matmul %47, %49, %cst_58 {dimension_numbers = #tpu.dot_dimension_numbers<[1], [0], [0], [1], [0, 0, 1, 1], [], []>} : vector<32x256xf32>, vector<256x256xf32>, vector<32x256xf32> -> vector<32x256xf32>
    %51 = arith.addf %44, %50 : vector<32x256xf32>
    %c0_59 = arith.constant 0 : index
    %c7 = arith.constant 7 : index
    %c0_60 = arith.constant 0 : index
    %c0_61 = arith.constant 0 : index
    %52 = vector.load %arg2[%c0_59, %c7, %c0_60, %c0_61] : memref<4x9x32x32xf32, #tpu.memory_space<vmem>>, vector<1x1x32x32xf32>
    %53 = vector.shape_cast %52 : vector<1x1x32x32xf32> to vector<32x32xf32>
    %cst_62 = arith.constant dense<0.000000e+00> : vector<32x256xf32>
    %54 = tpu.matmul %53, %1, %cst_62 {dimension_numbers = #tpu.dot_dimension_numbers<[1], [0], [0], [1], [0, 0, 1, 1], [], []>} : vector<32x32xf32>, vector<32x256xf32>, vector<32x256xf32> -> vector<32x256xf32>
    %c7_63 = arith.constant 7 : index
    %c0_64 = arith.constant 0 : index
    %c0_65 = arith.constant 0 : index
    %55 = vector.load %arg1[%c7_63, %c0_64, %c0_65] : memref<9x256x256xf32, #tpu.memory_space<vmem>>, vector<1x256x256xf32>
    %56 = vector.shape_cast %55 : vector<1x256x256xf32> to vector<256x256xf32>
    %cst_66 = arith.constant dense<0.000000e+00> : vector<32x256xf32>
    %57 = tpu.matmul %54, %56, %cst_66 {dimension_numbers = #tpu.dot_dimension_numbers<[1], [0], [0], [1], [0, 0, 1, 1], [], []>} : vector<32x256xf32>, vector<256x256xf32>, vector<32x256xf32> -> vector<32x256xf32>
    %58 = arith.addf %51, %57 : vector<32x256xf32>
    %c0_67 = arith.constant 0 : index
    %c8 = arith.constant 8 : index
    %c0_68 = arith.constant 0 : index
    %c0_69 = arith.constant 0 : index
    %59 = vector.load %arg2[%c0_67, %c8, %c0_68, %c0_69] : memref<4x9x32x32xf32, #tpu.memory_space<vmem>>, vector<1x1x32x32xf32>
    %60 = vector.shape_cast %59 : vector<1x1x32x32xf32> to vector<32x32xf32>
    %cst_70 = arith.constant dense<0.000000e+00> : vector<32x256xf32>
    %61 = tpu.matmul %60, %1, %cst_70 {dimension_numbers = #tpu.dot_dimension_numbers<[1], [0], [0], [1], [0, 0, 1, 1], [], []>} : vector<32x32xf32>, vector<32x256xf32>, vector<32x256xf32> -> vector<32x256xf32>
    %c8_71 = arith.constant 8 : index
    %c0_72 = arith.constant 0 : index
    %c0_73 = arith.constant 0 : index
    %62 = vector.load %arg1[%c8_71, %c0_72, %c0_73] : memref<9x256x256xf32, #tpu.memory_space<vmem>>, vector<1x256x256xf32>
    %63 = vector.shape_cast %62 : vector<1x256x256xf32> to vector<256x256xf32>
    %cst_74 = arith.constant dense<0.000000e+00> : vector<32x256xf32>
    %64 = tpu.matmul %61, %63, %cst_74 {dimension_numbers = #tpu.dot_dimension_numbers<[1], [0], [0], [1], [0, 0, 1, 1], [], []>} : vector<32x256xf32>, vector<256x256xf32>, vector<32x256xf32> -> vector<32x256xf32>
    %65 = arith.addf %58, %64 : vector<32x256xf32>
    %c0_75 = arith.constant 0 : index
    %c0_76 = arith.constant 0 : index
    %c0_77 = arith.constant 0 : index
    %66 = vector.load %arg3[%c0_75, %c0_76, %c0_77] : memref<4x32x1xf32, #tpu.memory_space<vmem>>, vector<1x32x1xf32>
    %67 = vector.shape_cast %66 : vector<1x32x1xf32> to vector<32x1xf32>
    %68 = vector.broadcast %67 : vector<32x1xf32> to vector<32x256xf32>
    %69 = arith.addf %65, %68 : vector<32x256xf32>
    %cst_78 = arith.constant 0.000000e+00 : f32
    %70 = vector.broadcast %cst_78 : f32 to vector<32x256xf32>
    %71 = arith.maximumf %69, %70 : vector<32x256xf32>
    %cst_79 = arith.constant 0.000000e+00 : f32
    %72 = vector.broadcast %cst_79 : f32 to vector<32x256xf32>
    %c1_80 = arith.constant 1 : index
    %c0_81 = arith.constant 0 : index
    %c0_82 = arith.constant 0 : index
    %c0_83 = arith.constant 0 : index
    %73 = vector.load %arg2[%c1_80, %c0_81, %c0_82, %c0_83] : memref<4x9x32x32xf32, #tpu.memory_space<vmem>>, vector<1x1x32x32xf32>
    %74 = vector.shape_cast %73 : vector<1x1x32x32xf32> to vector<32x32xf32>
    %cst_84 = arith.constant dense<0.000000e+00> : vector<32x256xf32>
    %75 = tpu.matmul %74, %71, %cst_84 {dimension_numbers = #tpu.dot_dimension_numbers<[1], [0], [0], [1], [0, 0, 1, 1], [], []>} : vector<32x32xf32>, vector<32x256xf32>, vector<32x256xf32> -> vector<32x256xf32>
    %c0_85 = arith.constant 0 : index
    %c0_86 = arith.constant 0 : index
    %c0_87 = arith.constant 0 : index
    %76 = vector.load %arg1[%c0_85, %c0_86, %c0_87] : memref<9x256x256xf32, #tpu.memory_space<vmem>>, vector<1x256x256xf32>
    %77 = vector.shape_cast %76 : vector<1x256x256xf32> to vector<256x256xf32>
    %cst_88 = arith.constant dense<0.000000e+00> : vector<32x256xf32>
    %78 = tpu.matmul %75, %77, %cst_88 {dimension_numbers = #tpu.dot_dimension_numbers<[1], [0], [0], [1], [0, 0, 1, 1], [], []>} : vector<32x256xf32>, vector<256x256xf32>, vector<32x256xf32> -> vector<32x256xf32>
    %79 = arith.addf %72, %78 : vector<32x256xf32>
    %c1_89 = arith.constant 1 : index
    %c1_90 = arith.constant 1 : index
    %c0_91 = arith.constant 0 : index
    %c0_92 = arith.constant 0 : index
    %80 = vector.load %arg2[%c1_89, %c1_90, %c0_91, %c0_92] : memref<4x9x32x32xf32, #tpu.memory_space<vmem>>, vector<1x1x32x32xf32>
    %81 = vector.shape_cast %80 : vector<1x1x32x32xf32> to vector<32x32xf32>
    %cst_93 = arith.constant dense<0.000000e+00> : vector<32x256xf32>
    %82 = tpu.matmul %81, %71, %cst_93 {dimension_numbers = #tpu.dot_dimension_numbers<[1], [0], [0], [1], [0, 0, 1, 1], [], []>} : vector<32x32xf32>, vector<32x256xf32>, vector<32x256xf32> -> vector<32x256xf32>
    %c1_94 = arith.constant 1 : index
    %c0_95 = arith.constant 0 : index
    %c0_96 = arith.constant 0 : index
    %83 = vector.load %arg1[%c1_94, %c0_95, %c0_96] : memref<9x256x256xf32, #tpu.memory_space<vmem>>, vector<1x256x256xf32>
    %84 = vector.shape_cast %83 : vector<1x256x256xf32> to vector<256x256xf32>
    %cst_97 = arith.constant dense<0.000000e+00> : vector<32x256xf32>
    %85 = tpu.matmul %82, %84, %cst_97 {dimension_numbers = #tpu.dot_dimension_numbers<[1], [0], [0], [1], [0, 0, 1, 1], [], []>} : vector<32x256xf32>, vector<256x256xf32>, vector<32x256xf32> -> vector<32x256xf32>
    %86 = arith.addf %79, %85 : vector<32x256xf32>
    %c1_98 = arith.constant 1 : index
    %c2_99 = arith.constant 2 : index
    %c0_100 = arith.constant 0 : index
    %c0_101 = arith.constant 0 : index
    %87 = vector.load %arg2[%c1_98, %c2_99, %c0_100, %c0_101] : memref<4x9x32x32xf32, #tpu.memory_space<vmem>>, vector<1x1x32x32xf32>
    %88 = vector.shape_cast %87 : vector<1x1x32x32xf32> to vector<32x32xf32>
    %cst_102 = arith.constant dense<0.000000e+00> : vector<32x256xf32>
    %89 = tpu.matmul %88, %71, %cst_102 {dimension_numbers = #tpu.dot_dimension_numbers<[1], [0], [0], [1], [0, 0, 1, 1], [], []>} : vector<32x32xf32>, vector<32x256xf32>, vector<32x256xf32> -> vector<32x256xf32>
    %c2_103 = arith.constant 2 : index
    %c0_104 = arith.constant 0 : index
    %c0_105 = arith.constant 0 : index
    %90 = vector.load %arg1[%c2_103, %c0_104, %c0_105] : memref<9x256x256xf32, #tpu.memory_space<vmem>>, vector<1x256x256xf32>
    %91 = vector.shape_cast %90 : vector<1x256x256xf32> to vector<256x256xf32>
    %cst_106 = arith.constant dense<0.000000e+00> : vector<32x256xf32>
    %92 = tpu.matmul %89, %91, %cst_106 {dimension_numbers = #tpu.dot_dimension_numbers<[1], [0], [0], [1], [0, 0, 1, 1], [], []>} : vector<32x256xf32>, vector<256x256xf32>, vector<32x256xf32> -> vector<32x256xf32>
    %93 = arith.addf %86, %92 : vector<32x256xf32>
    %c1_107 = arith.constant 1 : index
    %c3_108 = arith.constant 3 : index
    %c0_109 = arith.constant 0 : index
    %c0_110 = arith.constant 0 : index
    %94 = vector.load %arg2[%c1_107, %c3_108, %c0_109, %c0_110] : memref<4x9x32x32xf32, #tpu.memory_space<vmem>>, vector<1x1x32x32xf32>
    %95 = vector.shape_cast %94 : vector<1x1x32x32xf32> to vector<32x32xf32>
    %cst_111 = arith.constant dense<0.000000e+00> : vector<32x256xf32>
    %96 = tpu.matmul %95, %71, %cst_111 {dimension_numbers = #tpu.dot_dimension_numbers<[1], [0], [0], [1], [0, 0, 1, 1], [], []>} : vector<32x32xf32>, vector<32x256xf32>, vector<32x256xf32> -> vector<32x256xf32>
    %c3_112 = arith.constant 3 : index
    %c0_113 = arith.constant 0 : index
    %c0_114 = arith.constant 0 : index
    %97 = vector.load %arg1[%c3_112, %c0_113, %c0_114] : memref<9x256x256xf32, #tpu.memory_space<vmem>>, vector<1x256x256xf32>
    %98 = vector.shape_cast %97 : vector<1x256x256xf32> to vector<256x256xf32>
    %cst_115 = arith.constant dense<0.000000e+00> : vector<32x256xf32>
    %99 = tpu.matmul %96, %98, %cst_115 {dimension_numbers = #tpu.dot_dimension_numbers<[1], [0], [0], [1], [0, 0, 1, 1], [], []>} : vector<32x256xf32>, vector<256x256xf32>, vector<32x256xf32> -> vector<32x256xf32>
    %100 = arith.addf %93, %99 : vector<32x256xf32>
    %c1_116 = arith.constant 1 : index
    %c4_117 = arith.constant 4 : index
    %c0_118 = arith.constant 0 : index
    %c0_119 = arith.constant 0 : index
    %101 = vector.load %arg2[%c1_116, %c4_117, %c0_118, %c0_119] : memref<4x9x32x32xf32, #tpu.memory_space<vmem>>, vector<1x1x32x32xf32>
    %102 = vector.shape_cast %101 : vector<1x1x32x32xf32> to vector<32x32xf32>
    %cst_120 = arith.constant dense<0.000000e+00> : vector<32x256xf32>
    %103 = tpu.matmul %102, %71, %cst_120 {dimension_numbers = #tpu.dot_dimension_numbers<[1], [0], [0], [1], [0, 0, 1, 1], [], []>} : vector<32x32xf32>, vector<32x256xf32>, vector<32x256xf32> -> vector<32x256xf32>
    %c4_121 = arith.constant 4 : index
    %c0_122 = arith.constant 0 : index
    %c0_123 = arith.constant 0 : index
    %104 = vector.load %arg1[%c4_121, %c0_122, %c0_123] : memref<9x256x256xf32, #tpu.memory_space<vmem>>, vector<1x256x256xf32>
    %105 = vector.shape_cast %104 : vector<1x256x256xf32> to vector<256x256xf32>
    %cst_124 = arith.constant dense<0.000000e+00> : vector<32x256xf32>
    %106 = tpu.matmul %103, %105, %cst_124 {dimension_numbers = #tpu.dot_dimension_numbers<[1], [0], [0], [1], [0, 0, 1, 1], [], []>} : vector<32x256xf32>, vector<256x256xf32>, vector<32x256xf32> -> vector<32x256xf32>
    %107 = arith.addf %100, %106 : vector<32x256xf32>
    %c1_125 = arith.constant 1 : index
    %c5_126 = arith.constant 5 : index
    %c0_127 = arith.constant 0 : index
    %c0_128 = arith.constant 0 : index
    %108 = vector.load %arg2[%c1_125, %c5_126, %c0_127, %c0_128] : memref<4x9x32x32xf32, #tpu.memory_space<vmem>>, vector<1x1x32x32xf32>
    %109 = vector.shape_cast %108 : vector<1x1x32x32xf32> to vector<32x32xf32>
    %cst_129 = arith.constant dense<0.000000e+00> : vector<32x256xf32>
    %110 = tpu.matmul %109, %71, %cst_129 {dimension_numbers = #tpu.dot_dimension_numbers<[1], [0], [0], [1], [0, 0, 1, 1], [], []>} : vector<32x32xf32>, vector<32x256xf32>, vector<32x256xf32> -> vector<32x256xf32>
    %c5_130 = arith.constant 5 : index
    %c0_131 = arith.constant 0 : index
    %c0_132 = arith.constant 0 : index
    %111 = vector.load %arg1[%c5_130, %c0_131, %c0_132] : memref<9x256x256xf32, #tpu.memory_space<vmem>>, vector<1x256x256xf32>
    %112 = vector.shape_cast %111 : vector<1x256x256xf32> to vector<256x256xf32>
    %cst_133 = arith.constant dense<0.000000e+00> : vector<32x256xf32>
    %113 = tpu.matmul %110, %112, %cst_133 {dimension_numbers = #tpu.dot_dimension_numbers<[1], [0], [0], [1], [0, 0, 1, 1], [], []>} : vector<32x256xf32>, vector<256x256xf32>, vector<32x256xf32> -> vector<32x256xf32>
    %114 = arith.addf %107, %113 : vector<32x256xf32>
    %c1_134 = arith.constant 1 : index
    %c6_135 = arith.constant 6 : index
    %c0_136 = arith.constant 0 : index
    %c0_137 = arith.constant 0 : index
    %115 = vector.load %arg2[%c1_134, %c6_135, %c0_136, %c0_137] : memref<4x9x32x32xf32, #tpu.memory_space<vmem>>, vector<1x1x32x32xf32>
    %116 = vector.shape_cast %115 : vector<1x1x32x32xf32> to vector<32x32xf32>
    %cst_138 = arith.constant dense<0.000000e+00> : vector<32x256xf32>
    %117 = tpu.matmul %116, %71, %cst_138 {dimension_numbers = #tpu.dot_dimension_numbers<[1], [0], [0], [1], [0, 0, 1, 1], [], []>} : vector<32x32xf32>, vector<32x256xf32>, vector<32x256xf32> -> vector<32x256xf32>
    %c6_139 = arith.constant 6 : index
    %c0_140 = arith.constant 0 : index
    %c0_141 = arith.constant 0 : index
    %118 = vector.load %arg1[%c6_139, %c0_140, %c0_141] : memref<9x256x256xf32, #tpu.memory_space<vmem>>, vector<1x256x256xf32>
    %119 = vector.shape_cast %118 : vector<1x256x256xf32> to vector<256x256xf32>
    %cst_142 = arith.constant dense<0.000000e+00> : vector<32x256xf32>
    %120 = tpu.matmul %117, %119, %cst_142 {dimension_numbers = #tpu.dot_dimension_numbers<[1], [0], [0], [1], [0, 0, 1, 1], [], []>} : vector<32x256xf32>, vector<256x256xf32>, vector<32x256xf32> -> vector<32x256xf32>
    %121 = arith.addf %114, %120 : vector<32x256xf32>
    %c1_143 = arith.constant 1 : index
    %c7_144 = arith.constant 7 : index
    %c0_145 = arith.constant 0 : index
    %c0_146 = arith.constant 0 : index
    %122 = vector.load %arg2[%c1_143, %c7_144, %c0_145, %c0_146] : memref<4x9x32x32xf32, #tpu.memory_space<vmem>>, vector<1x1x32x32xf32>
    %123 = vector.shape_cast %122 : vector<1x1x32x32xf32> to vector<32x32xf32>
    %cst_147 = arith.constant dense<0.000000e+00> : vector<32x256xf32>
    %124 = tpu.matmul %123, %71, %cst_147 {dimension_numbers = #tpu.dot_dimension_numbers<[1], [0], [0], [1], [0, 0, 1, 1], [], []>} : vector<32x32xf32>, vector<32x256xf32>, vector<32x256xf32> -> vector<32x256xf32>
    %c7_148 = arith.constant 7 : index
    %c0_149 = arith.constant 0 : index
    %c0_150 = arith.constant 0 : index
    %125 = vector.load %arg1[%c7_148, %c0_149, %c0_150] : memref<9x256x256xf32, #tpu.memory_space<vmem>>, vector<1x256x256xf32>
    %126 = vector.shape_cast %125 : vector<1x256x256xf32> to vector<256x256xf32>
    %cst_151 = arith.constant dense<0.000000e+00> : vector<32x256xf32>
    %127 = tpu.matmul %124, %126, %cst_151 {dimension_numbers = #tpu.dot_dimension_numbers<[1], [0], [0], [1], [0, 0, 1, 1], [], []>} : vector<32x256xf32>, vector<256x256xf32>, vector<32x256xf32> -> vector<32x256xf32>
    %128 = arith.addf %121, %127 : vector<32x256xf32>
    %c1_152 = arith.constant 1 : index
    %c8_153 = arith.constant 8 : index
    %c0_154 = arith.constant 0 : index
    %c0_155 = arith.constant 0 : index
    %129 = vector.load %arg2[%c1_152, %c8_153, %c0_154, %c0_155] : memref<4x9x32x32xf32, #tpu.memory_space<vmem>>, vector<1x1x32x32xf32>
    %130 = vector.shape_cast %129 : vector<1x1x32x32xf32> to vector<32x32xf32>
    %cst_156 = arith.constant dense<0.000000e+00> : vector<32x256xf32>
    %131 = tpu.matmul %130, %71, %cst_156 {dimension_numbers = #tpu.dot_dimension_numbers<[1], [0], [0], [1], [0, 0, 1, 1], [], []>} : vector<32x32xf32>, vector<32x256xf32>, vector<32x256xf32> -> vector<32x256xf32>
    %c8_157 = arith.constant 8 : index
    %c0_158 = arith.constant 0 : index
    %c0_159 = arith.constant 0 : index
    %132 = vector.load %arg1[%c8_157, %c0_158, %c0_159] : memref<9x256x256xf32, #tpu.memory_space<vmem>>, vector<1x256x256xf32>
    %133 = vector.shape_cast %132 : vector<1x256x256xf32> to vector<256x256xf32>
    %cst_160 = arith.constant dense<0.000000e+00> : vector<32x256xf32>
    %134 = tpu.matmul %131, %133, %cst_160 {dimension_numbers = #tpu.dot_dimension_numbers<[1], [0], [0], [1], [0, 0, 1, 1], [], []>} : vector<32x256xf32>, vector<256x256xf32>, vector<32x256xf32> -> vector<32x256xf32>
    %135 = arith.addf %128, %134 : vector<32x256xf32>
    %c1_161 = arith.constant 1 : index
    %c0_162 = arith.constant 0 : index
    %c0_163 = arith.constant 0 : index
    %136 = vector.load %arg3[%c1_161, %c0_162, %c0_163] : memref<4x32x1xf32, #tpu.memory_space<vmem>>, vector<1x32x1xf32>
    %137 = vector.shape_cast %136 : vector<1x32x1xf32> to vector<32x1xf32>
    %138 = vector.broadcast %137 : vector<32x1xf32> to vector<32x256xf32>
    %139 = arith.addf %135, %138 : vector<32x256xf32>
    %cst_164 = arith.constant 1.000000e-01 : f32
    %140 = vector.broadcast %cst_164 : f32 to vector<32x256xf32>
    %141 = arith.mulf %140, %139 : vector<32x256xf32>
    %142 = arith.addf %1, %141 : vector<32x256xf32>
    %c0_165 = arith.constant 0 : index
    %c0_166 = arith.constant 0 : index
    %c0_167 = arith.constant 0 : index
    %143 = vector.load %arg4[%c0_165, %c0_166, %c0_167] : memref<4x32x32xf32, #tpu.memory_space<vmem>>, vector<1x32x32xf32>
    %144 = vector.shape_cast %143 : vector<1x32x32xf32> to vector<32x32xf32>
    %cst_168 = arith.constant dense<0.000000e+00> : vector<32x256xf32>
    %145 = tpu.matmul %144, %142, %cst_168 {dimension_numbers = #tpu.dot_dimension_numbers<[1], [0], [0], [1], [0, 0, 1, 1], [], []>} : vector<32x32xf32>, vector<32x256xf32>, vector<32x256xf32> -> vector<32x256xf32>
    %c0_169 = arith.constant 0 : index
    %c0_170 = arith.constant 0 : index
    %c0_171 = arith.constant 0 : index
    %146 = vector.load %arg5[%c0_169, %c0_170, %c0_171] : memref<4x32x1xf32, #tpu.memory_space<vmem>>, vector<1x32x1xf32>
    %147 = vector.shape_cast %146 : vector<1x32x1xf32> to vector<32x1xf32>
    %148 = vector.broadcast %147 : vector<32x1xf32> to vector<32x256xf32>
    %149 = arith.addf %145, %148 : vector<32x256xf32>
    %cst_172 = arith.constant 0.000000e+00 : f32
    %150 = vector.broadcast %cst_172 : f32 to vector<32x256xf32>
    %151 = arith.maximumf %149, %150 : vector<32x256xf32>
    %c1_173 = arith.constant 1 : index
    %c0_174 = arith.constant 0 : index
    %c0_175 = arith.constant 0 : index
    %152 = vector.load %arg4[%c1_173, %c0_174, %c0_175] : memref<4x32x32xf32, #tpu.memory_space<vmem>>, vector<1x32x32xf32>
    %153 = vector.shape_cast %152 : vector<1x32x32xf32> to vector<32x32xf32>
    %cst_176 = arith.constant dense<0.000000e+00> : vector<32x256xf32>
    %154 = tpu.matmul %153, %151, %cst_176 {dimension_numbers = #tpu.dot_dimension_numbers<[1], [0], [0], [1], [0, 0, 1, 1], [], []>} : vector<32x32xf32>, vector<32x256xf32>, vector<32x256xf32> -> vector<32x256xf32>
    %c1_177 = arith.constant 1 : index
    %c0_178 = arith.constant 0 : index
    %c0_179 = arith.constant 0 : index
    %155 = vector.load %arg5[%c1_177, %c0_178, %c0_179] : memref<4x32x1xf32, #tpu.memory_space<vmem>>, vector<1x32x1xf32>
    %156 = vector.shape_cast %155 : vector<1x32x1xf32> to vector<32x1xf32>
    %157 = vector.broadcast %156 : vector<32x1xf32> to vector<32x256xf32>
    %158 = arith.addf %154, %157 : vector<32x256xf32>
    %c0_180 = arith.constant 0 : index
    %c0_181 = arith.constant 0 : index
    %c0_182 = arith.constant 0 : index
    %159 = vector.load %arg6[%c0_180, %c0_181, %c0_182] : memref<2x8x32xf32, #tpu.memory_space<vmem>>, vector<1x8x32xf32>
    %160 = vector.shape_cast %159 : vector<1x8x32xf32> to vector<8x32xf32>
    %cst_183 = arith.constant dense<0.000000e+00> : vector<8x256xf32>
    %161 = tpu.matmul %160, %158, %cst_183 {dimension_numbers = #tpu.dot_dimension_numbers<[1], [0], [0], [1], [0, 0, 1, 1], [], []>} : vector<8x32xf32>, vector<32x256xf32>, vector<8x256xf32> -> vector<8x256xf32>
    %cst_184 = arith.constant dense<0.000000e+00> : vector<8xf32>
    %162 = vector.multi_reduction <add>, %161, %cst_184 [1] : vector<8x256xf32> to vector<8xf32>
    %163 = vector.shape_cast %162 : vector<8xf32> to vector<8x1xf32>
    %cst_185 = arith.constant 2.560000e+02 : f32
    %164 = vector.broadcast %cst_185 : f32 to vector<8x1xf32>
    %165 = arith.divf %163, %164 : vector<8x1xf32>
    %c0_186 = arith.constant 0 : index
    %c0_187 = arith.constant 0 : index
    %c0_188 = arith.constant 0 : index
    %166 = vector.load %arg7[%c0_186, %c0_187, %c0_188] : memref<2x8x1xf32, #tpu.memory_space<vmem>>, vector<1x8x1xf32>
    %167 = vector.shape_cast %166 : vector<1x8x1xf32> to vector<8x1xf32>
    %168 = arith.addf %165, %167 : vector<8x1xf32>
    %cst_189 = arith.constant 0.000000e+00 : f32
    %169 = vector.broadcast %cst_189 : f32 to vector<8x1xf32>
    %170 = arith.maximumf %168, %169 : vector<8x1xf32>
    %c0_190 = arith.constant 0 : index
    %c0_191 = arith.constant 0 : index
    %c0_192 = arith.constant 0 : index
    %171 = vector.load %arg8[%c0_190, %c0_191, %c0_192] : memref<2x32x8xf32, #tpu.memory_space<vmem>>, vector<1x32x8xf32>
    %172 = vector.shape_cast %171 : vector<1x32x8xf32> to vector<32x8xf32>
    %173 = vector.shape_cast %170 : vector<8x1xf32> to vector<8x1xf32>
    %174 = vector.broadcast %173 : vector<8x1xf32> to vector<8x256xf32>
    %cst_193 = arith.constant dense<0.000000e+00> : vector<32x256xf32>
    %175 = tpu.matmul %172, %174, %cst_193 {dimension_numbers = #tpu.dot_dimension_numbers<[1], [0], [0], [1], [0, 0, 1, 1], [], []>} : vector<32x8xf32>, vector<8x256xf32>, vector<32x256xf32> -> vector<32x256xf32>
    %c0_194 = arith.constant 0 : index
    %c0_195 = arith.constant 0 : index
    %c0_196 = arith.constant 0 : index
    %176 = vector.load %arg9[%c0_194, %c0_195, %c0_196] : memref<2x32x1xf32, #tpu.memory_space<vmem>>, vector<1x32x1xf32>
    %177 = vector.shape_cast %176 : vector<1x32x1xf32> to vector<32x1xf32>
    %178 = vector.broadcast %177 : vector<32x1xf32> to vector<32x256xf32>
    %179 = arith.addf %175, %178 : vector<32x256xf32>
    %cst_197 = arith.constant 0.000000e+00 : f32
    %180 = vector.broadcast %cst_197 : f32 to vector<32x256xf32>
    %181 = arith.subf %180, %179 : vector<32x256xf32>
    %182 = math.exp %181 : vector<32x256xf32>
    %cst_198 = arith.constant 1.000000e+00 : f32
    %183 = vector.broadcast %cst_198 : f32 to vector<32x256xf32>
    %184 = arith.addf %183, %182 : vector<32x256xf32>
    %cst_199 = arith.constant 1.000000e+00 : f32
    %185 = vector.broadcast %cst_199 : f32 to vector<32x256xf32>
    %186 = arith.divf %185, %184 : vector<32x256xf32>
    %187 = arith.mulf %158, %186 : vector<32x256xf32>
    %cst_200 = arith.constant 1.000000e-01 : f32
    %188 = vector.broadcast %cst_200 : f32 to vector<32x256xf32>
    %189 = arith.mulf %188, %187 : vector<32x256xf32>
    %190 = arith.addf %142, %189 : vector<32x256xf32>
    %cst_201 = arith.constant 0.000000e+00 : f32
    %191 = vector.broadcast %cst_201 : f32 to vector<32x256xf32>
    %c2_202 = arith.constant 2 : index
    %c0_203 = arith.constant 0 : index
    %c0_204 = arith.constant 0 : index
    %c0_205 = arith.constant 0 : index
    %192 = vector.load %arg2[%c2_202, %c0_203, %c0_204, %c0_205] : memref<4x9x32x32xf32, #tpu.memory_space<vmem>>, vector<1x1x32x32xf32>
    %193 = vector.shape_cast %192 : vector<1x1x32x32xf32> to vector<32x32xf32>
    %cst_206 = arith.constant dense<0.000000e+00> : vector<32x256xf32>
    %194 = tpu.matmul %193, %190, %cst_206 {dimension_numbers = #tpu.dot_dimension_numbers<[1], [0], [0], [1], [0, 0, 1, 1], [], []>} : vector<32x32xf32>, vector<32x256xf32>, vector<32x256xf32> -> vector<32x256xf32>
    %c0_207 = arith.constant 0 : index
    %c0_208 = arith.constant 0 : index
    %c0_209 = arith.constant 0 : index
    %195 = vector.load %arg1[%c0_207, %c0_208, %c0_209] : memref<9x256x256xf32, #tpu.memory_space<vmem>>, vector<1x256x256xf32>
    %196 = vector.shape_cast %195 : vector<1x256x256xf32> to vector<256x256xf32>
    %cst_210 = arith.constant dense<0.000000e+00> : vector<32x256xf32>
    %197 = tpu.matmul %194, %196, %cst_210 {dimension_numbers = #tpu.dot_dimension_numbers<[1], [0], [0], [1], [0, 0, 1, 1], [], []>} : vector<32x256xf32>, vector<256x256xf32>, vector<32x256xf32> -> vector<32x256xf32>
    %198 = arith.addf %191, %197 : vector<32x256xf32>
    %c2_211 = arith.constant 2 : index
    %c1_212 = arith.constant 1 : index
    %c0_213 = arith.constant 0 : index
    %c0_214 = arith.constant 0 : index
    %199 = vector.load %arg2[%c2_211, %c1_212, %c0_213, %c0_214] : memref<4x9x32x32xf32, #tpu.memory_space<vmem>>, vector<1x1x32x32xf32>
    %200 = vector.shape_cast %199 : vector<1x1x32x32xf32> to vector<32x32xf32>
    %cst_215 = arith.constant dense<0.000000e+00> : vector<32x256xf32>
    %201 = tpu.matmul %200, %190, %cst_215 {dimension_numbers = #tpu.dot_dimension_numbers<[1], [0], [0], [1], [0, 0, 1, 1], [], []>} : vector<32x32xf32>, vector<32x256xf32>, vector<32x256xf32> -> vector<32x256xf32>
    %c1_216 = arith.constant 1 : index
    %c0_217 = arith.constant 0 : index
    %c0_218 = arith.constant 0 : index
    %202 = vector.load %arg1[%c1_216, %c0_217, %c0_218] : memref<9x256x256xf32, #tpu.memory_space<vmem>>, vector<1x256x256xf32>
    %203 = vector.shape_cast %202 : vector<1x256x256xf32> to vector<256x256xf32>
    %cst_219 = arith.constant dense<0.000000e+00> : vector<32x256xf32>
    %204 = tpu.matmul %201, %203, %cst_219 {dimension_numbers = #tpu.dot_dimension_numbers<[1], [0], [0], [1], [0, 0, 1, 1], [], []>} : vector<32x256xf32>, vector<256x256xf32>, vector<32x256xf32> -> vector<32x256xf32>
    %205 = arith.addf %198, %204 : vector<32x256xf32>
    %c2_220 = arith.constant 2 : index
    %c2_221 = arith.constant 2 : index
    %c0_222 = arith.constant 0 : index
    %c0_223 = arith.constant 0 : index
    %206 = vector.load %arg2[%c2_220, %c2_221, %c0_222, %c0_223] : memref<4x9x32x32xf32, #tpu.memory_space<vmem>>, vector<1x1x32x32xf32>
    %207 = vector.shape_cast %206 : vector<1x1x32x32xf32> to vector<32x32xf32>
    %cst_224 = arith.constant dense<0.000000e+00> : vector<32x256xf32>
    %208 = tpu.matmul %207, %190, %cst_224 {dimension_numbers = #tpu.dot_dimension_numbers<[1], [0], [0], [1], [0, 0, 1, 1], [], []>} : vector<32x32xf32>, vector<32x256xf32>, vector<32x256xf32> -> vector<32x256xf32>
    %c2_225 = arith.constant 2 : index
    %c0_226 = arith.constant 0 : index
    %c0_227 = arith.constant 0 : index
    %209 = vector.load %arg1[%c2_225, %c0_226, %c0_227] : memref<9x256x256xf32, #tpu.memory_space<vmem>>, vector<1x256x256xf32>
    %210 = vector.shape_cast %209 : vector<1x256x256xf32> to vector<256x256xf32>
    %cst_228 = arith.constant dense<0.000000e+00> : vector<32x256xf32>
    %211 = tpu.matmul %208, %210, %cst_228 {dimension_numbers = #tpu.dot_dimension_numbers<[1], [0], [0], [1], [0, 0, 1, 1], [], []>} : vector<32x256xf32>, vector<256x256xf32>, vector<32x256xf32> -> vector<32x256xf32>
    %212 = arith.addf %205, %211 : vector<32x256xf32>
    %c2_229 = arith.constant 2 : index
    %c3_230 = arith.constant 3 : index
    %c0_231 = arith.constant 0 : index
    %c0_232 = arith.constant 0 : index
    %213 = vector.load %arg2[%c2_229, %c3_230, %c0_231, %c0_232] : memref<4x9x32x32xf32, #tpu.memory_space<vmem>>, vector<1x1x32x32xf32>
    %214 = vector.shape_cast %213 : vector<1x1x32x32xf32> to vector<32x32xf32>
    %cst_233 = arith.constant dense<0.000000e+00> : vector<32x256xf32>
    %215 = tpu.matmul %214, %190, %cst_233 {dimension_numbers = #tpu.dot_dimension_numbers<[1], [0], [0], [1], [0, 0, 1, 1], [], []>} : vector<32x32xf32>, vector<32x256xf32>, vector<32x256xf32> -> vector<32x256xf32>
    %c3_234 = arith.constant 3 : index
    %c0_235 = arith.constant 0 : index
    %c0_236 = arith.constant 0 : index
    %216 = vector.load %arg1[%c3_234, %c0_235, %c0_236] : memref<9x256x256xf32, #tpu.memory_space<vmem>>, vector<1x256x256xf32>
    %217 = vector.shape_cast %216 : vector<1x256x256xf32> to vector<256x256xf32>
    %cst_237 = arith.constant dense<0.000000e+00> : vector<32x256xf32>
    %218 = tpu.matmul %215, %217, %cst_237 {dimension_numbers = #tpu.dot_dimension_numbers<[1], [0], [0], [1], [0, 0, 1, 1], [], []>} : vector<32x256xf32>, vector<256x256xf32>, vector<32x256xf32> -> vector<32x256xf32>
    %219 = arith.addf %212, %218 : vector<32x256xf32>
    %c2_238 = arith.constant 2 : index
    %c4_239 = arith.constant 4 : index
    %c0_240 = arith.constant 0 : index
    %c0_241 = arith.constant 0 : index
    %220 = vector.load %arg2[%c2_238, %c4_239, %c0_240, %c0_241] : memref<4x9x32x32xf32, #tpu.memory_space<vmem>>, vector<1x1x32x32xf32>
    %221 = vector.shape_cast %220 : vector<1x1x32x32xf32> to vector<32x32xf32>
    %cst_242 = arith.constant dense<0.000000e+00> : vector<32x256xf32>
    %222 = tpu.matmul %221, %190, %cst_242 {dimension_numbers = #tpu.dot_dimension_numbers<[1], [0], [0], [1], [0, 0, 1, 1], [], []>} : vector<32x32xf32>, vector<32x256xf32>, vector<32x256xf32> -> vector<32x256xf32>
    %c4_243 = arith.constant 4 : index
    %c0_244 = arith.constant 0 : index
    %c0_245 = arith.constant 0 : index
    %223 = vector.load %arg1[%c4_243, %c0_244, %c0_245] : memref<9x256x256xf32, #tpu.memory_space<vmem>>, vector<1x256x256xf32>
    %224 = vector.shape_cast %223 : vector<1x256x256xf32> to vector<256x256xf32>
    %cst_246 = arith.constant dense<0.000000e+00> : vector<32x256xf32>
    %225 = tpu.matmul %222, %224, %cst_246 {dimension_numbers = #tpu.dot_dimension_numbers<[1], [0], [0], [1], [0, 0, 1, 1], [], []>} : vector<32x256xf32>, vector<256x256xf32>, vector<32x256xf32> -> vector<32x256xf32>
    %226 = arith.addf %219, %225 : vector<32x256xf32>
    %c2_247 = arith.constant 2 : index
    %c5_248 = arith.constant 5 : index
    %c0_249 = arith.constant 0 : index
    %c0_250 = arith.constant 0 : index
    %227 = vector.load %arg2[%c2_247, %c5_248, %c0_249, %c0_250] : memref<4x9x32x32xf32, #tpu.memory_space<vmem>>, vector<1x1x32x32xf32>
    %228 = vector.shape_cast %227 : vector<1x1x32x32xf32> to vector<32x32xf32>
    %cst_251 = arith.constant dense<0.000000e+00> : vector<32x256xf32>
    %229 = tpu.matmul %228, %190, %cst_251 {dimension_numbers = #tpu.dot_dimension_numbers<[1], [0], [0], [1], [0, 0, 1, 1], [], []>} : vector<32x32xf32>, vector<32x256xf32>, vector<32x256xf32> -> vector<32x256xf32>
    %c5_252 = arith.constant 5 : index
    %c0_253 = arith.constant 0 : index
    %c0_254 = arith.constant 0 : index
    %230 = vector.load %arg1[%c5_252, %c0_253, %c0_254] : memref<9x256x256xf32, #tpu.memory_space<vmem>>, vector<1x256x256xf32>
    %231 = vector.shape_cast %230 : vector<1x256x256xf32> to vector<256x256xf32>
    %cst_255 = arith.constant dense<0.000000e+00> : vector<32x256xf32>
    %232 = tpu.matmul %229, %231, %cst_255 {dimension_numbers = #tpu.dot_dimension_numbers<[1], [0], [0], [1], [0, 0, 1, 1], [], []>} : vector<32x256xf32>, vector<256x256xf32>, vector<32x256xf32> -> vector<32x256xf32>
    %233 = arith.addf %226, %232 : vector<32x256xf32>
    %c2_256 = arith.constant 2 : index
    %c6_257 = arith.constant 6 : index
    %c0_258 = arith.constant 0 : index
    %c0_259 = arith.constant 0 : index
    %234 = vector.load %arg2[%c2_256, %c6_257, %c0_258, %c0_259] : memref<4x9x32x32xf32, #tpu.memory_space<vmem>>, vector<1x1x32x32xf32>
    %235 = vector.shape_cast %234 : vector<1x1x32x32xf32> to vector<32x32xf32>
    %cst_260 = arith.constant dense<0.000000e+00> : vector<32x256xf32>
    %236 = tpu.matmul %235, %190, %cst_260 {dimension_numbers = #tpu.dot_dimension_numbers<[1], [0], [0], [1], [0, 0, 1, 1], [], []>} : vector<32x32xf32>, vector<32x256xf32>, vector<32x256xf32> -> vector<32x256xf32>
    %c6_261 = arith.constant 6 : index
    %c0_262 = arith.constant 0 : index
    %c0_263 = arith.constant 0 : index
    %237 = vector.load %arg1[%c6_261, %c0_262, %c0_263] : memref<9x256x256xf32, #tpu.memory_space<vmem>>, vector<1x256x256xf32>
    %238 = vector.shape_cast %237 : vector<1x256x256xf32> to vector<256x256xf32>
    %cst_264 = arith.constant dense<0.000000e+00> : vector<32x256xf32>
    %239 = tpu.matmul %236, %238, %cst_264 {dimension_numbers = #tpu.dot_dimension_numbers<[1], [0], [0], [1], [0, 0, 1, 1], [], []>} : vector<32x256xf32>, vector<256x256xf32>, vector<32x256xf32> -> vector<32x256xf32>
    %240 = arith.addf %233, %239 : vector<32x256xf32>
    %c2_265 = arith.constant 2 : index
    %c7_266 = arith.constant 7 : index
    %c0_267 = arith.constant 0 : index
    %c0_268 = arith.constant 0 : index
    %241 = vector.load %arg2[%c2_265, %c7_266, %c0_267, %c0_268] : memref<4x9x32x32xf32, #tpu.memory_space<vmem>>, vector<1x1x32x32xf32>
    %242 = vector.shape_cast %241 : vector<1x1x32x32xf32> to vector<32x32xf32>
    %cst_269 = arith.constant dense<0.000000e+00> : vector<32x256xf32>
    %243 = tpu.matmul %242, %190, %cst_269 {dimension_numbers = #tpu.dot_dimension_numbers<[1], [0], [0], [1], [0, 0, 1, 1], [], []>} : vector<32x32xf32>, vector<32x256xf32>, vector<32x256xf32> -> vector<32x256xf32>
    %c7_270 = arith.constant 7 : index
    %c0_271 = arith.constant 0 : index
    %c0_272 = arith.constant 0 : index
    %244 = vector.load %arg1[%c7_270, %c0_271, %c0_272] : memref<9x256x256xf32, #tpu.memory_space<vmem>>, vector<1x256x256xf32>
    %245 = vector.shape_cast %244 : vector<1x256x256xf32> to vector<256x256xf32>
    %cst_273 = arith.constant dense<0.000000e+00> : vector<32x256xf32>
    %246 = tpu.matmul %243, %245, %cst_273 {dimension_numbers = #tpu.dot_dimension_numbers<[1], [0], [0], [1], [0, 0, 1, 1], [], []>} : vector<32x256xf32>, vector<256x256xf32>, vector<32x256xf32> -> vector<32x256xf32>
    %247 = arith.addf %240, %246 : vector<32x256xf32>
    %c2_274 = arith.constant 2 : index
    %c8_275 = arith.constant 8 : index
    %c0_276 = arith.constant 0 : index
    %c0_277 = arith.constant 0 : index
    %248 = vector.load %arg2[%c2_274, %c8_275, %c0_276, %c0_277] : memref<4x9x32x32xf32, #tpu.memory_space<vmem>>, vector<1x1x32x32xf32>
    %249 = vector.shape_cast %248 : vector<1x1x32x32xf32> to vector<32x32xf32>
    %cst_278 = arith.constant dense<0.000000e+00> : vector<32x256xf32>
    %250 = tpu.matmul %249, %190, %cst_278 {dimension_numbers = #tpu.dot_dimension_numbers<[1], [0], [0], [1], [0, 0, 1, 1], [], []>} : vector<32x32xf32>, vector<32x256xf32>, vector<32x256xf32> -> vector<32x256xf32>
    %c8_279 = arith.constant 8 : index
    %c0_280 = arith.constant 0 : index
    %c0_281 = arith.constant 0 : index
    %251 = vector.load %arg1[%c8_279, %c0_280, %c0_281] : memref<9x256x256xf32, #tpu.memory_space<vmem>>, vector<1x256x256xf32>
    %252 = vector.shape_cast %251 : vector<1x256x256xf32> to vector<256x256xf32>
    %cst_282 = arith.constant dense<0.000000e+00> : vector<32x256xf32>
    %253 = tpu.matmul %250, %252, %cst_282 {dimension_numbers = #tpu.dot_dimension_numbers<[1], [0], [0], [1], [0, 0, 1, 1], [], []>} : vector<32x256xf32>, vector<256x256xf32>, vector<32x256xf32> -> vector<32x256xf32>
    %254 = arith.addf %247, %253 : vector<32x256xf32>
    %c2_283 = arith.constant 2 : index
    %c0_284 = arith.constant 0 : index
    %c0_285 = arith.constant 0 : index
    %255 = vector.load %arg3[%c2_283, %c0_284, %c0_285] : memref<4x32x1xf32, #tpu.memory_space<vmem>>, vector<1x32x1xf32>
    %256 = vector.shape_cast %255 : vector<1x32x1xf32> to vector<32x1xf32>
    %257 = vector.broadcast %256 : vector<32x1xf32> to vector<32x256xf32>
    %258 = arith.addf %254, %257 : vector<32x256xf32>
    %cst_286 = arith.constant 0.000000e+00 : f32
    %259 = vector.broadcast %cst_286 : f32 to vector<32x256xf32>
    %260 = arith.maximumf %258, %259 : vector<32x256xf32>
    %cst_287 = arith.constant 0.000000e+00 : f32
    %261 = vector.broadcast %cst_287 : f32 to vector<32x256xf32>
    %c3_288 = arith.constant 3 : index
    %c0_289 = arith.constant 0 : index
    %c0_290 = arith.constant 0 : index
    %c0_291 = arith.constant 0 : index
    %262 = vector.load %arg2[%c3_288, %c0_289, %c0_290, %c0_291] : memref<4x9x32x32xf32, #tpu.memory_space<vmem>>, vector<1x1x32x32xf32>
    %263 = vector.shape_cast %262 : vector<1x1x32x32xf32> to vector<32x32xf32>
    %cst_292 = arith.constant dense<0.000000e+00> : vector<32x256xf32>
    %264 = tpu.matmul %263, %260, %cst_292 {dimension_numbers = #tpu.dot_dimension_numbers<[1], [0], [0], [1], [0, 0, 1, 1], [], []>} : vector<32x32xf32>, vector<32x256xf32>, vector<32x256xf32> -> vector<32x256xf32>
    %c0_293 = arith.constant 0 : index
    %c0_294 = arith.constant 0 : index
    %c0_295 = arith.constant 0 : index
    %265 = vector.load %arg1[%c0_293, %c0_294, %c0_295] : memref<9x256x256xf32, #tpu.memory_space<vmem>>, vector<1x256x256xf32>
    %266 = vector.shape_cast %265 : vector<1x256x256xf32> to vector<256x256xf32>
    %cst_296 = arith.constant dense<0.000000e+00> : vector<32x256xf32>
    %267 = tpu.matmul %264, %266, %cst_296 {dimension_numbers = #tpu.dot_dimension_numbers<[1], [0], [0], [1], [0, 0, 1, 1], [], []>} : vector<32x256xf32>, vector<256x256xf32>, vector<32x256xf32> -> vector<32x256xf32>
    %268 = arith.addf %261, %267 : vector<32x256xf32>
    %c3_297 = arith.constant 3 : index
    %c1_298 = arith.constant 1 : index
    %c0_299 = arith.constant 0 : index
    %c0_300 = arith.constant 0 : index
    %269 = vector.load %arg2[%c3_297, %c1_298, %c0_299, %c0_300] : memref<4x9x32x32xf32, #tpu.memory_space<vmem>>, vector<1x1x32x32xf32>
    %270 = vector.shape_cast %269 : vector<1x1x32x32xf32> to vector<32x32xf32>
    %cst_301 = arith.constant dense<0.000000e+00> : vector<32x256xf32>
    %271 = tpu.matmul %270, %260, %cst_301 {dimension_numbers = #tpu.dot_dimension_numbers<[1], [0], [0], [1], [0, 0, 1, 1], [], []>} : vector<32x32xf32>, vector<32x256xf32>, vector<32x256xf32> -> vector<32x256xf32>
    %c1_302 = arith.constant 1 : index
    %c0_303 = arith.constant 0 : index
    %c0_304 = arith.constant 0 : index
    %272 = vector.load %arg1[%c1_302, %c0_303, %c0_304] : memref<9x256x256xf32, #tpu.memory_space<vmem>>, vector<1x256x256xf32>
    %273 = vector.shape_cast %272 : vector<1x256x256xf32> to vector<256x256xf32>
    %cst_305 = arith.constant dense<0.000000e+00> : vector<32x256xf32>
    %274 = tpu.matmul %271, %273, %cst_305 {dimension_numbers = #tpu.dot_dimension_numbers<[1], [0], [0], [1], [0, 0, 1, 1], [], []>} : vector<32x256xf32>, vector<256x256xf32>, vector<32x256xf32> -> vector<32x256xf32>
    %275 = arith.addf %268, %274 : vector<32x256xf32>
    %c3_306 = arith.constant 3 : index
    %c2_307 = arith.constant 2 : index
    %c0_308 = arith.constant 0 : index
    %c0_309 = arith.constant 0 : index
    %276 = vector.load %arg2[%c3_306, %c2_307, %c0_308, %c0_309] : memref<4x9x32x32xf32, #tpu.memory_space<vmem>>, vector<1x1x32x32xf32>
    %277 = vector.shape_cast %276 : vector<1x1x32x32xf32> to vector<32x32xf32>
    %cst_310 = arith.constant dense<0.000000e+00> : vector<32x256xf32>
    %278 = tpu.matmul %277, %260, %cst_310 {dimension_numbers = #tpu.dot_dimension_numbers<[1], [0], [0], [1], [0, 0, 1, 1], [], []>} : vector<32x32xf32>, vector<32x256xf32>, vector<32x256xf32> -> vector<32x256xf32>
    %c2_311 = arith.constant 2 : index
    %c0_312 = arith.constant 0 : index
    %c0_313 = arith.constant 0 : index
    %279 = vector.load %arg1[%c2_311, %c0_312, %c0_313] : memref<9x256x256xf32, #tpu.memory_space<vmem>>, vector<1x256x256xf32>
    %280 = vector.shape_cast %279 : vector<1x256x256xf32> to vector<256x256xf32>
    %cst_314 = arith.constant dense<0.000000e+00> : vector<32x256xf32>
    %281 = tpu.matmul %278, %280, %cst_314 {dimension_numbers = #tpu.dot_dimension_numbers<[1], [0], [0], [1], [0, 0, 1, 1], [], []>} : vector<32x256xf32>, vector<256x256xf32>, vector<32x256xf32> -> vector<32x256xf32>
    %282 = arith.addf %275, %281 : vector<32x256xf32>
    %c3_315 = arith.constant 3 : index
    %c3_316 = arith.constant 3 : index
    %c0_317 = arith.constant 0 : index
    %c0_318 = arith.constant 0 : index
    %283 = vector.load %arg2[%c3_315, %c3_316, %c0_317, %c0_318] : memref<4x9x32x32xf32, #tpu.memory_space<vmem>>, vector<1x1x32x32xf32>
    %284 = vector.shape_cast %283 : vector<1x1x32x32xf32> to vector<32x32xf32>
    %cst_319 = arith.constant dense<0.000000e+00> : vector<32x256xf32>
    %285 = tpu.matmul %284, %260, %cst_319 {dimension_numbers = #tpu.dot_dimension_numbers<[1], [0], [0], [1], [0, 0, 1, 1], [], []>} : vector<32x32xf32>, vector<32x256xf32>, vector<32x256xf32> -> vector<32x256xf32>
    %c3_320 = arith.constant 3 : index
    %c0_321 = arith.constant 0 : index
    %c0_322 = arith.constant 0 : index
    %286 = vector.load %arg1[%c3_320, %c0_321, %c0_322] : memref<9x256x256xf32, #tpu.memory_space<vmem>>, vector<1x256x256xf32>
    %287 = vector.shape_cast %286 : vector<1x256x256xf32> to vector<256x256xf32>
    %cst_323 = arith.constant dense<0.000000e+00> : vector<32x256xf32>
    %288 = tpu.matmul %285, %287, %cst_323 {dimension_numbers = #tpu.dot_dimension_numbers<[1], [0], [0], [1], [0, 0, 1, 1], [], []>} : vector<32x256xf32>, vector<256x256xf32>, vector<32x256xf32> -> vector<32x256xf32>
    %289 = arith.addf %282, %288 : vector<32x256xf32>
    %c3_324 = arith.constant 3 : index
    %c4_325 = arith.constant 4 : index
    %c0_326 = arith.constant 0 : index
    %c0_327 = arith.constant 0 : index
    %290 = vector.load %arg2[%c3_324, %c4_325, %c0_326, %c0_327] : memref<4x9x32x32xf32, #tpu.memory_space<vmem>>, vector<1x1x32x32xf32>
    %291 = vector.shape_cast %290 : vector<1x1x32x32xf32> to vector<32x32xf32>
    %cst_328 = arith.constant dense<0.000000e+00> : vector<32x256xf32>
    %292 = tpu.matmul %291, %260, %cst_328 {dimension_numbers = #tpu.dot_dimension_numbers<[1], [0], [0], [1], [0, 0, 1, 1], [], []>} : vector<32x32xf32>, vector<32x256xf32>, vector<32x256xf32> -> vector<32x256xf32>
    %c4_329 = arith.constant 4 : index
    %c0_330 = arith.constant 0 : index
    %c0_331 = arith.constant 0 : index
    %293 = vector.load %arg1[%c4_329, %c0_330, %c0_331] : memref<9x256x256xf32, #tpu.memory_space<vmem>>, vector<1x256x256xf32>
    %294 = vector.shape_cast %293 : vector<1x256x256xf32> to vector<256x256xf32>
    %cst_332 = arith.constant dense<0.000000e+00> : vector<32x256xf32>
    %295 = tpu.matmul %292, %294, %cst_332 {dimension_numbers = #tpu.dot_dimension_numbers<[1], [0], [0], [1], [0, 0, 1, 1], [], []>} : vector<32x256xf32>, vector<256x256xf32>, vector<32x256xf32> -> vector<32x256xf32>
    %296 = arith.addf %289, %295 : vector<32x256xf32>
    %c3_333 = arith.constant 3 : index
    %c5_334 = arith.constant 5 : index
    %c0_335 = arith.constant 0 : index
    %c0_336 = arith.constant 0 : index
    %297 = vector.load %arg2[%c3_333, %c5_334, %c0_335, %c0_336] : memref<4x9x32x32xf32, #tpu.memory_space<vmem>>, vector<1x1x32x32xf32>
    %298 = vector.shape_cast %297 : vector<1x1x32x32xf32> to vector<32x32xf32>
    %cst_337 = arith.constant dense<0.000000e+00> : vector<32x256xf32>
    %299 = tpu.matmul %298, %260, %cst_337 {dimension_numbers = #tpu.dot_dimension_numbers<[1], [0], [0], [1], [0, 0, 1, 1], [], []>} : vector<32x32xf32>, vector<32x256xf32>, vector<32x256xf32> -> vector<32x256xf32>
    %c5_338 = arith.constant 5 : index
    %c0_339 = arith.constant 0 : index
    %c0_340 = arith.constant 0 : index
    %300 = vector.load %arg1[%c5_338, %c0_339, %c0_340] : memref<9x256x256xf32, #tpu.memory_space<vmem>>, vector<1x256x256xf32>
    %301 = vector.shape_cast %300 : vector<1x256x256xf32> to vector<256x256xf32>
    %cst_341 = arith.constant dense<0.000000e+00> : vector<32x256xf32>
    %302 = tpu.matmul %299, %301, %cst_341 {dimension_numbers = #tpu.dot_dimension_numbers<[1], [0], [0], [1], [0, 0, 1, 1], [], []>} : vector<32x256xf32>, vector<256x256xf32>, vector<32x256xf32> -> vector<32x256xf32>
    %303 = arith.addf %296, %302 : vector<32x256xf32>
    %c3_342 = arith.constant 3 : index
    %c6_343 = arith.constant 6 : index
    %c0_344 = arith.constant 0 : index
    %c0_345 = arith.constant 0 : index
    %304 = vector.load %arg2[%c3_342, %c6_343, %c0_344, %c0_345] : memref<4x9x32x32xf32, #tpu.memory_space<vmem>>, vector<1x1x32x32xf32>
    %305 = vector.shape_cast %304 : vector<1x1x32x32xf32> to vector<32x32xf32>
    %cst_346 = arith.constant dense<0.000000e+00> : vector<32x256xf32>
    %306 = tpu.matmul %305, %260, %cst_346 {dimension_numbers = #tpu.dot_dimension_numbers<[1], [0], [0], [1], [0, 0, 1, 1], [], []>} : vector<32x32xf32>, vector<32x256xf32>, vector<32x256xf32> -> vector<32x256xf32>
    %c6_347 = arith.constant 6 : index
    %c0_348 = arith.constant 0 : index
    %c0_349 = arith.constant 0 : index
    %307 = vector.load %arg1[%c6_347, %c0_348, %c0_349] : memref<9x256x256xf32, #tpu.memory_space<vmem>>, vector<1x256x256xf32>
    %308 = vector.shape_cast %307 : vector<1x256x256xf32> to vector<256x256xf32>
    %cst_350 = arith.constant dense<0.000000e+00> : vector<32x256xf32>
    %309 = tpu.matmul %306, %308, %cst_350 {dimension_numbers = #tpu.dot_dimension_numbers<[1], [0], [0], [1], [0, 0, 1, 1], [], []>} : vector<32x256xf32>, vector<256x256xf32>, vector<32x256xf32> -> vector<32x256xf32>
    %310 = arith.addf %303, %309 : vector<32x256xf32>
    %c3_351 = arith.constant 3 : index
    %c7_352 = arith.constant 7 : index
    %c0_353 = arith.constant 0 : index
    %c0_354 = arith.constant 0 : index
    %311 = vector.load %arg2[%c3_351, %c7_352, %c0_353, %c0_354] : memref<4x9x32x32xf32, #tpu.memory_space<vmem>>, vector<1x1x32x32xf32>
    %312 = vector.shape_cast %311 : vector<1x1x32x32xf32> to vector<32x32xf32>
    %cst_355 = arith.constant dense<0.000000e+00> : vector<32x256xf32>
    %313 = tpu.matmul %312, %260, %cst_355 {dimension_numbers = #tpu.dot_dimension_numbers<[1], [0], [0], [1], [0, 0, 1, 1], [], []>} : vector<32x32xf32>, vector<32x256xf32>, vector<32x256xf32> -> vector<32x256xf32>
    %c7_356 = arith.constant 7 : index
    %c0_357 = arith.constant 0 : index
    %c0_358 = arith.constant 0 : index
    %314 = vector.load %arg1[%c7_356, %c0_357, %c0_358] : memref<9x256x256xf32, #tpu.memory_space<vmem>>, vector<1x256x256xf32>
    %315 = vector.shape_cast %314 : vector<1x256x256xf32> to vector<256x256xf32>
    %cst_359 = arith.constant dense<0.000000e+00> : vector<32x256xf32>
    %316 = tpu.matmul %313, %315, %cst_359 {dimension_numbers = #tpu.dot_dimension_numbers<[1], [0], [0], [1], [0, 0, 1, 1], [], []>} : vector<32x256xf32>, vector<256x256xf32>, vector<32x256xf32> -> vector<32x256xf32>
    %317 = arith.addf %310, %316 : vector<32x256xf32>
    %c3_360 = arith.constant 3 : index
    %c8_361 = arith.constant 8 : index
    %c0_362 = arith.constant 0 : index
    %c0_363 = arith.constant 0 : index
    %318 = vector.load %arg2[%c3_360, %c8_361, %c0_362, %c0_363] : memref<4x9x32x32xf32, #tpu.memory_space<vmem>>, vector<1x1x32x32xf32>
    %319 = vector.shape_cast %318 : vector<1x1x32x32xf32> to vector<32x32xf32>
    %cst_364 = arith.constant dense<0.000000e+00> : vector<32x256xf32>
    %320 = tpu.matmul %319, %260, %cst_364 {dimension_numbers = #tpu.dot_dimension_numbers<[1], [0], [0], [1], [0, 0, 1, 1], [], []>} : vector<32x32xf32>, vector<32x256xf32>, vector<32x256xf32> -> vector<32x256xf32>
    %c8_365 = arith.constant 8 : index
    %c0_366 = arith.constant 0 : index
    %c0_367 = arith.constant 0 : index
    %321 = vector.load %arg1[%c8_365, %c0_366, %c0_367] : memref<9x256x256xf32, #tpu.memory_space<vmem>>, vector<1x256x256xf32>
    %322 = vector.shape_cast %321 : vector<1x256x256xf32> to vector<256x256xf32>
    %cst_368 = arith.constant dense<0.000000e+00> : vector<32x256xf32>
    %323 = tpu.matmul %320, %322, %cst_368 {dimension_numbers = #tpu.dot_dimension_numbers<[1], [0], [0], [1], [0, 0, 1, 1], [], []>} : vector<32x256xf32>, vector<256x256xf32>, vector<32x256xf32> -> vector<32x256xf32>
    %324 = arith.addf %317, %323 : vector<32x256xf32>
    %c3_369 = arith.constant 3 : index
    %c0_370 = arith.constant 0 : index
    %c0_371 = arith.constant 0 : index
    %325 = vector.load %arg3[%c3_369, %c0_370, %c0_371] : memref<4x32x1xf32, #tpu.memory_space<vmem>>, vector<1x32x1xf32>
    %326 = vector.shape_cast %325 : vector<1x32x1xf32> to vector<32x1xf32>
    %327 = vector.broadcast %326 : vector<32x1xf32> to vector<32x256xf32>
    %328 = arith.addf %324, %327 : vector<32x256xf32>
    %cst_372 = arith.constant 1.000000e-01 : f32
    %329 = vector.broadcast %cst_372 : f32 to vector<32x256xf32>
    %330 = arith.mulf %329, %328 : vector<32x256xf32>
    %331 = arith.addf %190, %330 : vector<32x256xf32>
    %c2_373 = arith.constant 2 : index
    %c0_374 = arith.constant 0 : index
    %c0_375 = arith.constant 0 : index
    %332 = vector.load %arg4[%c2_373, %c0_374, %c0_375] : memref<4x32x32xf32, #tpu.memory_space<vmem>>, vector<1x32x32xf32>
    %333 = vector.shape_cast %332 : vector<1x32x32xf32> to vector<32x32xf32>
    %cst_376 = arith.constant dense<0.000000e+00> : vector<32x256xf32>
    %334 = tpu.matmul %333, %331, %cst_376 {dimension_numbers = #tpu.dot_dimension_numbers<[1], [0], [0], [1], [0, 0, 1, 1], [], []>} : vector<32x32xf32>, vector<32x256xf32>, vector<32x256xf32> -> vector<32x256xf32>
    %c2_377 = arith.constant 2 : index
    %c0_378 = arith.constant 0 : index
    %c0_379 = arith.constant 0 : index
    %335 = vector.load %arg5[%c2_377, %c0_378, %c0_379] : memref<4x32x1xf32, #tpu.memory_space<vmem>>, vector<1x32x1xf32>
    %336 = vector.shape_cast %335 : vector<1x32x1xf32> to vector<32x1xf32>
    %337 = vector.broadcast %336 : vector<32x1xf32> to vector<32x256xf32>
    %338 = arith.addf %334, %337 : vector<32x256xf32>
    %cst_380 = arith.constant 0.000000e+00 : f32
    %339 = vector.broadcast %cst_380 : f32 to vector<32x256xf32>
    %340 = arith.maximumf %338, %339 : vector<32x256xf32>
    %c3_381 = arith.constant 3 : index
    %c0_382 = arith.constant 0 : index
    %c0_383 = arith.constant 0 : index
    %341 = vector.load %arg4[%c3_381, %c0_382, %c0_383] : memref<4x32x32xf32, #tpu.memory_space<vmem>>, vector<1x32x32xf32>
    %342 = vector.shape_cast %341 : vector<1x32x32xf32> to vector<32x32xf32>
    %cst_384 = arith.constant dense<0.000000e+00> : vector<32x256xf32>
    %343 = tpu.matmul %342, %340, %cst_384 {dimension_numbers = #tpu.dot_dimension_numbers<[1], [0], [0], [1], [0, 0, 1, 1], [], []>} : vector<32x32xf32>, vector<32x256xf32>, vector<32x256xf32> -> vector<32x256xf32>
    %c3_385 = arith.constant 3 : index
    %c0_386 = arith.constant 0 : index
    %c0_387 = arith.constant 0 : index
    %344 = vector.load %arg5[%c3_385, %c0_386, %c0_387] : memref<4x32x1xf32, #tpu.memory_space<vmem>>, vector<1x32x1xf32>
    %345 = vector.shape_cast %344 : vector<1x32x1xf32> to vector<32x1xf32>
    %346 = vector.broadcast %345 : vector<32x1xf32> to vector<32x256xf32>
    %347 = arith.addf %343, %346 : vector<32x256xf32>
    %c1_388 = arith.constant 1 : index
    %c0_389 = arith.constant 0 : index
    %c0_390 = arith.constant 0 : index
    %348 = vector.load %arg6[%c1_388, %c0_389, %c0_390] : memref<2x8x32xf32, #tpu.memory_space<vmem>>, vector<1x8x32xf32>
    %349 = vector.shape_cast %348 : vector<1x8x32xf32> to vector<8x32xf32>
    %cst_391 = arith.constant dense<0.000000e+00> : vector<8x256xf32>
    %350 = tpu.matmul %349, %347, %cst_391 {dimension_numbers = #tpu.dot_dimension_numbers<[1], [0], [0], [1], [0, 0, 1, 1], [], []>} : vector<8x32xf32>, vector<32x256xf32>, vector<8x256xf32> -> vector<8x256xf32>
    %cst_392 = arith.constant dense<0.000000e+00> : vector<8xf32>
    %351 = vector.multi_reduction <add>, %350, %cst_392 [1] : vector<8x256xf32> to vector<8xf32>
    %352 = vector.shape_cast %351 : vector<8xf32> to vector<8x1xf32>
    %cst_393 = arith.constant 2.560000e+02 : f32
    %353 = vector.broadcast %cst_393 : f32 to vector<8x1xf32>
    %354 = arith.divf %352, %353 : vector<8x1xf32>
    %c1_394 = arith.constant 1 : index
    %c0_395 = arith.constant 0 : index
    %c0_396 = arith.constant 0 : index
    %355 = vector.load %arg7[%c1_394, %c0_395, %c0_396] : memref<2x8x1xf32, #tpu.memory_space<vmem>>, vector<1x8x1xf32>
    %356 = vector.shape_cast %355 : vector<1x8x1xf32> to vector<8x1xf32>
    %357 = arith.addf %354, %356 : vector<8x1xf32>
    %cst_397 = arith.constant 0.000000e+00 : f32
    %358 = vector.broadcast %cst_397 : f32 to vector<8x1xf32>
    %359 = arith.maximumf %357, %358 : vector<8x1xf32>
    %c1_398 = arith.constant 1 : index
    %c0_399 = arith.constant 0 : index
    %c0_400 = arith.constant 0 : index
    %360 = vector.load %arg8[%c1_398, %c0_399, %c0_400] : memref<2x32x8xf32, #tpu.memory_space<vmem>>, vector<1x32x8xf32>
    %361 = vector.shape_cast %360 : vector<1x32x8xf32> to vector<32x8xf32>
    %362 = vector.shape_cast %359 : vector<8x1xf32> to vector<8x1xf32>
    %363 = vector.broadcast %362 : vector<8x1xf32> to vector<8x256xf32>
    %cst_401 = arith.constant dense<0.000000e+00> : vector<32x256xf32>
    %364 = tpu.matmul %361, %363, %cst_401 {dimension_numbers = #tpu.dot_dimension_numbers<[1], [0], [0], [1], [0, 0, 1, 1], [], []>} : vector<32x8xf32>, vector<8x256xf32>, vector<32x256xf32> -> vector<32x256xf32>
    %c1_402 = arith.constant 1 : index
    %c0_403 = arith.constant 0 : index
    %c0_404 = arith.constant 0 : index
    %365 = vector.load %arg9[%c1_402, %c0_403, %c0_404] : memref<2x32x1xf32, #tpu.memory_space<vmem>>, vector<1x32x1xf32>
    %366 = vector.shape_cast %365 : vector<1x32x1xf32> to vector<32x1xf32>
    %367 = vector.broadcast %366 : vector<32x1xf32> to vector<32x256xf32>
    %368 = arith.addf %364, %367 : vector<32x256xf32>
    %cst_405 = arith.constant 0.000000e+00 : f32
    %369 = vector.broadcast %cst_405 : f32 to vector<32x256xf32>
    %370 = arith.subf %369, %368 : vector<32x256xf32>
    %371 = math.exp %370 : vector<32x256xf32>
    %cst_406 = arith.constant 1.000000e+00 : f32
    %372 = vector.broadcast %cst_406 : f32 to vector<32x256xf32>
    %373 = arith.addf %372, %371 : vector<32x256xf32>
    %cst_407 = arith.constant 1.000000e+00 : f32
    %374 = vector.broadcast %cst_407 : f32 to vector<32x256xf32>
    %375 = arith.divf %374, %373 : vector<32x256xf32>
    %376 = arith.mulf %347, %375 : vector<32x256xf32>
    %cst_408 = arith.constant 1.000000e-01 : f32
    %377 = vector.broadcast %cst_408 : f32 to vector<32x256xf32>
    %378 = arith.mulf %377, %376 : vector<32x256xf32>
    %379 = arith.addf %331, %378 : vector<32x256xf32>
    %380 = arith.addf %379, %1 : vector<32x256xf32>
    %c0_409 = arith.constant 0 : index
    %c0_410 = arith.constant 0 : index
    %c0_411 = arith.constant 0 : index
    %381 = vector.load %arg11[%c0_409, %c0_410, %c0_411] : memref<1x32x256xf32, #tpu.memory_space<vmem>>, vector<1x32x256xf32>
    %382 = vector.shape_cast %381 : vector<1x32x256xf32> to vector<32x256xf32>
    %383 = vector.shape_cast %380 : vector<32x256xf32> to vector<1x32x256xf32>
    tpu.vector_store %arg11[%c0_409, %c0_410, %c0_411], %383 {strides = array<i32>} : memref<1x32x256xf32, #tpu.memory_space<vmem>>, vector<1x32x256xf32>,
    return
  }
  func.func @transform_0(%arg0: i32) -> (i32, i32, i32) {
    %c0_i32 = arith.constant 0 : i32
    %c0_i32_0 = arith.constant 0 : i32
    %c0_i32_1 = arith.constant 0 : i32
    %c0_i32_2 = arith.constant 0 : i32
    return %c0_i32, %c0_i32_0, %c0_i32_1 : i32, i32, i32
  }
  func.func @transform_1(%arg0: i32) -> (i32, i32, i32, i32) {
    %c0_i32 = arith.constant 0 : i32
    %c0_i32_0 = arith.constant 0 : i32
    %c0_i32_1 = arith.constant 0 : i32
    %c0_i32_2 = arith.constant 0 : i32
    %c0_i32_3 = arith.constant 0 : i32
    return %c0_i32, %c0_i32_0, %c0_i32_1, %c0_i32_2 : i32, i32, i32, i32
  }
  func.func @transform_2(%arg0: i32) -> (i32, i32, i32) {
    %c0_i32 = arith.constant 0 : i32
    %c0_i32_0 = arith.constant 0 : i32
    %c0_i32_1 = arith.constant 0 : i32
    %c0_i32_2 = arith.constant 0 : i32
    return %c0_i32, %c0_i32_0, %c0_i32_1 : i32, i32, i32
  }
  func.func @transform_3(%arg0: i32) -> (i32, i32, i32) {
    %c0_i32 = arith.constant 0 : i32
    %c0_i32_0 = arith.constant 0 : i32
    %c0_i32_1 = arith.constant 0 : i32
    %c0_i32_2 = arith.constant 0 : i32
    return %c0_i32, %c0_i32_0, %c0_i32_1 : i32, i32, i32
  }
  func.func @transform_4(%arg0: i32) -> (i32, i32, i32) {
    %c0_i32 = arith.constant 0 : i32
    %c0_i32_0 = arith.constant 0 : i32
    %c0_i32_1 = arith.constant 0 : i32
    %c0_i32_2 = arith.constant 0 : i32
    return %c0_i32, %c0_i32_0, %c0_i32_1 : i32, i32, i32
  }
  func.func @transform_5(%arg0: i32) -> (i32, i32, i32) {
    %c0_i32 = arith.constant 0 : i32
    %c0_i32_0 = arith.constant 0 : i32
    %c0_i32_1 = arith.constant 0 : i32
    %c0_i32_2 = arith.constant 0 : i32
    return %c0_i32, %c0_i32_0, %c0_i32_1 : i32, i32, i32
  }
  func.func @transform_6(%arg0: i32) -> (i32, i32, i32) {
    %c0_i32 = arith.constant 0 : i32
    %c0_i32_0 = arith.constant 0 : i32
    %c0_i32_1 = arith.constant 0 : i32
    %c0_i32_2 = arith.constant 0 : i32
    return %c0_i32, %c0_i32_0, %c0_i32_1 : i32, i32, i32
  }
  func.func @transform_7(%arg0: i32) -> (i32, i32, i32) {
    %c0_i32 = arith.constant 0 : i32
    %c0_i32_0 = arith.constant 0 : i32
    %c0_i32_1 = arith.constant 0 : i32
    %c0_i32_2 = arith.constant 0 : i32
    return %c0_i32, %c0_i32_0, %c0_i32_1 : i32, i32, i32
  }
  func.func @transform_8(%arg0: i32) -> (i32, i32, i32) {
    %c0_i32 = arith.constant 0 : i32
    %c0_i32_0 = arith.constant 0 : i32
    %c0_i32_1 = arith.constant 0 : i32
    %c0_i32_2 = arith.constant 0 : i32
    return %c0_i32, %c0_i32_0, %c0_i32_1 : i32, i32, i32
  }
  func.func @transform_9(%arg0: i32) -> (i32, i32, i32) {
    %c0_i32 = arith.constant 0 : i32
    %c0_i32_0 = arith.constant 0 : i32
    %c0_i32_1 = arith.constant 0 : i32
    return %arg0, %c0_i32, %c0_i32_0 : i32, i32, i32
  }
  func.func @transform_10(%arg0: i32) -> (i32, i32, i32) {
    %c0_i32 = arith.constant 0 : i32
    %c0_i32_0 = arith.constant 0 : i32
    %c0_i32_1 = arith.constant 0 : i32
    return %arg0, %c0_i32, %c0_i32_0 : i32, i32, i32
  }
}

</mosaic_0001>

<llo_original>
// kernel: tpu_custom_call.1
$region0: #{tpu_custom_call.1}
  #allocation0 [shape = 'u32[]', space=smem, size = 0x4, offset = 0x4, fixed_abs, tag = 'smem constant byte address 0x4 - core index']
  #allocation1 [shape = 'u32[144,128]{1,0:T(1,128)}', space=vmem, size = 0x12000, scoped, tag = 'internal scratch']
  %s0 = inlined_call_operand.hbm [shape: f32[9,256,256], index: 0, kind: input, shape index: {}]
  %s1 = inlined_call_operand.hbm [shape: f32[4,9,32,32], index: 1, kind: input, shape index: {}]
  %s2 = inlined_call_operand.vmem [shape: f32[4,32,1], index: 2, kind: input, shape index: {}]
  %s3 = inlined_call_operand.hbm [shape: f32[4,32,32], index: 3, kind: input, shape index: {}]
  %s4 = inlined_call_operand.vmem [shape: f32[4,32,1], index: 4, kind: input, shape index: {}]
  %s5 = inlined_call_operand.hbm [shape: f32[2,8,32], index: 5, kind: input, shape index: {}]
  %s6 = inlined_call_operand.vmem [shape: f32[2,8,1], index: 6, kind: input, shape index: {}]
  %s7 = inlined_call_operand.vmem [shape: f32[2,32,8], index: 7, kind: input, shape index: {}]
  %s8 = inlined_call_operand.vmem [shape: f32[2,32,1], index: 8, kind: input, shape index: {}]
  %s9 = inlined_call_operand.hbm [shape: f32[2,32,256], index: 9, kind: input, shape index: {}]
  %s10 = inlined_call_operand.hbm [shape: f32[2,32,256], index: 10, kind: output, shape index: {}]
  %s11 = sld [smem:[#allocation0]]
  $region93: #{tpu_custom_call.1} parent=0
    _
  %s13 = ssub.s32 1, %s11
  %s14 = scalar_select 0, %s13, %s11
  $region1: #{tpu_custom_call.1} parent=0
    #allocation2 [shape = 'u8[2359296]{0}', space=vmem, size = 0x240000, scoped, tag = 'input window, operand 0, single buffered']
    #allocation3 [shape = 's32[2]{0}', space=sflag, size = 0x8, scoped, tag = 'scoped memory for tpu_custom_call.1']
    #allocation4 [shape = 's32[2]{0}', space=sflag, size = 0x8, scoped, tag = 'scoped memory for tpu_custom_call.1']
    #allocation5 [shape = 'u8[589824]{0}', space=vmem, size = 0x90000, scoped, tag = 'input window, operand 1, single buffered']
    #allocation6 [shape = 's32[1]{0}', space=sflag, size = 0x4, scoped, tag = 'scoped memory for tpu_custom_call.1']
    #allocation7 [shape = 'u8[65536]{0}', space=vmem, size = 0x10000, scoped, tag = 'input window, operand 3, single buffered']
    #allocation8 [shape = 'u8[8192]{0}', space=vmem, size = 0x2000, scoped, tag = 'input window, operand 5, single buffered']
    #allocation9 [shape = 's32[1]{0}', space=sflag, size = 0x4, scoped, tag = 'scoped memory for tpu_custom_call.1']
    #allocation10 [shape = 'u8[65536]{0}', space=vmem, size = 0x10000, scoped, tag = 'input window, operand 9']
    #allocation11 [shape = 'u8[65536]{0}', space=vmem, size = 0x10000, scoped, tag = 'output window, operand 0']
    %15 = vsyncpa [#allocation3], 0
    %16 = vsyncpa [#allocation6], 0
    %17 = vsyncpa [#allocation9], 0
    %18 = vsyncpa [#allocation4], 0
    %s19 = scalar_lea.sflag [#allocation4], 1
    %20 = vsyncpa %s19, 0
    loop: start=0, step=1, limit=4
    $region2: #{tpu_custom_call.1} parent=1 // loop_pre_header
      _
    $region3: #{tpu_custom_call.1} parent=1 // loop_header
      %s22 = sphi 0, %s26
      %p23 = scmp.ge.s32.totalorder %s22, 4
      %s30 = sphi 0, %s30
      %s32 = sphi 0, %s30
      %s33 = sphi 0, %s32
      %s47 = sphi 0, %s33
      %s51 = sphi 0, %s51
      %s53 = sphi 0, %s51
      %s54 = sphi 0, %s53
      %s68 = sphi 0, %s54
      %s72 = sphi 0, %s72
      %s74 = sphi 0, %s72
      %s75 = sphi 0, %s74
      %s89 = sphi 0, %s75
      %s93 = sphi 0, %s93
      %s95 = sphi 0, %s93
      %s96 = sphi 0, %s95
      %s110 = sphi 0, %s96
      %s114 = sphi 0, %s114
      %s116 = sphi 0, %s114
      %s117 = sphi 0, %s116
      %s131 = sphi 0, %s117
      %s135 = sphi 0, %s135
      %s137 = sphi 0, %s135
      %s138 = sphi 0, %s137
      %s152 = sphi 0, %s138
      %s156 = sphi 0, %s156
      %s158 = sphi 0, %s156
      %s159 = sphi 0, %s158
      %s173 = sphi 0, %s159
      %s177 = sphi 0, %s177
      %s179 = sphi 0, %s177
      %s180 = sphi 0, %s179
      %s194 = sphi 0, %s180
      %s198 = sphi 0, %s198
      %s200 = sphi 0, %s198
      %s201 = sphi 0, %s200
      %s215 = sphi 0, %s201
      %s221 = sphi 0, %s223
      %s224 = sphi 0, %s221
      %s225 = sphi 0, %s224
      %s241 = sphi 0, %s225
      %s247 = sphi 0, %s249
      %s250 = sphi 0, %s247
      %s251 = sphi 0, %s250
      %s267 = sphi 0, %s251
    $region4: #{tpu_custom_call.1} parent=1 // loop_header_branch
      %25 = sbr.rel (%p23) target = $region8
    $region5: #{tpu_custom_call.1} parent=1 // loop_body
      %s27 = ssub.s32 %s22, 1
      %s28 = ssub.s32 %s22, 2
      %s29 = sadd.s32 %s22, 1
      %s31 = sadd.s32 %s30, 1
      %p34 = scmp.eq.s32.totalorder %s22, 1
      %p35 = scmp.ne.s32.totalorder %s30, %s32
      %p36 = scmp.eq.s32.totalorder %s22, 0
      %p37 = por %p35, %p36
      %p38 = scmp.ne.s32.totalorder %s30, %s32
      %p39 = scmp.eq.s32.totalorder %s27, 1
      %p40 = por %p38, %p39
      %p41 = scmp.ne.s32.totalorder %s32, %s33
      %p42 = scmp.eq.s32.totalorder %s27, 0
      %p43 = por %p41, %p42
      %p44 = scmp.ne.s32.totalorder %s32, %s33
      %p45 = scmp.eq.s32.totalorder %s28, 1
      %p46 = por %p44, %p45
      %p48 = scmp.ne.s32.totalorder %s33, %s47
      %p49 = scmp.eq.s32.totalorder %s28, 0
      %p50 = por %p48, %p49
      %s52 = sadd.s32 %s51, 1
      %p55 = scmp.eq.s32.totalorder %s22, 1
      %p56 = scmp.ne.s32.totalorder %s51, %s53
      %p57 = scmp.eq.s32.totalorder %s22, 0
      %p58 = por %p56, %p57
      %p59 = scmp.ne.s32.totalorder %s51, %s53
      %p60 = scmp.eq.s32.totalorder %s27, 1
      %p61 = por %p59, %p60
      %p62 = scmp.ne.s32.totalorder %s53, %s54
      %p63 = scmp.eq.s32.totalorder %s27, 0
      %p64 = por %p62, %p63
      %p65 = scmp.ne.s32.totalorder %s53, %s54
      %p66 = scmp.eq.s32.totalorder %s28, 1
      %p67 = por %p65, %p66
      %p69 = scmp.ne.s32.totalorder %s54, %s68
      %p70 = scmp.eq.s32.totalorder %s28, 0
      %p71 = por %p69, %p70
      %s73 = sadd.s32 %s72, 1
      %p76 = scmp.eq.s32.totalorder %s22, 1
      %p77 = scmp.ne.s32.totalorder %s72, %s74
      %p78 = scmp.eq.s32.totalorder %s22, 0
      %p79 = por %p77, %p78
      %p80 = scmp.ne.s32.totalorder %s72, %s74
      %p81 = scmp.eq.s32.totalorder %s27, 1
      %p82 = por %p80, %p81
      %p83 = scmp.ne.s32.totalorder %s74, %s75
      %p84 = scmp.eq.s32.totalorder %s27, 0
      %p85 = por %p83, %p84
      %p86 = scmp.ne.s32.totalorder %s74, %s75
      %p87 = scmp.eq.s32.totalorder %s28, 1
      %p88 = por %p86, %p87
      %p90 = scmp.ne.s32.totalorder %s75, %s89
      %p91 = scmp.eq.s32.totalorder %s28, 0
      %p92 = por %p90, %p91
      %s94 = sadd.s32 %s93, 1
      %p97 = scmp.eq.s32.totalorder %s22, 1
      %p98 = scmp.ne.s32.totalorder %s93, %s95
      %p99 = scmp.eq.s32.totalorder %s22, 0
      %p100 = por %p98, %p99
      %p101 = scmp.ne.s32.totalorder %s93, %s95
      %p102 = scmp.eq.s32.totalorder %s27, 1
      %p103 = por %p101, %p102
      %p104 = scmp.ne.s32.totalorder %s95, %s96
      %p105 = scmp.eq.s32.totalorder %s27, 0
      %p106 = por %p104, %p105
      %p107 = scmp.ne.s32.totalorder %s95, %s96
      %p108 = scmp.eq.s32.totalorder %s28, 1
      %p109 = por %p107, %p108
      %p111 = scmp.ne.s32.totalorder %s96, %s110
      %p112 = scmp.eq.s32.totalorder %s28, 0
      %p113 = por %p111, %p112
      %s115 = sadd.s32 %s114, 1
      %p118 = scmp.eq.s32.totalorder %s22, 1
      %p119 = scmp.ne.s32.totalorder %s114, %s116
      %p120 = scmp.eq.s32.totalorder %s22, 0
      %p121 = por %p119, %p120
      %p122 = scmp.ne.s32.totalorder %s114, %s116
      %p123 = scmp.eq.s32.totalorder %s27, 1
      %p124 = por %p122, %p123
      %p125 = scmp.ne.s32.totalorder %s116, %s117
      %p126 = scmp.eq.s32.totalorder %s27, 0
      %p127 = por %p125, %p126
      %p128 = scmp.ne.s32.totalorder %s116, %s117
      %p129 = scmp.eq.s32.totalorder %s28, 1
      %p130 = por %p128, %p129
      %p132 = scmp.ne.s32.totalorder %s117, %s131
      %p133 = scmp.eq.s32.totalorder %s28, 0
      %p134 = por %p132, %p133
      %s136 = sadd.s32 %s135, 1
      %p139 = scmp.eq.s32.totalorder %s22, 1
      %p140 = scmp.ne.s32.totalorder %s135, %s137
      %p141 = scmp.eq.s32.totalorder %s22, 0
      %p142 = por %p140, %p141
      %p143 = scmp.ne.s32.totalorder %s135, %s137
      %p144 = scmp.eq.s32.totalorder %s27, 1
      %p145 = por %p143, %p144
      %p146 = scmp.ne.s32.totalorder %s137, %s138
      %p147 = scmp.eq.s32.totalorder %s27, 0
      %p148 = por %p146, %p147
      %p149 = scmp.ne.s32.totalorder %s137, %s138
      %p150 = scmp.eq.s32.totalorder %s28, 1
      %p151 = por %p149, %p150
      %p153 = scmp.ne.s32.totalorder %s138, %s152
      %p154 = scmp.eq.s32.totalorder %s28, 0
      %p155 = por %p153, %p154
      %s157 = sadd.s32 %s156, 1
      %p160 = scmp.eq.s32.totalorder %s22, 1
      %p161 = scmp.ne.s32.totalorder %s156, %s158
      %p162 = scmp.eq.s32.totalorder %s22, 0
      %p163 = por %p161, %p162
      %p164 = scmp.ne.s32.totalorder %s156, %s158
      %p165 = scmp.eq.s32.totalorder %s27, 1
      %p166 = por %p164, %p165
      %p167 = scmp.ne.s32.totalorder %s158, %s159
      %p168 = scmp.eq.s32.totalorder %s27, 0
      %p169 = por %p167, %p168
      %p170 = scmp.ne.s32.totalorder %s158, %s159
      %p171 = scmp.eq.s32.totalorder %s28, 1
      %p172 = por %p170, %p171
      %p174 = scmp.ne.s32.totalorder %s159, %s173
      %p175 = scmp.eq.s32.totalorder %s28, 0
      %p176 = por %p174, %p175
      %s178 = sadd.s32 %s177, 1
      %p181 = scmp.eq.s32.totalorder %s22, 1
      %p182 = scmp.ne.s32.totalorder %s177, %s179
      %p183 = scmp.eq.s32.totalorder %s22, 0
      %p184 = por %p182, %p183
      %p185 = scmp.ne.s32.totalorder %s177, %s179
      %p186 = scmp.eq.s32.totalorder %s27, 1
      %p187 = por %p185, %p186
      %p188 = scmp.ne.s32.totalorder %s179, %s180
      %p189 = scmp.eq.s32.totalorder %s27, 0
      %p190 = por %p188, %p189
      %p191 = scmp.ne.s32.totalorder %s179, %s180
      %p192 = scmp.eq.s32.totalorder %s28, 1
      %p193 = por %p191, %p192
      %p195 = scmp.ne.s32.totalorder %s180, %s194
      %p196 = scmp.eq.s32.totalorder %s28, 0
      %p197 = por %p195, %p196
      %s199 = sadd.s32 %s198, 1
      %p202 = scmp.eq.s32.totalorder %s22, 1
      %p203 = scmp.ne.s32.totalorder %s198, %s200
      %p204 = scmp.eq.s32.totalorder %s22, 0
      %p205 = por %p203, %p204
      %p206 = scmp.ne.s32.totalorder %s198, %s200
      %p207 = scmp.eq.s32.totalorder %s27, 1
      %p208 = por %p206, %p207
      %p209 = scmp.ne.s32.totalorder %s200, %s201
      %p210 = scmp.eq.s32.totalorder %s27, 0
      %p211 = por %p209, %p210
      %p212 = scmp.ne.s32.totalorder %s200, %s201
      %p213 = scmp.eq.s32.totalorder %s28, 1
      %p214 = por %p212, %p213
      %p216 = scmp.ne.s32.totalorder %s201, %s215
      %p217 = scmp.eq.s32.totalorder %s28, 0
      %p218 = por %p216, %p217
      %s219 = ssub.s32 %s22, %s29
      %p220 = scmp.eq.s32.totalorder %s219, 0
      %s222 = sadd.s32 %s221, 1
      %s223 = scalar_select %p220, %s221, %s222
      %p226 = pneg %p220
      %p227 = scmp.eq.s32.totalorder %s22, 1
      %p228 = por %p226, %p227
      %p229 = scmp.ne.s32.totalorder %s221, %s224
      %p230 = scmp.eq.s32.totalorder %s22, 0
      %p231 = por %p229, %p230
      %p232 = scmp.ne.s32.totalorder %s221, %s224
      %p233 = scmp.eq.s32.totalorder %s27, 1
      %p234 = por %p232, %p233
      %p235 = scmp.ne.s32.totalorder %s224, %s225
      %p236 = scmp.eq.s32.totalorder %s27, 0
      %p237 = por %p235, %p236
      %p238 = scmp.ne.s32.totalorder %s224, %s225
      %p239 = scmp.eq.s32.totalorder %s28, 1
      %p240 = por %p238, %p239
      %p242 = scmp.ne.s32.totalorder %s225, %s241
      %p243 = scmp.eq.s32.totalorder %s28, 0
      %p244 = por %p242, %p243
      %s245 = ssub.s32 %s22, %s29
      %p246 = scmp.eq.s32.totalorder %s245, 0
      %s248 = sadd.s32 %s247, 1
      %s249 = scalar_select %p246, %s247, %s248
      %p252 = pneg %p246
      %p253 = scmp.eq.s32.totalorder %s22, 1
      %p254 = por %p252, %p253
      %p255 = scmp.ne.s32.totalorder %s247, %s250
      %p256 = scmp.eq.s32.totalorder %s22, 0
      %p257 = por %p255, %p256
      %p258 = scmp.ne.s32.totalorder %s247, %s250
      %p259 = scmp.eq.s32.totalorder %s27, 1
      %p260 = por %p258, %p259
      %p261 = scmp.ne.s32.totalorder %s250, %s251
      %p262 = scmp.eq.s32.totalorder %s27, 0
      %p263 = por %p261, %p262
      %p264 = scmp.ne.s32.totalorder %s250, %s251
      %p265 = scmp.eq.s32.totalorder %s28, 1
      %p266 = por %p264, %p265
      %p268 = scmp.ne.s32.totalorder %s251, %s267
      %p269 = scmp.eq.s32.totalorder %s28, 0
      %p270 = por %p268, %p269
      %p271 = scmp.le.s32.totalorder 1, %s22
      %p272 = scmp.lt.s32.totalorder %s22, 3
      %p273 = pnand %p271, %p272
      %p274 = pneg %p273
      // Predicated region
      $region9: #{tpu_custom_call.1} parent=5 // pred_check
        _
      $region10: #{tpu_custom_call.1} parent=5 // pred_check_branch
        %276 = sbr.rel (%p273) target = $region12
      $region11: #{tpu_custom_call.1} parent=5 // pred_region
        %s277 = ssub.s32 %s22, 1
        // Predicated region
        $region13: #{tpu_custom_call.1} parent=11 // pred_check
          %p278 = pneg %p43
        $region14: #{tpu_custom_call.1} parent=11 // pred_check_branch
          %280 = sbr.rel (%p278) target = $region16
        $region15: #{tpu_custom_call.1} parent=11 // pred_region
          %s282 = ssub.s32 73728, 73728
          %283 = vsyncadd [#allocation3], %s282
          %s284 = sshll.u32 [#allocation2], 4
          %s285 = int_to_ptr.vmem [resolvable:$true] %s284
          %290 = dma.hbm_to_vmem [thread:$0]  %s0, 73728, %s285, [#allocation3], 256, 256, 16
        $region16: #{tpu_custom_call.1} parent=11 // pred_fallthru
          _
        // Predicated region
        $region17: #{tpu_custom_call.1} parent=11 // pred_check
          %p291 = pneg %p64
        $region18: #{tpu_custom_call.1} parent=11 // pred_check_branch
          %293 = sbr.rel (%p291) target = $region20
        $region19: #{tpu_custom_call.1} parent=11 // pred_region
          %s295 = ssub.s32 18432, 18432
          %296 = vsyncadd [#allocation6], %s295
          %s297 = sshll.u32 [#allocation5], 4
          %s298 = int_to_ptr.vmem [resolvable:$true] %s297
          %303 = dma.hbm_to_vmem [thread:$0]  %s1, 18432, %s298, [#allocation6], 128, 128, 8
        $region20: #{tpu_custom_call.1} parent=11 // pred_fallthru
          _
        // Predicated region
        $region21: #{tpu_custom_call.1} parent=11 // pred_check
          %p304 = pneg %p85
        $region22: #{tpu_custom_call.1} parent=11 // pred_check_branch
          %306 = sbr.rel (%p304) target = $region24
        $region23: #{tpu_custom_call.1} parent=11 // pred_region
          _
        $region24: #{tpu_custom_call.1} parent=11 // pred_fallthru
          _
        // Predicated region
        $region25: #{tpu_custom_call.1} parent=11 // pred_check
          %p307 = pneg %p106
        $region26: #{tpu_custom_call.1} parent=11 // pred_check_branch
          %309 = sbr.rel (%p307) target = $region28
        $region27: #{tpu_custom_call.1} parent=11 // pred_region
          %s311 = ssub.s32 2048, 2048
          %312 = vsyncadd [#allocation6], %s311
          %s313 = sshll.u32 [#allocation7], 4
          %s314 = int_to_ptr.vmem [resolvable:$true] %s313
          %319 = dma.hbm_to_vmem [thread:$0]  %s3, 2048, %s314, [#allocation6], 128, 128, 8
        $region28: #{tpu_custom_call.1} parent=11 // pred_fallthru
          _
        // Predicated region
        $region29: #{tpu_custom_call.1} parent=11 // pred_check
          %p320 = pneg %p127
        $region30: #{tpu_custom_call.1} parent=11 // pred_check_branch
          %322 = sbr.rel (%p320) target = $region32
        $region31: #{tpu_custom_call.1} parent=11 // pred_region
          _
        $region32: #{tpu_custom_call.1} parent=11 // pred_fallthru
          _
        // Predicated region
        $region33: #{tpu_custom_call.1} parent=11 // pred_check
          %p323 = pneg %p148
        $region34: #{tpu_custom_call.1} parent=11 // pred_check_branch
          %325 = sbr.rel (%p323) target = $region36
        $region35: #{tpu_custom_call.1} parent=11 // pred_region
          %s327 = ssub.s32 256, 256
          %328 = vsyncadd [#allocation9], %s327
          %s329 = sshll.u32 [#allocation8], 4
          %s330 = int_to_ptr.vmem [resolvable:$true] %s329
          %335 = dma.hbm_to_vmem [thread:$0]  %s5, 256, %s330, [#allocation9], 128, 128, 8
        $region36: #{tpu_custom_call.1} parent=11 // pred_fallthru
          _
        // Predicated region
        $region37: #{tpu_custom_call.1} parent=11 // pred_check
          %p336 = pneg %p169
        $region38: #{tpu_custom_call.1} parent=11 // pred_check_branch
          %338 = sbr.rel (%p336) target = $region40
        $region39: #{tpu_custom_call.1} parent=11 // pred_region
          _
        $region40: #{tpu_custom_call.1} parent=11 // pred_fallthru
          _
        // Predicated region
        $region41: #{tpu_custom_call.1} parent=11 // pred_check
          %p339 = pneg %p190
        $region42: #{tpu_custom_call.1} parent=11 // pred_check_branch
          %341 = sbr.rel (%p339) target = $region44
        $region43: #{tpu_custom_call.1} parent=11 // pred_region
          _
        $region44: #{tpu_custom_call.1} parent=11 // pred_fallthru
          _
        // Predicated region
        $region45: #{tpu_custom_call.1} parent=11 // pred_check
          %p342 = pneg %p211
        $region46: #{tpu_custom_call.1} parent=11 // pred_check_branch
          %344 = sbr.rel (%p342) target = $region48
        $region47: #{tpu_custom_call.1} parent=11 // pred_region
          _
        $region48: #{tpu_custom_call.1} parent=11 // pred_fallthru
          _
      $region12: #{tpu_custom_call.1} parent=5 // pred_fallthru
        _
      %p345 = scmp.lt.s32.totalorder %s22, 2
      // Predicated region
      $region49: #{tpu_custom_call.1} parent=5 // pred_check
        %p346 = pneg %p345
      $region50: #{tpu_custom_call.1} parent=5 // pred_check_branch
        %348 = sbr.rel (%p346) target = $region52
      $region51: #{tpu_custom_call.1} parent=5 // pred_region
        // Predicated region
        $region53: #{tpu_custom_call.1} parent=51 // pred_check
          %p349 = pneg %p231
        $region54: #{tpu_custom_call.1} parent=51 // pred_check_branch
          %351 = sbr.rel (%p349) target = $region56
        $region55: #{tpu_custom_call.1} parent=51 // pred_region
          %s352 = sand.u32 %s22, 1
          %s353 = scalar_lea.sflag [#allocation3], %s352
          %s354 = sand.u32 %s221, 1
          %s355 = smul.addr %s354, 64
          %s356 = scalar_lea.vmem [#allocation10], %s355
          %s358 = ssub.s32 1024, 1024
          %359 = vsyncadd %s353, %s358
          %s360 = smul.addr %s22, 8
          %s361 = smul.addr %s360, 128
          %s362 = scalar_lea.hbm %s9, %s361
          %s363 = sshll.u32 %s356, 4
          %s364 = int_to_ptr.vmem [resolvable:$true] %s363
          %369 = dma.hbm_to_vmem [thread:$0]  %s362, 1024, %s364, %s353, 256, 256, 16
        $region56: #{tpu_custom_call.1} parent=51 // pred_fallthru
          _
      $region52: #{tpu_custom_call.1} parent=5 // pred_fallthru
        _
      %p370 = scmp.le.s32.totalorder 1, %s22
      %p371 = scmp.lt.s32.totalorder %s22, 3
      %p372 = pnand %p370, %p371
      %p373 = pneg %p372
      // Predicated region
      $region57: #{tpu_custom_call.1} parent=5 // pred_check
        _
      $region58: #{tpu_custom_call.1} parent=5 // pred_check_branch
        %375 = sbr.rel (%p372) target = $region60
      $region59: #{tpu_custom_call.1} parent=5 // pred_region
        %s376 = ssub.s32 %s22, 1
        // Predicated region
        $region61: #{tpu_custom_call.1} parent=59 // pred_check
          %p377 = pneg %p43
        $region62: #{tpu_custom_call.1} parent=59 // pred_check_branch
          %379 = sbr.rel (%p377) target = $region64
        $region63: #{tpu_custom_call.1} parent=59 // pred_region
          %380 = dma.done [#allocation3], 73728
        $region64: #{tpu_custom_call.1} parent=59 // pred_fallthru
          _
        // Predicated region
        $region65: #{tpu_custom_call.1} parent=59 // pred_check
          %p381 = pneg %p64
        $region66: #{tpu_custom_call.1} parent=59 // pred_check_branch
          %383 = sbr.rel (%p381) target = $region68
        $region67: #{tpu_custom_call.1} parent=59 // pred_region
          %384 = dma.done [#allocation6], 18432
        $region68: #{tpu_custom_call.1} parent=59 // pred_fallthru
          _
        // Predicated region
        $region69: #{tpu_custom_call.1} parent=59 // pred_check
          %p385 = pneg %p106
        $region70: #{tpu_custom_call.1} parent=59 // pred_check_branch
          %387 = sbr.rel (%p385) target = $region72
        $region71: #{tpu_custom_call.1} parent=59 // pred_region
          %388 = dma.done [#allocation6], 2048
        $region72: #{tpu_custom_call.1} parent=59 // pred_fallthru
          _
        // Predicated region
        $region73: #{tpu_custom_call.1} parent=59 // pred_check
          %p389 = pneg %p148
        $region74: #{tpu_custom_call.1} parent=59 // pred_check_branch
          %391 = sbr.rel (%p389) target = $region76
        $region75: #{tpu_custom_call.1} parent=59 // pred_region
          %392 = dma.done [#allocation9], 256
        $region76: #{tpu_custom_call.1} parent=59 // pred_fallthru
          _
        %s393 = sand.u32 %s27, 1
        %s394 = scalar_lea.sflag [#allocation3], %s393
        %s395 = sand.u32 %s224, 1
        %s396 = smul.addr %s395, 64
        %s397 = scalar_lea.vmem [#allocation10], %s396
        // Predicated region
        $region77: #{tpu_custom_call.1} parent=59 // pred_check
          %p398 = pneg %p237
        $region78: #{tpu_custom_call.1} parent=59 // pred_check_branch
          %400 = sbr.rel (%p398) target = $region80
        $region79: #{tpu_custom_call.1} parent=59 // pred_region
          %401 = dma.done %s394, 1024
        $region80: #{tpu_custom_call.1} parent=59 // pred_fallthru
          _
        %p402 = pneg %p43
        %p403 = pneg %p40
        %p404 = pneg %p64
        %p405 = pneg %p61
        %p406 = pneg %p85
        %p407 = pneg %p82
        %p408 = pneg %p106
        %p409 = pneg %p103
        %p410 = pneg %p127
        %p411 = pneg %p124
        %p412 = pneg %p148
        %p413 = pneg %p145
        %p414 = pneg %p169
        %p415 = pneg %p166
        %p416 = pneg %p190
        %p417 = pneg %p187
        %p418 = pneg %p211
        %p419 = pneg %p208
        %s420 = sand.u32 %s27, 1
        %s421 = scalar_lea.sflag [#allocation3], %s420
        %s422 = sand.u32 %s224, 1
        %s423 = smul.addr %s422, 64
        %s424 = scalar_lea.vmem [#allocation10], %s423
        %p425 = pneg %p237
        %p426 = pneg %p234
        %p427 = pneg %p263
        %p428 = pneg %p260
        %s429 = sand.u32 %s250, 1
        %s430 = scalar_lea.sflag [#allocation4], %s429
        %s431 = sand.u32 %s250, 1
        %s432 = smul.addr %s431, 64
        %s433 = scalar_lea.vmem [#allocation11], %s432
        %v434 = vld [vmem:[%s397] sm:$0xff]
        %v435 = vld [vmem:[%s397 + $0x8] sm:$0xff]
        %v436 = vld [vmem:[%s397 + $0x10] sm:$0xff]
        %v437 = vld [vmem:[%s397 + $0x18] sm:$0xff]
        %v438 = vld [vmem:[%s397 + $0x20] sm:$0xff]
        %v439 = vld [vmem:[%s397 + $0x28] sm:$0xff]
        %v440 = vld [vmem:[%s397 + $0x30] sm:$0xff]
        %v441 = vld [vmem:[%s397 + $0x38] sm:$0xff]
        %v442 = vld [vmem:[#allocation5] sm:$0xff]
        %v443 = vld [vmem:[#allocation5 + $0x8] sm:$0xff]
        %v444 = vld [vmem:[#allocation5 + $0x10] sm:$0xff]
        %v445 = vld [vmem:[#allocation5 + $0x18] sm:$0xff]
        %vm446 = vcmask 261120
        %v448 = vsel %vm446, %v442, 0
        %v451 = vsel %vm446, %v443, 0
        %v454 = vsel %vm446, %v444, 0
        %v457 = vsel %vm446, %v445, 0
        %459 = vmatprep.subr.mxu0 0.0
        %460 = vmatpush1.msra.mxu0 0.0
        %461 = vmatprep.subr.mxu0 0.0
        %462 = vmatpush1.msra.mxu0 0.0
        %463 = vmatprep.subr.mxu0 0.0
        %464 = vmatpush1.msra.mxu0 0.0
        %465 = vmatprep.subr.mxu0 0.0
        %466 = vmatpush1.msra.mxu0 0.0
        %467 = vmatprep.subr.mxu0 0.0
        %468 = vmatpush1.msra.mxu0 0.0
        %469 = vmatprep.subr.mxu0 0.0
        %470 = vmatpush1.msra.mxu0 0.0
        %471 = vmatprep.subr.mxu0 0.0
        %472 = vmatpush1.msra.mxu0 0.0
        %473 = vmatprep.subr.mxu0 0.0
        %474 = vmatpush1.msra.mxu0 0.0
        %475 = vmatprep.subr.mxu0 0.0
        %476 = vmatpush1.msra.mxu0 0.0
        %477 = vmatprep.subr.mxu0 0.0
        %478 = vmatpush1.msra.mxu0 0.0
        %479 = vmatprep.subr.mxu0 0.0
        %480 = vmatpush1.msra.mxu0 0.0
        %481 = vmatprep.subr.mxu0 0.0
        %482 = vmatpush1.msra.mxu0 0.0
        %483 = vmatprep.subr.mxu0 %v441
        %484 = vmatpush1.msra.mxu0 %v440
        %485 = vmatprep.subr.mxu0 %v439
        %486 = vmatpush1.msra.mxu0 %v438
        %487 = vmatprep.subr.mxu0 %v437
        %488 = vmatpush1.msra.mxu0 %v436
        %489 = vmatprep.subr.mxu0 %v435
        %490 = vmatpush1.msra.mxu0 %v434
        %491 = vmatprep.subr.mxu0 0.0
        %492 = vmatpush2.msra.mxu0 0.0
        %493 = vmatprep.subr.mxu0 0.0
        %494 = vmatpush2.msra.mxu0 0.0
        %495 = vmatprep.subr.mxu0 0.0
        %496 = vmatpush2.msra.mxu0 0.0
        %497 = vmatprep.subr.mxu0 0.0
        %498 = vmatpush2.msra.mxu0 0.0
        %499 = vmatprep.subr.mxu0 0.0
        %500 = vmatpush2.msra.mxu0 0.0
        %501 = vmatprep.subr.mxu0 0.0
        %502 = vmatpush2.msra.mxu0 0.0
        %503 = vmatprep.subr.mxu0 0.0
        %504 = vmatpush2.msra.mxu0 0.0
        %505 = vmatprep.subr.mxu0 0.0
        %506 = vmatpush2.msra.mxu0 0.0
        %507 = vmatprep.subr.mxu0 0.0
        %508 = vmatpush2.msra.mxu0 0.0
        %509 = vmatprep.subr.mxu0 0.0
        %510 = vmatpush2.msra.mxu0 0.0
        %511 = vmatprep.subr.mxu0 0.0
        %512 = vmatpush2.msra.mxu0 0.0
        %513 = vmatprep.subr.mxu0 0.0
        %514 = vmatpush2.msra.mxu0 0.0
        %515 = vmatprep.subr.mxu0 0.0
        %516 = vmatpush2.msra.mxu0 0.0
        %517 = vmatprep.subr.mxu0 0.0
        %518 = vmatpush2.msra.mxu0 0.0
        %519 = vmatprep.subr.mxu0 0.0
        %520 = vmatpush2.msra.mxu0 0.0
        %521 = vmatprep.subr.mxu0 0.0
        %522 = vmatpush2.msra.mxu0 0.0
        %523 = vmatprep.mubr.f32.mxu0 0.0
        %524 = vmatmul.mubr.f32.gmra.mxu0 %v448
        %v525 = vpop.f32.mrf.mxu0
        %v526 = vadd.f32 0.0, %v525
        %v527 = vpop.f32.mrf.mxu0
        %v528 = vadd.f32 0.0, %v527
        %529 = vmatprep.mubr.f32.mxu0 0.0
        %530 = vmatmul.mubr.f32.gmra.mxu0 %v451
        %v531 = vpop.f32.mrf.mxu0
        %v532 = vadd.f32 0.0, %v531
        %v533 = vpop.f32.mrf.mxu0
        %v534 = vadd.f32 0.0, %v533
        %535 = vmatprep.mubr.f32.mxu0 0.0
        %536 = vmatmul.mubr.f32.gmra.mxu0 %v454
        %v537 = vpop.f32.mrf.mxu0
        %v538 = vadd.f32 0.0, %v537
        %v539 = vpop.f32.mrf.mxu0
        %v540 = vadd.f32 0.0, %v539
        %541 = vmatprep.mubr.f32.mxu0 0.0
        %542 = vmatmul.mubr.f32.gmra.mxu0 %v457
        %v543 = vpop.f32.mrf.mxu0
        %v544 = vadd.f32 0.0, %v543
        %v545 = vpop.f32.mrf.mxu0
        %v546 = vadd.f32 0.0, %v545
        %547 = vdwg.mxu0
        %v548 = vld [vmem:[#allocation2] sm:$0xff]
        %v549 = vld [vmem:[#allocation2 + $0x8] sm:$0xff]
        %v550 = vld [vmem:[#allocation2 + $0x10] sm:$0xff]
        %v551 = vld [vmem:[#allocation2 + $0x18] sm:$0xff]
        %v552 = vld [vmem:[#allocation2 + $0x20] sm:$0xff]
        %v553 = vld [vmem:[#allocation2 + $0x28] sm:$0xff]
        %v554 = vld [vmem:[#allocation2 + $0x30] sm:$0xff]
        %v555 = vld [vmem:[#allocation2 + $0x38] sm:$0xff]
        %v556 = vld [vmem:[#allocation2 + $0x40] sm:$0xff]
        %v557 = vld [vmem:[#allocation2 + $0x48] sm:$0xff]
        %v558 = vld [vmem:[#allocation2 + $0x50] sm:$0xff]
        %v559 = vld [vmem:[#allocation2 + $0x58] sm:$0xff]
        %v560 = vld [vmem:[#allocation2 + $0x60] sm:$0xff]
        %v561 = vld [vmem:[#allocation2 + $0x68] sm:$0xff]
        %v562 = vld [vmem:[#allocation2 + $0x70] sm:$0xff]
        %v563 = vld [vmem:[#allocation2 + $0x78] sm:$0xff]
        %v564 = vld [vmem:[#allocation2 + $0x80] sm:$0xff]
        %v565 = vld [vmem:[#allocation2 + $0x88] sm:$0xff]
        %v566 = vld [vmem:[#allocation2 + $0x90] sm:$0xff]
        %v567 = vld [vmem:[#allocation2 + $0x98] sm:$0xff]
        %v568 = vld [vmem:[#allocation2 + $0xa0] sm:$0xff]
        %v569 = vld [vmem:[#allocation2 + $0xa8] sm:$0xff]
        %v570 = vld [vmem:[#allocation2 + $0xb0] sm:$0xff]
        %v571 = vld [vmem:[#allocation2 + $0xb8] sm:$0xff]
        %v572 = vld [vmem:[#allocation2 + $0xc0] sm:$0xff]
        %v573 = vld [vmem:[#allocation2 + $0xc8] sm:$0xff]
        %v574 = vld [vmem:[#allocation2 + $0xd0] sm:$0xff]
        %v575 = vld [vmem:[#allocation2 + $0xd8] sm:$0xff]
        %v576 = vld [vmem:[#allocation2 + $0xe0] sm:$0xff]
        %v577 = vld [vmem:[#allocation2 + $0xe8] sm:$0xff]
        %v578 = vld [vmem:[#allocation2 + $0xf0] sm:$0xff]
        %v579 = vld [vmem:[#allocation2 + $0xf8] sm:$0xff]
        %v580 = vld [vmem:[#allocation2 + $0x100] sm:$0xff]
        %v581 = vld [vmem:[#allocation2 + $0x108] sm:$0xff]
        %v582 = vld [vmem:[#allocation2 + $0x110] sm:$0xff]
        %v583 = vld [vmem:[#allocation2 + $0x118] sm:$0xff]
        %v584 = vld [vmem:[#allocation2 + $0x120] sm:$0xff]
        %v585 = vld [vmem:[#allocation2 + $0x128] sm:$0xff]
        %v586 = vld [vmem:[#allocation2 + $0x130] sm:$0xff]
        %v587 = vld [vmem:[#allocation2 + $0x138] sm:$0xff]
        %v588 = vld [vmem:[#allocation2 + $0x140] sm:$0xff]
        %v589 = vld [vmem:[#allocation2 + $0x148] sm:$0xff]
        %v590 = vld [vmem:[#allocation2 + $0x150] sm:$0xff]
        %v591 = vld [vmem:[#allocation2 + $0x158] sm:$0xff]
        %v592 = vld [vmem:[#allocation2 + $0x160] sm:$0xff]
        %v593 = vld [vmem:[#allocation2 + $0x168] sm:$0xff]
        %v594 = vld [vmem:[#allocation2 + $0x170] sm:$0xff]
        %v595 = vld [vmem:[#allocation2 + $0x178] sm:$0xff]
        %v596 = vld [vmem:[#allocation2 + $0x180] sm:$0xff]
        %v597 = vld [vmem:[#allocation2 + $0x188] sm:$0xff]
        %v598 = vld [vmem:[#allocation2 + $0x190] sm:$0xff]
        %v599 = vld [vmem:[#allocation2 + $0x198] sm:$0xff]
        %v600 = vld [vmem:[#allocation2 + $0x1a0] sm:$0xff]
        %v601 = vld [vmem:[#allocation2 + $0x1a8] sm:$0xff]
        %v602 = vld [vmem:[#allocation2 + $0x1b0] sm:$0xff]
        %v603 = vld [vmem:[#allocation2 + $0x1b8] sm:$0xff]
        %v604 = vld [vmem:[#allocation2 + $0x1c0] sm:$0xff]
        %v605 = vld [vmem:[#allocation2 + $0x1c8] sm:$0xff]
        %v606 = vld [vmem:[#allocation2 + $0x1d0] sm:$0xff]
        %v607 = vld [vmem:[#allocation2 + $0x1d8] sm:$0xff]
        %v608 = vld [vmem:[#allocation2 + $0x1e0] sm:$0xff]
        %v609 = vld [vmem:[#allocation2 + $0x1e8] sm:$0xff]
        %v610 = vld [vmem:[#allocation2 + $0x1f0] sm:$0xff]
        %v611 = vld [vmem:[#allocation2 + $0x1f8] sm:$0xff]
        %s612 = scalar_lea.vmem [#allocation5], 32
        %v613 = vld [vmem:[%s612] sm:$0xff]
        %v614 = vld [vmem:[%s612 + $0x8] sm:$0xff]
        %v615 = vld [vmem:[%s612 + $0x10] sm:$0xff]
        %v616 = vld [vmem:[%s612 + $0x18] sm:$0xff]
        %v618 = vsel %vm446, %v613, 0
        %v621 = vsel %vm446, %v614, 0
        %v624 = vsel %vm446, %v615, 0
        %v627 = vsel %vm446, %v616, 0
        %629 = vmatprep.subr.mxu0 0.0
        %630 = vmatpush1.msra.mxu0 0.0
        %631 = vmatprep.subr.mxu0 0.0
        %632 = vmatpush1.msra.mxu0 0.0
        %633 = vmatprep.subr.mxu0 0.0
        %634 = vmatpush1.msra.mxu0 0.0
        %635 = vmatprep.subr.mxu0 0.0
        %636 = vmatpush1.msra.mxu0 0.0
        %637 = vmatprep.subr.mxu0 0.0
        %638 = vmatpush1.msra.mxu0 0.0
        %639 = vmatprep.subr.mxu0 0.0
        %640 = vmatpush1.msra.mxu0 0.0
        %641 = vmatprep.subr.mxu0 0.0
        %642 = vmatpush1.msra.mxu0 0.0
        %643 = vmatprep.subr.mxu0 0.0
        %644 = vmatpush1.msra.mxu0 0.0
        %645 = vmatprep.subr.mxu0 0.0
        %646 = vmatpush1.msra.mxu0 0.0
        %647 = vmatprep.subr.mxu0 0.0
        %648 = vmatpush1.msra.mxu0 0.0
        %649 = vmatprep.subr.mxu0 0.0
        %650 = vmatpush1.msra.mxu0 0.0
        %651 = vmatprep.subr.mxu0 0.0
        %652 = vmatpush1.msra.mxu0 0.0
        %653 = vmatprep.subr.mxu0 %v441
        %654 = vmatpush1.msra.mxu0 %v440
        %655 = vmatprep.subr.mxu0 %v439
        %656 = vmatpush1.msra.mxu0 %v438
        %657 = vmatprep.subr.mxu0 %v437
        %658 = vmatpush1.msra.mxu0 %v436
        %659 = vmatprep.subr.mxu0 %v435
        %660 = vmatpush1.msra.mxu0 %v434
        %661 = vmatprep.subr.mxu0 0.0
        %662 = vmatpush2.msra.mxu0 0.0
        %663 = vmatprep.subr.mxu0 0.0
        %664 = vmatpush2.msra.mxu0 0.0
        %665 = vmatprep.subr.mxu0 0.0
        %666 = vmatpush2.msra.mxu0 0.0
        %667 = vmatprep.subr.mxu0 0.0
        %668 = vmatpush2.msra.mxu0 0.0
        %669 = vmatprep.subr.mxu0 0.0
        %670 = vmatpush2.msra.mxu0 0.0
        %671 = vmatprep.subr.mxu0 0.0
        %672 = vmatpush2.msra.mxu0 0.0
        %673 = vmatprep.subr.mxu0 0.0
        %674 = vmatpush2.msra.mxu0 0.0
        %675 = vmatprep.subr.mxu0 0.0
        %676 = vmatpush2.msra.mxu0 0.0
        %677 = vmatprep.subr.mxu0 0.0
        %678 = vmatpush2.msra.mxu0 0.0
        %679 = vmatprep.subr.mxu0 0.0
        %680 = vmatpush2.msra.mxu0 0.0
        %681 = vmatprep.subr.mxu0 0.0
        %682 = vmatpush2.msra.mxu0 0.0
        %683 = vmatprep.subr.mxu0 0.0
        %684 = vmatpush2.msra.mxu0 0.0
        %685 = vmatprep.subr.mxu0 0.0
        %686 = vmatpush2.msra.mxu0 0.0
        %687 = vmatprep.subr.mxu0 0.0
        %688 = vmatpush2.msra.mxu0 0.0
        %689 = vmatprep.subr.mxu0 0.0
        %690 = vmatpush2.msra.mxu0 0.0
        %691 = vmatprep.subr.mxu0 0.0
        %692 = vmatpush2.msra.mxu0 0.0
        %693 = vmatprep.mubr.f32.mxu0 0.0
        %694 = vmatmul.mubr.f32.gmra.mxu0 %v618
        %v695 = vpop.f32.mrf.mxu0
        %v696 = vadd.f32 0.0, %v695
        %v697 = vpop.f32.mrf.mxu0
        %v698 = vadd.f32 0.0, %v697
        %699 = vmatprep.mubr.f32.mxu0 0.0
        %700 = vmatmul.mubr.f32.gmra.mxu0 %v621
        %v701 = vpop.f32.mrf.mxu0
        %v702 = vadd.f32 0.0, %v701
        %v703 = vpop.f32.mrf.mxu0
        %v704 = vadd.f32 0.0, %v703
        %705 = vmatprep.mubr.f32.mxu0 0.0
        %706 = vmatmul.mubr.f32.gmra.mxu0 %v624
        %v707 = vpop.f32.mrf.mxu0
        %v708 = vadd.f32 0.0, %v707
        %v709 = vpop.f32.mrf.mxu0
        %v710 = vadd.f32 0.0, %v709
        %711 = vmatprep.mubr.f32.mxu0 0.0
        %712 = vmatmul.mubr.f32.gmra.mxu0 %v627
        %v713 = vpop.f32.mrf.mxu0
        %v714 = vadd.f32 0.0, %v713
        %v715 = vpop.f32.mrf.mxu0
        %v716 = vadd.f32 0.0, %v715
        %717 = vdwg.mxu0
        %s718 = scalar_lea.vmem [#allocation2], 512
        %v719 = vld [vmem:[%s718] sm:$0xff]
        %v720 = vld [vmem:[%s718 + $0x8] sm:$0xff]
        %v721 = vld [vmem:[%s718 + $0x10] sm:$0xff]
        %v722 = vld [vmem:[%s718 + $0x18] sm:$0xff]
        %v723 = vld [vmem:[%s718 + $0x20] sm:$0xff]
        %v724 = vld [vmem:[%s718 + $0x28] sm:$0xff]
        %v725 = vld [vmem:[%s718 + $0x30] sm:$0xff]
        %v726 = vld [vmem:[%s718 + $0x38] sm:$0xff]
        %v727 = vld [vmem:[%s718 + $0x40] sm:$0xff]
        %v728 = vld [vmem:[%s718 + $0x48] sm:$0xff]
        %v729 = vld [vmem:[%s718 + $0x50] sm:$0xff]
        %v730 = vld [vmem:[%s718 + $0x58] sm:$0xff]
        %v731 = vld [vmem:[%s718 + $0x60] sm:$0xff]
        %v732 = vld [vmem:[%s718 + $0x68] sm:$0xff]
        %v733 = vld [vmem:[%s718 + $0x70] sm:$0xff]
        %v734 = vld [vmem:[%s718 + $0x78] sm:$0xff]
        %v735 = vld [vmem:[%s718 + $0x80] sm:$0xff]
        %v736 = vld [vmem:[%s718 + $0x88] sm:$0xff]
        %v737 = vld [vmem:[%s718 + $0x90] sm:$0xff]
        %v738 = vld [vmem:[%s718 + $0x98] sm:$0xff]
        %v739 = vld [vmem:[%s718 + $0xa0] sm:$0xff]
        %v740 = vld [vmem:[%s718 + $0xa8] sm:$0xff]
        %v741 = vld [vmem:[%s718 + $0xb0] sm:$0xff]
        %v742 = vld [vmem:[%s718 + $0xb8] sm:$0xff]
        %v743 = vld [vmem:[%s718 + $0xc0] sm:$0xff]
        %v744 = vld [vmem:[%s718 + $0xc8] sm:$0xff]
        %v745 = vld [vmem:[%s718 + $0xd0] sm:$0xff]
        %v746 = vld [vmem:[%s718 + $0xd8] sm:$0xff]
        %v747 = vld [vmem:[%s718 + $0xe0] sm:$0xff]
        %v748 = vld [vmem:[%s718 + $0xe8] sm:$0xff]
        %v749 = vld [vmem:[%s718 + $0xf0] sm:$0xff]
        %v750 = vld [vmem:[%s718 + $0xf8] sm:$0xff]
        %v751 = vld [vmem:[%s718 + $0x100] sm:$0xff]
        %v752 = vld [vmem:[%s718 + $0x108] sm:$0xff]
        %v753 = vld [vmem:[%s718 + $0x110] sm:$0xff]
        %v754 = vld [vmem:[%s718 + $0x118] sm:$0xff]
        %v755 = vld [vmem:[%s718 + $0x120] sm:$0xff]
        %v756 = vld [vmem:[%s718 + $0x128] sm:$0xff]
        %v757 = vld [vmem:[%s718 + $0x130] sm:$0xff]
        %v758 = vld [vmem:[%s718 + $0x138] sm:$0xff]
        %v759 = vld [vmem:[%s718 + $0x140] sm:$0xff]
        %v760 = vld [vmem:[%s718 + $0x148] sm:$0xff]
        %v761 = vld [vmem:[%s718 + $0x150] sm:$0xff]
        %v762 = vld [vmem:[%s718 + $0x158] sm:$0xff]
        %v763 = vld [vmem:[%s718 + $0x160] sm:$0xff]
        %v764 = vld [vmem:[%s718 + $0x168] sm:$0xff]
        %v765 = vld [vmem:[%s718 + $0x170] sm:$0xff]
        %v766 = vld [vmem:[%s718 + $0x178] sm:$0xff]
        %v767 = vld [vmem:[%s718 + $0x180] sm:$0xff]
        %v768 = vld [vmem:[%s718 + $0x188] sm:$0xff]
        %v769 = vld [vmem:[%s718 + $0x190] sm:$0xff]
        %v770 = vld [vmem:[%s718 + $0x198] sm:$0xff]
        %v771 = vld [vmem:[%s718 + $0x1a0] sm:$0xff]
        %v772 = vld [vmem:[%s718 + $0x1a8] sm:$0xff]
        %v773 = vld [vmem:[%s718 + $0x1b0] sm:$0xff]
        %v774 = vld [vmem:[%s718 + $0x1b8] sm:$0xff]
        %v775 = vld [vmem:[%s718 + $0x1c0] sm:$0xff]
        %v776 = vld [vmem:[%s718 + $0x1c8] sm:$0xff]
        %v777 = vld [vmem:[%s718 + $0x1d0] sm:$0xff]
        %v778 = vld [vmem:[%s718 + $0x1d8] sm:$0xff]
        %v779 = vld [vmem:[%s718 + $0x1e0] sm:$0xff]
        %v780 = vld [vmem:[%s718 + $0x1e8] sm:$0xff]
        %v781 = vld [vmem:[%s718 + $0x1f0] sm:$0xff]
        %v782 = vld [vmem:[%s718 + $0x1f8] sm:$0xff]
        %783 = vmatprep.subr.mxu0 %v750
        %784 = vmatpush1.msra.mxu0 %v749
        %785 = vmatprep.subr.mxu0 %v748
        %786 = vmatpush1.msra.mxu0 %v747
        %787 = vmatprep.subr.mxu0 %v746
        %788 = vmatpush1.msra.mxu0 %v745
        %789 = vmatprep.subr.mxu0 %v744
        %790 = vmatpush1.msra.mxu0 %v743
        %791 = vmatprep.subr.mxu0 %v742
        %792 = vmatpush1.msra.mxu0 %v741
        %793 = vmatprep.subr.mxu0 %v740
        %794 = vmatpush1.msra.mxu0 %v739
        %795 = vmatprep.subr.mxu0 %v738
        %796 = vmatpush1.msra.mxu0 %v737
        %797 = vmatprep.subr.mxu0 %v736
        %798 = vmatpush1.msra.mxu0 %v735
        %799 = vmatprep.subr.mxu0 %v734
        %800 = vmatpush1.msra.mxu0 %v733
        %801 = vmatprep.subr.mxu0 %v732
        %802 = vmatpush1.msra.mxu0 %v731
        %803 = vmatprep.subr.mxu0 %v730
        %804 = vmatpush1.msra.mxu0 %v729
        %805 = vmatprep.subr.mxu0 %v728
        %806 = vmatpush1.msra.mxu0 %v727
        %807 = vmatprep.subr.mxu0 %v726
        %808 = vmatpush1.msra.mxu0 %v725
        %809 = vmatprep.subr.mxu0 %v724
        %810 = vmatpush1.msra.mxu0 %v723
        %811 = vmatprep.subr.mxu0 %v722
        %812 = vmatpush1.msra.mxu0 %v721
        %813 = vmatprep.subr.mxu0 %v720
        %814 = vmatpush1.msra.mxu0 %v719
        %815 = vmatprep.subr.mxu0 %v782
        %816 = vmatpush2.msra.mxu0 %v781
        %817 = vmatprep.subr.mxu0 %v780
        %818 = vmatpush2.msra.mxu0 %v779
        %819 = vmatprep.subr.mxu0 %v778
        %820 = vmatpush2.msra.mxu0 %v777
        %821 = vmatprep.subr.mxu0 %v776
        %822 = vmatpush2.msra.mxu0 %v775
        %823 = vmatprep.subr.mxu0 %v774
        %824 = vmatpush2.msra.mxu0 %v773
        %825 = vmatprep.subr.mxu0 %v772
        %826 = vmatpush2.msra.mxu0 %v771
        %827 = vmatprep.subr.mxu0 %v770
        %828 = vmatpush2.msra.mxu0 %v769
        %829 = vmatprep.subr.mxu0 %v768
        %830 = vmatpush2.msra.mxu0 %v767
        %831 = vmatprep.subr.mxu0 %v766
        %832 = vmatpush2.msra.mxu0 %v765
        %833 = vmatprep.subr.mxu0 %v764
        %834 = vmatpush2.msra.mxu0 %v763
        %835 = vmatprep.subr.mxu0 %v762
        %836 = vmatpush2.msra.mxu0 %v761
        %837 = vmatprep.subr.mxu0 %v760
        %838 = vmatpush2.msra.mxu0 %v759
        %839 = vmatprep.subr.mxu0 %v758
        %840 = vmatpush2.msra.mxu0 %v757
        %841 = vmatprep.subr.mxu0 %v756
        %842 = vmatpush2.msra.mxu0 %v755
        %843 = vmatprep.subr.mxu0 %v754
        %844 = vmatpush2.msra.mxu0 %v753
        %845 = vmatprep.subr.mxu0 %v752
        %846 = vmatpush2.msra.mxu0 %v751
        %847 = vmatprep.mubr.f32.mxu0 %v698
        %848 = vmatmul.mubr.f32.gmra.mxu0 %v696
        %v849 = vpop.f32.mrf.mxu0
        %v850 = vadd.f32 0.0, %v849
        %v851 = vpop.f32.mrf.mxu0
        %v852 = vadd.f32 0.0, %v851
        %853 = vmatprep.mubr.f32.mxu0 %v704
        %854 = vmatmul.mubr.f32.gmra.mxu0 %v702
        %v855 = vpop.f32.mrf.mxu0
        %v856 = vadd.f32 0.0, %v855
        %v857 = vpop.f32.mrf.mxu0
        %v858 = vadd.f32 0.0, %v857
        %859 = vmatprep.mubr.f32.mxu0 %v710
        %860 = vmatmul.mubr.f32.gmra.mxu0 %v708
        %v861 = vpop.f32.mrf.mxu0
        %v862 = vadd.f32 0.0, %v861
        %v863 = vpop.f32.mrf.mxu0
        %v864 = vadd.f32 0.0, %v863
        %865 = vmatprep.mubr.f32.mxu0 %v716
        %866 = vmatmul.mubr.f32.gmra.mxu0 %v714
        %v867 = vpop.f32.mrf.mxu0
        %v868 = vadd.f32 0.0, %v867
        %v869 = vpop.f32.mrf.mxu0
        %v870 = vadd.f32 0.0, %v869
        %871 = vdwg.mxu0
        %872 = vmatprep.subr.mxu0 %v579
        %873 = vmatpush1.msra.mxu0 %v578
        %874 = vmatprep.subr.mxu0 %v577
        %875 = vmatpush1.msra.mxu0 %v576
        %876 = vmatprep.subr.mxu0 %v575
        %877 = vmatpush1.msra.mxu0 %v574
        %878 = vmatprep.subr.mxu0 %v573
        %879 = vmatpush1.msra.mxu0 %v572
        %880 = vmatprep.subr.mxu0 %v571
        %881 = vmatpush1.msra.mxu0 %v570
        %882 = vmatprep.subr.mxu0 %v569
        %883 = vmatpush1.msra.mxu0 %v568
        %884 = vmatprep.subr.mxu0 %v567
        %885 = vmatpush1.msra.mxu0 %v566
        %886 = vmatprep.subr.mxu0 %v565
        %887 = vmatpush1.msra.mxu0 %v564
        %888 = vmatprep.subr.mxu0 %v563
        %889 = vmatpush1.msra.mxu0 %v562
        %890 = vmatprep.subr.mxu0 %v561
        %891 = vmatpush1.msra.mxu0 %v560
        %892 = vmatprep.subr.mxu0 %v559
        %893 = vmatpush1.msra.mxu0 %v558
        %894 = vmatprep.subr.mxu0 %v557
        %895 = vmatpush1.msra.mxu0 %v556
        %896 = vmatprep.subr.mxu0 %v555
        %897 = vmatpush1.msra.mxu0 %v554
        %898 = vmatprep.subr.mxu0 %v553
        %899 = vmatpush1.msra.mxu0 %v552
        %900 = vmatprep.subr.mxu0 %v551
        %901 = vmatpush1.msra.mxu0 %v550
        %902 = vmatprep.subr.mxu0 %v549
        %903 = vmatpush1.msra.mxu0 %v548
        %904 = vmatprep.subr.mxu0 %v611
        %905 = vmatpush2.msra.mxu0 %v610
        %906 = vmatprep.subr.mxu0 %v609
        %907 = vmatpush2.msra.mxu0 %v608
        %908 = vmatprep.subr.mxu0 %v607
        %909 = vmatpush2.msra.mxu0 %v606
        %910 = vmatprep.subr.mxu0 %v605
        %911 = vmatpush2.msra.mxu0 %v604
        %912 = vmatprep.subr.mxu0 %v603
        %913 = vmatpush2.msra.mxu0 %v602
        %914 = vmatprep.subr.mxu0 %v601
        %915 = vmatpush2.msra.mxu0 %v600
        %916 = vmatprep.subr.mxu0 %v599
        %917 = vmatpush2.msra.mxu0 %v598
        %918 = vmatprep.subr.mxu0 %v597
        %919 = vmatpush2.msra.mxu0 %v596
        %920 = vmatprep.subr.mxu0 %v595
        %921 = vmatpush2.msra.mxu0 %v594
        %922 = vmatprep.subr.mxu0 %v593
        %923 = vmatpush2.msra.mxu0 %v592
        %924 = vmatprep.subr.mxu0 %v591
        %925 = vmatpush2.msra.mxu0 %v590
        %926 = vmatprep.subr.mxu0 %v589
        %927 = vmatpush2.msra.mxu0 %v588
        %928 = vmatprep.subr.mxu0 %v587
        %929 = vmatpush2.msra.mxu0 %v586
        %930 = vmatprep.subr.mxu0 %v585
        %931 = vmatpush2.msra.mxu0 %v584
        %932 = vmatprep.subr.mxu0 %v583
        %933 = vmatpush2.msra.mxu0 %v582
        %934 = vmatprep.subr.mxu0 %v581
        %935 = vmatpush2.msra.mxu0 %v580
        %936 = vmatprep.mubr.f32.mxu0 %v528
        %937 = vmatmul.mubr.f32.gmra.mxu0 %v526
        %v938 = vpop.f32.mrf.mxu0
        %v939 = vadd.f32 %v850, %v938
        %v940 = vpop.f32.mrf.mxu0
        %v941 = vadd.f32 %v852, %v940
        %942 = vmatprep.mubr.f32.mxu0 %v534
        %943 = vmatmul.mubr.f32.gmra.mxu0 %v532
        %v944 = vpop.f32.mrf.mxu0
        %v945 = vadd.f32 %v856, %v944
        %v946 = vpop.f32.mrf.mxu0
        %v947 = vadd.f32 %v858, %v946
        %948 = vmatprep.mubr.f32.mxu0 %v540
        %949 = vmatmul.mubr.f32.gmra.mxu0 %v538
        %v950 = vpop.f32.mrf.mxu0
        %v951 = vadd.f32 %v862, %v950
        %v952 = vpop.f32.mrf.mxu0
        %v953 = vadd.f32 %v864, %v952
        %954 = vmatprep.mubr.f32.mxu0 %v546
        %955 = vmatmul.mubr.f32.gmra.mxu0 %v544
        %v956 = vpop.f32.mrf.mxu0
        %v957 = vadd.f32 %v868, %v956
        %v958 = vpop.f32.mrf.mxu0
        %v959 = vadd.f32 %v870, %v958
        %960 = vdwg.mxu0
        %s961 = scalar_lea.vmem [#allocation5], 64
        %v962 = vld [vmem:[%s961] sm:$0xff]
        %v963 = vld [vmem:[%s961 + $0x8] sm:$0xff]
        %v964 = vld [vmem:[%s961 + $0x10] sm:$0xff]
        %v965 = vld [vmem:[%s961 + $0x18] sm:$0xff]
        %v967 = vsel %vm446, %v962, 0
        %v970 = vsel %vm446, %v963, 0
        %v973 = vsel %vm446, %v964, 0
        %v976 = vsel %vm446, %v965, 0
        %978 = vmatprep.subr.mxu0 0.0
        %979 = vmatpush1.msra.mxu0 0.0
        %980 = vmatprep.subr.mxu0 0.0
        %981 = vmatpush1.msra.mxu0 0.0
        %982 = vmatprep.subr.mxu0 0.0
        %983 = vmatpush1.msra.mxu0 0.0
        %984 = vmatprep.subr.mxu0 0.0
        %985 = vmatpush1.msra.mxu0 0.0
        %986 = vmatprep.subr.mxu0 0.0
        %987 = vmatpush1.msra.mxu0 0.0
        %988 = vmatprep.subr.mxu0 0.0
        %989 = vmatpush1.msra.mxu0 0.0
        %990 = vmatprep.subr.mxu0 0.0
        %991 = vmatpush1.msra.mxu0 0.0
        %992 = vmatprep.subr.mxu0 0.0
        %993 = vmatpush1.msra.mxu0 0.0
        %994 = vmatprep.subr.mxu0 0.0
        %995 = vmatpush1.msra.mxu0 0.0
        %996 = vmatprep.subr.mxu0 0.0
        %997 = vmatpush1.msra.mxu0 0.0
        %998 = vmatprep.subr.mxu0 0.0
        %999 = vmatpush1.msra.mxu0 0.0
        %1000 = vmatprep.subr.mxu0 0.0
        %1001 = vmatpush1.msra.mxu0 0.0
        %1002 = vmatprep.subr.mxu0 %v441
        %1003 = vmatpush1.msra.mxu0 %v440
        %1004 = vmatprep.subr.mxu0 %v439
        %1005 = vmatpush1.msra.mxu0 %v438
        %1006 = vmatprep.subr.mxu0 %v437
        %1007 = vmatpush1.msra.mxu0 %v436
        %1008 = vmatprep.subr.mxu0 %v435
        %1009 = vmatpush1.msra.mxu0 %v434
        %1010 = vmatprep.subr.mxu0 0.0
        %1011 = vmatpush2.msra.mxu0 0.0
        %1012 = vmatprep.subr.mxu0 0.0
        %1013 = vmatpush2.msra.mxu0 0.0
        %1014 = vmatprep.subr.mxu0 0.0
        %1015 = vmatpush2.msra.mxu0 0.0
        %1016 = vmatprep.subr.mxu0 0.0
        %1017 = vmatpush2.msra.mxu0 0.0
        %1018 = vmatprep.subr.mxu0 0.0
        %1019 = vmatpush2.msra.mxu0 0.0
        %1020 = vmatprep.subr.mxu0 0.0
        %1021 = vmatpush2.msra.mxu0 0.0
        %1022 = vmatprep.subr.mxu0 0.0
        %1023 = vmatpush2.msra.mxu0 0.0
        %1024 = vmatprep.subr.mxu0 0.0
        %1025 = vmatpush2.msra.mxu0 0.0
        %1026 = vmatprep.subr.mxu0 0.0
        %1027 = vmatpush2.msra.mxu0 0.0
        %1028 = vmatprep.subr.mxu0 0.0
        %1029 = vmatpush2.msra.mxu0 0.0
        %1030 = vmatprep.subr.mxu0 0.0
        %1031 = vmatpush2.msra.mxu0 0.0
        %1032 = vmatprep.subr.mxu0 0.0
        %1033 = vmatpush2.msra.mxu0 0.0
        %1034 = vmatprep.subr.mxu0 0.0
        %1035 = vmatpush2.msra.mxu0 0.0
        %1036 = vmatprep.subr.mxu0 0.0
        %1037 = vmatpush2.msra.mxu0 0.0
        %1038 = vmatprep.subr.mxu0 0.0
        %1039 = vmatpush2.msra.mxu0 0.0
        %1040 = vmatprep.subr.mxu0 0.0
        %1041 = vmatpush2.msra.mxu0 0.0
        %1042 = vmatprep.mubr.f32.mxu0 0.0
        %1043 = vmatmul.mubr.f32.gmra.mxu0 %v967
        %v1044 = vpop.f32.mrf.mxu0
        %v1045 = vadd.f32 0.0, %v1044
        %v1046 = vpop.f32.mrf.mxu0
        %v1047 = vadd.f32 0.0, %v1046
        %1048 = vmatprep.mubr.f32.mxu0 0.0
        %1049 = vmatmul.mubr.f32.gmra.mxu0 %v970
        %v1050 = vpop.f32.mrf.mxu0
        %v1051 = vadd.f32 0.0, %v1050
        %v1052 = vpop.f32.mrf.mxu0
        %v1053 = vadd.f32 0.0, %v1052
        %1054 = vmatprep.mubr.f32.mxu0 0.0
        %1055 = vmatmul.mubr.f32.gmra.mxu0 %v973
        %v1056 = vpop.f32.mrf.mxu0
        %v1057 = vadd.f32 0.0, %v1056
        %v1058 = vpop.f32.mrf.mxu0
        %v1059 = vadd.f32 0.0, %v1058
        %1060 = vmatprep.mubr.f32.mxu0 0.0
        %1061 = vmatmul.mubr.f32.gmra.mxu0 %v976
        %v1062 = vpop.f32.mrf.mxu0
        %v1063 = vadd.f32 0.0, %v1062
        %v1064 = vpop.f32.mrf.mxu0
        %v1065 = vadd.f32 0.0, %v1064
        %1066 = vdwg.mxu0
        %s1067 = scalar_lea.vmem [#allocation2], 1024
        %v1068 = vld [vmem:[%s1067] sm:$0xff]
        %v1069 = vld [vmem:[%s1067 + $0x8] sm:$0xff]
        %v1070 = vld [vmem:[%s1067 + $0x10] sm:$0xff]
        %v1071 = vld [vmem:[%s1067 + $0x18] sm:$0xff]
        %v1072 = vld [vmem:[%s1067 + $0x20] sm:$0xff]
        %v1073 = vld [vmem:[%s1067 + $0x28] sm:$0xff]
        %v1074 = vld [vmem:[%s1067 + $0x30] sm:$0xff]
        %v1075 = vld [vmem:[%s1067 + $0x38] sm:$0xff]
        %v1076 = vld [vmem:[%s1067 + $0x40] sm:$0xff]
        %v1077 = vld [vmem:[%s1067 + $0x48] sm:$0xff]
        %v1078 = vld [vmem:[%s1067 + $0x50] sm:$0xff]
        %v1079 = vld [vmem:[%s1067 + $0x58] sm:$0xff]
        %v1080 = vld [vmem:[%s1067 + $0x60] sm:$0xff]
        %v1081 = vld [vmem:[%s1067 + $0x68] sm:$0xff]
        %v1082 = vld [vmem:[%s1067 + $0x70] sm:$0xff]
        %v1083 = vld [vmem:[%s1067 + $0x78] sm:$0xff]
        %v1084 = vld [vmem:[%s1067 + $0x80] sm:$0xff]
        %v1085 = vld [vmem:[%s1067 + $0x88] sm:$0xff]
        %v1086 = vld [vmem:[%s1067 + $0x90] sm:$0xff]
        %v1087 = vld [vmem:[%s1067 + $0x98] sm:$0xff]
        %v1088 = vld [vmem:[%s1067 + $0xa0] sm:$0xff]
        %v1089 = vld [vmem:[%s1067 + $0xa8] sm:$0xff]
        %v1090 = vld [vmem:[%s1067 + $0xb0] sm:$0xff]
        %v1091 = vld [vmem:[%s1067 + $0xb8] sm:$0xff]
        %v1092 = vld [vmem:[%s1067 + $0xc0] sm:$0xff]
        %v1093 = vld [vmem:[%s1067 + $0xc8] sm:$0xff]
        %v1094 = vld [vmem:[%s1067 + $0xd0] sm:$0xff]
        %v1095 = vld [vmem:[%s1067 + $0xd8] sm:$0xff]
        %v1096 = vld [vmem:[%s1067 + $0xe0] sm:$0xff]
        %v1097 = vld [vmem:[%s1067 + $0xe8] sm:$0xff]
        %v1098 = vld [vmem:[%s1067 + $0xf0] sm:$0xff]
        %v1099 = vld [vmem:[%s1067 + $0xf8] sm:$0xff]
        %v1100 = vld [vmem:[%s1067 + $0x100] sm:$0xff]
        %v1101 = vld [vmem:[%s1067 + $0x108] sm:$0xff]
        %v1102 = vld [vmem:[%s1067 + $0x110] sm:$0xff]
        %v1103 = vld [vmem:[%s1067 + $0x118] sm:$0xff]
        %v1104 = vld [vmem:[%s1067 + $0x120] sm:$0xff]
        %v1105 = vld [vmem:[%s1067 + $0x128] sm:$0xff]
        %v1106 = vld [vmem:[%s1067 + $0x130] sm:$0xff]
        %v1107 = vld [vmem:[%s1067 + $0x138] sm:$0xff]
        %v1108 = vld [vmem:[%s1067 + $0x140] sm:$0xff]
        %v1109 = vld [vmem:[%s1067 + $0x148] sm:$0xff]
        %v1110 = vld [vmem:[%s1067 + $0x150] sm:$0xff]
        %v1111 = vld [vmem:[%s1067 + $0x158] sm:$0xff]
        %v1112 = vld [vmem:[%s1067 + $0x160] sm:$0xff]
        %v1113 = vld [vmem:[%s1067 + $0x168] sm:$0xff]
        %v1114 = vld [vmem:[%s1067 + $0x170] sm:$0xff]
        %v1115 = vld [vmem:[%s1067 + $0x178] sm:$0xff]
        %v1116 = vld [vmem:[%s1067 + $0x180] sm:$0xff]
        %v1117 = vld [vmem:[%s1067 + $0x188] sm:$0xff]
        %v1118 = vld [vmem:[%s1067 + $0x190] sm:$0xff]
        %v1119 = vld [vmem:[%s1067 + $0x198] sm:$0xff]
        %v1120 = vld [vmem:[%s1067 + $0x1a0] sm:$0xff]
        %v1121 = vld [vmem:[%s1067 + $0x1a8] sm:$0xff]
        %v1122 = vld [vmem:[%s1067 + $0x1b0] sm:$0xff]
        %v1123 = vld [vmem:[%s1067 + $0x1b8] sm:$0xff]
        %v1124 = vld [vmem:[%s1067 + $0x1c0] sm:$0xff]
        %v1125 = vld [vmem:[%s1067 + $0x1c8] sm:$0xff]
        %v1126 = vld [vmem:[%s1067 + $0x1d0] sm:$0xff]
        %v1127 = vld [vmem:[%s1067 + $0x1d8] sm:$0xff]
        %v1128 = vld [vmem:[%s1067 + $0x1e0] sm:$0xff]
        %v1129 = vld [vmem:[%s1067 + $0x1e8] sm:$0xff]
        %v1130 = vld [vmem:[%s1067 + $0x1f0] sm:$0xff]
        %v1131 = vld [vmem:[%s1067 + $0x1f8] sm:$0xff]
        %1132 = vmatprep.subr.mxu0 %v1099
        %1133 = vmatpush1.msra.mxu0 %v1098
        %1134 = vmatprep.subr.mxu0 %v1097
        %1135 = vmatpush1.msra.mxu0 %v1096
        %1136 = vmatprep.subr.mxu0 %v1095
        %1137 = vmatpush1.msra.mxu0 %v1094
        %1138 = vmatprep.subr.mxu0 %v1093
        %1139 = vmatpush1.msra.mxu0 %v1092
        %1140 = vmatprep.subr.mxu0 %v1091
        %1141 = vmatpush1.msra.mxu0 %v1090
        %1142 = vmatprep.subr.mxu0 %v1089
        %1143 = vmatpush1.msra.mxu0 %v1088
        %1144 = vmatprep.subr.mxu0 %v1087
        %1145 = vmatpush1.msra.mxu0 %v1086
        %1146 = vmatprep.subr.mxu0 %v1085
        %1147 = vmatpush1.msra.mxu0 %v1084
        %1148 = vmatprep.subr.mxu0 %v1083
        %1149 = vmatpush1.msra.mxu0 %v1082
        %1150 = vmatprep.subr.mxu0 %v1081
        %1151 = vmatpush1.msra.mxu0 %v1080
        %1152 = vmatprep.subr.mxu0 %v1079
        %1153 = vmatpush1.msra.mxu0 %v1078
        %1154 = vmatprep.subr.mxu0 %v1077
        %1155 = vmatpush1.msra.mxu0 %v1076
        %1156 = vmatprep.subr.mxu0 %v1075
        %1157 = vmatpush1.msra.mxu0 %v1074
        %1158 = vmatprep.subr.mxu0 %v1073
        %1159 = vmatpush1.msra.mxu0 %v1072
        %1160 = vmatprep.subr.mxu0 %v1071
        %1161 = vmatpush1.msra.mxu0 %v1070
        %1162 = vmatprep.subr.mxu0 %v1069
        %1163 = vmatpush1.msra.mxu0 %v1068
        %1164 = vmatprep.subr.mxu0 %v1131
        %1165 = vmatpush2.msra.mxu0 %v1130
        %1166 = vmatprep.subr.mxu0 %v1129
        %1167 = vmatpush2.msra.mxu0 %v1128
        %1168 = vmatprep.subr.mxu0 %v1127
        %1169 = vmatpush2.msra.mxu0 %v1126
        %1170 = vmatprep.subr.mxu0 %v1125
        %1171 = vmatpush2.msra.mxu0 %v1124
        %1172 = vmatprep.subr.mxu0 %v1123
        %1173 = vmatpush2.msra.mxu0 %v1122
        %1174 = vmatprep.subr.mxu0 %v1121
        %1175 = vmatpush2.msra.mxu0 %v1120
        %1176 = vmatprep.subr.mxu0 %v1119
        %1177 = vmatpush2.msra.mxu0 %v1118
        %1178 = vmatprep.subr.mxu0 %v1117
        %1179 = vmatpush2.msra.mxu0 %v1116
        %1180 = vmatprep.subr.mxu0 %v1115
        %1181 = vmatpush2.msra.mxu0 %v1114
        %1182 = vmatprep.subr.mxu0 %v1113
        %1183 = vmatpush2.msra.mxu0 %v1112
        %1184 = vmatprep.subr.mxu0 %v1111
        %1185 = vmatpush2.msra.mxu0 %v1110
        %1186 = vmatprep.subr.mxu0 %v1109
        %1187 = vmatpush2.msra.mxu0 %v1108
        %1188 = vmatprep.subr.mxu0 %v1107
        %1189 = vmatpush2.msra.mxu0 %v1106
        %1190 = vmatprep.subr.mxu0 %v1105
        %1191 = vmatpush2.msra.mxu0 %v1104
        %1192 = vmatprep.subr.mxu0 %v1103
        %1193 = vmatpush2.msra.mxu0 %v1102
        %1194 = vmatprep.subr.mxu0 %v1101
        %1195 = vmatpush2.msra.mxu0 %v1100
        %1196 = vmatprep.mubr.f32.mxu0 %v1047
        %1197 = vmatmul.mubr.f32.gmra.mxu0 %v1045
        %v1198 = vpop.f32.mrf.mxu0
        %v1199 = vadd.f32 0.0, %v1198
        %v1200 = vpop.f32.mrf.mxu0
        %v1201 = vadd.f32 0.0, %v1200
        %1202 = vmatprep.mubr.f32.mxu0 %v1053
        %1203 = vmatmul.mubr.f32.gmra.mxu0 %v1051
        %v1204 = vpop.f32.mrf.mxu0
        %v1205 = vadd.f32 0.0, %v1204
        %v1206 = vpop.f32.mrf.mxu0
        %v1207 = vadd.f32 0.0, %v1206
        %1208 = vmatprep.mubr.f32.mxu0 %v1059
        %1209 = vmatmul.mubr.f32.gmra.mxu0 %v1057
        %v1210 = vpop.f32.mrf.mxu0
        %v1211 = vadd.f32 0.0, %v1210
        %v1212 = vpop.f32.mrf.mxu0
        %v1213 = vadd.f32 0.0, %v1212
        %1214 = vmatprep.mubr.f32.mxu0 %v1065
        %1215 = vmatmul.mubr.f32.gmra.mxu0 %v1063
        %v1216 = vpop.f32.mrf.mxu0
        %v1217 = vadd.f32 0.0, %v1216
        %v1218 = vpop.f32.mrf.mxu0
        %v1219 = vadd.f32 0.0, %v1218
        %1220 = vdwg.mxu0
        %v1221 = vadd.f32 %v939, %v1199
        %v1222 = vadd.f32 %v941, %v1201
        %v1223 = vadd.f32 %v945, %v1205
        %v1224 = vadd.f32 %v947, %v1207
        %v1225 = vadd.f32 %v951, %v1211
        %v1226 = vadd.f32 %v953, %v1213
        %v1227 = vadd.f32 %v957, %v1217
        %v1228 = vadd.f32 %v959, %v1219
        %s1229 = scalar_lea.vmem [#allocation5], 96
        %v1230 = vld [vmem:[%s1229] sm:$0xff]
        %v1231 = vld [vmem:[%s1229 + $0x8] sm:$0xff]
        %v1232 = vld [vmem:[%s1229 + $0x10] sm:$0xff]
        %v1233 = vld [vmem:[%s1229 + $0x18] sm:$0xff]
        %v1235 = vsel %vm446, %v1230, 0
        %v1238 = vsel %vm446, %v1231, 0
        %v1241 = vsel %vm446, %v1232, 0
        %v1244 = vsel %vm446, %v1233, 0
        %1246 = vmatprep.subr.mxu0 0.0
        %1247 = vmatpush1.msra.mxu0 0.0
        %1248 = vmatprep.subr.mxu0 0.0
        %1249 = vmatpush1.msra.mxu0 0.0
        %1250 = vmatprep.subr.mxu0 0.0
        %1251 = vmatpush1.msra.mxu0 0.0
        %1252 = vmatprep.subr.mxu0 0.0
        %1253 = vmatpush1.msra.mxu0 0.0
        %1254 = vmatprep.subr.mxu0 0.0
        %1255 = vmatpush1.msra.mxu0 0.0
        %1256 = vmatprep.subr.mxu0 0.0
        %1257 = vmatpush1.msra.mxu0 0.0
        %1258 = vmatprep.subr.mxu0 0.0
        %1259 = vmatpush1.msra.mxu0 0.0
        %1260 = vmatprep.subr.mxu0 0.0
        %1261 = vmatpush1.msra.mxu0 0.0
        %1262 = vmatprep.subr.mxu0 0.0
        %1263 = vmatpush1.msra.mxu0 0.0
        %1264 = vmatprep.subr.mxu0 0.0
        %1265 = vmatpush1.msra.mxu0 0.0
        %1266 = vmatprep.subr.mxu0 0.0
        %1267 = vmatpush1.msra.mxu0 0.0
        %1268 = vmatprep.subr.mxu0 0.0
        %1269 = vmatpush1.msra.mxu0 0.0
        %1270 = vmatprep.subr.mxu0 %v441
        %1271 = vmatpush1.msra.mxu0 %v440
        %1272 = vmatprep.subr.mxu0 %v439
        %1273 = vmatpush1.msra.mxu0 %v438
        %1274 = vmatprep.subr.mxu0 %v437
        %1275 = vmatpush1.msra.mxu0 %v436
        %1276 = vmatprep.subr.mxu0 %v435
        %1277 = vmatpush1.msra.mxu0 %v434
        %1278 = vmatprep.subr.mxu0 0.0
        %1279 = vmatpush2.msra.mxu0 0.0
        %1280 = vmatprep.subr.mxu0 0.0
        %1281 = vmatpush2.msra.mxu0 0.0
        %1282 = vmatprep.subr.mxu0 0.0
        %1283 = vmatpush2.msra.mxu0 0.0
        %1284 = vmatprep.subr.mxu0 0.0
        %1285 = vmatpush2.msra.mxu0 0.0
        %1286 = vmatprep.subr.mxu0 0.0
        %1287 = vmatpush2.msra.mxu0 0.0
        %1288 = vmatprep.subr.mxu0 0.0
        %1289 = vmatpush2.msra.mxu0 0.0
        %1290 = vmatprep.subr.mxu0 0.0
        %1291 = vmatpush2.msra.mxu0 0.0
        %1292 = vmatprep.subr.mxu0 0.0
        %1293 = vmatpush2.msra.mxu0 0.0
        %1294 = vmatprep.subr.mxu0 0.0
        %1295 = vmatpush2.msra.mxu0 0.0
        %1296 = vmatprep.subr.mxu0 0.0
        %1297 = vmatpush2.msra.mxu0 0.0
        %1298 = vmatprep.subr.mxu0 0.0
        %1299 = vmatpush2.msra.mxu0 0.0
        %1300 = vmatprep.subr.mxu0 0.0
        %1301 = vmatpush2.msra.mxu0 0.0
        %1302 = vmatprep.subr.mxu0 0.0
        %1303 = vmatpush2.msra.mxu0 0.0
        %1304 = vmatprep.subr.mxu0 0.0
        %1305 = vmatpush2.msra.mxu0 0.0
        %1306 = vmatprep.subr.mxu0 0.0
        %1307 = vmatpush2.msra.mxu0 0.0
        %1308 = vmatprep.subr.mxu0 0.0
        %1309 = vmatpush2.msra.mxu0 0.0
        %1310 = vmatprep.mubr.f32.mxu0 0.0
        %1311 = vmatmul.mubr.f32.gmra.mxu0 %v1235
        %v1312 = vpop.f32.mrf.mxu0
        %v1313 = vadd.f32 0.0, %v1312
        %v1314 = vpop.f32.mrf.mxu0
        %v1315 = vadd.f32 0.0, %v1314
        %1316 = vmatprep.mubr.f32.mxu0 0.0
        %1317 = vmatmul.mubr.f32.gmra.mxu0 %v1238
        %v1318 = vpop.f32.mrf.mxu0
        %v1319 = vadd.f32 0.0, %v1318
        %v1320 = vpop.f32.mrf.mxu0
        %v1321 = vadd.f32 0.0, %v1320
        %1322 = vmatprep.mubr.f32.mxu0 0.0
        %1323 = vmatmul.mubr.f32.gmra.mxu0 %v1241
        %v1324 = vpop.f32.mrf.mxu0
        %v1325 = vadd.f32 0.0, %v1324
        %v1326 = vpop.f32.mrf.mxu0
        %v1327 = vadd.f32 0.0, %v1326
        %1328 = vmatprep.mubr.f32.mxu0 0.0
        %1329 = vmatmul.mubr.f32.gmra.mxu0 %v1244
        %v1330 = vpop.f32.mrf.mxu0
        %v1331 = vadd.f32 0.0, %v1330
        %v1332 = vpop.f32.mrf.mxu0
        %v1333 = vadd.f32 0.0, %v1332
        %1334 = vdwg.mxu0
        %s1335 = scalar_lea.vmem [#allocation2], 1536
        %v1336 = vld [vmem:[%s1335] sm:$0xff]
        %v1337 = vld [vmem:[%s1335 + $0x8] sm:$0xff]
        %v1338 = vld [vmem:[%s1335 + $0x10] sm:$0xff]
        %v1339 = vld [vmem:[%s1335 + $0x18] sm:$0xff]
        %v1340 = vld [vmem:[%s1335 + $0x20] sm:$0xff]
        %v1341 = vld [vmem:[%s1335 + $0x28] sm:$0xff]
        %v1342 = vld [vmem:[%s1335 + $0x30] sm:$0xff]
        %v1343 = vld [vmem:[%s1335 + $0x38] sm:$0xff]
        %v1344 = vld [vmem:[%s1335 + $0x40] sm:$0xff]
        %v1345 = vld [vmem:[%s1335 + $0x48] sm:$0xff]
        %v1346 = vld [vmem:[%s1335 + $0x50] sm:$0xff]
        %v1347 = vld [vmem:[%s1335 + $0x58] sm:$0xff]
        %v1348 = vld [vmem:[%s1335 + $0x60] sm:$0xff]
        %v1349 = vld [vmem:[%s1335 + $0x68] sm:$0xff]
        %v1350 = vld [vmem:[%s1335 + $0x70] sm:$0xff]
        %v1351 = vld [vmem:[%s1335 + $0x78] sm:$0xff]
        %v1352 = vld [vmem:[%s1335 + $0x80] sm:$0xff]
        %v1353 = vld [vmem:[%s1335 + $0x88] sm:$0xff]
        %v1354 = vld [vmem:[%s1335 + $0x90] sm:$0xff]
        %v1355 = vld [vmem:[%s1335 + $0x98] sm:$0xff]
        %v1356 = vld [vmem:[%s1335 + $0xa0] sm:$0xff]
        %v1357 = vld [vmem:[%s1335 + $0xa8] sm:$0xff]
        %v1358 = vld [vmem:[%s1335 + $0xb0] sm:$0xff]
        %v1359 = vld [vmem:[%s1335 + $0xb8] sm:$0xff]
        %v1360 = vld [vmem:[%s1335 + $0xc0] sm:$0xff]
        %v1361 = vld [vmem:[%s1335 + $0xc8] sm:$0xff]
        %v1362 = vld [vmem:[%s1335 + $0xd0] sm:$0xff]
        %v1363 = vld [vmem:[%s1335 + $0xd8] sm:$0xff]
        %v1364 = vld [vmem:[%s1335 + $0xe0] sm:$0xff]
        %v1365 = vld [vmem:[%s1335 + $0xe8] sm:$0xff]
        %v1366 = vld [vmem:[%s1335 + $0xf0] sm:$0xff]
        %v1367 = vld [vmem:[%s1335 + $0xf8] sm:$0xff]
        %v1368 = vld [vmem:[%s1335 + $0x100] sm:$0xff]
        %v1369 = vld [vmem:[%s1335 + $0x108] sm:$0xff]
        %v1370 = vld [vmem:[%s1335 + $0x110] sm:$0xff]
        %v1371 = vld [vmem:[%s1335 + $0x118] sm:$0xff]
        %v1372 = vld [vmem:[%s1335 + $0x120] sm:$0xff]
        %v1373 = vld [vmem:[%s1335 + $0x128] sm:$0xff]
        %v1374 = vld [vmem:[%s1335 + $0x130] sm:$0xff]
        %v1375 = vld [vmem:[%s1335 + $0x138] sm:$0xff]
        %v1376 = vld [vmem:[%s1335 + $0x140] sm:$0xff]
        %v1377 = vld [vmem:[%s1335 + $0x148] sm:$0xff]
        %v1378 = vld [vmem:[%s1335 + $0x150] sm:$0xff]
        %v1379 = vld [vmem:[%s1335 + $0x158] sm:$0xff]
        %v1380 = vld [vmem:[%s1335 + $0x160] sm:$0xff]
        %v1381 = vld [vmem:[%s1335 + $0x168] sm:$0xff]
        %v1382 = vld [vmem:[%s1335 + $0x170] sm:$0xff]
        %v1383 = vld [vmem:[%s1335 + $0x178] sm:$0xff]
        %v1384 = vld [vmem:[%s1335 + $0x180] sm:$0xff]
        %v1385 = vld [vmem:[%s1335 + $0x188] sm:$0xff]
        %v1386 = vld [vmem:[%s1335 + $0x190] sm:$0xff]
        %v1387 = vld [vmem:[%s1335 + $0x198] sm:$0xff]
        %v1388 = vld [vmem:[%s1335 + $0x1a0] sm:$0xff]
        %v1389 = vld [vmem:[%s1335 + $0x1a8] sm:$0xff]
        %v1390 = vld [vmem:[%s1335 + $0x1b0] sm:$0xff]
        %v1391 = vld [vmem:[%s1335 + $0x1b8] sm:$0xff]
        %v1392 = vld [vmem:[%s1335 + $0x1c0] sm:$0xff]
        %v1393 = vld [vmem:[%s1335 + $0x1c8] sm:$0xff]
        %v1394 = vld [vmem:[%s1335 + $0x1d0] sm:$0xff]
        %v1395 = vld [vmem:[%s1335 + $0x1d8] sm:$0xff]
        %v1396 = vld [vmem:[%s1335 + $0x1e0] sm:$0xff]
        %v1397 = vld [vmem:[%s1335 + $0x1e8] sm:$0xff]
        %v1398 = vld [vmem:[%s1335 + $0x1f0] sm:$0xff]
        %v1399 = vld [vmem:[%s1335 + $0x1f8] sm:$0xff]
        %1400 = vmatprep.subr.mxu0 %v1367
        %1401 = vmatpush1.msra.mxu0 %v1366
        %1402 = vmatprep.subr.mxu0 %v1365
        %1403 = vmatpush1.msra.mxu0 %v1364
        %1404 = vmatprep.subr.mxu0 %v1363
        %1405 = vmatpush1.msra.mxu0 %v1362
        %1406 = vmatprep.subr.mxu0 %v1361
        %1407 = vmatpush1.msra.mxu0 %v1360
        %1408 = vmatprep.subr.mxu0 %v1359
        %1409 = vmatpush1.msra.mxu0 %v1358
        %1410 = vmatprep.subr.mxu0 %v1357
        %1411 = vmatpush1.msra.mxu0 %v1356
        %1412 = vmatprep.subr.mxu0 %v1355
        %1413 = vmatpush1.msra.mxu0 %v1354
        %1414 = vmatprep.subr.mxu0 %v1353
        %1415 = vmatpush1.msra.mxu0 %v1352
        %1416 = vmatprep.subr.mxu0 %v1351
        %1417 = vmatpush1.msra.mxu0 %v1350
        %1418 = vmatprep.subr.mxu0 %v1349
        %1419 = vmatpush1.msra.mxu0 %v1348
        %1420 = vmatprep.subr.mxu0 %v1347
        %1421 = vmatpush1.msra.mxu0 %v1346
        %1422 = vmatprep.subr.mxu0 %v1345
        %1423 = vmatpush1.msra.mxu0 %v1344
        %1424 = vmatprep.subr.mxu0 %v1343
        %1425 = vmatpush1.msra.mxu0 %v1342
        %1426 = vmatprep.subr.mxu0 %v1341
        %1427 = vmatpush1.msra.mxu0 %v1340
        %1428 = vmatprep.subr.mxu0 %v1339
        %1429 = vmatpush1.msra.mxu0 %v1338
        %1430 = vmatprep.subr.mxu0 %v1337
        %1431 = vmatpush1.msra.mxu0 %v1336
        %1432 = vmatprep.subr.mxu0 %v1399
        %1433 = vmatpush2.msra.mxu0 %v1398
        %1434 = vmatprep.subr.mxu0 %v1397
        %1435 = vmatpush2.msra.mxu0 %v1396
        %1436 = vmatprep.subr.mxu0 %v1395
        %1437 = vmatpush2.msra.mxu0 %v1394
        %1438 = vmatprep.subr.mxu0 %v1393
        %1439 = vmatpush2.msra.mxu0 %v1392
        %1440 = vmatprep.subr.mxu0 %v1391
        %1441 = vmatpush2.msra.mxu0 %v1390
        %1442 = vmatprep.subr.mxu0 %v1389
        %1443 = vmatpush2.msra.mxu0 %v1388
        %1444 = vmatprep.subr.mxu0 %v1387
        %1445 = vmatpush2.msra.mxu0 %v1386
        %1446 = vmatprep.subr.mxu0 %v1385
        %1447 = vmatpush2.msra.mxu0 %v1384
        %1448 = vmatprep.subr.mxu0 %v1383
        %1449 = vmatpush2.msra.mxu0 %v1382
        %1450 = vmatprep.subr.mxu0 %v1381
        %1451 = vmatpush2.msra.mxu0 %v1380
        %1452 = vmatprep.subr.mxu0 %v1379
        %1453 = vmatpush2.msra.mxu0 %v1378
        %1454 = vmatprep.subr.mxu0 %v1377
        %1455 = vmatpush2.msra.mxu0 %v1376
        %1456 = vmatprep.subr.mxu0 %v1375
        %1457 = vmatpush2.msra.mxu0 %v1374
        %1458 = vmatprep.subr.mxu0 %v1373
        %1459 = vmatpush2.msra.mxu0 %v1372
        %1460 = vmatprep.subr.mxu0 %v1371
        %1461 = vmatpush2.msra.mxu0 %v1370
        %1462 = vmatprep.subr.mxu0 %v1369
        %1463 = vmatpush2.msra.mxu0 %v1368
        %1464 = vmatprep.mubr.f32.mxu0 %v1315
        %1465 = vmatmul.mubr.f32.gmra.mxu0 %v1313
        %v1466 = vpop.f32.mrf.mxu0
        %v1467 = vadd.f32 0.0, %v1466
        %v1468 = vpop.f32.mrf.mxu0
        %v1469 = vadd.f32 0.0, %v1468
        %1470 = vmatprep.mubr.f32.mxu0 %v1321
        %1471 = vmatmul.mubr.f32.gmra.mxu0 %v1319
        %v1472 = vpop.f32.mrf.mxu0
        %v1473 = vadd.f32 0.0, %v1472
        %v1474 = vpop.f32.mrf.mxu0
        %v1475 = vadd.f32 0.0, %v1474
        %1476 = vmatprep.mubr.f32.mxu0 %v1327
        %1477 = vmatmul.mubr.f32.gmra.mxu0 %v1325
        %v1478 = vpop.f32.mrf.mxu0
        %v1479 = vadd.f32 0.0, %v1478
        %v1480 = vpop.f32.mrf.mxu0
        %v1481 = vadd.f32 0.0, %v1480
        %1482 = vmatprep.mubr.f32.mxu0 %v1333
        %1483 = vmatmul.mubr.f32.gmra.mxu0 %v1331
        %v1484 = vpop.f32.mrf.mxu0
        %v1485 = vadd.f32 0.0, %v1484
        %v1486 = vpop.f32.mrf.mxu0
        %v1487 = vadd.f32 0.0, %v1486
        %1488 = vdwg.mxu0
        %v1489 = vadd.f32 %v1221, %v1467
        %v1490 = vadd.f32 %v1222, %v1469
        %v1491 = vadd.f32 %v1223, %v1473
        %v1492 = vadd.f32 %v1224, %v1475
        %v1493 = vadd.f32 %v1225, %v1479
        %v1494 = vadd.f32 %v1226, %v1481
        %v1495 = vadd.f32 %v1227, %v1485
        %v1496 = vadd.f32 %v1228, %v1487
        %s1497 = scalar_lea.vmem [#allocation5], 128
        %v1498 = vld [vmem:[%s1497] sm:$0xff]
        %v1499 = vld [vmem:[%s1497 + $0x8] sm:$0xff]
        %v1500 = vld [vmem:[%s1497 + $0x10] sm:$0xff]
        %v1501 = vld [vmem:[%s1497 + $0x18] sm:$0xff]
        %v1503 = vsel %vm446, %v1498, 0
        %v1506 = vsel %vm446, %v1499, 0
        %v1509 = vsel %vm446, %v1500, 0
        %v1512 = vsel %vm446, %v1501, 0
        %1514 = vmatprep.subr.mxu0 0.0
        %1515 = vmatpush1.msra.mxu0 0.0
        %1516 = vmatprep.subr.mxu0 0.0
        %1517 = vmatpush1.msra.mxu0 0.0
        %1518 = vmatprep.subr.mxu0 0.0
        %1519 = vmatpush1.msra.mxu0 0.0
        %1520 = vmatprep.subr.mxu0 0.0
        %1521 = vmatpush1.msra.mxu0 0.0
        %1522 = vmatprep.subr.mxu0 0.0
        %1523 = vmatpush1.msra.mxu0 0.0
        %1524 = vmatprep.subr.mxu0 0.0
        %1525 = vmatpush1.msra.mxu0 0.0
        %1526 = vmatprep.subr.mxu0 0.0
        %1527 = vmatpush1.msra.mxu0 0.0
        %1528 = vmatprep.subr.mxu0 0.0
        %1529 = vmatpush1.msra.mxu0 0.0
        %1530 = vmatprep.subr.mxu0 0.0
        %1531 = vmatpush1.msra.mxu0 0.0
        %1532 = vmatprep.subr.mxu0 0.0
        %1533 = vmatpush1.msra.mxu0 0.0
        %1534 = vmatprep.subr.mxu0 0.0
        %1535 = vmatpush1.msra.mxu0 0.0
        %1536 = vmatprep.subr.mxu0 0.0
        %1537 = vmatpush1.msra.mxu0 0.0
        %1538 = vmatprep.subr.mxu0 %v441
        %1539 = vmatpush1.msra.mxu0 %v440
        %1540 = vmatprep.subr.mxu0 %v439
        %1541 = vmatpush1.msra.mxu0 %v438
        %1542 = vmatprep.subr.mxu0 %v437
        %1543 = vmatpush1.msra.mxu0 %v436
        %1544 = vmatprep.subr.mxu0 %v435
        %1545 = vmatpush1.msra.mxu0 %v434
        %1546 = vmatprep.subr.mxu0 0.0
        %1547 = vmatpush2.msra.mxu0 0.0
        %1548 = vmatprep.subr.mxu0 0.0
        %1549 = vmatpush2.msra.mxu0 0.0
        %1550 = vmatprep.subr.mxu0 0.0
        %1551 = vmatpush2.msra.mxu0 0.0
        %1552 = vmatprep.subr.mxu0 0.0
        %1553 = vmatpush2.msra.mxu0 0.0
        %1554 = vmatprep.subr.mxu0 0.0
        %1555 = vmatpush2.msra.mxu0 0.0
        %1556 = vmatprep.subr.mxu0 0.0
        %1557 = vmatpush2.msra.mxu0 0.0
        %1558 = vmatprep.subr.mxu0 0.0
        %1559 = vmatpush2.msra.mxu0 0.0
        %1560 = vmatprep.subr.mxu0 0.0
        %1561 = vmatpush2.msra.mxu0 0.0
        %1562 = vmatprep.subr.mxu0 0.0
        %1563 = vmatpush2.msra.mxu0 0.0
        %1564 = vmatprep.subr.mxu0 0.0
        %1565 = vmatpush2.msra.mxu0 0.0
        %1566 = vmatprep.subr.mxu0 0.0
        %1567 = vmatpush2.msra.mxu0 0.0
        %1568 = vmatprep.subr.mxu0 0.0
        %1569 = vmatpush2.msra.mxu0 0.0
        %1570 = vmatprep.subr.mxu0 0.0
        %1571 = vmatpush2.msra.mxu0 0.0
        %1572 = vmatprep.subr.mxu0 0.0
        %1573 = vmatpush2.msra.mxu0 0.0
        %1574 = vmatprep.subr.mxu0 0.0
        %1575 = vmatpush2.msra.mxu0 0.0
        %1576 = vmatprep.subr.mxu0 0.0
        %1577 = vmatpush2.msra.mxu0 0.0
        %1578 = vmatprep.mubr.f32.mxu0 0.0
        %1579 = vmatmul.mubr.f32.gmra.mxu0 %v1503
        %v1580 = vpop.f32.mrf.mxu0
        %v1581 = vadd.f32 0.0, %v1580
        %v1582 = vpop.f32.mrf.mxu0
        %v1583 = vadd.f32 0.0, %v1582
        %1584 = vmatprep.mubr.f32.mxu0 0.0
        %1585 = vmatmul.mubr.f32.gmra.mxu0 %v1506
        %v1586 = vpop.f32.mrf.mxu0
        %v1587 = vadd.f32 0.0, %v1586
        %v1588 = vpop.f32.mrf.mxu0
        %v1589 = vadd.f32 0.0, %v1588
        %1590 = vmatprep.mubr.f32.mxu0 0.0
        %1591 = vmatmul.mubr.f32.gmra.mxu0 %v1509
        %v1592 = vpop.f32.mrf.mxu0
        %v1593 = vadd.f32 0.0, %v1592
        %v1594 = vpop.f32.mrf.mxu0
        %v1595 = vadd.f32 0.0, %v1594
        %1596 = vmatprep.mubr.f32.mxu0 0.0
        %1597 = vmatmul.mubr.f32.gmra.mxu0 %v1512
        %v1598 = vpop.f32.mrf.mxu0
        %v1599 = vadd.f32 0.0, %v1598
        %v1600 = vpop.f32.mrf.mxu0
        %v1601 = vadd.f32 0.0, %v1600
        %1602 = vdwg.mxu0
        %s1603 = scalar_lea.vmem [#allocation2], 2048
        %v1604 = vld [vmem:[%s1603] sm:$0xff]
        %v1605 = vld [vmem:[%s1603 + $0x8] sm:$0xff]
        %v1606 = vld [vmem:[%s1603 + $0x10] sm:$0xff]
        %v1607 = vld [vmem:[%s1603 + $0x18] sm:$0xff]
        %v1608 = vld [vmem:[%s1603 + $0x20] sm:$0xff]
        %v1609 = vld [vmem:[%s1603 + $0x28] sm:$0xff]
        %v1610 = vld [vmem:[%s1603 + $0x30] sm:$0xff]
        %v1611 = vld [vmem:[%s1603 + $0x38] sm:$0xff]
        %v1612 = vld [vmem:[%s1603 + $0x40] sm:$0xff]
        %v1613 = vld [vmem:[%s1603 + $0x48] sm:$0xff]
        %v1614 = vld [vmem:[%s1603 + $0x50] sm:$0xff]
        %v1615 = vld [vmem:[%s1603 + $0x58] sm:$0xff]
        %v1616 = vld [vmem:[%s1603 + $0x60] sm:$0xff]
        %v1617 = vld [vmem:[%s1603 + $0x68] sm:$0xff]
        %v1618 = vld [vmem:[%s1603 + $0x70] sm:$0xff]
        %v1619 = vld [vmem:[%s1603 + $0x78] sm:$0xff]
        %v1620 = vld [vmem:[%s1603 + $0x80] sm:$0xff]
        %v1621 = vld [vmem:[%s1603 + $0x88] sm:$0xff]
        %v1622 = vld [vmem:[%s1603 + $0x90] sm:$0xff]
        %v1623 = vld [vmem:[%s1603 + $0x98] sm:$0xff]
        %v1624 = vld [vmem:[%s1603 + $0xa0] sm:$0xff]
        %v1625 = vld [vmem:[%s1603 + $0xa8] sm:$0xff]
        %v1626 = vld [vmem:[%s1603 + $0xb0] sm:$0xff]
        %v1627 = vld [vmem:[%s1603 + $0xb8] sm:$0xff]
        %v1628 = vld [vmem:[%s1603 + $0xc0] sm:$0xff]
        %v1629 = vld [vmem:[%s1603 + $0xc8] sm:$0xff]
        %v1630 = vld [vmem:[%s1603 + $0xd0] sm:$0xff]
        %v1631 = vld [vmem:[%s1603 + $0xd8] sm:$0xff]
        %v1632 = vld [vmem:[%s1603 + $0xe0] sm:$0xff]
        %v1633 = vld [vmem:[%s1603 + $0xe8] sm:$0xff]
        %v1634 = vld [vmem:[%s1603 + $0xf0] sm:$0xff]
        %v1635 = vld [vmem:[%s1603 + $0xf8] sm:$0xff]
        %v1636 = vld [vmem:[%s1603 + $0x100] sm:$0xff]
        %v1637 = vld [vmem:[%s1603 + $0x108] sm:$0xff]
        %v1638 = vld [vmem:[%s1603 + $0x110] sm:$0xff]
        %v1639 = vld [vmem:[%s1603 + $0x118] sm:$0xff]
        %v1640 = vld [vmem:[%s1603 + $0x120] sm:$0xff]
        %v1641 = vld [vmem:[%s1603 + $0x128] sm:$0xff]
        %v1642 = vld [vmem:[%s1603 + $0x130] sm:$0xff]
        %v1643 = vld [vmem:[%s1603 + $0x138] sm:$0xff]
        %v1644 = vld [vmem:[%s1603 + $0x140] sm:$0xff]
        %v1645 = vld [vmem:[%s1603 + $0x148] sm:$0xff]
        %v1646 = vld [vmem:[%s1603 + $0x150] sm:$0xff]
        %v1647 = vld [vmem:[%s1603 + $0x158] sm:$0xff]
        %v1648 = vld [vmem:[%s1603 + $0x160] sm:$0xff]
        %v1649 = vld [vmem:[%s1603 + $0x168] sm:$0xff]
        %v1650 = vld [vmem:[%s1603 + $0x170] sm:$0xff]
        %v1651 = vld [vmem:[%s1603 + $0x178] sm:$0xff]
        %v1652 = vld [vmem:[%s1603 + $0x180] sm:$0xff]
        %v1653 = vld [vmem:[%s1603 + $0x188] sm:$0xff]
        %v1654 = vld [vmem:[%s1603 + $0x190] sm:$0xff]
        %v1655 = vld [vmem:[%s1603 + $0x198] sm:$0xff]
        %v1656 = vld [vmem:[%s1603 + $0x1a0] sm:$0xff]
        %v1657 = vld [vmem:[%s1603 + $0x1a8] sm:$0xff]
        %v1658 = vld [vmem:[%s1603 + $0x1b0] sm:$0xff]
        %v1659 = vld [vmem:[%s1603 + $0x1b8] sm:$0xff]
        %v1660 = vld [vmem:[%s1603 + $0x1c0] sm:$0xff]
        %v1661 = vld [vmem:[%s1603 + $0x1c8] sm:$0xff]
        %v1662 = vld [vmem:[%s1603 + $0x1d0] sm:$0xff]
        %v1663 = vld [vmem:[%s1603 + $0x1d8] sm:$0xff]
        %v1664 = vld [vmem:[%s1603 + $0x1e0] sm:$0xff]
        %v1665 = vld [vmem:[%s1603 + $0x1e8] sm:$0xff]
        %v1666 = vld [vmem:[%s1603 + $0x1f0] sm:$0xff]
        %v1667 = vld [vmem:[%s1603 + $0x1f8] sm:$0xff]
        %1668 = vmatprep.subr.mxu0 %v1635
        %1669 = vmatpush1.msra.mxu0 %v1634
        %1670 = vmatprep.subr.mxu0 %v1633
        %1671 = vmatpush1.msra.mxu0 %v1632
        %1672 = vmatprep.subr.mxu0 %v1631
        %1673 = vmatpush1.msra.mxu0 %v1630
        %1674 = vmatprep.subr.mxu0 %v1629
        %1675 = vmatpush1.msra.mxu0 %v1628
        %1676 = vmatprep.subr.mxu0 %v1627
        %1677 = vmatpush1.msra.mxu0 %v1626
        %1678 = vmatprep.subr.mxu0 %v1625
        %1679 = vmatpush1.msra.mxu0 %v1624
        %1680 = vmatprep.subr.mxu0 %v1623
        %1681 = vmatpush1.msra.mxu0 %v1622
        %1682 = vmatprep.subr.mxu0 %v1621
        %1683 = vmatpush1.msra.mxu0 %v1620
        %1684 = vmatprep.subr.mxu0 %v1619
        %1685 = vmatpush1.msra.mxu0 %v1618
        %1686 = vmatprep.subr.mxu0 %v1617
        %1687 = vmatpush1.msra.mxu0 %v1616
        %1688 = vmatprep.subr.mxu0 %v1615
        %1689 = vmatpush1.msra.mxu0 %v1614
        %1690 = vmatprep.subr.mxu0 %v1613
        %1691 = vmatpush1.msra.mxu0 %v1612
        %1692 = vmatprep.subr.mxu0 %v1611
        %1693 = vmatpush1.msra.mxu0 %v1610
        %1694 = vmatprep.subr.mxu0 %v1609
        %1695 = vmatpush1.msra.mxu0 %v1608
        %1696 = vmatprep.subr.mxu0 %v1607
        %1697 = vmatpush1.msra.mxu0 %v1606
        %1698 = vmatprep.subr.mxu0 %v1605
        %1699 = vmatpush1.msra.mxu0 %v1604
        %1700 = vmatprep.subr.mxu0 %v1667
        %1701 = vmatpush2.msra.mxu0 %v1666
        %1702 = vmatprep.subr.mxu0 %v1665
        %1703 = vmatpush2.msra.mxu0 %v1664
        %1704 = vmatprep.subr.mxu0 %v1663
        %1705 = vmatpush2.msra.mxu0 %v1662
        %1706 = vmatprep.subr.mxu0 %v1661
        %1707 = vmatpush2.msra.mxu0 %v1660
        %1708 = vmatprep.subr.mxu0 %v1659
        %1709 = vmatpush2.msra.mxu0 %v1658
        %1710 = vmatprep.subr.mxu0 %v1657
        %1711 = vmatpush2.msra.mxu0 %v1656
        %1712 = vmatprep.subr.mxu0 %v1655
        %1713 = vmatpush2.msra.mxu0 %v1654
        %1714 = vmatprep.subr.mxu0 %v1653
        %1715 = vmatpush2.msra.mxu0 %v1652
        %1716 = vmatprep.subr.mxu0 %v1651
        %1717 = vmatpush2.msra.mxu0 %v1650
        %1718 = vmatprep.subr.mxu0 %v1649
        %1719 = vmatpush2.msra.mxu0 %v1648
        %1720 = vmatprep.subr.mxu0 %v1647
        %1721 = vmatpush2.msra.mxu0 %v1646
        %1722 = vmatprep.subr.mxu0 %v1645
        %1723 = vmatpush2.msra.mxu0 %v1644
        %1724 = vmatprep.subr.mxu0 %v1643
        %1725 = vmatpush2.msra.mxu0 %v1642
        %1726 = vmatprep.subr.mxu0 %v1641
        %1727 = vmatpush2.msra.mxu0 %v1640
        %1728 = vmatprep.subr.mxu0 %v1639
        %1729 = vmatpush2.msra.mxu0 %v1638
        %1730 = vmatprep.subr.mxu0 %v1637
        %1731 = vmatpush2.msra.mxu0 %v1636
        %1732 = vmatprep.mubr.f32.mxu0 %v1583
        %1733 = vmatmul.mubr.f32.gmra.mxu0 %v1581
        %v1734 = vpop.f32.mrf.mxu0
        %v1735 = vadd.f32 0.0, %v1734
        %v1736 = vpop.f32.mrf.mxu0
        %v1737 = vadd.f32 0.0, %v1736
        %1738 = vmatprep.mubr.f32.mxu0 %v1589
        %1739 = vmatmul.mubr.f32.gmra.mxu0 %v1587
        %v1740 = vpop.f32.mrf.mxu0
        %v1741 = vadd.f32 0.0, %v1740
        %v1742 = vpop.f32.mrf.mxu0
        %v1743 = vadd.f32 0.0, %v1742
        %1744 = vmatprep.mubr.f32.mxu0 %v1595
        %1745 = vmatmul.mubr.f32.gmra.mxu0 %v1593
        %v1746 = vpop.f32.mrf.mxu0
        %v1747 = vadd.f32 0.0, %v1746
        %v1748 = vpop.f32.mrf.mxu0
        %v1749 = vadd.f32 0.0, %v1748
        %1750 = vmatprep.mubr.f32.mxu0 %v1601
        %1751 = vmatmul.mubr.f32.gmra.mxu0 %v1599
        %v1752 = vpop.f32.mrf.mxu0
        %v1753 = vadd.f32 0.0, %v1752
        %v1754 = vpop.f32.mrf.mxu0
        %v1755 = vadd.f32 0.0, %v1754
        %1756 = vdwg.mxu0
        %v1757 = vadd.f32 %v1489, %v1735
        %v1758 = vadd.f32 %v1490, %v1737
        %v1759 = vadd.f32 %v1491, %v1741
        %v1760 = vadd.f32 %v1492, %v1743
        %v1761 = vadd.f32 %v1493, %v1747
        %v1762 = vadd.f32 %v1494, %v1749
        %v1763 = vadd.f32 %v1495, %v1753
        %v1764 = vadd.f32 %v1496, %v1755
        %s1765 = scalar_lea.vmem [#allocation5], 160
        %v1766 = vld [vmem:[%s1765] sm:$0xff]
        %v1767 = vld [vmem:[%s1765 + $0x8] sm:$0xff]
        %v1768 = vld [vmem:[%s1765 + $0x10] sm:$0xff]
        %v1769 = vld [vmem:[%s1765 + $0x18] sm:$0xff]
        %v1771 = vsel %vm446, %v1766, 0
        %v1774 = vsel %vm446, %v1767, 0
        %v1777 = vsel %vm446, %v1768, 0
        %v1780 = vsel %vm446, %v1769, 0
        %1782 = vmatprep.subr.mxu0 0.0
        %1783 = vmatpush1.msra.mxu0 0.0
        %1784 = vmatprep.subr.mxu0 0.0
        %1785 = vmatpush1.msra.mxu0 0.0
        %1786 = vmatprep.subr.mxu0 0.0
        %1787 = vmatpush1.msra.mxu0 0.0
        %1788 = vmatprep.subr.mxu0 0.0
        %1789 = vmatpush1.msra.mxu0 0.0
        %1790 = vmatprep.subr.mxu0 0.0
        %1791 = vmatpush1.msra.mxu0 0.0
        %1792 = vmatprep.subr.mxu0 0.0
        %1793 = vmatpush1.msra.mxu0 0.0
        %1794 = vmatprep.subr.mxu0 0.0
        %1795 = vmatpush1.msra.mxu0 0.0
        %1796 = vmatprep.subr.mxu0 0.0
        %1797 = vmatpush1.msra.mxu0 0.0
        %1798 = vmatprep.subr.mxu0 0.0
        %1799 = vmatpush1.msra.mxu0 0.0
        %1800 = vmatprep.subr.mxu0 0.0
        %1801 = vmatpush1.msra.mxu0 0.0
        %1802 = vmatprep.subr.mxu0 0.0
        %1803 = vmatpush1.msra.mxu0 0.0
        %1804 = vmatprep.subr.mxu0 0.0
        %1805 = vmatpush1.msra.mxu0 0.0
        %1806 = vmatprep.subr.mxu0 %v441
        %1807 = vmatpush1.msra.mxu0 %v440
        %1808 = vmatprep.subr.mxu0 %v439
        %1809 = vmatpush1.msra.mxu0 %v438
        %1810 = vmatprep.subr.mxu0 %v437
        %1811 = vmatpush1.msra.mxu0 %v436
        %1812 = vmatprep.subr.mxu0 %v435
        %1813 = vmatpush1.msra.mxu0 %v434
        %1814 = vmatprep.subr.mxu0 0.0
        %1815 = vmatpush2.msra.mxu0 0.0
        %1816 = vmatprep.subr.mxu0 0.0
        %1817 = vmatpush2.msra.mxu0 0.0
        %1818 = vmatprep.subr.mxu0 0.0
        %1819 = vmatpush2.msra.mxu0 0.0
        %1820 = vmatprep.subr.mxu0 0.0
        %1821 = vmatpush2.msra.mxu0 0.0
        %1822 = vmatprep.subr.mxu0 0.0
        %1823 = vmatpush2.msra.mxu0 0.0
        %1824 = vmatprep.subr.mxu0 0.0
        %1825 = vmatpush2.msra.mxu0 0.0
        %1826 = vmatprep.subr.mxu0 0.0
        %1827 = vmatpush2.msra.mxu0 0.0
        %1828 = vmatprep.subr.mxu0 0.0
        %1829 = vmatpush2.msra.mxu0 0.0
        %1830 = vmatprep.subr.mxu0 0.0
        %1831 = vmatpush2.msra.mxu0 0.0
        %1832 = vmatprep.subr.mxu0 0.0
        %1833 = vmatpush2.msra.mxu0 0.0
        %1834 = vmatprep.subr.mxu0 0.0
        %1835 = vmatpush2.msra.mxu0 0.0
        %1836 = vmatprep.subr.mxu0 0.0
        %1837 = vmatpush2.msra.mxu0 0.0
        %1838 = vmatprep.subr.mxu0 0.0
        %1839 = vmatpush2.msra.mxu0 0.0
        %1840 = vmatprep.subr.mxu0 0.0
        %1841 = vmatpush2.msra.mxu0 0.0
        %1842 = vmatprep.subr.mxu0 0.0
        %1843 = vmatpush2.msra.mxu0 0.0
        %1844 = vmatprep.subr.mxu0 0.0
        %1845 = vmatpush2.msra.mxu0 0.0
        %1846 = vmatprep.mubr.f32.mxu0 0.0
        %1847 = vmatmul.mubr.f32.gmra.mxu0 %v1771
        %v1848 = vpop.f32.mrf.mxu0
        %v1849 = vadd.f32 0.0, %v1848
        %v1850 = vpop.f32.mrf.mxu0
        %v1851 = vadd.f32 0.0, %v1850
        %1852 = vmatprep.mubr.f32.mxu0 0.0
        %1853 = vmatmul.mubr.f32.gmra.mxu0 %v1774
        %v1854 = vpop.f32.mrf.mxu0
        %v1855 = vadd.f32 0.0, %v1854
        %v1856 = vpop.f32.mrf.mxu0
        %v1857 = vadd.f32 0.0, %v1856
        %1858 = vmatprep.mubr.f32.mxu0 0.0
        %1859 = vmatmul.mubr.f32.gmra.mxu0 %v1777
        %v1860 = vpop.f32.mrf.mxu0
        %v1861 = vadd.f32 0.0, %v1860
        %v1862 = vpop.f32.mrf.mxu0
        %v1863 = vadd.f32 0.0, %v1862
        %1864 = vmatprep.mubr.f32.mxu0 0.0
        %1865 = vmatmul.mubr.f32.gmra.mxu0 %v1780
        %v1866 = vpop.f32.mrf.mxu0
        %v1867 = vadd.f32 0.0, %v1866
        %v1868 = vpop.f32.mrf.mxu0
        %v1869 = vadd.f32 0.0, %v1868
        %1870 = vdwg.mxu0
        %s1871 = scalar_lea.vmem [#allocation2], 2560
        %v1872 = vld [vmem:[%s1871] sm:$0xff]
        %v1873 = vld [vmem:[%s1871 + $0x8] sm:$0xff]
        %v1874 = vld [vmem:[%s1871 + $0x10] sm:$0xff]
        %v1875 = vld [vmem:[%s1871 + $0x18] sm:$0xff]
        %v1876 = vld [vmem:[%s1871 + $0x20] sm:$0xff]
        %v1877 = vld [vmem:[%s1871 + $0x28] sm:$0xff]
        %v1878 = vld [vmem:[%s1871 + $0x30] sm:$0xff]
        %v1879 = vld [vmem:[%s1871 + $0x38] sm:$0xff]
        %v1880 = vld [vmem:[%s1871 + $0x40] sm:$0xff]
        %v1881 = vld [vmem:[%s1871 + $0x48] sm:$0xff]
        %v1882 = vld [vmem:[%s1871 + $0x50] sm:$0xff]
        %v1883 = vld [vmem:[%s1871 + $0x58] sm:$0xff]
        %v1884 = vld [vmem:[%s1871 + $0x60] sm:$0xff]
        %v1885 = vld [vmem:[%s1871 + $0x68] sm:$0xff]
        %v1886 = vld [vmem:[%s1871 + $0x70] sm:$0xff]
        %v1887 = vld [vmem:[%s1871 + $0x78] sm:$0xff]
        %v1888 = vld [vmem:[%s1871 + $0x80] sm:$0xff]
        %v1889 = vld [vmem:[%s1871 + $0x88] sm:$0xff]
        %v1890 = vld [vmem:[%s1871 + $0x90] sm:$0xff]
        %v1891 = vld [vmem:[%s1871 + $0x98] sm:$0xff]
        %v1892 = vld [vmem:[%s1871 + $0xa0] sm:$0xff]
        %v1893 = vld [vmem:[%s1871 + $0xa8] sm:$0xff]
        %v1894 = vld [vmem:[%s1871 + $0xb0] sm:$0xff]
        %v1895 = vld [vmem:[%s1871 + $0xb8] sm:$0xff]
        %v1896 = vld [vmem:[%s1871 + $0xc0] sm:$0xff]
        %v1897 = vld [vmem:[%s1871 + $0xc8] sm:$0xff]
        %v1898 = vld [vmem:[%s1871 + $0xd0] sm:$0xff]
        %v1899 = vld [vmem:[%s1871 + $0xd8] sm:$0xff]
        %v1900 = vld [vmem:[%s1871 + $0xe0] sm:$0xff]
        %v1901 = vld [vmem:[%s1871 + $0xe8] sm:$0xff]
        %v1902 = vld [vmem:[%s1871 + $0xf0] sm:$0xff]
        %v1903 = vld [vmem:[%s1871 + $0xf8] sm:$0xff]
        %v1904 = vld [vmem:[%s1871 + $0x100] sm:$0xff]
        %v1905 = vld [vmem:[%s1871 + $0x108] sm:$0xff]
        %v1906 = vld [vmem:[%s1871 + $0x110] sm:$0xff]
        %v1907 = vld [vmem:[%s1871 + $0x118] sm:$0xff]
        %v1908 = vld [vmem:[%s1871 + $0x120] sm:$0xff]
        %v1909 = vld [vmem:[%s1871 + $0x128] sm:$0xff]
        %v1910 = vld [vmem:[%s1871 + $0x130] sm:$0xff]
        %v1911 = vld [vmem:[%s1871 + $0x138] sm:$0xff]
        %v1912 = vld [vmem:[%s1871 + $0x140] sm:$0xff]
        %v1913 = vld [vmem:[%s1871 + $0x148] sm:$0xff]
        %v1914 = vld [vmem:[%s1871 + $0x150] sm:$0xff]
        %v1915 = vld [vmem:[%s1871 + $0x158] sm:$0xff]
        %v1916 = vld [vmem:[%s1871 + $0x160] sm:$0xff]
        %v1917 = vld [vmem:[%s1871 + $0x168] sm:$0xff]
        %v1918 = vld [vmem:[%s1871 + $0x170] sm:$0xff]
        %v1919 = vld [vmem:[%s1871 + $0x178] sm:$0xff]
        %v1920 = vld [vmem:[%s1871 + $0x180] sm:$0xff]
        %v1921 = vld [vmem:[%s1871 + $0x188] sm:$0xff]
        %v1922 = vld [vmem:[%s1871 + $0x190] sm:$0xff]
        %v1923 = vld [vmem:[%s1871 + $0x198] sm:$0xff]
        %v1924 = vld [vmem:[%s1871 + $0x1a0] sm:$0xff]
        %v1925 = vld [vmem:[%s1871 + $0x1a8] sm:$0xff]
        %v1926 = vld [vmem:[%s1871 + $0x1b0] sm:$0xff]
        %v1927 = vld [vmem:[%s1871 + $0x1b8] sm:$0xff]
        %v1928 = vld [vmem:[%s1871 + $0x1c0] sm:$0xff]
        %v1929 = vld [vmem:[%s1871 + $0x1c8] sm:$0xff]
        %v1930 = vld [vmem:[%s1871 + $0x1d0] sm:$0xff]
        %v1931 = vld [vmem:[%s1871 + $0x1d8] sm:$0xff]
        %v1932 = vld [vmem:[%s1871 + $0x1e0] sm:$0xff]
        %v1933 = vld [vmem:[%s1871 + $0x1e8] sm:$0xff]
        %v1934 = vld [vmem:[%s1871 + $0x1f0] sm:$0xff]
        %v1935 = vld [vmem:[%s1871 + $0x1f8] sm:$0xff]
        %1936 = vmatprep.subr.mxu0 %v1903
        %1937 = vmatpush1.msra.mxu0 %v1902
        %1938 = vmatprep.subr.mxu0 %v1901
        %1939 = vmatpush1.msra.mxu0 %v1900
        %1940 = vmatprep.subr.mxu0 %v1899
        %1941 = vmatpush1.msra.mxu0 %v1898
        %1942 = vmatprep.subr.mxu0 %v1897
        %1943 = vmatpush1.msra.mxu0 %v1896
        %1944 = vmatprep.subr.mxu0 %v1895
        %1945 = vmatpush1.msra.mxu0 %v1894
        %1946 = vmatprep.subr.mxu0 %v1893
        %1947 = vmatpush1.msra.mxu0 %v1892
        %1948 = vmatprep.subr.mxu0 %v1891
        %1949 = vmatpush1.msra.mxu0 %v1890
        %1950 = vmatprep.subr.mxu0 %v1889
        %1951 = vmatpush1.msra.mxu0 %v1888
        %1952 = vmatprep.subr.mxu0 %v1887
        %1953 = vmatpush1.msra.mxu0 %v1886
        %1954 = vmatprep.subr.mxu0 %v1885
        %1955 = vmatpush1.msra.mxu0 %v1884
        %1956 = vmatprep.subr.mxu0 %v1883
        %1957 = vmatpush1.msra.mxu0 %v1882
        %1958 = vmatprep.subr.mxu0 %v1881
        %1959 = vmatpush1.msra.mxu0 %v1880
        %1960 = vmatprep.subr.mxu0 %v1879
        %1961 = vmatpush1.msra.mxu0 %v1878
        %1962 = vmatprep.subr.mxu0 %v1877
        %1963 = vmatpush1.msra.mxu0 %v1876
        %1964 = vmatprep.subr.mxu0 %v1875
        %1965 = vmatpush1.msra.mxu0 %v1874
        %1966 = vmatprep.subr.mxu0 %v1873
        %1967 = vmatpush1.msra.mxu0 %v1872
        %1968 = vmatprep.subr.mxu0 %v1935
        %1969 = vmatpush2.msra.mxu0 %v1934
        %1970 = vmatprep.subr.mxu0 %v1933
        %1971 = vmatpush2.msra.mxu0 %v1932
        %1972 = vmatprep.subr.mxu0 %v1931
        %1973 = vmatpush2.msra.mxu0 %v1930
        %1974 = vmatprep.subr.mxu0 %v1929
        %1975 = vmatpush2.msra.mxu0 %v1928
        %1976 = vmatprep.subr.mxu0 %v1927
        %1977 = vmatpush2.msra.mxu0 %v1926
        %1978 = vmatprep.subr.mxu0 %v1925
        %1979 = vmatpush2.msra.mxu0 %v1924
        %1980 = vmatprep.subr.mxu0 %v1923
        %1981 = vmatpush2.msra.mxu0 %v1922
        %1982 = vmatprep.subr.mxu0 %v1921
        %1983 = vmatpush2.msra.mxu0 %v1920
        %1984 = vmatprep.subr.mxu0 %v1919
        %1985 = vmatpush2.msra.mxu0 %v1918
        %1986 = vmatprep.subr.mxu0 %v1917
        %1987 = vmatpush2.msra.mxu0 %v1916
        %1988 = vmatprep.subr.mxu0 %v1915
        %1989 = vmatpush2.msra.mxu0 %v1914
        %1990 = vmatprep.subr.mxu0 %v1913
        %1991 = vmatpush2.msra.mxu0 %v1912
        %1992 = vmatprep.subr.mxu0 %v1911
        %1993 = vmatpush2.msra.mxu0 %v1910
        %1994 = vmatprep.subr.mxu0 %v1909
        %1995 = vmatpush2.msra.mxu0 %v1908
        %1996 = vmatprep.subr.mxu0 %v1907
        %1997 = vmatpush2.msra.mxu0 %v1906
        %1998 = vmatprep.subr.mxu0 %v1905
        %1999 = vmatpush2.msra.mxu0 %v1904
        %2000 = vmatprep.mubr.f32.mxu0 %v1851
        %2001 = vmatmul.mubr.f32.gmra.mxu0 %v1849
        %v2002 = vpop.f32.mrf.mxu0
        %v2003 = vadd.f32 0.0, %v2002
        %v2004 = vpop.f32.mrf.mxu0
        %v2005 = vadd.f32 0.0, %v2004
        %2006 = vmatprep.mubr.f32.mxu0 %v1857
        %2007 = vmatmul.mubr.f32.gmra.mxu0 %v1855
        %v2008 = vpop.f32.mrf.mxu0
        %v2009 = vadd.f32 0.0, %v2008
        %v2010 = vpop.f32.mrf.mxu0
        %v2011 = vadd.f32 0.0, %v2010
        %2012 = vmatprep.mubr.f32.mxu0 %v1863
        %2013 = vmatmul.mubr.f32.gmra.mxu0 %v1861
        %v2014 = vpop.f32.mrf.mxu0
        %v2015 = vadd.f32 0.0, %v2014
        %v2016 = vpop.f32.mrf.mxu0
        %v2017 = vadd.f32 0.0, %v2016
        %2018 = vmatprep.mubr.f32.mxu0 %v1869
        %2019 = vmatmul.mubr.f32.gmra.mxu0 %v1867
        %v2020 = vpop.f32.mrf.mxu0
        %v2021 = vadd.f32 0.0, %v2020
        %v2022 = vpop.f32.mrf.mxu0
        %v2023 = vadd.f32 0.0, %v2022
        %2024 = vdwg.mxu0
        %v2025 = vadd.f32 %v1757, %v2003
        %v2026 = vadd.f32 %v1758, %v2005
        %v2027 = vadd.f32 %v1759, %v2009
        %v2028 = vadd.f32 %v1760, %v2011
        %v2029 = vadd.f32 %v1761, %v2015
        %v2030 = vadd.f32 %v1762, %v2017
        %v2031 = vadd.f32 %v1763, %v2021
        %v2032 = vadd.f32 %v1764, %v2023
        %s2033 = scalar_lea.vmem [#allocation5], 192
        %v2034 = vld [vmem:[%s2033] sm:$0xff]
        %v2035 = vld [vmem:[%s2033 + $0x8] sm:$0xff]
        %v2036 = vld [vmem:[%s2033 + $0x10] sm:$0xff]
        %v2037 = vld [vmem:[%s2033 + $0x18] sm:$0xff]
        %v2039 = vsel %vm446, %v2034, 0
        %v2042 = vsel %vm446, %v2035, 0
        %v2045 = vsel %vm446, %v2036, 0
        %v2048 = vsel %vm446, %v2037, 0
        %2050 = vmatprep.subr.mxu0 0.0
        %2051 = vmatpush1.msra.mxu0 0.0
        %2052 = vmatprep.subr.mxu0 0.0
        %2053 = vmatpush1.msra.mxu0 0.0
        %2054 = vmatprep.subr.mxu0 0.0
        %2055 = vmatpush1.msra.mxu0 0.0
        %2056 = vmatprep.subr.mxu0 0.0
        %2057 = vmatpush1.msra.mxu0 0.0
        %2058 = vmatprep.subr.mxu0 0.0
        %2059 = vmatpush1.msra.mxu0 0.0
        %2060 = vmatprep.subr.mxu0 0.0
        %2061 = vmatpush1.msra.mxu0 0.0
        %2062 = vmatprep.subr.mxu0 0.0
        %2063 = vmatpush1.msra.mxu0 0.0
        %2064 = vmatprep.subr.mxu0 0.0
        %2065 = vmatpush1.msra.mxu0 0.0
        %2066 = vmatprep.subr.mxu0 0.0
        %2067 = vmatpush1.msra.mxu0 0.0
        %2068 = vmatprep.subr.mxu0 0.0
        %2069 = vmatpush1.msra.mxu0 0.0
        %2070 = vmatprep.subr.mxu0 0.0
        %2071 = vmatpush1.msra.mxu0 0.0
        %2072 = vmatprep.subr.mxu0 0.0
        %2073 = vmatpush1.msra.mxu0 0.0
        %2074 = vmatprep.subr.mxu0 %v441
        %2075 = vmatpush1.msra.mxu0 %v440
        %2076 = vmatprep.subr.mxu0 %v439
        %2077 = vmatpush1.msra.mxu0 %v438
        %2078 = vmatprep.subr.mxu0 %v437
        %2079 = vmatpush1.msra.mxu0 %v436
        %2080 = vmatprep.subr.mxu0 %v435
        %2081 = vmatpush1.msra.mxu0 %v434
        %2082 = vmatprep.subr.mxu0 0.0
        %2083 = vmatpush2.msra.mxu0 0.0
        %2084 = vmatprep.subr.mxu0 0.0
        %2085 = vmatpush2.msra.mxu0 0.0
        %2086 = vmatprep.subr.mxu0 0.0
        %2087 = vmatpush2.msra.mxu0 0.0
        %2088 = vmatprep.subr.mxu0 0.0
        %2089 = vmatpush2.msra.mxu0 0.0
        %2090 = vmatprep.subr.mxu0 0.0
        %2091 = vmatpush2.msra.mxu0 0.0
        %2092 = vmatprep.subr.mxu0 0.0
        %2093 = vmatpush2.msra.mxu0 0.0
        %2094 = vmatprep.subr.mxu0 0.0
        %2095 = vmatpush2.msra.mxu0 0.0
        %2096 = vmatprep.subr.mxu0 0.0
        %2097 = vmatpush2.msra.mxu0 0.0
        %2098 = vmatprep.subr.mxu0 0.0
        %2099 = vmatpush2.msra.mxu0 0.0
        %2100 = vmatprep.subr.mxu0 0.0
        %2101 = vmatpush2.msra.mxu0 0.0
        %2102 = vmatprep.subr.mxu0 0.0
        %2103 = vmatpush2.msra.mxu0 0.0
        %2104 = vmatprep.subr.mxu0 0.0
        %2105 = vmatpush2.msra.mxu0 0.0
        %2106 = vmatprep.subr.mxu0 0.0
        %2107 = vmatpush2.msra.mxu0 0.0
        %2108 = vmatprep.subr.mxu0 0.0
        %2109 = vmatpush2.msra.mxu0 0.0
        %2110 = vmatprep.subr.mxu0 0.0
        %2111 = vmatpush2.msra.mxu0 0.0
        %2112 = vmatprep.subr.mxu0 0.0
        %2113 = vmatpush2.msra.mxu0 0.0
        %2114 = vmatprep.mubr.f32.mxu0 0.0
        %2115 = vmatmul.mubr.f32.gmra.mxu0 %v2039
        %v2116 = vpop.f32.mrf.mxu0
        %v2117 = vadd.f32 0.0, %v2116
        %v2118 = vpop.f32.mrf.mxu0
        %v2119 = vadd.f32 0.0, %v2118
        %2120 = vmatprep.mubr.f32.mxu0 0.0
        %2121 = vmatmul.mubr.f32.gmra.mxu0 %v2042
        %v2122 = vpop.f32.mrf.mxu0
        %v2123 = vadd.f32 0.0, %v2122
        %v2124 = vpop.f32.mrf.mxu0
        %v2125 = vadd.f32 0.0, %v2124
        %2126 = vmatprep.mubr.f32.mxu0 0.0
        %2127 = vmatmul.mubr.f32.gmra.mxu0 %v2045
        %v2128 = vpop.f32.mrf.mxu0
        %v2129 = vadd.f32 0.0, %v2128
        %v2130 = vpop.f32.mrf.mxu0
        %v2131 = vadd.f32 0.0, %v2130
        %2132 = vmatprep.mubr.f32.mxu0 0.0
        %2133 = vmatmul.mubr.f32.gmra.mxu0 %v2048
        %v2134 = vpop.f32.mrf.mxu0
        %v2135 = vadd.f32 0.0, %v2134
        %v2136 = vpop.f32.mrf.mxu0
        %v2137 = vadd.f32 0.0, %v2136
        %2138 = vdwg.mxu0
        %s2139 = scalar_lea.vmem [#allocation2], 3072
        %v2140 = vld [vmem:[%s2139] sm:$0xff]
        %v2141 = vld [vmem:[%s2139 + $0x8] sm:$0xff]
        %v2142 = vld [vmem:[%s2139 + $0x10] sm:$0xff]
        %v2143 = vld [vmem:[%s2139 + $0x18] sm:$0xff]
        %v2144 = vld [vmem:[%s2139 + $0x20] sm:$0xff]
        %v2145 = vld [vmem:[%s2139 + $0x28] sm:$0xff]
        %v2146 = vld [vmem:[%s2139 + $0x30] sm:$0xff]
        %v2147 = vld [vmem:[%s2139 + $0x38] sm:$0xff]
        %v2148 = vld [vmem:[%s2139 + $0x40] sm:$0xff]
        %v2149 = vld [vmem:[%s2139 + $0x48] sm:$0xff]
        %v2150 = vld [vmem:[%s2139 + $0x50] sm:$0xff]
        %v2151 = vld [vmem:[%s2139 + $0x58] sm:$0xff]
        %v2152 = vld [vmem:[%s2139 + $0x60] sm:$0xff]
        %v2153 = vld [vmem:[%s2139 + $0x68] sm:$0xff]
        %v2154 = vld [vmem:[%s2139 + $0x70] sm:$0xff]
        %v2155 = vld [vmem:[%s2139 + $0x78] sm:$0xff]
        %v2156 = vld [vmem:[%s2139 + $0x80] sm:$0xff]
        %v2157 = vld [vmem:[%s2139 + $0x88] sm:$0xff]
        %v2158 = vld [vmem:[%s2139 + $0x90] sm:$0xff]
        %v2159 = vld [vmem:[%s2139 + $0x98] sm:$0xff]
        %v2160 = vld [vmem:[%s2139 + $0xa0] sm:$0xff]
        %v2161 = vld [vmem:[%s2139 + $0xa8] sm:$0xff]
        %v2162 = vld [vmem:[%s2139 + $0xb0] sm:$0xff]
        %v2163 = vld [vmem:[%s2139 + $0xb8] sm:$0xff]
        %v2164 = vld [vmem:[%s2139 + $0xc0] sm:$0xff]
        %v2165 = vld [vmem:[%s2139 + $0xc8] sm:$0xff]
        %v2166 = vld [vmem:[%s2139 + $0xd0] sm:$0xff]
        %v2167 = vld [vmem:[%s2139 + $0xd8] sm:$0xff]
        %v2168 = vld [vmem:[%s2139 + $0xe0] sm:$0xff]
        %v2169 = vld [vmem:[%s2139 + $0xe8] sm:$0xff]
        %v2170 = vld [vmem:[%s2139 + $0xf0] sm:$0xff]
        %v2171 = vld [vmem:[%s2139 + $0xf8] sm:$0xff]
        %v2172 = vld [vmem:[%s2139 + $0x100] sm:$0xff]
        %v2173 = vld [vmem:[%s2139 + $0x108] sm:$0xff]
        %v2174 = vld [vmem:[%s2139 + $0x110] sm:$0xff]
        %v2175 = vld [vmem:[%s2139 + $0x118] sm:$0xff]
        %v2176 = vld [vmem:[%s2139 + $0x120] sm:$0xff]
        %v2177 = vld [vmem:[%s2139 + $0x128] sm:$0xff]
        %v2178 = vld [vmem:[%s2139 + $0x130] sm:$0xff]
        %v2179 = vld [vmem:[%s2139 + $0x138] sm:$0xff]
        %v2180 = vld [vmem:[%s2139 + $0x140] sm:$0xff]
        %v2181 = vld [vmem:[%s2139 + $0x148] sm:$0xff]
        %v2182 = vld [vmem:[%s2139 + $0x150] sm:$0xff]
        %v2183 = vld [vmem:[%s2139 + $0x158] sm:$0xff]
        %v2184 = vld [vmem:[%s2139 + $0x160] sm:$0xff]
        %v2185 = vld [vmem:[%s2139 + $0x168] sm:$0xff]
        %v2186 = vld [vmem:[%s2139 + $0x170] sm:$0xff]
        %v2187 = vld [vmem:[%s2139 + $0x178] sm:$0xff]
        %v2188 = vld [vmem:[%s2139 + $0x180] sm:$0xff]
        %v2189 = vld [vmem:[%s2139 + $0x188] sm:$0xff]
        %v2190 = vld [vmem:[%s2139 + $0x190] sm:$0xff]
        %v2191 = vld [vmem:[%s2139 + $0x198] sm:$0xff]
        %v2192 = vld [vmem:[%s2139 + $0x1a0] sm:$0xff]
        %v2193 = vld [vmem:[%s2139 + $0x1a8] sm:$0xff]
        %v2194 = vld [vmem:[%s2139 + $0x1b0] sm:$0xff]
        %v2195 = vld [vmem:[%s2139 + $0x1b8] sm:$0xff]
        %v2196 = vld [vmem:[%s2139 + $0x1c0] sm:$0xff]
        %v2197 = vld [vmem:[%s2139 + $0x1c8] sm:$0xff]
        %v2198 = vld [vmem:[%s2139 + $0x1d0] sm:$0xff]
        %v2199 = vld [vmem:[%s2139 + $0x1d8] sm:$0xff]
        %v2200 = vld [vmem:[%s2139 + $0x1e0] sm:$0xff]
        %v2201 = vld [vmem:[%s2139 + $0x1e8] sm:$0xff]
        %v2202 = vld [vmem:[%s2139 + $0x1f0] sm:$0xff]
        %v2203 = vld [vmem:[%s2139 + $0x1f8] sm:$0xff]
        %2204 = vmatprep.subr.mxu0 %v2171
        %2205 = vmatpush1.msra.mxu0 %v2170
        %2206 = vmatprep.subr.mxu0 %v2169
        %2207 = vmatpush1.msra.mxu0 %v2168
        %2208 = vmatprep.subr.mxu0 %v2167
        %2209 = vmatpush1.msra.mxu0 %v2166
        %2210 = vmatprep.subr.mxu0 %v2165
        %2211 = vmatpush1.msra.mxu0 %v2164
        %2212 = vmatprep.subr.mxu0 %v2163
        %2213 = vmatpush1.msra.mxu0 %v2162
        %2214 = vmatprep.subr.mxu0 %v2161
        %2215 = vmatpush1.msra.mxu0 %v2160
        %2216 = vmatprep.subr.mxu0 %v2159
        %2217 = vmatpush1.msra.mxu0 %v2158
        %2218 = vmatprep.subr.mxu0 %v2157
        %2219 = vmatpush1.msra.mxu0 %v2156
        %2220 = vmatprep.subr.mxu0 %v2155
        %2221 = vmatpush1.msra.mxu0 %v2154
        %2222 = vmatprep.subr.mxu0 %v2153
        %2223 = vmatpush1.msra.mxu0 %v2152
        %2224 = vmatprep.subr.mxu0 %v2151
        %2225 = vmatpush1.msra.mxu0 %v2150
        %2226 = vmatprep.subr.mxu0 %v2149
        %2227 = vmatpush1.msra.mxu0 %v2148
        %2228 = vmatprep.subr.mxu0 %v2147
        %2229 = vmatpush1.msra.mxu0 %v2146
        %2230 = vmatprep.subr.mxu0 %v2145
        %2231 = vmatpush1.msra.mxu0 %v2144
        %2232 = vmatprep.subr.mxu0 %v2143
        %2233 = vmatpush1.msra.mxu0 %v2142
        %2234 = vmatprep.subr.mxu0 %v2141
        %2235 = vmatpush1.msra.mxu0 %v2140
        %2236 = vmatprep.subr.mxu0 %v2203
        %2237 = vmatpush2.msra.mxu0 %v2202
        %2238 = vmatprep.subr.mxu0 %v2201
        %2239 = vmatpush2.msra.mxu0 %v2200
        %2240 = vmatprep.subr.mxu0 %v2199
        %2241 = vmatpush2.msra.mxu0 %v2198
        %2242 = vmatprep.subr.mxu0 %v2197
        %2243 = vmatpush2.msra.mxu0 %v2196
        %2244 = vmatprep.subr.mxu0 %v2195
        %2245 = vmatpush2.msra.mxu0 %v2194
        %2246 = vmatprep.subr.mxu0 %v2193
        %2247 = vmatpush2.msra.mxu0 %v2192
        %2248 = vmatprep.subr.mxu0 %v2191
        %2249 = vmatpush2.msra.mxu0 %v2190
        %2250 = vmatprep.subr.mxu0 %v2189
        %2251 = vmatpush2.msra.mxu0 %v2188
        %2252 = vmatprep.subr.mxu0 %v2187
        %2253 = vmatpush2.msra.mxu0 %v2186
        %2254 = vmatprep.subr.mxu0 %v2185
        %2255 = vmatpush2.msra.mxu0 %v2184
        %2256 = vmatprep.subr.mxu0 %v2183
        %2257 = vmatpush2.msra.mxu0 %v2182
        %2258 = vmatprep.subr.mxu0 %v2181
        %2259 = vmatpush2.msra.mxu0 %v2180
        %2260 = vmatprep.subr.mxu0 %v2179
        %2261 = vmatpush2.msra.mxu0 %v2178
        %2262 = vmatprep.subr.mxu0 %v2177
        %2263 = vmatpush2.msra.mxu0 %v2176
        %2264 = vmatprep.subr.mxu0 %v2175
        %2265 = vmatpush2.msra.mxu0 %v2174
        %2266 = vmatprep.subr.mxu0 %v2173
        %2267 = vmatpush2.msra.mxu0 %v2172
        %2268 = vmatprep.mubr.f32.mxu0 %v2119
        %2269 = vmatmul.mubr.f32.gmra.mxu0 %v2117
        %v2270 = vpop.f32.mrf.mxu0
        %v2271 = vadd.f32 0.0, %v2270
        %v2272 = vpop.f32.mrf.mxu0
        %v2273 = vadd.f32 0.0, %v2272
        %2274 = vmatprep.mubr.f32.mxu0 %v2125
        %2275 = vmatmul.mubr.f32.gmra.mxu0 %v2123
        %v2276 = vpop.f32.mrf.mxu0
        %v2277 = vadd.f32 0.0, %v2276
        %v2278 = vpop.f32.mrf.mxu0
        %v2279 = vadd.f32 0.0, %v2278
        %2280 = vmatprep.mubr.f32.mxu0 %v2131
        %2281 = vmatmul.mubr.f32.gmra.mxu0 %v2129
        %v2282 = vpop.f32.mrf.mxu0
        %v2283 = vadd.f32 0.0, %v2282
        %v2284 = vpop.f32.mrf.mxu0
        %v2285 = vadd.f32 0.0, %v2284
        %2286 = vmatprep.mubr.f32.mxu0 %v2137
        %2287 = vmatmul.mubr.f32.gmra.mxu0 %v2135
        %v2288 = vpop.f32.mrf.mxu0
        %v2289 = vadd.f32 0.0, %v2288
        %v2290 = vpop.f32.mrf.mxu0
        %v2291 = vadd.f32 0.0, %v2290
        %2292 = vdwg.mxu0
        %v2293 = vadd.f32 %v2025, %v2271
        %v2294 = vadd.f32 %v2026, %v2273
        %v2295 = vadd.f32 %v2027, %v2277
        %v2296 = vadd.f32 %v2028, %v2279
        %v2297 = vadd.f32 %v2029, %v2283
        %v2298 = vadd.f32 %v2030, %v2285
        %v2299 = vadd.f32 %v2031, %v2289
        %v2300 = vadd.f32 %v2032, %v2291
        %s2301 = scalar_lea.vmem [#allocation5], 224
        %v2302 = vld [vmem:[%s2301] sm:$0xff]
        %v2303 = vld [vmem:[%s2301 + $0x8] sm:$0xff]
        %v2304 = vld [vmem:[%s2301 + $0x10] sm:$0xff]
        %v2305 = vld [vmem:[%s2301 + $0x18] sm:$0xff]
        %v2307 = vsel %vm446, %v2302, 0
        %v2310 = vsel %vm446, %v2303, 0
        %v2313 = vsel %vm446, %v2304, 0
        %v2316 = vsel %vm446, %v2305, 0
        %2318 = vmatprep.subr.mxu0 0.0
        %2319 = vmatpush1.msra.mxu0 0.0
        %2320 = vmatprep.subr.mxu0 0.0
        %2321 = vmatpush1.msra.mxu0 0.0
        %2322 = vmatprep.subr.mxu0 0.0
        %2323 = vmatpush1.msra.mxu0 0.0
        %2324 = vmatprep.subr.mxu0 0.0
        %2325 = vmatpush1.msra.mxu0 0.0
        %2326 = vmatprep.subr.mxu0 0.0
        %2327 = vmatpush1.msra.mxu0 0.0
        %2328 = vmatprep.subr.mxu0 0.0
        %2329 = vmatpush1.msra.mxu0 0.0
        %2330 = vmatprep.subr.mxu0 0.0
        %2331 = vmatpush1.msra.mxu0 0.0
        %2332 = vmatprep.subr.mxu0 0.0
        %2333 = vmatpush1.msra.mxu0 0.0
        %2334 = vmatprep.subr.mxu0 0.0
        %2335 = vmatpush1.msra.mxu0 0.0
        %2336 = vmatprep.subr.mxu0 0.0
        %2337 = vmatpush1.msra.mxu0 0.0
        %2338 = vmatprep.subr.mxu0 0.0
        %2339 = vmatpush1.msra.mxu0 0.0
        %2340 = vmatprep.subr.mxu0 0.0
        %2341 = vmatpush1.msra.mxu0 0.0
        %2342 = vmatprep.subr.mxu0 %v441
        %2343 = vmatpush1.msra.mxu0 %v440
        %2344 = vmatprep.subr.mxu0 %v439
        %2345 = vmatpush1.msra.mxu0 %v438
        %2346 = vmatprep.subr.mxu0 %v437
        %2347 = vmatpush1.msra.mxu0 %v436
        %2348 = vmatprep.subr.mxu0 %v435
        %2349 = vmatpush1.msra.mxu0 %v434
        %2350 = vmatprep.subr.mxu0 0.0
        %2351 = vmatpush2.msra.mxu0 0.0
        %2352 = vmatprep.subr.mxu0 0.0
        %2353 = vmatpush2.msra.mxu0 0.0
        %2354 = vmatprep.subr.mxu0 0.0
        %2355 = vmatpush2.msra.mxu0 0.0
        %2356 = vmatprep.subr.mxu0 0.0
        %2357 = vmatpush2.msra.mxu0 0.0
        %2358 = vmatprep.subr.mxu0 0.0
        %2359 = vmatpush2.msra.mxu0 0.0
        %2360 = vmatprep.subr.mxu0 0.0
        %2361 = vmatpush2.msra.mxu0 0.0
        %2362 = vmatprep.subr.mxu0 0.0
        %2363 = vmatpush2.msra.mxu0 0.0
        %2364 = vmatprep.subr.mxu0 0.0
        %2365 = vmatpush2.msra.mxu0 0.0
        %2366 = vmatprep.subr.mxu0 0.0
        %2367 = vmatpush2.msra.mxu0 0.0
        %2368 = vmatprep.subr.mxu0 0.0
        %2369 = vmatpush2.msra.mxu0 0.0
        %2370 = vmatprep.subr.mxu0 0.0
        %2371 = vmatpush2.msra.mxu0 0.0
        %2372 = vmatprep.subr.mxu0 0.0
        %2373 = vmatpush2.msra.mxu0 0.0
        %2374 = vmatprep.subr.mxu0 0.0
        %2375 = vmatpush2.msra.mxu0 0.0
        %2376 = vmatprep.subr.mxu0 0.0
        %2377 = vmatpush2.msra.mxu0 0.0
        %2378 = vmatprep.subr.mxu0 0.0
        %2379 = vmatpush2.msra.mxu0 0.0
        %2380 = vmatprep.subr.mxu0 0.0
        %2381 = vmatpush2.msra.mxu0 0.0
        %2382 = vmatprep.mubr.f32.mxu0 0.0
        %2383 = vmatmul.mubr.f32.gmra.mxu0 %v2307
        %v2384 = vpop.f32.mrf.mxu0
        %v2385 = vadd.f32 0.0, %v2384
        %v2386 = vpop.f32.mrf.mxu0
        %v2387 = vadd.f32 0.0, %v2386
        %2388 = vmatprep.mubr.f32.mxu0 0.0
        %2389 = vmatmul.mubr.f32.gmra.mxu0 %v2310
        %v2390 = vpop.f32.mrf.mxu0
        %v2391 = vadd.f32 0.0, %v2390
        %v2392 = vpop.f32.mrf.mxu0
        %v2393 = vadd.f32 0.0, %v2392
        %2394 = vmatprep.mubr.f32.mxu0 0.0
        %2395 = vmatmul.mubr.f32.gmra.mxu0 %v2313
        %v2396 = vpop.f32.mrf.mxu0
        %v2397 = vadd.f32 0.0, %v2396
        %v2398 = vpop.f32.mrf.mxu0
        %v2399 = vadd.f32 0.0, %v2398
        %2400 = vmatprep.mubr.f32.mxu0 0.0
        %2401 = vmatmul.mubr.f32.gmra.mxu0 %v2316
        %v2402 = vpop.f32.mrf.mxu0
        %v2403 = vadd.f32 0.0, %v2402
        %v2404 = vpop.f32.mrf.mxu0
        %v2405 = vadd.f32 0.0, %v2404
        %2406 = vdwg.mxu0
        %s2407 = scalar_lea.vmem [#allocation2], 3584
        %v2408 = vld [vmem:[%s2407] sm:$0xff]
        %v2409 = vld [vmem:[%s2407 + $0x8] sm:$0xff]
        %v2410 = vld [vmem:[%s2407 + $0x10] sm:$0xff]
        %v2411 = vld [vmem:[%s2407 + $0x18] sm:$0xff]
        %v2412 = vld [vmem:[%s2407 + $0x20] sm:$0xff]
        %v2413 = vld [vmem:[%s2407 + $0x28] sm:$0xff]
        %v2414 = vld [vmem:[%s2407 + $0x30] sm:$0xff]
        %v2415 = vld [vmem:[%s2407 + $0x38] sm:$0xff]
        %v2416 = vld [vmem:[%s2407 + $0x40] sm:$0xff]
        %v2417 = vld [vmem:[%s2407 + $0x48] sm:$0xff]
        %v2418 = vld [vmem:[%s2407 + $0x50] sm:$0xff]
        %v2419 = vld [vmem:[%s2407 + $0x58] sm:$0xff]
        %v2420 = vld [vmem:[%s2407 + $0x60] sm:$0xff]
        %v2421 = vld [vmem:[%s2407 + $0x68] sm:$0xff]
        %v2422 = vld [vmem:[%s2407 + $0x70] sm:$0xff]
        %v2423 = vld [vmem:[%s2407 + $0x78] sm:$0xff]
        %v2424 = vld [vmem:[%s2407 + $0x80] sm:$0xff]
        %v2425 = vld [vmem:[%s2407 + $0x88] sm:$0xff]
        %v2426 = vld [vmem:[%s2407 + $0x90] sm:$0xff]
        %v2427 = vld [vmem:[%s2407 + $0x98] sm:$0xff]
        %v2428 = vld [vmem:[%s2407 + $0xa0] sm:$0xff]
        %v2429 = vld [vmem:[%s2407 + $0xa8] sm:$0xff]
        %v2430 = vld [vmem:[%s2407 + $0xb0] sm:$0xff]
        %v2431 = vld [vmem:[%s2407 + $0xb8] sm:$0xff]
        %v2432 = vld [vmem:[%s2407 + $0xc0] sm:$0xff]
        %v2433 = vld [vmem:[%s2407 + $0xc8] sm:$0xff]
        %v2434 = vld [vmem:[%s2407 + $0xd0] sm:$0xff]
        %v2435 = vld [vmem:[%s2407 + $0xd8] sm:$0xff]
        %v2436 = vld [vmem:[%s2407 + $0xe0] sm:$0xff]
        %v2437 = vld [vmem:[%s2407 + $0xe8] sm:$0xff]
        %v2438 = vld [vmem:[%s2407 + $0xf0] sm:$0xff]
        %v2439 = vld [vmem:[%s2407 + $0xf8] sm:$0xff]
        %v2440 = vld [vmem:[%s2407 + $0x100] sm:$0xff]
        %v2441 = vld [vmem:[%s2407 + $0x108] sm:$0xff]
        %v2442 = vld [vmem:[%s2407 + $0x110] sm:$0xff]
        %v2443 = vld [vmem:[%s2407 + $0x118] sm:$0xff]
        %v2444 = vld [vmem:[%s2407 + $0x120] sm:$0xff]
        %v2445 = vld [vmem:[%s2407 + $0x128] sm:$0xff]
        %v2446 = vld [vmem:[%s2407 + $0x130] sm:$0xff]
        %v2447 = vld [vmem:[%s2407 + $0x138] sm:$0xff]
        %v2448 = vld [vmem:[%s2407 + $0x140] sm:$0xff]
        %v2449 = vld [vmem:[%s2407 + $0x148] sm:$0xff]
        %v2450 = vld [vmem:[%s2407 + $0x150] sm:$0xff]
        %v2451 = vld [vmem:[%s2407 + $0x158] sm:$0xff]
        %v2452 = vld [vmem:[%s2407 + $0x160] sm:$0xff]
        %v2453 = vld [vmem:[%s2407 + $0x168] sm:$0xff]
        %v2454 = vld [vmem:[%s2407 + $0x170] sm:$0xff]
        %v2455 = vld [vmem:[%s2407 + $0x178] sm:$0xff]
        %v2456 = vld [vmem:[%s2407 + $0x180] sm:$0xff]
        %v2457 = vld [vmem:[%s2407 + $0x188] sm:$0xff]
        %v2458 = vld [vmem:[%s2407 + $0x190] sm:$0xff]
        %v2459 = vld [vmem:[%s2407 + $0x198] sm:$0xff]
        %v2460 = vld [vmem:[%s2407 + $0x1a0] sm:$0xff]
        %v2461 = vld [vmem:[%s2407 + $0x1a8] sm:$0xff]
        %v2462 = vld [vmem:[%s2407 + $0x1b0] sm:$0xff]
        %v2463 = vld [vmem:[%s2407 + $0x1b8] sm:$0xff]
        %v2464 = vld [vmem:[%s2407 + $0x1c0] sm:$0xff]
        %v2465 = vld [vmem:[%s2407 + $0x1c8] sm:$0xff]
        %v2466 = vld [vmem:[%s2407 + $0x1d0] sm:$0xff]
        %v2467 = vld [vmem:[%s2407 + $0x1d8] sm:$0xff]
        %v2468 = vld [vmem:[%s2407 + $0x1e0] sm:$0xff]
        %v2469 = vld [vmem:[%s2407 + $0x1e8] sm:$0xff]
        %v2470 = vld [vmem:[%s2407 + $0x1f0] sm:$0xff]
        %v2471 = vld [vmem:[%s2407 + $0x1f8] sm:$0xff]
        %2472 = vmatprep.subr.mxu0 %v2439
        %2473 = vmatpush1.msra.mxu0 %v2438
        %2474 = vmatprep.subr.mxu0 %v2437
        %2475 = vmatpush1.msra.mxu0 %v2436
        %2476 = vmatprep.subr.mxu0 %v2435
        %2477 = vmatpush1.msra.mxu0 %v2434
        %2478 = vmatprep.subr.mxu0 %v2433
        %2479 = vmatpush1.msra.mxu0 %v2432
        %2480 = vmatprep.subr.mxu0 %v2431
        %2481 = vmatpush1.msra.mxu0 %v2430
        %2482 = vmatprep.subr.mxu0 %v2429
        %2483 = vmatpush1.msra.mxu0 %v2428
        %2484 = vmatprep.subr.mxu0 %v2427
        %2485 = vmatpush1.msra.mxu0 %v2426
        %2486 = vmatprep.subr.mxu0 %v2425
        %2487 = vmatpush1.msra.mxu0 %v2424
        %2488 = vmatprep.subr.mxu0 %v2423
        %2489 = vmatpush1.msra.mxu0 %v2422
        %2490 = vmatprep.subr.mxu0 %v2421
        %2491 = vmatpush1.msra.mxu0 %v2420
        %2492 = vmatprep.subr.mxu0 %v2419
        %2493 = vmatpush1.msra.mxu0 %v2418
        %2494 = vmatprep.subr.mxu0 %v2417
        %2495 = vmatpush1.msra.mxu0 %v2416
        %2496 = vmatprep.subr.mxu0 %v2415
        %2497 = vmatpush1.msra.mxu0 %v2414
        %2498 = vmatprep.subr.mxu0 %v2413
        %2499 = vmatpush1.msra.mxu0 %v2412
        %2500 = vmatprep.subr.mxu0 %v2411
        %2501 = vmatpush1.msra.mxu0 %v2410
        %2502 = vmatprep.subr.mxu0 %v2409
        %2503 = vmatpush1.msra.mxu0 %v2408
        %2504 = vmatprep.subr.mxu0 %v2471
        %2505 = vmatpush2.msra.mxu0 %v2470
        %2506 = vmatprep.subr.mxu0 %v2469
        %2507 = vmatpush2.msra.mxu0 %v2468
        %2508 = vmatprep.subr.mxu0 %v2467
        %2509 = vmatpush2.msra.mxu0 %v2466
        %2510 = vmatprep.subr.mxu0 %v2465
        %2511 = vmatpush2.msra.mxu0 %v2464
        %2512 = vmatprep.subr.mxu0 %v2463
        %2513 = vmatpush2.msra.mxu0 %v2462
        %2514 = vmatprep.subr.mxu0 %v2461
        %2515 = vmatpush2.msra.mxu0 %v2460
        %2516 = vmatprep.subr.mxu0 %v2459
        %2517 = vmatpush2.msra.mxu0 %v2458
        %2518 = vmatprep.subr.mxu0 %v2457
        %2519 = vmatpush2.msra.mxu0 %v2456
        %2520 = vmatprep.subr.mxu0 %v2455
        %2521 = vmatpush2.msra.mxu0 %v2454
        %2522 = vmatprep.subr.mxu0 %v2453
        %2523 = vmatpush2.msra.mxu0 %v2452
        %2524 = vmatprep.subr.mxu0 %v2451
        %2525 = vmatpush2.msra.mxu0 %v2450
        %2526 = vmatprep.subr.mxu0 %v2449
        %2527 = vmatpush2.msra.mxu0 %v2448
        %2528 = vmatprep.subr.mxu0 %v2447
        %2529 = vmatpush2.msra.mxu0 %v2446
        %2530 = vmatprep.subr.mxu0 %v2445
        %2531 = vmatpush2.msra.mxu0 %v2444
        %2532 = vmatprep.subr.mxu0 %v2443
        %2533 = vmatpush2.msra.mxu0 %v2442
        %2534 = vmatprep.subr.mxu0 %v2441
        %2535 = vmatpush2.msra.mxu0 %v2440
        %2536 = vmatprep.mubr.f32.mxu0 %v2387
        %2537 = vmatmul.mubr.f32.gmra.mxu0 %v2385
        %v2538 = vpop.f32.mrf.mxu0
        %v2539 = vadd.f32 0.0, %v2538
        %v2540 = vpop.f32.mrf.mxu0
        %v2541 = vadd.f32 0.0, %v2540
        %2542 = vmatprep.mubr.f32.mxu0 %v2393
        %2543 = vmatmul.mubr.f32.gmra.mxu0 %v2391
        %v2544 = vpop.f32.mrf.mxu0
        %v2545 = vadd.f32 0.0, %v2544
        %v2546 = vpop.f32.mrf.mxu0
        %v2547 = vadd.f32 0.0, %v2546
        %2548 = vmatprep.mubr.f32.mxu0 %v2399
        %2549 = vmatmul.mubr.f32.gmra.mxu0 %v2397
        %v2550 = vpop.f32.mrf.mxu0
        %v2551 = vadd.f32 0.0, %v2550
        %v2552 = vpop.f32.mrf.mxu0
        %v2553 = vadd.f32 0.0, %v2552
        %2554 = vmatprep.mubr.f32.mxu0 %v2405
        %2555 = vmatmul.mubr.f32.gmra.mxu0 %v2403
        %v2556 = vpop.f32.mrf.mxu0
        %v2557 = vadd.f32 0.0, %v2556
        %v2558 = vpop.f32.mrf.mxu0
        %v2559 = vadd.f32 0.0, %v2558
        %2560 = vdwg.mxu0
        %v2561 = vadd.f32 %v2293, %v2539
        %v2562 = vadd.f32 %v2294, %v2541
        %v2563 = vadd.f32 %v2295, %v2545
        %v2564 = vadd.f32 %v2296, %v2547
        %v2565 = vadd.f32 %v2297, %v2551
        %v2566 = vadd.f32 %v2298, %v2553
        %v2567 = vadd.f32 %v2299, %v2557
        %v2568 = vadd.f32 %v2300, %v2559
        %s2569 = scalar_lea.vmem [#allocation5], 256
        %v2570 = vld [vmem:[%s2569] sm:$0xff]
        %v2571 = vld [vmem:[%s2569 + $0x8] sm:$0xff]
        %v2572 = vld [vmem:[%s2569 + $0x10] sm:$0xff]
        %v2573 = vld [vmem:[%s2569 + $0x18] sm:$0xff]
        %v2575 = vsel %vm446, %v2570, 0
        %v2578 = vsel %vm446, %v2571, 0
        %v2581 = vsel %vm446, %v2572, 0
        %v2584 = vsel %vm446, %v2573, 0
        %2586 = vmatprep.subr.mxu0 0.0
        %2587 = vmatpush1.msra.mxu0 0.0
        %2588 = vmatprep.subr.mxu0 0.0
        %2589 = vmatpush1.msra.mxu0 0.0
        %2590 = vmatprep.subr.mxu0 0.0
        %2591 = vmatpush1.msra.mxu0 0.0
        %2592 = vmatprep.subr.mxu0 0.0
        %2593 = vmatpush1.msra.mxu0 0.0
        %2594 = vmatprep.subr.mxu0 0.0
        %2595 = vmatpush1.msra.mxu0 0.0
        %2596 = vmatprep.subr.mxu0 0.0
        %2597 = vmatpush1.msra.mxu0 0.0
        %2598 = vmatprep.subr.mxu0 0.0
        %2599 = vmatpush1.msra.mxu0 0.0
        %2600 = vmatprep.subr.mxu0 0.0
        %2601 = vmatpush1.msra.mxu0 0.0
        %2602 = vmatprep.subr.mxu0 0.0
        %2603 = vmatpush1.msra.mxu0 0.0
        %2604 = vmatprep.subr.mxu0 0.0
        %2605 = vmatpush1.msra.mxu0 0.0
        %2606 = vmatprep.subr.mxu0 0.0
        %2607 = vmatpush1.msra.mxu0 0.0
        %2608 = vmatprep.subr.mxu0 0.0
        %2609 = vmatpush1.msra.mxu0 0.0
        %2610 = vmatprep.subr.mxu0 %v441
        %2611 = vmatpush1.msra.mxu0 %v440
        %2612 = vmatprep.subr.mxu0 %v439
        %2613 = vmatpush1.msra.mxu0 %v438
        %2614 = vmatprep.subr.mxu0 %v437
        %2615 = vmatpush1.msra.mxu0 %v436
        %2616 = vmatprep.subr.mxu0 %v435
        %2617 = vmatpush1.msra.mxu0 %v434
        %2618 = vmatprep.subr.mxu0 0.0
        %2619 = vmatpush2.msra.mxu0 0.0
        %2620 = vmatprep.subr.mxu0 0.0
        %2621 = vmatpush2.msra.mxu0 0.0
        %2622 = vmatprep.subr.mxu0 0.0
        %2623 = vmatpush2.msra.mxu0 0.0
        %2624 = vmatprep.subr.mxu0 0.0
        %2625 = vmatpush2.msra.mxu0 0.0
        %2626 = vmatprep.subr.mxu0 0.0
        %2627 = vmatpush2.msra.mxu0 0.0
        %2628 = vmatprep.subr.mxu0 0.0
        %2629 = vmatpush2.msra.mxu0 0.0
        %2630 = vmatprep.subr.mxu0 0.0
        %2631 = vmatpush2.msra.mxu0 0.0
        %2632 = vmatprep.subr.mxu0 0.0
        %2633 = vmatpush2.msra.mxu0 0.0
        %2634 = vmatprep.subr.mxu0 0.0
        %2635 = vmatpush2.msra.mxu0 0.0
        %2636 = vmatprep.subr.mxu0 0.0
        %2637 = vmatpush2.msra.mxu0 0.0
        %2638 = vmatprep.subr.mxu0 0.0
        %2639 = vmatpush2.msra.mxu0 0.0
        %2640 = vmatprep.subr.mxu0 0.0
        %2641 = vmatpush2.msra.mxu0 0.0
        %2642 = vmatprep.subr.mxu0 0.0
        %2643 = vmatpush2.msra.mxu0 0.0
        %2644 = vmatprep.subr.mxu0 0.0
        %2645 = vmatpush2.msra.mxu0 0.0
        %2646 = vmatprep.subr.mxu0 0.0
        %2647 = vmatpush2.msra.mxu0 0.0
        %2648 = vmatprep.subr.mxu0 0.0
        %2649 = vmatpush2.msra.mxu0 0.0
        %2650 = vmatprep.mubr.f32.mxu0 0.0
        %2651 = vmatmul.mubr.f32.gmra.mxu0 %v2575
        %v2652 = vpop.f32.mrf.mxu0
        %v2653 = vadd.f32 0.0, %v2652
        %v2654 = vpop.f32.mrf.mxu0
        %v2655 = vadd.f32 0.0, %v2654
        %2656 = vmatprep.mubr.f32.mxu0 0.0
        %2657 = vmatmul.mubr.f32.gmra.mxu0 %v2578
        %v2658 = vpop.f32.mrf.mxu0
        %v2659 = vadd.f32 0.0, %v2658
        %v2660 = vpop.f32.mrf.mxu0
        %v2661 = vadd.f32 0.0, %v2660
        %2662 = vmatprep.mubr.f32.mxu0 0.0
        %2663 = vmatmul.mubr.f32.gmra.mxu0 %v2581
        %v2664 = vpop.f32.mrf.mxu0
        %v2665 = vadd.f32 0.0, %v2664
        %v2666 = vpop.f32.mrf.mxu0
        %v2667 = vadd.f32 0.0, %v2666
        %2668 = vmatprep.mubr.f32.mxu0 0.0
        %2669 = vmatmul.mubr.f32.gmra.mxu0 %v2584
        %v2670 = vpop.f32.mrf.mxu0
        %v2671 = vadd.f32 0.0, %v2670
        %v2672 = vpop.f32.mrf.mxu0
        %v2673 = vadd.f32 0.0, %v2672
        %2674 = vdwg.mxu0
        %s2675 = scalar_lea.vmem [#allocation2], 4096
        %v2676 = vld [vmem:[%s2675] sm:$0xff]
        %v2677 = vld [vmem:[%s2675 + $0x8] sm:$0xff]
        %v2678 = vld [vmem:[%s2675 + $0x10] sm:$0xff]
        %v2679 = vld [vmem:[%s2675 + $0x18] sm:$0xff]
        %v2680 = vld [vmem:[%s2675 + $0x20] sm:$0xff]
        %v2681 = vld [vmem:[%s2675 + $0x28] sm:$0xff]
        %v2682 = vld [vmem:[%s2675 + $0x30] sm:$0xff]
        %v2683 = vld [vmem:[%s2675 + $0x38] sm:$0xff]
        %v2684 = vld [vmem:[%s2675 + $0x40] sm:$0xff]
        %v2685 = vld [vmem:[%s2675 + $0x48] sm:$0xff]
        %v2686 = vld [vmem:[%s2675 + $0x50] sm:$0xff]
        %v2687 = vld [vmem:[%s2675 + $0x58] sm:$0xff]
        %v2688 = vld [vmem:[%s2675 + $0x60] sm:$0xff]
        %v2689 = vld [vmem:[%s2675 + $0x68] sm:$0xff]
        %v2690 = vld [vmem:[%s2675 + $0x70] sm:$0xff]
        %v2691 = vld [vmem:[%s2675 + $0x78] sm:$0xff]
        %v2692 = vld [vmem:[%s2675 + $0x80] sm:$0xff]
        %v2693 = vld [vmem:[%s2675 + $0x88] sm:$0xff]
        %v2694 = vld [vmem:[%s2675 + $0x90] sm:$0xff]
        %v2695 = vld [vmem:[%s2675 + $0x98] sm:$0xff]
        %v2696 = vld [vmem:[%s2675 + $0xa0] sm:$0xff]
        %v2697 = vld [vmem:[%s2675 + $0xa8] sm:$0xff]
        %v2698 = vld [vmem:[%s2675 + $0xb0] sm:$0xff]
        %v2699 = vld [vmem:[%s2675 + $0xb8] sm:$0xff]
        %v2700 = vld [vmem:[%s2675 + $0xc0] sm:$0xff]
        %v2701 = vld [vmem:[%s2675 + $0xc8] sm:$0xff]
        %v2702 = vld [vmem:[%s2675 + $0xd0] sm:$0xff]
        %v2703 = vld [vmem:[%s2675 + $0xd8] sm:$0xff]
        %v2704 = vld [vmem:[%s2675 + $0xe0] sm:$0xff]
        %v2705 = vld [vmem:[%s2675 + $0xe8] sm:$0xff]
        %v2706 = vld [vmem:[%s2675 + $0xf0] sm:$0xff]
        %v2707 = vld [vmem:[%s2675 + $0xf8] sm:$0xff]
        %v2708 = vld [vmem:[%s2675 + $0x100] sm:$0xff]
        %v2709 = vld [vmem:[%s2675 + $0x108] sm:$0xff]
        %v2710 = vld [vmem:[%s2675 + $0x110] sm:$0xff]
        %v2711 = vld [vmem:[%s2675 + $0x118] sm:$0xff]
        %v2712 = vld [vmem:[%s2675 + $0x120] sm:$0xff]
        %v2713 = vld [vmem:[%s2675 + $0x128] sm:$0xff]
        %v2714 = vld [vmem:[%s2675 + $0x130] sm:$0xff]
        %v2715 = vld [vmem:[%s2675 + $0x138] sm:$0xff]
        %v2716 = vld [vmem:[%s2675 + $0x140] sm:$0xff]
        %v2717 = vld [vmem:[%s2675 + $0x148] sm:$0xff]
        %v2718 = vld [vmem:[%s2675 + $0x150] sm:$0xff]
        %v2719 = vld [vmem:[%s2675 + $0x158] sm:$0xff]
        %v2720 = vld [vmem:[%s2675 + $0x160] sm:$0xff]
        %v2721 = vld [vmem:[%s2675 + $0x168] sm:$0xff]
        %v2722 = vld [vmem:[%s2675 + $0x170] sm:$0xff]
        %v2723 = vld [vmem:[%s2675 + $0x178] sm:$0xff]
        %v2724 = vld [vmem:[%s2675 + $0x180] sm:$0xff]
        %v2725 = vld [vmem:[%s2675 + $0x188] sm:$0xff]
        %v2726 = vld [vmem:[%s2675 + $0x190] sm:$0xff]
        %v2727 = vld [vmem:[%s2675 + $0x198] sm:$0xff]
        %v2728 = vld [vmem:[%s2675 + $0x1a0] sm:$0xff]
        %v2729 = vld [vmem:[%s2675 + $0x1a8] sm:$0xff]
        %v2730 = vld [vmem:[%s2675 + $0x1b0] sm:$0xff]
        %v2731 = vld [vmem:[%s2675 + $0x1b8] sm:$0xff]
        %v2732 = vld [vmem:[%s2675 + $0x1c0] sm:$0xff]
        %v2733 = vld [vmem:[%s2675 + $0x1c8] sm:$0xff]
        %v2734 = vld [vmem:[%s2675 + $0x1d0] sm:$0xff]
        %v2735 = vld [vmem:[%s2675 + $0x1d8] sm:$0xff]
        %v2736 = vld [vmem:[%s2675 + $0x1e0] sm:$0xff]
        %v2737 = vld [vmem:[%s2675 + $0x1e8] sm:$0xff]
        %v2738 = vld [vmem:[%s2675 + $0x1f0] sm:$0xff]
        %v2739 = vld [vmem:[%s2675 + $0x1f8] sm:$0xff]
        %2740 = vmatprep.subr.mxu0 %v2707
        %2741 = vmatpush1.msra.mxu0 %v2706
        %2742 = vmatprep.subr.mxu0 %v2705
        %2743 = vmatpush1.msra.mxu0 %v2704
        %2744 = vmatprep.subr.mxu0 %v2703
        %2745 = vmatpush1.msra.mxu0 %v2702
        %2746 = vmatprep.subr.mxu0 %v2701
        %2747 = vmatpush1.msra.mxu0 %v2700
        %2748 = vmatprep.subr.mxu0 %v2699
        %2749 = vmatpush1.msra.mxu0 %v2698
        %2750 = vmatprep.subr.mxu0 %v2697
        %2751 = vmatpush1.msra.mxu0 %v2696
        %2752 = vmatprep.subr.mxu0 %v2695
        %2753 = vmatpush1.msra.mxu0 %v2694
        %2754 = vmatprep.subr.mxu0 %v2693
        %2755 = vmatpush1.msra.mxu0 %v2692
        %2756 = vmatprep.subr.mxu0 %v2691
        %2757 = vmatpush1.msra.mxu0 %v2690
        %2758 = vmatprep.subr.mxu0 %v2689
        %2759 = vmatpush1.msra.mxu0 %v2688
        %2760 = vmatprep.subr.mxu0 %v2687
        %2761 = vmatpush1.msra.mxu0 %v2686
        %2762 = vmatprep.subr.mxu0 %v2685
        %2763 = vmatpush1.msra.mxu0 %v2684
        %2764 = vmatprep.subr.mxu0 %v2683
        %2765 = vmatpush1.msra.mxu0 %v2682
        %2766 = vmatprep.subr.mxu0 %v2681
        %2767 = vmatpush1.msra.mxu0 %v2680
        %2768 = vmatprep.subr.mxu0 %v2679
        %2769 = vmatpush1.msra.mxu0 %v2678
        %2770 = vmatprep.subr.mxu0 %v2677
        %2771 = vmatpush1.msra.mxu0 %v2676
        %2772 = vmatprep.subr.mxu0 %v2739
        %2773 = vmatpush2.msra.mxu0 %v2738
        %2774 = vmatprep.subr.mxu0 %v2737
        %2775 = vmatpush2.msra.mxu0 %v2736
        %2776 = vmatprep.subr.mxu0 %v2735
        %2777 = vmatpush2.msra.mxu0 %v2734
        %2778 = vmatprep.subr.mxu0 %v2733
        %2779 = vmatpush2.msra.mxu0 %v2732
        %2780 = vmatprep.subr.mxu0 %v2731
        %2781 = vmatpush2.msra.mxu0 %v2730
        %2782 = vmatprep.subr.mxu0 %v2729
        %2783 = vmatpush2.msra.mxu0 %v2728
        %2784 = vmatprep.subr.mxu0 %v2727
        %2785 = vmatpush2.msra.mxu0 %v2726
        %2786 = vmatprep.subr.mxu0 %v2725
        %2787 = vmatpush2.msra.mxu0 %v2724
        %2788 = vmatprep.subr.mxu0 %v2723
        %2789 = vmatpush2.msra.mxu0 %v2722
        %2790 = vmatprep.subr.mxu0 %v2721
        %2791 = vmatpush2.msra.mxu0 %v2720
        %2792 = vmatprep.subr.mxu0 %v2719
        %2793 = vmatpush2.msra.mxu0 %v2718
        %2794 = vmatprep.subr.mxu0 %v2717
        %2795 = vmatpush2.msra.mxu0 %v2716
        %2796 = vmatprep.subr.mxu0 %v2715
        %2797 = vmatpush2.msra.mxu0 %v2714
        %2798 = vmatprep.subr.mxu0 %v2713
        %2799 = vmatpush2.msra.mxu0 %v2712
        %2800 = vmatprep.subr.mxu0 %v2711
        %2801 = vmatpush2.msra.mxu0 %v2710
        %2802 = vmatprep.subr.mxu0 %v2709
        %2803 = vmatpush2.msra.mxu0 %v2708
        %2804 = vmatprep.mubr.f32.mxu0 %v2655
        %2805 = vmatmul.mubr.f32.gmra.mxu0 %v2653
        %v2806 = vpop.f32.mrf.mxu0
        %v2807 = vadd.f32 0.0, %v2806
        %v2808 = vpop.f32.mrf.mxu0
        %v2809 = vadd.f32 0.0, %v2808
        %2810 = vmatprep.mubr.f32.mxu0 %v2661
        %2811 = vmatmul.mubr.f32.gmra.mxu0 %v2659
        %v2812 = vpop.f32.mrf.mxu0
        %v2813 = vadd.f32 0.0, %v2812
        %v2814 = vpop.f32.mrf.mxu0
        %v2815 = vadd.f32 0.0, %v2814
        %2816 = vmatprep.mubr.f32.mxu0 %v2667
        %2817 = vmatmul.mubr.f32.gmra.mxu0 %v2665
        %v2818 = vpop.f32.mrf.mxu0
        %v2819 = vadd.f32 0.0, %v2818
        %v2820 = vpop.f32.mrf.mxu0
        %v2821 = vadd.f32 0.0, %v2820
        %2822 = vmatprep.mubr.f32.mxu0 %v2673
        %2823 = vmatmul.mubr.f32.gmra.mxu0 %v2671
        %v2824 = vpop.f32.mrf.mxu0
        %v2825 = vadd.f32 0.0, %v2824
        %v2826 = vpop.f32.mrf.mxu0
        %v2827 = vadd.f32 0.0, %v2826
        %2828 = vdwg.mxu0
        %v2829 = vadd.f32 %v2561, %v2807
        %v2830 = vadd.f32 %v2562, %v2809
        %v2831 = vadd.f32 %v2563, %v2813
        %v2832 = vadd.f32 %v2564, %v2815
        %v2833 = vadd.f32 %v2565, %v2819
        %v2834 = vadd.f32 %v2566, %v2821
        %v2835 = vadd.f32 %v2567, %v2825
        %v2836 = vadd.f32 %v2568, %v2827
        %v2837 = vld [vmem:[%s2] sm:$0xff]
        %v2838 = vld [vmem:[%s2 + $0x8] sm:$0xff]
        %v2839 = vld [vmem:[%s2 + $0x10] sm:$0xff]
        %v2840 = vld [vmem:[%s2 + $0x18] sm:$0xff]
        %2842 = vset.pattern.permute.xlu0 0
        %2843 = vperm.xlu0 %2842, %v2837
        %v2844 = vpop.permute.xlu0 %2843
        %2847 = vset.pattern.permute.xlu0 0
        %2848 = vperm.xlu0 %2847, %v2838
        %v2849 = vpop.permute.xlu0 %2848
        %2852 = vset.pattern.permute.xlu0 0
        %2853 = vperm.xlu0 %2852, %v2839
        %v2854 = vpop.permute.xlu0 %2853
        %2857 = vset.pattern.permute.xlu0 0
        %2858 = vperm.xlu0 %2857, %v2840
        %v2859 = vpop.permute.xlu0 %2858
        %v2861 = vadd.f32 %v2829, %v2844
        %v2862 = vadd.f32 %v2830, %v2844
        %v2863 = vadd.f32 %v2831, %v2849
        %v2864 = vadd.f32 %v2832, %v2849
        %v2865 = vadd.f32 %v2833, %v2854
        %v2866 = vadd.f32 %v2834, %v2854
        %v2867 = vadd.f32 %v2835, %v2859
        %v2868 = vadd.f32 %v2836, %v2859
        %v2869 = vmax.f32 %v2861, 0.0
        %v2870 = vmax.f32 %v2862, 0.0
        %v2871 = vmax.f32 %v2863, 0.0
        %v2872 = vmax.f32 %v2864, 0.0
        %v2873 = vmax.f32 %v2865, 0.0
        %v2874 = vmax.f32 %v2866, 0.0
        %v2875 = vmax.f32 %v2867, 0.0
        %v2876 = vmax.f32 %v2868, 0.0
        %s2877 = scalar_lea.vmem [#allocation5], 288
        %v2878 = vld [vmem:[%s2877] sm:$0xff]
        %v2879 = vld [vmem:[%s2877 + $0x8] sm:$0xff]
        %v2880 = vld [vmem:[%s2877 + $0x10] sm:$0xff]
        %v2881 = vld [vmem:[%s2877 + $0x18] sm:$0xff]
        %v2883 = vsel %vm446, %v2878, 0
        %v2886 = vsel %vm446, %v2879, 0
        %v2889 = vsel %vm446, %v2880, 0
        %v2892 = vsel %vm446, %v2881, 0
        %2894 = vmatprep.subr.mxu0 0.0
        %2895 = vmatpush1.msra.mxu0 0.0
        %2896 = vmatprep.subr.mxu0 0.0
        %2897 = vmatpush1.msra.mxu0 0.0
        %2898 = vmatprep.subr.mxu0 0.0
        %2899 = vmatpush1.msra.mxu0 0.0
        %2900 = vmatprep.subr.mxu0 0.0
        %2901 = vmatpush1.msra.mxu0 0.0
        %2902 = vmatprep.subr.mxu0 0.0
        %2903 = vmatpush1.msra.mxu0 0.0
        %2904 = vmatprep.subr.mxu0 0.0
        %2905 = vmatpush1.msra.mxu0 0.0
        %2906 = vmatprep.subr.mxu0 0.0
        %2907 = vmatpush1.msra.mxu0 0.0
        %2908 = vmatprep.subr.mxu0 0.0
        %2909 = vmatpush1.msra.mxu0 0.0
        %2910 = vmatprep.subr.mxu0 0.0
        %2911 = vmatpush1.msra.mxu0 0.0
        %2912 = vmatprep.subr.mxu0 0.0
        %2913 = vmatpush1.msra.mxu0 0.0
        %2914 = vmatprep.subr.mxu0 0.0
        %2915 = vmatpush1.msra.mxu0 0.0
        %2916 = vmatprep.subr.mxu0 0.0
        %2917 = vmatpush1.msra.mxu0 0.0
        %2918 = vmatprep.subr.mxu0 %v2876
        %2919 = vmatpush1.msra.mxu0 %v2875
        %2920 = vmatprep.subr.mxu0 %v2874
        %2921 = vmatpush1.msra.mxu0 %v2873
        %2922 = vmatprep.subr.mxu0 %v2872
        %2923 = vmatpush1.msra.mxu0 %v2871
        %2924 = vmatprep.subr.mxu0 %v2870
        %2925 = vmatpush1.msra.mxu0 %v2869
        %2926 = vmatprep.subr.mxu0 0.0
        %2927 = vmatpush2.msra.mxu0 0.0
        %2928 = vmatprep.subr.mxu0 0.0
        %2929 = vmatpush2.msra.mxu0 0.0
        %2930 = vmatprep.subr.mxu0 0.0
        %2931 = vmatpush2.msra.mxu0 0.0
        %2932 = vmatprep.subr.mxu0 0.0
        %2933 = vmatpush2.msra.mxu0 0.0
        %2934 = vmatprep.subr.mxu0 0.0
        %2935 = vmatpush2.msra.mxu0 0.0
        %2936 = vmatprep.subr.mxu0 0.0
        %2937 = vmatpush2.msra.mxu0 0.0
        %2938 = vmatprep.subr.mxu0 0.0
        %2939 = vmatpush2.msra.mxu0 0.0
        %2940 = vmatprep.subr.mxu0 0.0
        %2941 = vmatpush2.msra.mxu0 0.0
        %2942 = vmatprep.subr.mxu0 0.0
        %2943 = vmatpush2.msra.mxu0 0.0
        %2944 = vmatprep.subr.mxu0 0.0
        %2945 = vmatpush2.msra.mxu0 0.0
        %2946 = vmatprep.subr.mxu0 0.0
        %2947 = vmatpush2.msra.mxu0 0.0
        %2948 = vmatprep.subr.mxu0 0.0
        %2949 = vmatpush2.msra.mxu0 0.0
        %2950 = vmatprep.subr.mxu0 0.0
        %2951 = vmatpush2.msra.mxu0 0.0
        %2952 = vmatprep.subr.mxu0 0.0
        %2953 = vmatpush2.msra.mxu0 0.0
        %2954 = vmatprep.subr.mxu0 0.0
        %2955 = vmatpush2.msra.mxu0 0.0
        %2956 = vmatprep.subr.mxu0 0.0
        %2957 = vmatpush2.msra.mxu0 0.0
        %2958 = vmatprep.mubr.f32.mxu0 0.0
        %2959 = vmatmul.mubr.f32.gmra.mxu0 %v2883
        %v2960 = vpop.f32.mrf.mxu0
        %v2961 = vadd.f32 0.0, %v2960
        %v2962 = vpop.f32.mrf.mxu0
        %v2963 = vadd.f32 0.0, %v2962
        %2964 = vmatprep.mubr.f32.mxu0 0.0
        %2965 = vmatmul.mubr.f32.gmra.mxu0 %v2886
        %v2966 = vpop.f32.mrf.mxu0
        %v2967 = vadd.f32 0.0, %v2966
        %v2968 = vpop.f32.mrf.mxu0
        %v2969 = vadd.f32 0.0, %v2968
        %2970 = vmatprep.mubr.f32.mxu0 0.0
        %2971 = vmatmul.mubr.f32.gmra.mxu0 %v2889
        %v2972 = vpop.f32.mrf.mxu0
        %v2973 = vadd.f32 0.0, %v2972
        %v2974 = vpop.f32.mrf.mxu0
        %v2975 = vadd.f32 0.0, %v2974
        %2976 = vmatprep.mubr.f32.mxu0 0.0
        %2977 = vmatmul.mubr.f32.gmra.mxu0 %v2892
        %v2978 = vpop.f32.mrf.mxu0
        %v2979 = vadd.f32 0.0, %v2978
        %v2980 = vpop.f32.mrf.mxu0
        %v2981 = vadd.f32 0.0, %v2980
        %2982 = vdwg.mxu0
        %s2983 = scalar_lea.vmem [#allocation5], 320
        %v2984 = vld [vmem:[%s2983] sm:$0xff]
        %v2985 = vld [vmem:[%s2983 + $0x8] sm:$0xff]
        %v2986 = vld [vmem:[%s2983 + $0x10] sm:$0xff]
        %v2987 = vld [vmem:[%s2983 + $0x18] sm:$0xff]
        %v2989 = vsel %vm446, %v2984, 0
        %v2992 = vsel %vm446, %v2985, 0
        %v2995 = vsel %vm446, %v2986, 0
        %v2998 = vsel %vm446, %v2987, 0
        %3000 = vmatprep.subr.mxu0 0.0
        %3001 = vmatpush1.msra.mxu0 0.0
        %3002 = vmatprep.subr.mxu0 0.0
        %3003 = vmatpush1.msra.mxu0 0.0
        %3004 = vmatprep.subr.mxu0 0.0
        %3005 = vmatpush1.msra.mxu0 0.0
        %3006 = vmatprep.subr.mxu0 0.0
        %3007 = vmatpush1.msra.mxu0 0.0
        %3008 = vmatprep.subr.mxu0 0.0
        %3009 = vmatpush1.msra.mxu0 0.0
        %3010 = vmatprep.subr.mxu0 0.0
        %3011 = vmatpush1.msra.mxu0 0.0
        %3012 = vmatprep.subr.mxu0 0.0
        %3013 = vmatpush1.msra.mxu0 0.0
        %3014 = vmatprep.subr.mxu0 0.0
        %3015 = vmatpush1.msra.mxu0 0.0
        %3016 = vmatprep.subr.mxu0 0.0
        %3017 = vmatpush1.msra.mxu0 0.0
        %3018 = vmatprep.subr.mxu0 0.0
        %3019 = vmatpush1.msra.mxu0 0.0
        %3020 = vmatprep.subr.mxu0 0.0
        %3021 = vmatpush1.msra.mxu0 0.0
        %3022 = vmatprep.subr.mxu0 0.0
        %3023 = vmatpush1.msra.mxu0 0.0
        %3024 = vmatprep.subr.mxu0 %v2876
        %3025 = vmatpush1.msra.mxu0 %v2875
        %3026 = vmatprep.subr.mxu0 %v2874
        %3027 = vmatpush1.msra.mxu0 %v2873
        %3028 = vmatprep.subr.mxu0 %v2872
        %3029 = vmatpush1.msra.mxu0 %v2871
        %3030 = vmatprep.subr.mxu0 %v2870
        %3031 = vmatpush1.msra.mxu0 %v2869
        %3032 = vmatprep.subr.mxu0 0.0
        %3033 = vmatpush2.msra.mxu0 0.0
        %3034 = vmatprep.subr.mxu0 0.0
        %3035 = vmatpush2.msra.mxu0 0.0
        %3036 = vmatprep.subr.mxu0 0.0
        %3037 = vmatpush2.msra.mxu0 0.0
        %3038 = vmatprep.subr.mxu0 0.0
        %3039 = vmatpush2.msra.mxu0 0.0
        %3040 = vmatprep.subr.mxu0 0.0
        %3041 = vmatpush2.msra.mxu0 0.0
        %3042 = vmatprep.subr.mxu0 0.0
        %3043 = vmatpush2.msra.mxu0 0.0
        %3044 = vmatprep.subr.mxu0 0.0
        %3045 = vmatpush2.msra.mxu0 0.0
        %3046 = vmatprep.subr.mxu0 0.0
        %3047 = vmatpush2.msra.mxu0 0.0
        %3048 = vmatprep.subr.mxu0 0.0
        %3049 = vmatpush2.msra.mxu0 0.0
        %3050 = vmatprep.subr.mxu0 0.0
        %3051 = vmatpush2.msra.mxu0 0.0
        %3052 = vmatprep.subr.mxu0 0.0
        %3053 = vmatpush2.msra.mxu0 0.0
        %3054 = vmatprep.subr.mxu0 0.0
        %3055 = vmatpush2.msra.mxu0 0.0
        %3056 = vmatprep.subr.mxu0 0.0
        %3057 = vmatpush2.msra.mxu0 0.0
        %3058 = vmatprep.subr.mxu0 0.0
        %3059 = vmatpush2.msra.mxu0 0.0
        %3060 = vmatprep.subr.mxu0 0.0
        %3061 = vmatpush2.msra.mxu0 0.0
        %3062 = vmatprep.subr.mxu0 0.0
        %3063 = vmatpush2.msra.mxu0 0.0
        %3064 = vmatprep.mubr.f32.mxu0 0.0
        %3065 = vmatmul.mubr.f32.gmra.mxu0 %v2989
        %v3066 = vpop.f32.mrf.mxu0
        %v3067 = vadd.f32 0.0, %v3066
        %v3068 = vpop.f32.mrf.mxu0
        %v3069 = vadd.f32 0.0, %v3068
        %3070 = vmatprep.mubr.f32.mxu0 0.0
        %3071 = vmatmul.mubr.f32.gmra.mxu0 %v2992
        %v3072 = vpop.f32.mrf.mxu0
        %v3073 = vadd.f32 0.0, %v3072
        %v3074 = vpop.f32.mrf.mxu0
        %v3075 = vadd.f32 0.0, %v3074
        %3076 = vmatprep.mubr.f32.mxu0 0.0
        %3077 = vmatmul.mubr.f32.gmra.mxu0 %v2995
        %v3078 = vpop.f32.mrf.mxu0
        %v3079 = vadd.f32 0.0, %v3078
        %v3080 = vpop.f32.mrf.mxu0
        %v3081 = vadd.f32 0.0, %v3080
        %3082 = vmatprep.mubr.f32.mxu0 0.0
        %3083 = vmatmul.mubr.f32.gmra.mxu0 %v2998
        %v3084 = vpop.f32.mrf.mxu0
        %v3085 = vadd.f32 0.0, %v3084
        %v3086 = vpop.f32.mrf.mxu0
        %v3087 = vadd.f32 0.0, %v3086
        %3088 = vdwg.mxu0
        %3089 = vmatprep.subr.mxu0 %v750
        %3090 = vmatpush1.msra.mxu0 %v749
        %3091 = vmatprep.subr.mxu0 %v748
        %3092 = vmatpush1.msra.mxu0 %v747
        %3093 = vmatprep.subr.mxu0 %v746
        %3094 = vmatpush1.msra.mxu0 %v745
        %3095 = vmatprep.subr.mxu0 %v744
        %3096 = vmatpush1.msra.mxu0 %v743
        %3097 = vmatprep.subr.mxu0 %v742
        %3098 = vmatpush1.msra.mxu0 %v741
        %3099 = vmatprep.subr.mxu0 %v740
        %3100 = vmatpush1.msra.mxu0 %v739
        %3101 = vmatprep.subr.mxu0 %v738
        %3102 = vmatpush1.msra.mxu0 %v737
        %3103 = vmatprep.subr.mxu0 %v736
        %3104 = vmatpush1.msra.mxu0 %v735
        %3105 = vmatprep.subr.mxu0 %v734
        %3106 = vmatpush1.msra.mxu0 %v733
        %3107 = vmatprep.subr.mxu0 %v732
        %3108 = vmatpush1.msra.mxu0 %v731
        %3109 = vmatprep.subr.mxu0 %v730
        %3110 = vmatpush1.msra.mxu0 %v729
        %3111 = vmatprep.subr.mxu0 %v728
        %3112 = vmatpush1.msra.mxu0 %v727
        %3113 = vmatprep.subr.mxu0 %v726
        %3114 = vmatpush1.msra.mxu0 %v725
        %3115 = vmatprep.subr.mxu0 %v724
        %3116 = vmatpush1.msra.mxu0 %v723
        %3117 = vmatprep.subr.mxu0 %v722
        %3118 = vmatpush1.msra.mxu0 %v721
        %3119 = vmatprep.subr.mxu0 %v720
        %3120 = vmatpush1.msra.mxu0 %v719
        %3121 = vmatprep.subr.mxu0 %v782
        %3122 = vmatpush2.msra.mxu0 %v781
        %3123 = vmatprep.subr.mxu0 %v780
        %3124 = vmatpush2.msra.mxu0 %v779
        %3125 = vmatprep.subr.mxu0 %v778
        %3126 = vmatpush2.msra.mxu0 %v777
        %3127 = vmatprep.subr.mxu0 %v776
        %3128 = vmatpush2.msra.mxu0 %v775
        %3129 = vmatprep.subr.mxu0 %v774
        %3130 = vmatpush2.msra.mxu0 %v773
        %3131 = vmatprep.subr.mxu0 %v772
        %3132 = vmatpush2.msra.mxu0 %v771
        %3133 = vmatprep.subr.mxu0 %v770
        %3134 = vmatpush2.msra.mxu0 %v769
        %3135 = vmatprep.subr.mxu0 %v768
        %3136 = vmatpush2.msra.mxu0 %v767
        %3137 = vmatprep.subr.mxu0 %v766
        %3138 = vmatpush2.msra.mxu0 %v765
        %3139 = vmatprep.subr.mxu0 %v764
        %3140 = vmatpush2.msra.mxu0 %v763
        %3141 = vmatprep.subr.mxu0 %v762
        %3142 = vmatpush2.msra.mxu0 %v761
        %3143 = vmatprep.subr.mxu0 %v760
        %3144 = vmatpush2.msra.mxu0 %v759
        %3145 = vmatprep.subr.mxu0 %v758
        %3146 = vmatpush2.msra.mxu0 %v757
        %3147 = vmatprep.subr.mxu0 %v756
        %3148 = vmatpush2.msra.mxu0 %v755
        %3149 = vmatprep.subr.mxu0 %v754
        %3150 = vmatpush2.msra.mxu0 %v753
        %3151 = vmatprep.subr.mxu0 %v752
        %3152 = vmatpush2.msra.mxu0 %v751
        %3153 = vmatprep.mubr.f32.mxu0 %v3069
        %3154 = vmatmul.mubr.f32.gmra.mxu0 %v3067
        %v3155 = vpop.f32.mrf.mxu0
        %v3156 = vadd.f32 0.0, %v3155
        %v3157 = vpop.f32.mrf.mxu0
        %v3158 = vadd.f32 0.0, %v3157
        %3159 = vmatprep.mubr.f32.mxu0 %v3075
        %3160 = vmatmul.mubr.f32.gmra.mxu0 %v3073
        %v3161 = vpop.f32.mrf.mxu0
        %v3162 = vadd.f32 0.0, %v3161
        %v3163 = vpop.f32.mrf.mxu0
        %v3164 = vadd.f32 0.0, %v3163
        %3165 = vmatprep.mubr.f32.mxu0 %v3081
        %3166 = vmatmul.mubr.f32.gmra.mxu0 %v3079
        %v3167 = vpop.f32.mrf.mxu0
        %v3168 = vadd.f32 0.0, %v3167
        %v3169 = vpop.f32.mrf.mxu0
        %v3170 = vadd.f32 0.0, %v3169
        %3171 = vmatprep.mubr.f32.mxu0 %v3087
        %3172 = vmatmul.mubr.f32.gmra.mxu0 %v3085
        %v3173 = vpop.f32.mrf.mxu0
        %v3174 = vadd.f32 0.0, %v3173
        %v3175 = vpop.f32.mrf.mxu0
        %v3176 = vadd.f32 0.0, %v3175
        %3177 = vdwg.mxu0
        %3178 = vmatprep.subr.mxu0 %v579
        %3179 = vmatpush1.msra.mxu0 %v578
        %3180 = vmatprep.subr.mxu0 %v577
        %3181 = vmatpush1.msra.mxu0 %v576
        %3182 = vmatprep.subr.mxu0 %v575
        %3183 = vmatpush1.msra.mxu0 %v574
        %3184 = vmatprep.subr.mxu0 %v573
        %3185 = vmatpush1.msra.mxu0 %v572
        %3186 = vmatprep.subr.mxu0 %v571
        %3187 = vmatpush1.msra.mxu0 %v570
        %3188 = vmatprep.subr.mxu0 %v569
        %3189 = vmatpush1.msra.mxu0 %v568
        %3190 = vmatprep.subr.mxu0 %v567
        %3191 = vmatpush1.msra.mxu0 %v566
        %3192 = vmatprep.subr.mxu0 %v565
        %3193 = vmatpush1.msra.mxu0 %v564
        %3194 = vmatprep.subr.mxu0 %v563
        %3195 = vmatpush1.msra.mxu0 %v562
        %3196 = vmatprep.subr.mxu0 %v561
        %3197 = vmatpush1.msra.mxu0 %v560
        %3198 = vmatprep.subr.mxu0 %v559
        %3199 = vmatpush1.msra.mxu0 %v558
        %3200 = vmatprep.subr.mxu0 %v557
        %3201 = vmatpush1.msra.mxu0 %v556
        %3202 = vmatprep.subr.mxu0 %v555
        %3203 = vmatpush1.msra.mxu0 %v554
        %3204 = vmatprep.subr.mxu0 %v553
        %3205 = vmatpush1.msra.mxu0 %v552
        %3206 = vmatprep.subr.mxu0 %v551
        %3207 = vmatpush1.msra.mxu0 %v550
        %3208 = vmatprep.subr.mxu0 %v549
        %3209 = vmatpush1.msra.mxu0 %v548
        %3210 = vmatprep.subr.mxu0 %v611
        %3211 = vmatpush2.msra.mxu0 %v610
        %3212 = vmatprep.subr.mxu0 %v609
        %3213 = vmatpush2.msra.mxu0 %v608
        %3214 = vmatprep.subr.mxu0 %v607
        %3215 = vmatpush2.msra.mxu0 %v606
        %3216 = vmatprep.subr.mxu0 %v605
        %3217 = vmatpush2.msra.mxu0 %v604
        %3218 = vmatprep.subr.mxu0 %v603
        %3219 = vmatpush2.msra.mxu0 %v602
        %3220 = vmatprep.subr.mxu0 %v601
        %3221 = vmatpush2.msra.mxu0 %v600
        %3222 = vmatprep.subr.mxu0 %v599
        %3223 = vmatpush2.msra.mxu0 %v598
        %3224 = vmatprep.subr.mxu0 %v597
        %3225 = vmatpush2.msra.mxu0 %v596
        %3226 = vmatprep.subr.mxu0 %v595
        %3227 = vmatpush2.msra.mxu0 %v594
        %3228 = vmatprep.subr.mxu0 %v593
        %3229 = vmatpush2.msra.mxu0 %v592
        %3230 = vmatprep.subr.mxu0 %v591
        %3231 = vmatpush2.msra.mxu0 %v590
        %3232 = vmatprep.subr.mxu0 %v589
        %3233 = vmatpush2.msra.mxu0 %v588
        %3234 = vmatprep.subr.mxu0 %v587
        %3235 = vmatpush2.msra.mxu0 %v586
        %3236 = vmatprep.subr.mxu0 %v585
        %3237 = vmatpush2.msra.mxu0 %v584
        %3238 = vmatprep.subr.mxu0 %v583
        %3239 = vmatpush2.msra.mxu0 %v582
        %3240 = vmatprep.subr.mxu0 %v581
        %3241 = vmatpush2.msra.mxu0 %v580
        %3242 = vmatprep.mubr.f32.mxu0 %v2963
        %3243 = vmatmul.mubr.f32.gmra.mxu0 %v2961
        %v3244 = vpop.f32.mrf.mxu0
        %v3245 = vadd.f32 %v3156, %v3244
        %v3246 = vpop.f32.mrf.mxu0
        %v3247 = vadd.f32 %v3158, %v3246
        %3248 = vmatprep.mubr.f32.mxu0 %v2969
        %3249 = vmatmul.mubr.f32.gmra.mxu0 %v2967
        %v3250 = vpop.f32.mrf.mxu0
        %v3251 = vadd.f32 %v3162, %v3250
        %v3252 = vpop.f32.mrf.mxu0
        %v3253 = vadd.f32 %v3164, %v3252
        %3254 = vmatprep.mubr.f32.mxu0 %v2975
        %3255 = vmatmul.mubr.f32.gmra.mxu0 %v2973
        %v3256 = vpop.f32.mrf.mxu0
        %v3257 = vadd.f32 %v3168, %v3256
        %v3258 = vpop.f32.mrf.mxu0
        %v3259 = vadd.f32 %v3170, %v3258
        %3260 = vmatprep.mubr.f32.mxu0 %v2981
        %3261 = vmatmul.mubr.f32.gmra.mxu0 %v2979
        %v3262 = vpop.f32.mrf.mxu0
        %v3263 = vadd.f32 %v3174, %v3262
        %v3264 = vpop.f32.mrf.mxu0
        %v3265 = vadd.f32 %v3176, %v3264
        %3266 = vdwg.mxu0
        %s3267 = scalar_lea.vmem [#allocation5], 352
        %v3268 = vld [vmem:[%s3267] sm:$0xff]
        %v3269 = vld [vmem:[%s3267 + $0x8] sm:$0xff]
        %v3270 = vld [vmem:[%s3267 + $0x10] sm:$0xff]
        %v3271 = vld [vmem:[%s3267 + $0x18] sm:$0xff]
        %v3273 = vsel %vm446, %v3268, 0
        %v3276 = vsel %vm446, %v3269, 0
        %v3279 = vsel %vm446, %v3270, 0
        %v3282 = vsel %vm446, %v3271, 0
        %3284 = vmatprep.subr.mxu0 0.0
        %3285 = vmatpush1.msra.mxu0 0.0
        %3286 = vmatprep.subr.mxu0 0.0
        %3287 = vmatpush1.msra.mxu0 0.0
        %3288 = vmatprep.subr.mxu0 0.0
        %3289 = vmatpush1.msra.mxu0 0.0
        %3290 = vmatprep.subr.mxu0 0.0
        %3291 = vmatpush1.msra.mxu0 0.0
        %3292 = vmatprep.subr.mxu0 0.0
        %3293 = vmatpush1.msra.mxu0 0.0
        %3294 = vmatprep.subr.mxu0 0.0
        %3295 = vmatpush1.msra.mxu0 0.0
        %3296 = vmatprep.subr.mxu0 0.0
        %3297 = vmatpush1.msra.mxu0 0.0
        %3298 = vmatprep.subr.mxu0 0.0
        %3299 = vmatpush1.msra.mxu0 0.0
        %3300 = vmatprep.subr.mxu0 0.0
        %3301 = vmatpush1.msra.mxu0 0.0
        %3302 = vmatprep.subr.mxu0 0.0
        %3303 = vmatpush1.msra.mxu0 0.0
        %3304 = vmatprep.subr.mxu0 0.0
        %3305 = vmatpush1.msra.mxu0 0.0
        %3306 = vmatprep.subr.mxu0 0.0
        %3307 = vmatpush1.msra.mxu0 0.0
        %3308 = vmatprep.subr.mxu0 %v2876
        %3309 = vmatpush1.msra.mxu0 %v2875
        %3310 = vmatprep.subr.mxu0 %v2874
        %3311 = vmatpush1.msra.mxu0 %v2873
        %3312 = vmatprep.subr.mxu0 %v2872
        %3313 = vmatpush1.msra.mxu0 %v2871
        %3314 = vmatprep.subr.mxu0 %v2870
        %3315 = vmatpush1.msra.mxu0 %v2869
        %3316 = vmatprep.subr.mxu0 0.0
        %3317 = vmatpush2.msra.mxu0 0.0
        %3318 = vmatprep.subr.mxu0 0.0
        %3319 = vmatpush2.msra.mxu0 0.0
        %3320 = vmatprep.subr.mxu0 0.0
        %3321 = vmatpush2.msra.mxu0 0.0
        %3322 = vmatprep.subr.mxu0 0.0
        %3323 = vmatpush2.msra.mxu0 0.0
        %3324 = vmatprep.subr.mxu0 0.0
        %3325 = vmatpush2.msra.mxu0 0.0
        %3326 = vmatprep.subr.mxu0 0.0
        %3327 = vmatpush2.msra.mxu0 0.0
        %3328 = vmatprep.subr.mxu0 0.0
        %3329 = vmatpush2.msra.mxu0 0.0
        %3330 = vmatprep.subr.mxu0 0.0
        %3331 = vmatpush2.msra.mxu0 0.0
        %3332 = vmatprep.subr.mxu0 0.0
        %3333 = vmatpush2.msra.mxu0 0.0
        %3334 = vmatprep.subr.mxu0 0.0
        %3335 = vmatpush2.msra.mxu0 0.0
        %3336 = vmatprep.subr.mxu0 0.0
        %3337 = vmatpush2.msra.mxu0 0.0
        %3338 = vmatprep.subr.mxu0 0.0
        %3339 = vmatpush2.msra.mxu0 0.0
        %3340 = vmatprep.subr.mxu0 0.0
        %3341 = vmatpush2.msra.mxu0 0.0
        %3342 = vmatprep.subr.mxu0 0.0
        %3343 = vmatpush2.msra.mxu0 0.0
        %3344 = vmatprep.subr.mxu0 0.0
        %3345 = vmatpush2.msra.mxu0 0.0
        %3346 = vmatprep.subr.mxu0 0.0
        %3347 = vmatpush2.msra.mxu0 0.0
        %3348 = vmatprep.mubr.f32.mxu0 0.0
        %3349 = vmatmul.mubr.f32.gmra.mxu0 %v3273
        %v3350 = vpop.f32.mrf.mxu0
        %v3351 = vadd.f32 0.0, %v3350
        %v3352 = vpop.f32.mrf.mxu0
        %v3353 = vadd.f32 0.0, %v3352
        %3354 = vmatprep.mubr.f32.mxu0 0.0
        %3355 = vmatmul.mubr.f32.gmra.mxu0 %v3276
        %v3356 = vpop.f32.mrf.mxu0
        %v3357 = vadd.f32 0.0, %v3356
        %v3358 = vpop.f32.mrf.mxu0
        %v3359 = vadd.f32 0.0, %v3358
        %3360 = vmatprep.mubr.f32.mxu0 0.0
        %3361 = vmatmul.mubr.f32.gmra.mxu0 %v3279
        %v3362 = vpop.f32.mrf.mxu0
        %v3363 = vadd.f32 0.0, %v3362
        %v3364 = vpop.f32.mrf.mxu0
        %v3365 = vadd.f32 0.0, %v3364
        %3366 = vmatprep.mubr.f32.mxu0 0.0
        %3367 = vmatmul.mubr.f32.gmra.mxu0 %v3282
        %v3368 = vpop.f32.mrf.mxu0
        %v3369 = vadd.f32 0.0, %v3368
        %v3370 = vpop.f32.mrf.mxu0
        %v3371 = vadd.f32 0.0, %v3370
        %3372 = vdwg.mxu0
        %3373 = vmatprep.subr.mxu0 %v1099
        %3374 = vmatpush1.msra.mxu0 %v1098
        %3375 = vmatprep.subr.mxu0 %v1097
        %3376 = vmatpush1.msra.mxu0 %v1096
        %3377 = vmatprep.subr.mxu0 %v1095
        %3378 = vmatpush1.msra.mxu0 %v1094
        %3379 = vmatprep.subr.mxu0 %v1093
        %3380 = vmatpush1.msra.mxu0 %v1092
        %3381 = vmatprep.subr.mxu0 %v1091
        %3382 = vmatpush1.msra.mxu0 %v1090
        %3383 = vmatprep.subr.mxu0 %v1089
        %3384 = vmatpush1.msra.mxu0 %v1088
        %3385 = vmatprep.subr.mxu0 %v1087
        %3386 = vmatpush1.msra.mxu0 %v1086
        %3387 = vmatprep.subr.mxu0 %v1085
        %3388 = vmatpush1.msra.mxu0 %v1084
        %3389 = vmatprep.subr.mxu0 %v1083
        %3390 = vmatpush1.msra.mxu0 %v1082
        %3391 = vmatprep.subr.mxu0 %v1081
        %3392 = vmatpush1.msra.mxu0 %v1080
        %3393 = vmatprep.subr.mxu0 %v1079
        %3394 = vmatpush1.msra.mxu0 %v1078
        %3395 = vmatprep.subr.mxu0 %v1077
        %3396 = vmatpush1.msra.mxu0 %v1076
        %3397 = vmatprep.subr.mxu0 %v1075
        %3398 = vmatpush1.msra.mxu0 %v1074
        %3399 = vmatprep.subr.mxu0 %v1073
        %3400 = vmatpush1.msra.mxu0 %v1072
        %3401 = vmatprep.subr.mxu0 %v1071
        %3402 = vmatpush1.msra.mxu0 %v1070
        %3403 = vmatprep.subr.mxu0 %v1069
        %3404 = vmatpush1.msra.mxu0 %v1068
        %3405 = vmatprep.subr.mxu0 %v1131
        %3406 = vmatpush2.msra.mxu0 %v1130
        %3407 = vmatprep.subr.mxu0 %v1129
        %3408 = vmatpush2.msra.mxu0 %v1128
        %3409 = vmatprep.subr.mxu0 %v1127
        %3410 = vmatpush2.msra.mxu0 %v1126
        %3411 = vmatprep.subr.mxu0 %v1125
        %3412 = vmatpush2.msra.mxu0 %v1124
        %3413 = vmatprep.subr.mxu0 %v1123
        %3414 = vmatpush2.msra.mxu0 %v1122
        %3415 = vmatprep.subr.mxu0 %v1121
        %3416 = vmatpush2.msra.mxu0 %v1120
        %3417 = vmatprep.subr.mxu0 %v1119
        %3418 = vmatpush2.msra.mxu0 %v1118
        %3419 = vmatprep.subr.mxu0 %v1117
        %3420 = vmatpush2.msra.mxu0 %v1116
        %3421 = vmatprep.subr.mxu0 %v1115
        %3422 = vmatpush2.msra.mxu0 %v1114
        %3423 = vmatprep.subr.mxu0 %v1113
        %3424 = vmatpush2.msra.mxu0 %v1112
        %3425 = vmatprep.subr.mxu0 %v1111
        %3426 = vmatpush2.msra.mxu0 %v1110
        %3427 = vmatprep.subr.mxu0 %v1109
        %3428 = vmatpush2.msra.mxu0 %v1108
        %3429 = vmatprep.subr.mxu0 %v1107
        %3430 = vmatpush2.msra.mxu0 %v1106
        %3431 = vmatprep.subr.mxu0 %v1105
        %3432 = vmatpush2.msra.mxu0 %v1104
        %3433 = vmatprep.subr.mxu0 %v1103
        %3434 = vmatpush2.msra.mxu0 %v1102
        %3435 = vmatprep.subr.mxu0 %v1101
        %3436 = vmatpush2.msra.mxu0 %v1100
        %3437 = vmatprep.mubr.f32.mxu0 %v3353
        %3438 = vmatmul.mubr.f32.gmra.mxu0 %v3351
        %v3439 = vpop.f32.mrf.mxu0
        %v3440 = vadd.f32 0.0, %v3439
        %v3441 = vpop.f32.mrf.mxu0
        %v3442 = vadd.f32 0.0, %v3441
        %3443 = vmatprep.mubr.f32.mxu0 %v3359
        %3444 = vmatmul.mubr.f32.gmra.mxu0 %v3357
        %v3445 = vpop.f32.mrf.mxu0
        %v3446 = vadd.f32 0.0, %v3445
        %v3447 = vpop.f32.mrf.mxu0
        %v3448 = vadd.f32 0.0, %v3447
        %3449 = vmatprep.mubr.f32.mxu0 %v3365
        %3450 = vmatmul.mubr.f32.gmra.mxu0 %v3363
        %v3451 = vpop.f32.mrf.mxu0
        %v3452 = vadd.f32 0.0, %v3451
        %v3453 = vpop.f32.mrf.mxu0
        %v3454 = vadd.f32 0.0, %v3453
        %3455 = vmatprep.mubr.f32.mxu0 %v3371
        %3456 = vmatmul.mubr.f32.gmra.mxu0 %v3369
        %v3457 = vpop.f32.mrf.mxu0
        %v3458 = vadd.f32 0.0, %v3457
        %v3459 = vpop.f32.mrf.mxu0
        %v3460 = vadd.f32 0.0, %v3459
        %3461 = vdwg.mxu0
        %v3462 = vadd.f32 %v3245, %v3440
        %v3463 = vadd.f32 %v3247, %v3442
        %v3464 = vadd.f32 %v3251, %v3446
        %v3465 = vadd.f32 %v3253, %v3448
        %v3466 = vadd.f32 %v3257, %v3452
        %v3467 = vadd.f32 %v3259, %v3454
        %v3468 = vadd.f32 %v3263, %v3458
        %v3469 = vadd.f32 %v3265, %v3460
        %s3470 = scalar_lea.vmem [#allocation5], 384
        %v3471 = vld [vmem:[%s3470] sm:$0xff]
        %v3472 = vld [vmem:[%s3470 + $0x8] sm:$0xff]
        %v3473 = vld [vmem:[%s3470 + $0x10] sm:$0xff]
        %v3474 = vld [vmem:[%s3470 + $0x18] sm:$0xff]
        %v3476 = vsel %vm446, %v3471, 0
        %v3479 = vsel %vm446, %v3472, 0
        %v3482 = vsel %vm446, %v3473, 0
        %v3485 = vsel %vm446, %v3474, 0
        %3487 = vmatprep.subr.mxu0 0.0
        %3488 = vmatpush1.msra.mxu0 0.0
        %3489 = vmatprep.subr.mxu0 0.0
        %3490 = vmatpush1.msra.mxu0 0.0
        %3491 = vmatprep.subr.mxu0 0.0
        %3492 = vmatpush1.msra.mxu0 0.0
        %3493 = vmatprep.subr.mxu0 0.0
        %3494 = vmatpush1.msra.mxu0 0.0
        %3495 = vmatprep.subr.mxu0 0.0
        %3496 = vmatpush1.msra.mxu0 0.0
        %3497 = vmatprep.subr.mxu0 0.0
        %3498 = vmatpush1.msra.mxu0 0.0
        %3499 = vmatprep.subr.mxu0 0.0
        %3500 = vmatpush1.msra.mxu0 0.0
        %3501 = vmatprep.subr.mxu0 0.0
        %3502 = vmatpush1.msra.mxu0 0.0
        %3503 = vmatprep.subr.mxu0 0.0
        %3504 = vmatpush1.msra.mxu0 0.0
        %3505 = vmatprep.subr.mxu0 0.0
        %3506 = vmatpush1.msra.mxu0 0.0
        %3507 = vmatprep.subr.mxu0 0.0
        %3508 = vmatpush1.msra.mxu0 0.0
        %3509 = vmatprep.subr.mxu0 0.0
        %3510 = vmatpush1.msra.mxu0 0.0
        %3511 = vmatprep.subr.mxu0 %v2876
        %3512 = vmatpush1.msra.mxu0 %v2875
        %3513 = vmatprep.subr.mxu0 %v2874
        %3514 = vmatpush1.msra.mxu0 %v2873
        %3515 = vmatprep.subr.mxu0 %v2872
        %3516 = vmatpush1.msra.mxu0 %v2871
        %3517 = vmatprep.subr.mxu0 %v2870
        %3518 = vmatpush1.msra.mxu0 %v2869
        %3519 = vmatprep.subr.mxu0 0.0
        %3520 = vmatpush2.msra.mxu0 0.0
        %3521 = vmatprep.subr.mxu0 0.0
        %3522 = vmatpush2.msra.mxu0 0.0
        %3523 = vmatprep.subr.mxu0 0.0
        %3524 = vmatpush2.msra.mxu0 0.0
        %3525 = vmatprep.subr.mxu0 0.0
        %3526 = vmatpush2.msra.mxu0 0.0
        %3527 = vmatprep.subr.mxu0 0.0
        %3528 = vmatpush2.msra.mxu0 0.0
        %3529 = vmatprep.subr.mxu0 0.0
        %3530 = vmatpush2.msra.mxu0 0.0
        %3531 = vmatprep.subr.mxu0 0.0
        %3532 = vmatpush2.msra.mxu0 0.0
        %3533 = vmatprep.subr.mxu0 0.0
        %3534 = vmatpush2.msra.mxu0 0.0
        %3535 = vmatprep.subr.mxu0 0.0
        %3536 = vmatpush2.msra.mxu0 0.0
        %3537 = vmatprep.subr.mxu0 0.0
        %3538 = vmatpush2.msra.mxu0 0.0
        %3539 = vmatprep.subr.mxu0 0.0
        %3540 = vmatpush2.msra.mxu0 0.0
        %3541 = vmatprep.subr.mxu0 0.0
        %3542 = vmatpush2.msra.mxu0 0.0
        %3543 = vmatprep.subr.mxu0 0.0
        %3544 = vmatpush2.msra.mxu0 0.0
        %3545 = vmatprep.subr.mxu0 0.0
        %3546 = vmatpush2.msra.mxu0 0.0
        %3547 = vmatprep.subr.mxu0 0.0
        %3548 = vmatpush2.msra.mxu0 0.0
        %3549 = vmatprep.subr.mxu0 0.0
        %3550 = vmatpush2.msra.mxu0 0.0
        %3551 = vmatprep.mubr.f32.mxu0 0.0
        %3552 = vmatmul.mubr.f32.gmra.mxu0 %v3476
        %v3553 = vpop.f32.mrf.mxu0
        %v3554 = vadd.f32 0.0, %v3553
        %v3555 = vpop.f32.mrf.mxu0
        %v3556 = vadd.f32 0.0, %v3555
        %3557 = vmatprep.mubr.f32.mxu0 0.0
        %3558 = vmatmul.mubr.f32.gmra.mxu0 %v3479
        %v3559 = vpop.f32.mrf.mxu0
        %v3560 = vadd.f32 0.0, %v3559
        %v3561 = vpop.f32.mrf.mxu0
        %v3562 = vadd.f32 0.0, %v3561
        %3563 = vmatprep.mubr.f32.mxu0 0.0
        %3564 = vmatmul.mubr.f32.gmra.mxu0 %v3482
        %v3565 = vpop.f32.mrf.mxu0
        %v3566 = vadd.f32 0.0, %v3565
        %v3567 = vpop.f32.mrf.mxu0
        %v3568 = vadd.f32 0.0, %v3567
        %3569 = vmatprep.mubr.f32.mxu0 0.0
        %3570 = vmatmul.mubr.f32.gmra.mxu0 %v3485
        %v3571 = vpop.f32.mrf.mxu0
        %v3572 = vadd.f32 0.0, %v3571
        %v3573 = vpop.f32.mrf.mxu0
        %v3574 = vadd.f32 0.0, %v3573
        %3575 = vdwg.mxu0
        %3576 = vmatprep.subr.mxu0 %v1367
        %3577 = vmatpush1.msra.mxu0 %v1366
        %3578 = vmatprep.subr.mxu0 %v1365
        %3579 = vmatpush1.msra.mxu0 %v1364
        %3580 = vmatprep.subr.mxu0 %v1363
        %3581 = vmatpush1.msra.mxu0 %v1362
        %3582 = vmatprep.subr.mxu0 %v1361
        %3583 = vmatpush1.msra.mxu0 %v1360
        %3584 = vmatprep.subr.mxu0 %v1359
        %3585 = vmatpush1.msra.mxu0 %v1358
        %3586 = vmatprep.subr.mxu0 %v1357
        %3587 = vmatpush1.msra.mxu0 %v1356
        %3588 = vmatprep.subr.mxu0 %v1355
        %3589 = vmatpush1.msra.mxu0 %v1354
        %3590 = vmatprep.subr.mxu0 %v1353
        %3591 = vmatpush1.msra.mxu0 %v1352
        %3592 = vmatprep.subr.mxu0 %v1351
        %3593 = vmatpush1.msra.mxu0 %v1350
        %3594 = vmatprep.subr.mxu0 %v1349
        %3595 = vmatpush1.msra.mxu0 %v1348
        %3596 = vmatprep.subr.mxu0 %v1347
        %3597 = vmatpush1.msra.mxu0 %v1346
        %3598 = vmatprep.subr.mxu0 %v1345
        %3599 = vmatpush1.msra.mxu0 %v1344
        %3600 = vmatprep.subr.mxu0 %v1343
        %3601 = vmatpush1.msra.mxu0 %v1342
        %3602 = vmatprep.subr.mxu0 %v1341
        %3603 = vmatpush1.msra.mxu0 %v1340
        %3604 = vmatprep.subr.mxu0 %v1339
        %3605 = vmatpush1.msra.mxu0 %v1338
        %3606 = vmatprep.subr.mxu0 %v1337
        %3607 = vmatpush1.msra.mxu0 %v1336
        %3608 = vmatprep.subr.mxu0 %v1399
        %3609 = vmatpush2.msra.mxu0 %v1398
        %3610 = vmatprep.subr.mxu0 %v1397
        %3611 = vmatpush2.msra.mxu0 %v1396
        %3612 = vmatprep.subr.mxu0 %v1395
        %3613 = vmatpush2.msra.mxu0 %v1394
        %3614 = vmatprep.subr.mxu0 %v1393
        %3615 = vmatpush2.msra.mxu0 %v1392
        %3616 = vmatprep.subr.mxu0 %v1391
        %3617 = vmatpush2.msra.mxu0 %v1390
        %3618 = vmatprep.subr.mxu0 %v1389
        %3619 = vmatpush2.msra.mxu0 %v1388
        %3620 = vmatprep.subr.mxu0 %v1387
        %3621 = vmatpush2.msra.mxu0 %v1386
        %3622 = vmatprep.subr.mxu0 %v1385
        %3623 = vmatpush2.msra.mxu0 %v1384
        %3624 = vmatprep.subr.mxu0 %v1383
        %3625 = vmatpush2.msra.mxu0 %v1382
        %3626 = vmatprep.subr.mxu0 %v1381
        %3627 = vmatpush2.msra.mxu0 %v1380
        %3628 = vmatprep.subr.mxu0 %v1379
        %3629 = vmatpush2.msra.mxu0 %v1378
        %3630 = vmatprep.subr.mxu0 %v1377
        %3631 = vmatpush2.msra.mxu0 %v1376
        %3632 = vmatprep.subr.mxu0 %v1375
        %3633 = vmatpush2.msra.mxu0 %v1374
        %3634 = vmatprep.subr.mxu0 %v1373
        %3635 = vmatpush2.msra.mxu0 %v1372
        %3636 = vmatprep.subr.mxu0 %v1371
        %3637 = vmatpush2.msra.mxu0 %v1370
        %3638 = vmatprep.subr.mxu0 %v1369
        %3639 = vmatpush2.msra.mxu0 %v1368
        %3640 = vmatprep.mubr.f32.mxu0 %v3556
        %3641 = vmatmul.mubr.f32.gmra.mxu0 %v3554
        %v3642 = vpop.f32.mrf.mxu0
        %v3643 = vadd.f32 0.0, %v3642
        %v3644 = vpop.f32.mrf.mxu0
        %v3645 = vadd.f32 0.0, %v3644
        %3646 = vmatprep.mubr.f32.mxu0 %v3562
        %3647 = vmatmul.mubr.f32.gmra.mxu0 %v3560
        %v3648 = vpop.f32.mrf.mxu0
        %v3649 = vadd.f32 0.0, %v3648
        %v3650 = vpop.f32.mrf.mxu0
        %v3651 = vadd.f32 0.0, %v3650
        %3652 = vmatprep.mubr.f32.mxu0 %v3568
        %3653 = vmatmul.mubr.f32.gmra.mxu0 %v3566
        %v3654 = vpop.f32.mrf.mxu0
        %v3655 = vadd.f32 0.0, %v3654
        %v3656 = vpop.f32.mrf.mxu0
        %v3657 = vadd.f32 0.0, %v3656
        %3658 = vmatprep.mubr.f32.mxu0 %v3574
        %3659 = vmatmul.mubr.f32.gmra.mxu0 %v3572
        %v3660 = vpop.f32.mrf.mxu0
        %v3661 = vadd.f32 0.0, %v3660
        %v3662 = vpop.f32.mrf.mxu0
        %v3663 = vadd.f32 0.0, %v3662
        %3664 = vdwg.mxu0
        %v3665 = vadd.f32 %v3462, %v3643
        %v3666 = vadd.f32 %v3463, %v3645
        %v3667 = vadd.f32 %v3464, %v3649
        %v3668 = vadd.f32 %v3465, %v3651
        %v3669 = vadd.f32 %v3466, %v3655
        %v3670 = vadd.f32 %v3467, %v3657
        %v3671 = vadd.f32 %v3468, %v3661
        %v3672 = vadd.f32 %v3469, %v3663
        %s3673 = scalar_lea.vmem [#allocation5], 416
        %v3674 = vld [vmem:[%s3673] sm:$0xff]
        %v3675 = vld [vmem:[%s3673 + $0x8] sm:$0xff]
        %v3676 = vld [vmem:[%s3673 + $0x10] sm:$0xff]
        %v3677 = vld [vmem:[%s3673 + $0x18] sm:$0xff]
        %v3679 = vsel %vm446, %v3674, 0
        %v3682 = vsel %vm446, %v3675, 0
        %v3685 = vsel %vm446, %v3676, 0
        %v3688 = vsel %vm446, %v3677, 0
        %3690 = vmatprep.subr.mxu0 0.0
        %3691 = vmatpush1.msra.mxu0 0.0
        %3692 = vmatprep.subr.mxu0 0.0
        %3693 = vmatpush1.msra.mxu0 0.0
        %3694 = vmatprep.subr.mxu0 0.0
        %3695 = vmatpush1.msra.mxu0 0.0
        %3696 = vmatprep.subr.mxu0 0.0
        %3697 = vmatpush1.msra.mxu0 0.0
        %3698 = vmatprep.subr.mxu0 0.0
        %3699 = vmatpush1.msra.mxu0 0.0
        %3700 = vmatprep.subr.mxu0 0.0
        %3701 = vmatpush1.msra.mxu0 0.0
        %3702 = vmatprep.subr.mxu0 0.0
        %3703 = vmatpush1.msra.mxu0 0.0
        %3704 = vmatprep.subr.mxu0 0.0
        %3705 = vmatpush1.msra.mxu0 0.0
        %3706 = vmatprep.subr.mxu0 0.0
        %3707 = vmatpush1.msra.mxu0 0.0
        %3708 = vmatprep.subr.mxu0 0.0
        %3709 = vmatpush1.msra.mxu0 0.0
        %3710 = vmatprep.subr.mxu0 0.0
        %3711 = vmatpush1.msra.mxu0 0.0
        %3712 = vmatprep.subr.mxu0 0.0
        %3713 = vmatpush1.msra.mxu0 0.0
        %3714 = vmatprep.subr.mxu0 %v2876
        %3715 = vmatpush1.msra.mxu0 %v2875
        %3716 = vmatprep.subr.mxu0 %v2874
        %3717 = vmatpush1.msra.mxu0 %v2873
        %3718 = vmatprep.subr.mxu0 %v2872
        %3719 = vmatpush1.msra.mxu0 %v2871
        %3720 = vmatprep.subr.mxu0 %v2870
        %3721 = vmatpush1.msra.mxu0 %v2869
        %3722 = vmatprep.subr.mxu0 0.0
        %3723 = vmatpush2.msra.mxu0 0.0
        %3724 = vmatprep.subr.mxu0 0.0
        %3725 = vmatpush2.msra.mxu0 0.0
        %3726 = vmatprep.subr.mxu0 0.0
        %3727 = vmatpush2.msra.mxu0 0.0
        %3728 = vmatprep.subr.mxu0 0.0
        %3729 = vmatpush2.msra.mxu0 0.0
        %3730 = vmatprep.subr.mxu0 0.0
        %3731 = vmatpush2.msra.mxu0 0.0
        %3732 = vmatprep.subr.mxu0 0.0
        %3733 = vmatpush2.msra.mxu0 0.0
        %3734 = vmatprep.subr.mxu0 0.0
        %3735 = vmatpush2.msra.mxu0 0.0
        %3736 = vmatprep.subr.mxu0 0.0
        %3737 = vmatpush2.msra.mxu0 0.0
        %3738 = vmatprep.subr.mxu0 0.0
        %3739 = vmatpush2.msra.mxu0 0.0
        %3740 = vmatprep.subr.mxu0 0.0
        %3741 = vmatpush2.msra.mxu0 0.0
        %3742 = vmatprep.subr.mxu0 0.0
        %3743 = vmatpush2.msra.mxu0 0.0
        %3744 = vmatprep.subr.mxu0 0.0
        %3745 = vmatpush2.msra.mxu0 0.0
        %3746 = vmatprep.subr.mxu0 0.0
        %3747 = vmatpush2.msra.mxu0 0.0
        %3748 = vmatprep.subr.mxu0 0.0
        %3749 = vmatpush2.msra.mxu0 0.0
        %3750 = vmatprep.subr.mxu0 0.0
        %3751 = vmatpush2.msra.mxu0 0.0
        %3752 = vmatprep.subr.mxu0 0.0
        %3753 = vmatpush2.msra.mxu0 0.0
        %3754 = vmatprep.mubr.f32.mxu0 0.0
        %3755 = vmatmul.mubr.f32.gmra.mxu0 %v3679
        %v3756 = vpop.f32.mrf.mxu0
        %v3757 = vadd.f32 0.0, %v3756
        %v3758 = vpop.f32.mrf.mxu0
        %v3759 = vadd.f32 0.0, %v3758
        %3760 = vmatprep.mubr.f32.mxu0 0.0
        %3761 = vmatmul.mubr.f32.gmra.mxu0 %v3682
        %v3762 = vpop.f32.mrf.mxu0
        %v3763 = vadd.f32 0.0, %v3762
        %v3764 = vpop.f32.mrf.mxu0
        %v3765 = vadd.f32 0.0, %v3764
        %3766 = vmatprep.mubr.f32.mxu0 0.0
        %3767 = vmatmul.mubr.f32.gmra.mxu0 %v3685
        %v3768 = vpop.f32.mrf.mxu0
        %v3769 = vadd.f32 0.0, %v3768
        %v3770 = vpop.f32.mrf.mxu0
        %v3771 = vadd.f32 0.0, %v3770
        %3772 = vmatprep.mubr.f32.mxu0 0.0
        %3773 = vmatmul.mubr.f32.gmra.mxu0 %v3688
        %v3774 = vpop.f32.mrf.mxu0
        %v3775 = vadd.f32 0.0, %v3774
        %v3776 = vpop.f32.mrf.mxu0
        %v3777 = vadd.f32 0.0, %v3776
        %3778 = vdwg.mxu0
        %3779 = vmatprep.subr.mxu0 %v1635
        %3780 = vmatpush1.msra.mxu0 %v1634
        %3781 = vmatprep.subr.mxu0 %v1633
        %3782 = vmatpush1.msra.mxu0 %v1632
        %3783 = vmatprep.subr.mxu0 %v1631
        %3784 = vmatpush1.msra.mxu0 %v1630
        %3785 = vmatprep.subr.mxu0 %v1629
        %3786 = vmatpush1.msra.mxu0 %v1628
        %3787 = vmatprep.subr.mxu0 %v1627
        %3788 = vmatpush1.msra.mxu0 %v1626
        %3789 = vmatprep.subr.mxu0 %v1625
        %3790 = vmatpush1.msra.mxu0 %v1624
        %3791 = vmatprep.subr.mxu0 %v1623
        %3792 = vmatpush1.msra.mxu0 %v1622
        %3793 = vmatprep.subr.mxu0 %v1621
        %3794 = vmatpush1.msra.mxu0 %v1620
        %3795 = vmatprep.subr.mxu0 %v1619
        %3796 = vmatpush1.msra.mxu0 %v1618
        %3797 = vmatprep.subr.mxu0 %v1617
        %3798 = vmatpush1.msra.mxu0 %v1616
        %3799 = vmatprep.subr.mxu0 %v1615
        %3800 = vmatpush1.msra.mxu0 %v1614
        %3801 = vmatprep.subr.mxu0 %v1613
        %3802 = vmatpush1.msra.mxu0 %v1612
        %3803 = vmatprep.subr.mxu0 %v1611
        %3804 = vmatpush1.msra.mxu0 %v1610
        %3805 = vmatprep.subr.mxu0 %v1609
        %3806 = vmatpush1.msra.mxu0 %v1608
        %3807 = vmatprep.subr.mxu0 %v1607
        %3808 = vmatpush1.msra.mxu0 %v1606
        %3809 = vmatprep.subr.mxu0 %v1605
        %3810 = vmatpush1.msra.mxu0 %v1604
        %3811 = vmatprep.subr.mxu0 %v1667
        %3812 = vmatpush2.msra.mxu0 %v1666
        %3813 = vmatprep.subr.mxu0 %v1665
        %3814 = vmatpush2.msra.mxu0 %v1664
        %3815 = vmatprep.subr.mxu0 %v1663
        %3816 = vmatpush2.msra.mxu0 %v1662
        %3817 = vmatprep.subr.mxu0 %v1661
        %3818 = vmatpush2.msra.mxu0 %v1660
        %3819 = vmatprep.subr.mxu0 %v1659
        %3820 = vmatpush2.msra.mxu0 %v1658
        %3821 = vmatprep.subr.mxu0 %v1657
        %3822 = vmatpush2.msra.mxu0 %v1656
        %3823 = vmatprep.subr.mxu0 %v1655
        %3824 = vmatpush2.msra.mxu0 %v1654
        %3825 = vmatprep.subr.mxu0 %v1653
        %3826 = vmatpush2.msra.mxu0 %v1652
        %3827 = vmatprep.subr.mxu0 %v1651
        %3828 = vmatpush2.msra.mxu0 %v1650
        %3829 = vmatprep.subr.mxu0 %v1649
        %3830 = vmatpush2.msra.mxu0 %v1648
        %3831 = vmatprep.subr.mxu0 %v1647
        %3832 = vmatpush2.msra.mxu0 %v1646
        %3833 = vmatprep.subr.mxu0 %v1645
        %3834 = vmatpush2.msra.mxu0 %v1644
        %3835 = vmatprep.subr.mxu0 %v1643
        %3836 = vmatpush2.msra.mxu0 %v1642
        %3837 = vmatprep.subr.mxu0 %v1641
        %3838 = vmatpush2.msra.mxu0 %v1640
        %3839 = vmatprep.subr.mxu0 %v1639
        %3840 = vmatpush2.msra.mxu0 %v1638
        %3841 = vmatprep.subr.mxu0 %v1637
        %3842 = vmatpush2.msra.mxu0 %v1636
        %3843 = vmatprep.mubr.f32.mxu0 %v3759
        %3844 = vmatmul.mubr.f32.gmra.mxu0 %v3757
        %v3845 = vpop.f32.mrf.mxu0
        %v3846 = vadd.f32 0.0, %v3845
        %v3847 = vpop.f32.mrf.mxu0
        %v3848 = vadd.f32 0.0, %v3847
        %3849 = vmatprep.mubr.f32.mxu0 %v3765
        %3850 = vmatmul.mubr.f32.gmra.mxu0 %v3763
        %v3851 = vpop.f32.mrf.mxu0
        %v3852 = vadd.f32 0.0, %v3851
        %v3853 = vpop.f32.mrf.mxu0
        %v3854 = vadd.f32 0.0, %v3853
        %3855 = vmatprep.mubr.f32.mxu0 %v3771
        %3856 = vmatmul.mubr.f32.gmra.mxu0 %v3769
        %v3857 = vpop.f32.mrf.mxu0
        %v3858 = vadd.f32 0.0, %v3857
        %v3859 = vpop.f32.mrf.mxu0
        %v3860 = vadd.f32 0.0, %v3859
        %3861 = vmatprep.mubr.f32.mxu0 %v3777
        %3862 = vmatmul.mubr.f32.gmra.mxu0 %v3775
        %v3863 = vpop.f32.mrf.mxu0
        %v3864 = vadd.f32 0.0, %v3863
        %v3865 = vpop.f32.mrf.mxu0
        %v3866 = vadd.f32 0.0, %v3865
        %3867 = vdwg.mxu0
        %v3868 = vadd.f32 %v3665, %v3846
        %v3869 = vadd.f32 %v3666, %v3848
        %v3870 = vadd.f32 %v3667, %v3852
        %v3871 = vadd.f32 %v3668, %v3854
        %v3872 = vadd.f32 %v3669, %v3858
        %v3873 = vadd.f32 %v3670, %v3860
        %v3874 = vadd.f32 %v3671, %v3864
        %v3875 = vadd.f32 %v3672, %v3866
        %s3876 = scalar_lea.vmem [#allocation5], 448
        %v3877 = vld [vmem:[%s3876] sm:$0xff]
        %v3878 = vld [vmem:[%s3876 + $0x8] sm:$0xff]
        %v3879 = vld [vmem:[%s3876 + $0x10] sm:$0xff]
        %v3880 = vld [vmem:[%s3876 + $0x18] sm:$0xff]
        %v3882 = vsel %vm446, %v3877, 0
        %v3885 = vsel %vm446, %v3878, 0
        %v3888 = vsel %vm446, %v3879, 0
        %v3891 = vsel %vm446, %v3880, 0
        %3893 = vmatprep.subr.mxu0 0.0
        %3894 = vmatpush1.msra.mxu0 0.0
        %3895 = vmatprep.subr.mxu0 0.0
        %3896 = vmatpush1.msra.mxu0 0.0
        %3897 = vmatprep.subr.mxu0 0.0
        %3898 = vmatpush1.msra.mxu0 0.0
        %3899 = vmatprep.subr.mxu0 0.0
        %3900 = vmatpush1.msra.mxu0 0.0
        %3901 = vmatprep.subr.mxu0 0.0
        %3902 = vmatpush1.msra.mxu0 0.0
        %3903 = vmatprep.subr.mxu0 0.0
        %3904 = vmatpush1.msra.mxu0 0.0
        %3905 = vmatprep.subr.mxu0 0.0
        %3906 = vmatpush1.msra.mxu0 0.0
        %3907 = vmatprep.subr.mxu0 0.0
        %3908 = vmatpush1.msra.mxu0 0.0
        %3909 = vmatprep.subr.mxu0 0.0
        %3910 = vmatpush1.msra.mxu0 0.0
        %3911 = vmatprep.subr.mxu0 0.0
        %3912 = vmatpush1.msra.mxu0 0.0
        %3913 = vmatprep.subr.mxu0 0.0
        %3914 = vmatpush1.msra.mxu0 0.0
        %3915 = vmatprep.subr.mxu0 0.0
        %3916 = vmatpush1.msra.mxu0 0.0
        %3917 = vmatprep.subr.mxu0 %v2876
        %3918 = vmatpush1.msra.mxu0 %v2875
        %3919 = vmatprep.subr.mxu0 %v2874
        %3920 = vmatpush1.msra.mxu0 %v2873
        %3921 = vmatprep.subr.mxu0 %v2872
        %3922 = vmatpush1.msra.mxu0 %v2871
        %3923 = vmatprep.subr.mxu0 %v2870
        %3924 = vmatpush1.msra.mxu0 %v2869
        %3925 = vmatprep.subr.mxu0 0.0
        %3926 = vmatpush2.msra.mxu0 0.0
        %3927 = vmatprep.subr.mxu0 0.0
        %3928 = vmatpush2.msra.mxu0 0.0
        %3929 = vmatprep.subr.mxu0 0.0
        %3930 = vmatpush2.msra.mxu0 0.0
        %3931 = vmatprep.subr.mxu0 0.0
        %3932 = vmatpush2.msra.mxu0 0.0
        %3933 = vmatprep.subr.mxu0 0.0
        %3934 = vmatpush2.msra.mxu0 0.0
        %3935 = vmatprep.subr.mxu0 0.0
        %3936 = vmatpush2.msra.mxu0 0.0
        %3937 = vmatprep.subr.mxu0 0.0
        %3938 = vmatpush2.msra.mxu0 0.0
        %3939 = vmatprep.subr.mxu0 0.0
        %3940 = vmatpush2.msra.mxu0 0.0
        %3941 = vmatprep.subr.mxu0 0.0
        %3942 = vmatpush2.msra.mxu0 0.0
        %3943 = vmatprep.subr.mxu0 0.0
        %3944 = vmatpush2.msra.mxu0 0.0
        %3945 = vmatprep.subr.mxu0 0.0
        %3946 = vmatpush2.msra.mxu0 0.0
        %3947 = vmatprep.subr.mxu0 0.0
        %3948 = vmatpush2.msra.mxu0 0.0
        %3949 = vmatprep.subr.mxu0 0.0
        %3950 = vmatpush2.msra.mxu0 0.0
        %3951 = vmatprep.subr.mxu0 0.0
        %3952 = vmatpush2.msra.mxu0 0.0
        %3953 = vmatprep.subr.mxu0 0.0
        %3954 = vmatpush2.msra.mxu0 0.0
        %3955 = vmatprep.subr.mxu0 0.0
        %3956 = vmatpush2.msra.mxu0 0.0
        %3957 = vmatprep.mubr.f32.mxu0 0.0
        %3958 = vmatmul.mubr.f32.gmra.mxu0 %v3882
        %v3959 = vpop.f32.mrf.mxu0
        %v3960 = vadd.f32 0.0, %v3959
        %v3961 = vpop.f32.mrf.mxu0
        %v3962 = vadd.f32 0.0, %v3961
        %3963 = vmatprep.mubr.f32.mxu0 0.0
        %3964 = vmatmul.mubr.f32.gmra.mxu0 %v3885
        %v3965 = vpop.f32.mrf.mxu0
        %v3966 = vadd.f32 0.0, %v3965
        %v3967 = vpop.f32.mrf.mxu0
        %v3968 = vadd.f32 0.0, %v3967
        %3969 = vmatprep.mubr.f32.mxu0 0.0
        %3970 = vmatmul.mubr.f32.gmra.mxu0 %v3888
        %v3971 = vpop.f32.mrf.mxu0
        %v3972 = vadd.f32 0.0, %v3971
        %v3973 = vpop.f32.mrf.mxu0
        %v3974 = vadd.f32 0.0, %v3973
        %3975 = vmatprep.mubr.f32.mxu0 0.0
        %3976 = vmatmul.mubr.f32.gmra.mxu0 %v3891
        %v3977 = vpop.f32.mrf.mxu0
        %v3978 = vadd.f32 0.0, %v3977
        %v3979 = vpop.f32.mrf.mxu0
        %v3980 = vadd.f32 0.0, %v3979
        %3981 = vdwg.mxu0
        %3982 = vmatprep.subr.mxu0 %v1903
        %3983 = vmatpush1.msra.mxu0 %v1902
        %3984 = vmatprep.subr.mxu0 %v1901
        %3985 = vmatpush1.msra.mxu0 %v1900
        %3986 = vmatprep.subr.mxu0 %v1899
        %3987 = vmatpush1.msra.mxu0 %v1898
        %3988 = vmatprep.subr.mxu0 %v1897
        %3989 = vmatpush1.msra.mxu0 %v1896
        %3990 = vmatprep.subr.mxu0 %v1895
        %3991 = vmatpush1.msra.mxu0 %v1894
        %3992 = vmatprep.subr.mxu0 %v1893
        %3993 = vmatpush1.msra.mxu0 %v1892
        %3994 = vmatprep.subr.mxu0 %v1891
        %3995 = vmatpush1.msra.mxu0 %v1890
        %3996 = vmatprep.subr.mxu0 %v1889
        %3997 = vmatpush1.msra.mxu0 %v1888
        %3998 = vmatprep.subr.mxu0 %v1887
        %3999 = vmatpush1.msra.mxu0 %v1886
        %4000 = vmatprep.subr.mxu0 %v1885
        %4001 = vmatpush1.msra.mxu0 %v1884
        %4002 = vmatprep.subr.mxu0 %v1883
        %4003 = vmatpush1.msra.mxu0 %v1882
        %4004 = vmatprep.subr.mxu0 %v1881
        %4005 = vmatpush1.msra.mxu0 %v1880
        %4006 = vmatprep.subr.mxu0 %v1879
        %4007 = vmatpush1.msra.mxu0 %v1878
        %4008 = vmatprep.subr.mxu0 %v1877
        %4009 = vmatpush1.msra.mxu0 %v1876
        %4010 = vmatprep.subr.mxu0 %v1875
        %4011 = vmatpush1.msra.mxu0 %v1874
        %4012 = vmatprep.subr.mxu0 %v1873
        %4013 = vmatpush1.msra.mxu0 %v1872
        %4014 = vmatprep.subr.mxu0 %v1935
        %4015 = vmatpush2.msra.mxu0 %v1934
        %4016 = vmatprep.subr.mxu0 %v1933
        %4017 = vmatpush2.msra.mxu0 %v1932
        %4018 = vmatprep.subr.mxu0 %v1931
        %4019 = vmatpush2.msra.mxu0 %v1930
        %4020 = vmatprep.subr.mxu0 %v1929
        %4021 = vmatpush2.msra.mxu0 %v1928
        %4022 = vmatprep.subr.mxu0 %v1927
        %4023 = vmatpush2.msra.mxu0 %v1926
        %4024 = vmatprep.subr.mxu0 %v1925
        %4025 = vmatpush2.msra.mxu0 %v1924
        %4026 = vmatprep.subr.mxu0 %v1923
        %4027 = vmatpush2.msra.mxu0 %v1922
        %4028 = vmatprep.subr.mxu0 %v1921
        %4029 = vmatpush2.msra.mxu0 %v1920
        %4030 = vmatprep.subr.mxu0 %v1919
        %4031 = vmatpush2.msra.mxu0 %v1918
        %4032 = vmatprep.subr.mxu0 %v1917
        %4033 = vmatpush2.msra.mxu0 %v1916
        %4034 = vmatprep.subr.mxu0 %v1915
        %4035 = vmatpush2.msra.mxu0 %v1914
        %4036 = vmatprep.subr.mxu0 %v1913
        %4037 = vmatpush2.msra.mxu0 %v1912
        %4038 = vmatprep.subr.mxu0 %v1911
        %4039 = vmatpush2.msra.mxu0 %v1910
        %4040 = vmatprep.subr.mxu0 %v1909
        %4041 = vmatpush2.msra.mxu0 %v1908
        %4042 = vmatprep.subr.mxu0 %v1907
        %4043 = vmatpush2.msra.mxu0 %v1906
        %4044 = vmatprep.subr.mxu0 %v1905
        %4045 = vmatpush2.msra.mxu0 %v1904
        %4046 = vmatprep.mubr.f32.mxu0 %v3962
        %4047 = vmatmul.mubr.f32.gmra.mxu0 %v3960
        %v4048 = vpop.f32.mrf.mxu0
        %v4049 = vadd.f32 0.0, %v4048
        %v4050 = vpop.f32.mrf.mxu0
        %v4051 = vadd.f32 0.0, %v4050
        %4052 = vmatprep.mubr.f32.mxu0 %v3968
        %4053 = vmatmul.mubr.f32.gmra.mxu0 %v3966
        %v4054 = vpop.f32.mrf.mxu0
        %v4055 = vadd.f32 0.0, %v4054
        %v4056 = vpop.f32.mrf.mxu0
        %v4057 = vadd.f32 0.0, %v4056
        %4058 = vmatprep.mubr.f32.mxu0 %v3974
        %4059 = vmatmul.mubr.f32.gmra.mxu0 %v3972
        %v4060 = vpop.f32.mrf.mxu0
        %v4061 = vadd.f32 0.0, %v4060
        %v4062 = vpop.f32.mrf.mxu0
        %v4063 = vadd.f32 0.0, %v4062
        %4064 = vmatprep.mubr.f32.mxu0 %v3980
        %4065 = vmatmul.mubr.f32.gmra.mxu0 %v3978
        %v4066 = vpop.f32.mrf.mxu0
        %v4067 = vadd.f32 0.0, %v4066
        %v4068 = vpop.f32.mrf.mxu0
        %v4069 = vadd.f32 0.0, %v4068
        %4070 = vdwg.mxu0
        %v4071 = vadd.f32 %v3868, %v4049
        %v4072 = vadd.f32 %v3869, %v4051
        %v4073 = vadd.f32 %v3870, %v4055
        %v4074 = vadd.f32 %v3871, %v4057
        %v4075 = vadd.f32 %v3872, %v4061
        %v4076 = vadd.f32 %v3873, %v4063
        %v4077 = vadd.f32 %v3874, %v4067
        %v4078 = vadd.f32 %v3875, %v4069
        %s4079 = scalar_lea.vmem [#allocation5], 480
        %v4080 = vld [vmem:[%s4079] sm:$0xff]
        %v4081 = vld [vmem:[%s4079 + $0x8] sm:$0xff]
        %v4082 = vld [vmem:[%s4079 + $0x10] sm:$0xff]
        %v4083 = vld [vmem:[%s4079 + $0x18] sm:$0xff]
        %v4085 = vsel %vm446, %v4080, 0
        %v4088 = vsel %vm446, %v4081, 0
        %v4091 = vsel %vm446, %v4082, 0
        %v4094 = vsel %vm446, %v4083, 0
        %4096 = vmatprep.subr.mxu0 0.0
        %4097 = vmatpush1.msra.mxu0 0.0
        %4098 = vmatprep.subr.mxu0 0.0
        %4099 = vmatpush1.msra.mxu0 0.0
        %4100 = vmatprep.subr.mxu0 0.0
        %4101 = vmatpush1.msra.mxu0 0.0
        %4102 = vmatprep.subr.mxu0 0.0
        %4103 = vmatpush1.msra.mxu0 0.0
        %4104 = vmatprep.subr.mxu0 0.0
        %4105 = vmatpush1.msra.mxu0 0.0
        %4106 = vmatprep.subr.mxu0 0.0
        %4107 = vmatpush1.msra.mxu0 0.0
        %4108 = vmatprep.subr.mxu0 0.0
        %4109 = vmatpush1.msra.mxu0 0.0
        %4110 = vmatprep.subr.mxu0 0.0
        %4111 = vmatpush1.msra.mxu0 0.0
        %4112 = vmatprep.subr.mxu0 0.0
        %4113 = vmatpush1.msra.mxu0 0.0
        %4114 = vmatprep.subr.mxu0 0.0
        %4115 = vmatpush1.msra.mxu0 0.0
        %4116 = vmatprep.subr.mxu0 0.0
        %4117 = vmatpush1.msra.mxu0 0.0
        %4118 = vmatprep.subr.mxu0 0.0
        %4119 = vmatpush1.msra.mxu0 0.0
        %4120 = vmatprep.subr.mxu0 %v2876
        %4121 = vmatpush1.msra.mxu0 %v2875
        %4122 = vmatprep.subr.mxu0 %v2874
        %4123 = vmatpush1.msra.mxu0 %v2873
        %4124 = vmatprep.subr.mxu0 %v2872
        %4125 = vmatpush1.msra.mxu0 %v2871
        %4126 = vmatprep.subr.mxu0 %v2870
        %4127 = vmatpush1.msra.mxu0 %v2869
        %4128 = vmatprep.subr.mxu0 0.0
        %4129 = vmatpush2.msra.mxu0 0.0
        %4130 = vmatprep.subr.mxu0 0.0
        %4131 = vmatpush2.msra.mxu0 0.0
        %4132 = vmatprep.subr.mxu0 0.0
        %4133 = vmatpush2.msra.mxu0 0.0
        %4134 = vmatprep.subr.mxu0 0.0
        %4135 = vmatpush2.msra.mxu0 0.0
        %4136 = vmatprep.subr.mxu0 0.0
        %4137 = vmatpush2.msra.mxu0 0.0
        %4138 = vmatprep.subr.mxu0 0.0
        %4139 = vmatpush2.msra.mxu0 0.0
        %4140 = vmatprep.subr.mxu0 0.0
        %4141 = vmatpush2.msra.mxu0 0.0
        %4142 = vmatprep.subr.mxu0 0.0
        %4143 = vmatpush2.msra.mxu0 0.0
        %4144 = vmatprep.subr.mxu0 0.0
        %4145 = vmatpush2.msra.mxu0 0.0
        %4146 = vmatprep.subr.mxu0 0.0
        %4147 = vmatpush2.msra.mxu0 0.0
        %4148 = vmatprep.subr.mxu0 0.0
        %4149 = vmatpush2.msra.mxu0 0.0
        %4150 = vmatprep.subr.mxu0 0.0
        %4151 = vmatpush2.msra.mxu0 0.0
        %4152 = vmatprep.subr.mxu0 0.0
        %4153 = vmatpush2.msra.mxu0 0.0
        %4154 = vmatprep.subr.mxu0 0.0
        %4155 = vmatpush2.msra.mxu0 0.0
        %4156 = vmatprep.subr.mxu0 0.0
        %4157 = vmatpush2.msra.mxu0 0.0
        %4158 = vmatprep.subr.mxu0 0.0
        %4159 = vmatpush2.msra.mxu0 0.0
        %4160 = vmatprep.mubr.f32.mxu0 0.0
        %4161 = vmatmul.mubr.f32.gmra.mxu0 %v4085
        %v4162 = vpop.f32.mrf.mxu0
        %v4163 = vadd.f32 0.0, %v4162
        %v4164 = vpop.f32.mrf.mxu0
        %v4165 = vadd.f32 0.0, %v4164
        %4166 = vmatprep.mubr.f32.mxu0 0.0
        %4167 = vmatmul.mubr.f32.gmra.mxu0 %v4088
        %v4168 = vpop.f32.mrf.mxu0
        %v4169 = vadd.f32 0.0, %v4168
        %v4170 = vpop.f32.mrf.mxu0
        %v4171 = vadd.f32 0.0, %v4170
        %4172 = vmatprep.mubr.f32.mxu0 0.0
        %4173 = vmatmul.mubr.f32.gmra.mxu0 %v4091
        %v4174 = vpop.f32.mrf.mxu0
        %v4175 = vadd.f32 0.0, %v4174
        %v4176 = vpop.f32.mrf.mxu0
        %v4177 = vadd.f32 0.0, %v4176
        %4178 = vmatprep.mubr.f32.mxu0 0.0
        %4179 = vmatmul.mubr.f32.gmra.mxu0 %v4094
        %v4180 = vpop.f32.mrf.mxu0
        %v4181 = vadd.f32 0.0, %v4180
        %v4182 = vpop.f32.mrf.mxu0
        %v4183 = vadd.f32 0.0, %v4182
        %4184 = vdwg.mxu0
        %4185 = vmatprep.subr.mxu0 %v2171
        %4186 = vmatpush1.msra.mxu0 %v2170
        %4187 = vmatprep.subr.mxu0 %v2169
        %4188 = vmatpush1.msra.mxu0 %v2168
        %4189 = vmatprep.subr.mxu0 %v2167
        %4190 = vmatpush1.msra.mxu0 %v2166
        %4191 = vmatprep.subr.mxu0 %v2165
        %4192 = vmatpush1.msra.mxu0 %v2164
        %4193 = vmatprep.subr.mxu0 %v2163
        %4194 = vmatpush1.msra.mxu0 %v2162
        %4195 = vmatprep.subr.mxu0 %v2161
        %4196 = vmatpush1.msra.mxu0 %v2160
        %4197 = vmatprep.subr.mxu0 %v2159
        %4198 = vmatpush1.msra.mxu0 %v2158
        %4199 = vmatprep.subr.mxu0 %v2157
        %4200 = vmatpush1.msra.mxu0 %v2156
        %4201 = vmatprep.subr.mxu0 %v2155
        %4202 = vmatpush1.msra.mxu0 %v2154
        %4203 = vmatprep.subr.mxu0 %v2153
        %4204 = vmatpush1.msra.mxu0 %v2152
        %4205 = vmatprep.subr.mxu0 %v2151
        %4206 = vmatpush1.msra.mxu0 %v2150
        %4207 = vmatprep.subr.mxu0 %v2149
        %4208 = vmatpush1.msra.mxu0 %v2148
        %4209 = vmatprep.subr.mxu0 %v2147
        %4210 = vmatpush1.msra.mxu0 %v2146
        %4211 = vmatprep.subr.mxu0 %v2145
        %4212 = vmatpush1.msra.mxu0 %v2144
        %4213 = vmatprep.subr.mxu0 %v2143
        %4214 = vmatpush1.msra.mxu0 %v2142
        %4215 = vmatprep.subr.mxu0 %v2141
        %4216 = vmatpush1.msra.mxu0 %v2140
        %4217 = vmatprep.subr.mxu0 %v2203
        %4218 = vmatpush2.msra.mxu0 %v2202
        %4219 = vmatprep.subr.mxu0 %v2201
        %4220 = vmatpush2.msra.mxu0 %v2200
        %4221 = vmatprep.subr.mxu0 %v2199
        %4222 = vmatpush2.msra.mxu0 %v2198
        %4223 = vmatprep.subr.mxu0 %v2197
        %4224 = vmatpush2.msra.mxu0 %v2196
        %4225 = vmatprep.subr.mxu0 %v2195
        %4226 = vmatpush2.msra.mxu0 %v2194
        %4227 = vmatprep.subr.mxu0 %v2193
        %4228 = vmatpush2.msra.mxu0 %v2192
        %4229 = vmatprep.subr.mxu0 %v2191
        %4230 = vmatpush2.msra.mxu0 %v2190
        %4231 = vmatprep.subr.mxu0 %v2189
        %4232 = vmatpush2.msra.mxu0 %v2188
        %4233 = vmatprep.subr.mxu0 %v2187
        %4234 = vmatpush2.msra.mxu0 %v2186
        %4235 = vmatprep.subr.mxu0 %v2185
        %4236 = vmatpush2.msra.mxu0 %v2184
        %4237 = vmatprep.subr.mxu0 %v2183
        %4238 = vmatpush2.msra.mxu0 %v2182
        %4239 = vmatprep.subr.mxu0 %v2181
        %4240 = vmatpush2.msra.mxu0 %v2180
        %4241 = vmatprep.subr.mxu0 %v2179
        %4242 = vmatpush2.msra.mxu0 %v2178
        %4243 = vmatprep.subr.mxu0 %v2177
        %4244 = vmatpush2.msra.mxu0 %v2176
        %4245 = vmatprep.subr.mxu0 %v2175
        %4246 = vmatpush2.msra.mxu0 %v2174
        %4247 = vmatprep.subr.mxu0 %v2173
        %4248 = vmatpush2.msra.mxu0 %v2172
        %4249 = vmatprep.mubr.f32.mxu0 %v4165
        %4250 = vmatmul.mubr.f32.gmra.mxu0 %v4163
        %v4251 = vpop.f32.mrf.mxu0
        %v4252 = vadd.f32 0.0, %v4251
        %v4253 = vpop.f32.mrf.mxu0
        %v4254 = vadd.f32 0.0, %v4253
        %4255 = vmatprep.mubr.f32.mxu0 %v4171
        %4256 = vmatmul.mubr.f32.gmra.mxu0 %v4169
        %v4257 = vpop.f32.mrf.mxu0
        %v4258 = vadd.f32 0.0, %v4257
        %v4259 = vpop.f32.mrf.mxu0
        %v4260 = vadd.f32 0.0, %v4259
        %4261 = vmatprep.mubr.f32.mxu0 %v4177
        %4262 = vmatmul.mubr.f32.gmra.mxu0 %v4175
        %v4263 = vpop.f32.mrf.mxu0
        %v4264 = vadd.f32 0.0, %v4263
        %v4265 = vpop.f32.mrf.mxu0
        %v4266 = vadd.f32 0.0, %v4265
        %4267 = vmatprep.mubr.f32.mxu0 %v4183
        %4268 = vmatmul.mubr.f32.gmra.mxu0 %v4181
        %v4269 = vpop.f32.mrf.mxu0
        %v4270 = vadd.f32 0.0, %v4269
        %v4271 = vpop.f32.mrf.mxu0
        %v4272 = vadd.f32 0.0, %v4271
        %4273 = vdwg.mxu0
        %v4274 = vadd.f32 %v4071, %v4252
        %v4275 = vadd.f32 %v4072, %v4254
        %v4276 = vadd.f32 %v4073, %v4258
        %v4277 = vadd.f32 %v4074, %v4260
        %v4278 = vadd.f32 %v4075, %v4264
        %v4279 = vadd.f32 %v4076, %v4266
        %v4280 = vadd.f32 %v4077, %v4270
        %v4281 = vadd.f32 %v4078, %v4272
        %s4282 = scalar_lea.vmem [#allocation5], 512
        %v4283 = vld [vmem:[%s4282] sm:$0xff]
        %v4284 = vld [vmem:[%s4282 + $0x8] sm:$0xff]
        %v4285 = vld [vmem:[%s4282 + $0x10] sm:$0xff]
        %v4286 = vld [vmem:[%s4282 + $0x18] sm:$0xff]
        %v4288 = vsel %vm446, %v4283, 0
        %v4291 = vsel %vm446, %v4284, 0
        %v4294 = vsel %vm446, %v4285, 0
        %v4297 = vsel %vm446, %v4286, 0
        %4299 = vmatprep.subr.mxu0 0.0
        %4300 = vmatpush1.msra.mxu0 0.0
        %4301 = vmatprep.subr.mxu0 0.0
        %4302 = vmatpush1.msra.mxu0 0.0
        %4303 = vmatprep.subr.mxu0 0.0
        %4304 = vmatpush1.msra.mxu0 0.0
        %4305 = vmatprep.subr.mxu0 0.0
        %4306 = vmatpush1.msra.mxu0 0.0
        %4307 = vmatprep.subr.mxu0 0.0
        %4308 = vmatpush1.msra.mxu0 0.0
        %4309 = vmatprep.subr.mxu0 0.0
        %4310 = vmatpush1.msra.mxu0 0.0
        %4311 = vmatprep.subr.mxu0 0.0
        %4312 = vmatpush1.msra.mxu0 0.0
        %4313 = vmatprep.subr.mxu0 0.0
        %4314 = vmatpush1.msra.mxu0 0.0
        %4315 = vmatprep.subr.mxu0 0.0
        %4316 = vmatpush1.msra.mxu0 0.0
        %4317 = vmatprep.subr.mxu0 0.0
        %4318 = vmatpush1.msra.mxu0 0.0
        %4319 = vmatprep.subr.mxu0 0.0
        %4320 = vmatpush1.msra.mxu0 0.0
        %4321 = vmatprep.subr.mxu0 0.0
        %4322 = vmatpush1.msra.mxu0 0.0
        %4323 = vmatprep.subr.mxu0 %v2876
        %4324 = vmatpush1.msra.mxu0 %v2875
        %4325 = vmatprep.subr.mxu0 %v2874
        %4326 = vmatpush1.msra.mxu0 %v2873
        %4327 = vmatprep.subr.mxu0 %v2872
        %4328 = vmatpush1.msra.mxu0 %v2871
        %4329 = vmatprep.subr.mxu0 %v2870
        %4330 = vmatpush1.msra.mxu0 %v2869
        %4331 = vmatprep.subr.mxu0 0.0
        %4332 = vmatpush2.msra.mxu0 0.0
        %4333 = vmatprep.subr.mxu0 0.0
        %4334 = vmatpush2.msra.mxu0 0.0
        %4335 = vmatprep.subr.mxu0 0.0
        %4336 = vmatpush2.msra.mxu0 0.0
        %4337 = vmatprep.subr.mxu0 0.0
        %4338 = vmatpush2.msra.mxu0 0.0
        %4339 = vmatprep.subr.mxu0 0.0
        %4340 = vmatpush2.msra.mxu0 0.0
        %4341 = vmatprep.subr.mxu0 0.0
        %4342 = vmatpush2.msra.mxu0 0.0
        %4343 = vmatprep.subr.mxu0 0.0
        %4344 = vmatpush2.msra.mxu0 0.0
        %4345 = vmatprep.subr.mxu0 0.0
        %4346 = vmatpush2.msra.mxu0 0.0
        %4347 = vmatprep.subr.mxu0 0.0
        %4348 = vmatpush2.msra.mxu0 0.0
        %4349 = vmatprep.subr.mxu0 0.0
        %4350 = vmatpush2.msra.mxu0 0.0
        %4351 = vmatprep.subr.mxu0 0.0
        %4352 = vmatpush2.msra.mxu0 0.0
        %4353 = vmatprep.subr.mxu0 0.0
        %4354 = vmatpush2.msra.mxu0 0.0
        %4355 = vmatprep.subr.mxu0 0.0
        %4356 = vmatpush2.msra.mxu0 0.0
        %4357 = vmatprep.subr.mxu0 0.0
        %4358 = vmatpush2.msra.mxu0 0.0
        %4359 = vmatprep.subr.mxu0 0.0
        %4360 = vmatpush2.msra.mxu0 0.0
        %4361 = vmatprep.subr.mxu0 0.0
        %4362 = vmatpush2.msra.mxu0 0.0
        %4363 = vmatprep.mubr.f32.mxu0 0.0
        %4364 = vmatmul.mubr.f32.gmra.mxu0 %v4288
        %v4365 = vpop.f32.mrf.mxu0
        %v4366 = vadd.f32 0.0, %v4365
        %v4367 = vpop.f32.mrf.mxu0
        %v4368 = vadd.f32 0.0, %v4367
        %4369 = vmatprep.mubr.f32.mxu0 0.0
        %4370 = vmatmul.mubr.f32.gmra.mxu0 %v4291
        %v4371 = vpop.f32.mrf.mxu0
        %v4372 = vadd.f32 0.0, %v4371
        %v4373 = vpop.f32.mrf.mxu0
        %v4374 = vadd.f32 0.0, %v4373
        %4375 = vmatprep.mubr.f32.mxu0 0.0
        %4376 = vmatmul.mubr.f32.gmra.mxu0 %v4294
        %v4377 = vpop.f32.mrf.mxu0
        %v4378 = vadd.f32 0.0, %v4377
        %v4379 = vpop.f32.mrf.mxu0
        %v4380 = vadd.f32 0.0, %v4379
        %4381 = vmatprep.mubr.f32.mxu0 0.0
        %4382 = vmatmul.mubr.f32.gmra.mxu0 %v4297
        %v4383 = vpop.f32.mrf.mxu0
        %v4384 = vadd.f32 0.0, %v4383
        %v4385 = vpop.f32.mrf.mxu0
        %v4386 = vadd.f32 0.0, %v4385
        %4387 = vdwg.mxu0
        %4388 = vmatprep.subr.mxu0 %v2439
        %4389 = vmatpush1.msra.mxu0 %v2438
        %4390 = vmatprep.subr.mxu0 %v2437
        %4391 = vmatpush1.msra.mxu0 %v2436
        %4392 = vmatprep.subr.mxu0 %v2435
        %4393 = vmatpush1.msra.mxu0 %v2434
        %4394 = vmatprep.subr.mxu0 %v2433
        %4395 = vmatpush1.msra.mxu0 %v2432
        %4396 = vmatprep.subr.mxu0 %v2431
        %4397 = vmatpush1.msra.mxu0 %v2430
        %4398 = vmatprep.subr.mxu0 %v2429
        %4399 = vmatpush1.msra.mxu0 %v2428
        %4400 = vmatprep.subr.mxu0 %v2427
        %4401 = vmatpush1.msra.mxu0 %v2426
        %4402 = vmatprep.subr.mxu0 %v2425
        %4403 = vmatpush1.msra.mxu0 %v2424
        %4404 = vmatprep.subr.mxu0 %v2423
        %4405 = vmatpush1.msra.mxu0 %v2422
        %4406 = vmatprep.subr.mxu0 %v2421
        %4407 = vmatpush1.msra.mxu0 %v2420
        %4408 = vmatprep.subr.mxu0 %v2419
        %4409 = vmatpush1.msra.mxu0 %v2418
        %4410 = vmatprep.subr.mxu0 %v2417
        %4411 = vmatpush1.msra.mxu0 %v2416
        %4412 = vmatprep.subr.mxu0 %v2415
        %4413 = vmatpush1.msra.mxu0 %v2414
        %4414 = vmatprep.subr.mxu0 %v2413
        %4415 = vmatpush1.msra.mxu0 %v2412
        %4416 = vmatprep.subr.mxu0 %v2411
        %4417 = vmatpush1.msra.mxu0 %v2410
        %4418 = vmatprep.subr.mxu0 %v2409
        %4419 = vmatpush1.msra.mxu0 %v2408
        %4420 = vmatprep.subr.mxu0 %v2471
        %4421 = vmatpush2.msra.mxu0 %v2470
        %4422 = vmatprep.subr.mxu0 %v2469
        %4423 = vmatpush2.msra.mxu0 %v2468
        %4424 = vmatprep.subr.mxu0 %v2467
        %4425 = vmatpush2.msra.mxu0 %v2466
        %4426 = vmatprep.subr.mxu0 %v2465
        %4427 = vmatpush2.msra.mxu0 %v2464
        %4428 = vmatprep.subr.mxu0 %v2463
        %4429 = vmatpush2.msra.mxu0 %v2462
        %4430 = vmatprep.subr.mxu0 %v2461
        %4431 = vmatpush2.msra.mxu0 %v2460
        %4432 = vmatprep.subr.mxu0 %v2459
        %4433 = vmatpush2.msra.mxu0 %v2458
        %4434 = vmatprep.subr.mxu0 %v2457
        %4435 = vmatpush2.msra.mxu0 %v2456
        %4436 = vmatprep.subr.mxu0 %v2455
        %4437 = vmatpush2.msra.mxu0 %v2454
        %4438 = vmatprep.subr.mxu0 %v2453
        %4439 = vmatpush2.msra.mxu0 %v2452
        %4440 = vmatprep.subr.mxu0 %v2451
        %4441 = vmatpush2.msra.mxu0 %v2450
        %4442 = vmatprep.subr.mxu0 %v2449
        %4443 = vmatpush2.msra.mxu0 %v2448
        %4444 = vmatprep.subr.mxu0 %v2447
        %4445 = vmatpush2.msra.mxu0 %v2446
        %4446 = vmatprep.subr.mxu0 %v2445
        %4447 = vmatpush2.msra.mxu0 %v2444
        %4448 = vmatprep.subr.mxu0 %v2443
        %4449 = vmatpush2.msra.mxu0 %v2442
        %4450 = vmatprep.subr.mxu0 %v2441
        %4451 = vmatpush2.msra.mxu0 %v2440
        %4452 = vmatprep.mubr.f32.mxu0 %v4368
        %4453 = vmatmul.mubr.f32.gmra.mxu0 %v4366
        %v4454 = vpop.f32.mrf.mxu0
        %v4455 = vadd.f32 0.0, %v4454
        %v4456 = vpop.f32.mrf.mxu0
        %v4457 = vadd.f32 0.0, %v4456
        %4458 = vmatprep.mubr.f32.mxu0 %v4374
        %4459 = vmatmul.mubr.f32.gmra.mxu0 %v4372
        %v4460 = vpop.f32.mrf.mxu0
        %v4461 = vadd.f32 0.0, %v4460
        %v4462 = vpop.f32.mrf.mxu0
        %v4463 = vadd.f32 0.0, %v4462
        %4464 = vmatprep.mubr.f32.mxu0 %v4380
        %4465 = vmatmul.mubr.f32.gmra.mxu0 %v4378
        %v4466 = vpop.f32.mrf.mxu0
        %v4467 = vadd.f32 0.0, %v4466
        %v4468 = vpop.f32.mrf.mxu0
        %v4469 = vadd.f32 0.0, %v4468
        %4470 = vmatprep.mubr.f32.mxu0 %v4386
        %4471 = vmatmul.mubr.f32.gmra.mxu0 %v4384
        %v4472 = vpop.f32.mrf.mxu0
        %v4473 = vadd.f32 0.0, %v4472
        %v4474 = vpop.f32.mrf.mxu0
        %v4475 = vadd.f32 0.0, %v4474
        %4476 = vdwg.mxu0
        %v4477 = vadd.f32 %v4274, %v4455
        %v4478 = vadd.f32 %v4275, %v4457
        %v4479 = vadd.f32 %v4276, %v4461
        %v4480 = vadd.f32 %v4277, %v4463
        %v4481 = vadd.f32 %v4278, %v4467
        %v4482 = vadd.f32 %v4279, %v4469
        %v4483 = vadd.f32 %v4280, %v4473
        %v4484 = vadd.f32 %v4281, %v4475
        %s4485 = scalar_lea.vmem [#allocation5], 544
        %v4486 = vld [vmem:[%s4485] sm:$0xff]
        %v4487 = vld [vmem:[%s4485 + $0x8] sm:$0xff]
        %v4488 = vld [vmem:[%s4485 + $0x10] sm:$0xff]
        %v4489 = vld [vmem:[%s4485 + $0x18] sm:$0xff]
        %v4491 = vsel %vm446, %v4486, 0
        %v4494 = vsel %vm446, %v4487, 0
        %v4497 = vsel %vm446, %v4488, 0
        %v4500 = vsel %vm446, %v4489, 0
        %4502 = vmatprep.subr.mxu0 0.0
        %4503 = vmatpush1.msra.mxu0 0.0
        %4504 = vmatprep.subr.mxu0 0.0
        %4505 = vmatpush1.msra.mxu0 0.0
        %4506 = vmatprep.subr.mxu0 0.0
        %4507 = vmatpush1.msra.mxu0 0.0
        %4508 = vmatprep.subr.mxu0 0.0
        %4509 = vmatpush1.msra.mxu0 0.0
        %4510 = vmatprep.subr.mxu0 0.0
        %4511 = vmatpush1.msra.mxu0 0.0
        %4512 = vmatprep.subr.mxu0 0.0
        %4513 = vmatpush1.msra.mxu0 0.0
        %4514 = vmatprep.subr.mxu0 0.0
        %4515 = vmatpush1.msra.mxu0 0.0
        %4516 = vmatprep.subr.mxu0 0.0
        %4517 = vmatpush1.msra.mxu0 0.0
        %4518 = vmatprep.subr.mxu0 0.0
        %4519 = vmatpush1.msra.mxu0 0.0
        %4520 = vmatprep.subr.mxu0 0.0
        %4521 = vmatpush1.msra.mxu0 0.0
        %4522 = vmatprep.subr.mxu0 0.0
        %4523 = vmatpush1.msra.mxu0 0.0
        %4524 = vmatprep.subr.mxu0 0.0
        %4525 = vmatpush1.msra.mxu0 0.0
        %4526 = vmatprep.subr.mxu0 %v2876
        %4527 = vmatpush1.msra.mxu0 %v2875
        %4528 = vmatprep.subr.mxu0 %v2874
        %4529 = vmatpush1.msra.mxu0 %v2873
        %4530 = vmatprep.subr.mxu0 %v2872
        %4531 = vmatpush1.msra.mxu0 %v2871
        %4532 = vmatprep.subr.mxu0 %v2870
        %4533 = vmatpush1.msra.mxu0 %v2869
        %4534 = vmatprep.subr.mxu0 0.0
        %4535 = vmatpush2.msra.mxu0 0.0
        %4536 = vmatprep.subr.mxu0 0.0
        %4537 = vmatpush2.msra.mxu0 0.0
        %4538 = vmatprep.subr.mxu0 0.0
        %4539 = vmatpush2.msra.mxu0 0.0
        %4540 = vmatprep.subr.mxu0 0.0
        %4541 = vmatpush2.msra.mxu0 0.0
        %4542 = vmatprep.subr.mxu0 0.0
        %4543 = vmatpush2.msra.mxu0 0.0
        %4544 = vmatprep.subr.mxu0 0.0
        %4545 = vmatpush2.msra.mxu0 0.0
        %4546 = vmatprep.subr.mxu0 0.0
        %4547 = vmatpush2.msra.mxu0 0.0
        %4548 = vmatprep.subr.mxu0 0.0
        %4549 = vmatpush2.msra.mxu0 0.0
        %4550 = vmatprep.subr.mxu0 0.0
        %4551 = vmatpush2.msra.mxu0 0.0
        %4552 = vmatprep.subr.mxu0 0.0
        %4553 = vmatpush2.msra.mxu0 0.0
        %4554 = vmatprep.subr.mxu0 0.0
        %4555 = vmatpush2.msra.mxu0 0.0
        %4556 = vmatprep.subr.mxu0 0.0
        %4557 = vmatpush2.msra.mxu0 0.0
        %4558 = vmatprep.subr.mxu0 0.0
        %4559 = vmatpush2.msra.mxu0 0.0
        %4560 = vmatprep.subr.mxu0 0.0
        %4561 = vmatpush2.msra.mxu0 0.0
        %4562 = vmatprep.subr.mxu0 0.0
        %4563 = vmatpush2.msra.mxu0 0.0
        %4564 = vmatprep.subr.mxu0 0.0
        %4565 = vmatpush2.msra.mxu0 0.0
        %4566 = vmatprep.mubr.f32.mxu0 0.0
        %4567 = vmatmul.mubr.f32.gmra.mxu0 %v4491
        %v4568 = vpop.f32.mrf.mxu0
        %v4569 = vadd.f32 0.0, %v4568
        %v4570 = vpop.f32.mrf.mxu0
        %v4571 = vadd.f32 0.0, %v4570
        %4572 = vmatprep.mubr.f32.mxu0 0.0
        %4573 = vmatmul.mubr.f32.gmra.mxu0 %v4494
        %v4574 = vpop.f32.mrf.mxu0
        %v4575 = vadd.f32 0.0, %v4574
        %v4576 = vpop.f32.mrf.mxu0
        %v4577 = vadd.f32 0.0, %v4576
        %4578 = vmatprep.mubr.f32.mxu0 0.0
        %4579 = vmatmul.mubr.f32.gmra.mxu0 %v4497
        %v4580 = vpop.f32.mrf.mxu0
        %v4581 = vadd.f32 0.0, %v4580
        %v4582 = vpop.f32.mrf.mxu0
        %v4583 = vadd.f32 0.0, %v4582
        %4584 = vmatprep.mubr.f32.mxu0 0.0
        %4585 = vmatmul.mubr.f32.gmra.mxu0 %v4500
        %v4586 = vpop.f32.mrf.mxu0
        %v4587 = vadd.f32 0.0, %v4586
        %v4588 = vpop.f32.mrf.mxu0
        %v4589 = vadd.f32 0.0, %v4588
        %4590 = vdwg.mxu0
        %4591 = vmatprep.subr.mxu0 %v2707
        %4592 = vmatpush1.msra.mxu0 %v2706
        %4593 = vmatprep.subr.mxu0 %v2705
        %4594 = vmatpush1.msra.mxu0 %v2704
        %4595 = vmatprep.subr.mxu0 %v2703
        %4596 = vmatpush1.msra.mxu0 %v2702
        %4597 = vmatprep.subr.mxu0 %v2701
        %4598 = vmatpush1.msra.mxu0 %v2700
        %4599 = vmatprep.subr.mxu0 %v2699
        %4600 = vmatpush1.msra.mxu0 %v2698
        %4601 = vmatprep.subr.mxu0 %v2697
        %4602 = vmatpush1.msra.mxu0 %v2696
        %4603 = vmatprep.subr.mxu0 %v2695
        %4604 = vmatpush1.msra.mxu0 %v2694
        %4605 = vmatprep.subr.mxu0 %v2693
        %4606 = vmatpush1.msra.mxu0 %v2692
        %4607 = vmatprep.subr.mxu0 %v2691
        %4608 = vmatpush1.msra.mxu0 %v2690
        %4609 = vmatprep.subr.mxu0 %v2689
        %4610 = vmatpush1.msra.mxu0 %v2688
        %4611 = vmatprep.subr.mxu0 %v2687
        %4612 = vmatpush1.msra.mxu0 %v2686
        %4613 = vmatprep.subr.mxu0 %v2685
        %4614 = vmatpush1.msra.mxu0 %v2684
        %4615 = vmatprep.subr.mxu0 %v2683
        %4616 = vmatpush1.msra.mxu0 %v2682
        %4617 = vmatprep.subr.mxu0 %v2681
        %4618 = vmatpush1.msra.mxu0 %v2680
        %4619 = vmatprep.subr.mxu0 %v2679
        %4620 = vmatpush1.msra.mxu0 %v2678
        %4621 = vmatprep.subr.mxu0 %v2677
        %4622 = vmatpush1.msra.mxu0 %v2676
        %4623 = vmatprep.subr.mxu0 %v2739
        %4624 = vmatpush2.msra.mxu0 %v2738
        %4625 = vmatprep.subr.mxu0 %v2737
        %4626 = vmatpush2.msra.mxu0 %v2736
        %4627 = vmatprep.subr.mxu0 %v2735
        %4628 = vmatpush2.msra.mxu0 %v2734
        %4629 = vmatprep.subr.mxu0 %v2733
        %4630 = vmatpush2.msra.mxu0 %v2732
        %4631 = vmatprep.subr.mxu0 %v2731
        %4632 = vmatpush2.msra.mxu0 %v2730
        %4633 = vmatprep.subr.mxu0 %v2729
        %4634 = vmatpush2.msra.mxu0 %v2728
        %4635 = vmatprep.subr.mxu0 %v2727
        %4636 = vmatpush2.msra.mxu0 %v2726
        %4637 = vmatprep.subr.mxu0 %v2725
        %4638 = vmatpush2.msra.mxu0 %v2724
        %4639 = vmatprep.subr.mxu0 %v2723
        %4640 = vmatpush2.msra.mxu0 %v2722
        %4641 = vmatprep.subr.mxu0 %v2721
        %4642 = vmatpush2.msra.mxu0 %v2720
        %4643 = vmatprep.subr.mxu0 %v2719
        %4644 = vmatpush2.msra.mxu0 %v2718
        %4645 = vmatprep.subr.mxu0 %v2717
        %4646 = vmatpush2.msra.mxu0 %v2716
        %4647 = vmatprep.subr.mxu0 %v2715
        %4648 = vmatpush2.msra.mxu0 %v2714
        %4649 = vmatprep.subr.mxu0 %v2713
        %4650 = vmatpush2.msra.mxu0 %v2712
        %4651 = vmatprep.subr.mxu0 %v2711
        %4652 = vmatpush2.msra.mxu0 %v2710
        %4653 = vmatprep.subr.mxu0 %v2709
        %4654 = vmatpush2.msra.mxu0 %v2708
        %4655 = vmatprep.mubr.f32.mxu0 %v4571
        %4656 = vmatmul.mubr.f32.gmra.mxu0 %v4569
        %v4657 = vpop.f32.mrf.mxu0
        %v4658 = vadd.f32 0.0, %v4657
        %v4659 = vpop.f32.mrf.mxu0
        %v4660 = vadd.f32 0.0, %v4659
        %4661 = vmatprep.mubr.f32.mxu0 %v4577
        %4662 = vmatmul.mubr.f32.gmra.mxu0 %v4575
        %v4663 = vpop.f32.mrf.mxu0
        %v4664 = vadd.f32 0.0, %v4663
        %v4665 = vpop.f32.mrf.mxu0
        %v4666 = vadd.f32 0.0, %v4665
        %4667 = vmatprep.mubr.f32.mxu0 %v4583
        %4668 = vmatmul.mubr.f32.gmra.mxu0 %v4581
        %v4669 = vpop.f32.mrf.mxu0
        %v4670 = vadd.f32 0.0, %v4669
        %v4671 = vpop.f32.mrf.mxu0
        %v4672 = vadd.f32 0.0, %v4671
        %4673 = vmatprep.mubr.f32.mxu0 %v4589
        %4674 = vmatmul.mubr.f32.gmra.mxu0 %v4587
        %v4675 = vpop.f32.mrf.mxu0
        %v4676 = vadd.f32 0.0, %v4675
        %v4677 = vpop.f32.mrf.mxu0
        %v4678 = vadd.f32 0.0, %v4677
        %4679 = vdwg.mxu0
        %v4680 = vadd.f32 %v4477, %v4658
        %v4681 = vadd.f32 %v4478, %v4660
        %v4682 = vadd.f32 %v4479, %v4664
        %v4683 = vadd.f32 %v4480, %v4666
        %v4684 = vadd.f32 %v4481, %v4670
        %v4685 = vadd.f32 %v4482, %v4672
        %v4686 = vadd.f32 %v4483, %v4676
        %v4687 = vadd.f32 %v4484, %v4678
        %s4688 = scalar_lea.vmem %s2, 32
        %v4689 = vld [vmem:[%s4688] sm:$0xff]
        %v4690 = vld [vmem:[%s4688 + $0x8] sm:$0xff]
        %v4691 = vld [vmem:[%s4688 + $0x10] sm:$0xff]
        %v4692 = vld [vmem:[%s4688 + $0x18] sm:$0xff]
        %4694 = vset.pattern.permute.xlu0 0
        %4695 = vperm.xlu0 %4694, %v4689
        %v4696 = vpop.permute.xlu0 %4695
        %4699 = vset.pattern.permute.xlu0 0
        %4700 = vperm.xlu0 %4699, %v4690
        %v4701 = vpop.permute.xlu0 %4700
        %4704 = vset.pattern.permute.xlu0 0
        %4705 = vperm.xlu0 %4704, %v4691
        %v4706 = vpop.permute.xlu0 %4705
        %4709 = vset.pattern.permute.xlu0 0
        %4710 = vperm.xlu0 %4709, %v4692
        %v4711 = vpop.permute.xlu0 %4710
        %v4713 = vadd.f32 %v4680, %v4696
        %v4714 = vadd.f32 %v4681, %v4696
        %v4715 = vadd.f32 %v4682, %v4701
        %v4716 = vadd.f32 %v4683, %v4701
        %v4717 = vadd.f32 %v4684, %v4706
        %v4718 = vadd.f32 %v4685, %v4706
        %v4719 = vadd.f32 %v4686, %v4711
        %v4720 = vadd.f32 %v4687, %v4711
        %v4721 = vmul.f32 %v4713, 0.1
        %v4722 = vmul.f32 %v4714, 0.1
        %v4723 = vmul.f32 %v4715, 0.1
        %v4724 = vmul.f32 %v4716, 0.1
        %v4725 = vmul.f32 %v4717, 0.1
        %v4726 = vmul.f32 %v4718, 0.1
        %v4727 = vmul.f32 %v4719, 0.1
        %v4728 = vmul.f32 %v4720, 0.1
        %v4729 = vadd.f32 %v434, %v4721
        %v4730 = vadd.f32 %v435, %v4722
        %v4731 = vadd.f32 %v436, %v4723
        %v4732 = vadd.f32 %v437, %v4724
        %v4733 = vadd.f32 %v438, %v4725
        %v4734 = vadd.f32 %v439, %v4726
        %v4735 = vadd.f32 %v440, %v4727
        %v4736 = vadd.f32 %v441, %v4728
        %v4737 = vld [vmem:[#allocation7] sm:$0xff]
        %v4738 = vld [vmem:[#allocation7 + $0x8] sm:$0xff]
        %v4739 = vld [vmem:[#allocation7 + $0x10] sm:$0xff]
        %v4740 = vld [vmem:[#allocation7 + $0x18] sm:$0xff]
        %v4741 = vld [vmem:[%s4] sm:$0xff]
        %v4742 = vld [vmem:[%s4 + $0x8] sm:$0xff]
        %v4743 = vld [vmem:[%s4 + $0x10] sm:$0xff]
        %v4744 = vld [vmem:[%s4 + $0x18] sm:$0xff]
        %4746 = vset.pattern.permute.xlu0 0
        %4747 = vperm.xlu0 %4746, %v4741
        %v4748 = vpop.permute.xlu0 %4747
        %4751 = vset.pattern.permute.xlu0 0
        %4752 = vperm.xlu0 %4751, %v4742
        %v4753 = vpop.permute.xlu0 %4752
        %4756 = vset.pattern.permute.xlu0 0
        %4757 = vperm.xlu0 %4756, %v4743
        %v4758 = vpop.permute.xlu0 %4757
        %4761 = vset.pattern.permute.xlu0 0
        %4762 = vperm.xlu0 %4761, %v4744
        %v4763 = vpop.permute.xlu0 %4762
        %v4766 = vsel %vm446, %v4737, 0
        %v4769 = vsel %vm446, %v4738, 0
        %v4772 = vsel %vm446, %v4739, 0
        %v4775 = vsel %vm446, %v4740, 0
        %4777 = vmatprep.subr.mxu0 0.0
        %4778 = vmatpush1.msra.mxu0 0.0
        %4779 = vmatprep.subr.mxu0 0.0
        %4780 = vmatpush1.msra.mxu0 0.0
        %4781 = vmatprep.subr.mxu0 0.0
        %4782 = vmatpush1.msra.mxu0 0.0
        %4783 = vmatprep.subr.mxu0 0.0
        %4784 = vmatpush1.msra.mxu0 0.0
        %4785 = vmatprep.subr.mxu0 0.0
        %4786 = vmatpush1.msra.mxu0 0.0
        %4787 = vmatprep.subr.mxu0 0.0
        %4788 = vmatpush1.msra.mxu0 0.0
        %4789 = vmatprep.subr.mxu0 0.0
        %4790 = vmatpush1.msra.mxu0 0.0
        %4791 = vmatprep.subr.mxu0 0.0
        %4792 = vmatpush1.msra.mxu0 0.0
        %4793 = vmatprep.subr.mxu0 0.0
        %4794 = vmatpush1.msra.mxu0 0.0
        %4795 = vmatprep.subr.mxu0 0.0
        %4796 = vmatpush1.msra.mxu0 0.0
        %4797 = vmatprep.subr.mxu0 0.0
        %4798 = vmatpush1.msra.mxu0 0.0
        %4799 = vmatprep.subr.mxu0 0.0
        %4800 = vmatpush1.msra.mxu0 0.0
        %4801 = vmatprep.subr.mxu0 %v4736
        %4802 = vmatpush1.msra.mxu0 %v4735
        %4803 = vmatprep.subr.mxu0 %v4734
        %4804 = vmatpush1.msra.mxu0 %v4733
        %4805 = vmatprep.subr.mxu0 %v4732
        %4806 = vmatpush1.msra.mxu0 %v4731
        %4807 = vmatprep.subr.mxu0 %v4730
        %4808 = vmatpush1.msra.mxu0 %v4729
        %4809 = vmatprep.subr.mxu0 0.0
        %4810 = vmatpush2.msra.mxu0 0.0
        %4811 = vmatprep.subr.mxu0 0.0
        %4812 = vmatpush2.msra.mxu0 0.0
        %4813 = vmatprep.subr.mxu0 0.0
        %4814 = vmatpush2.msra.mxu0 0.0
        %4815 = vmatprep.subr.mxu0 0.0
        %4816 = vmatpush2.msra.mxu0 0.0
        %4817 = vmatprep.subr.mxu0 0.0
        %4818 = vmatpush2.msra.mxu0 0.0
        %4819 = vmatprep.subr.mxu0 0.0
        %4820 = vmatpush2.msra.mxu0 0.0
        %4821 = vmatprep.subr.mxu0 0.0
        %4822 = vmatpush2.msra.mxu0 0.0
        %4823 = vmatprep.subr.mxu0 0.0
        %4824 = vmatpush2.msra.mxu0 0.0
        %4825 = vmatprep.subr.mxu0 0.0
        %4826 = vmatpush2.msra.mxu0 0.0
        %4827 = vmatprep.subr.mxu0 0.0
        %4828 = vmatpush2.msra.mxu0 0.0
        %4829 = vmatprep.subr.mxu0 0.0
        %4830 = vmatpush2.msra.mxu0 0.0
        %4831 = vmatprep.subr.mxu0 0.0
        %4832 = vmatpush2.msra.mxu0 0.0
        %4833 = vmatprep.subr.mxu0 0.0
        %4834 = vmatpush2.msra.mxu0 0.0
        %4835 = vmatprep.subr.mxu0 0.0
        %4836 = vmatpush2.msra.mxu0 0.0
        %4837 = vmatprep.subr.mxu0 0.0
        %4838 = vmatpush2.msra.mxu0 0.0
        %4839 = vmatprep.subr.mxu0 0.0
        %4840 = vmatpush2.msra.mxu0 0.0
        %4841 = vmatprep.mubr.f32.mxu0 0.0
        %4842 = vmatmul.mubr.f32.gmra.mxu0 %v4766
        %v4843 = vpop.f32.mrf.mxu0
        %v4844 = vadd.f32 %v4748, %v4843
        %v4845 = vpop.f32.mrf.mxu0
        %v4846 = vadd.f32 %v4748, %v4845
        %4847 = vmatprep.mubr.f32.mxu0 0.0
        %4848 = vmatmul.mubr.f32.gmra.mxu0 %v4769
        %v4849 = vpop.f32.mrf.mxu0
        %v4850 = vadd.f32 %v4753, %v4849
        %v4851 = vpop.f32.mrf.mxu0
        %v4852 = vadd.f32 %v4753, %v4851
        %4853 = vmatprep.mubr.f32.mxu0 0.0
        %4854 = vmatmul.mubr.f32.gmra.mxu0 %v4772
        %v4855 = vpop.f32.mrf.mxu0
        %v4856 = vadd.f32 %v4758, %v4855
        %v4857 = vpop.f32.mrf.mxu0
        %v4858 = vadd.f32 %v4758, %v4857
        %4859 = vmatprep.mubr.f32.mxu0 0.0
        %4860 = vmatmul.mubr.f32.gmra.mxu0 %v4775
        %v4861 = vpop.f32.mrf.mxu0
        %v4862 = vadd.f32 %v4763, %v4861
        %v4863 = vpop.f32.mrf.mxu0
        %v4864 = vadd.f32 %v4763, %v4863
        %4865 = vdwg.mxu0
        %v4866 = vmax.f32 %v4844, 0.0
        %v4867 = vmax.f32 %v4846, 0.0
        %v4868 = vmax.f32 %v4850, 0.0
        %v4869 = vmax.f32 %v4852, 0.0
        %v4870 = vmax.f32 %v4856, 0.0
        %v4871 = vmax.f32 %v4858, 0.0
        %v4872 = vmax.f32 %v4862, 0.0
        %v4873 = vmax.f32 %v4864, 0.0
        %s4874 = scalar_lea.vmem [#allocation7], 32
        %v4875 = vld [vmem:[%s4874] sm:$0xff]
        %v4876 = vld [vmem:[%s4874 + $0x8] sm:$0xff]
        %v4877 = vld [vmem:[%s4874 + $0x10] sm:$0xff]
        %v4878 = vld [vmem:[%s4874 + $0x18] sm:$0xff]
        %s4879 = scalar_lea.vmem %s4, 32
        %v4880 = vld [vmem:[%s4879] sm:$0xff]
        %v4881 = vld [vmem:[%s4879 + $0x8] sm:$0xff]
        %v4882 = vld [vmem:[%s4879 + $0x10] sm:$0xff]
        %v4883 = vld [vmem:[%s4879 + $0x18] sm:$0xff]
        %4885 = vset.pattern.permute.xlu0 0
        %4886 = vperm.xlu0 %4885, %v4880
        %v4887 = vpop.permute.xlu0 %4886
        %4890 = vset.pattern.permute.xlu0 0
        %4891 = vperm.xlu0 %4890, %v4881
        %v4892 = vpop.permute.xlu0 %4891
        %4895 = vset.pattern.permute.xlu0 0
        %4896 = vperm.xlu0 %4895, %v4882
        %v4897 = vpop.permute.xlu0 %4896
        %4900 = vset.pattern.permute.xlu0 0
        %4901 = vperm.xlu0 %4900, %v4883
        %v4902 = vpop.permute.xlu0 %4901
        %v4905 = vsel %vm446, %v4875, 0
        %v4908 = vsel %vm446, %v4876, 0
        %v4911 = vsel %vm446, %v4877, 0
        %v4914 = vsel %vm446, %v4878, 0
        %4916 = vmatprep.subr.mxu0 0.0
        %4917 = vmatpush1.msra.mxu0 0.0
        %4918 = vmatprep.subr.mxu0 0.0
        %4919 = vmatpush1.msra.mxu0 0.0
        %4920 = vmatprep.subr.mxu0 0.0
        %4921 = vmatpush1.msra.mxu0 0.0
        %4922 = vmatprep.subr.mxu0 0.0
        %4923 = vmatpush1.msra.mxu0 0.0
        %4924 = vmatprep.subr.mxu0 0.0
        %4925 = vmatpush1.msra.mxu0 0.0
        %4926 = vmatprep.subr.mxu0 0.0
        %4927 = vmatpush1.msra.mxu0 0.0
        %4928 = vmatprep.subr.mxu0 0.0
        %4929 = vmatpush1.msra.mxu0 0.0
        %4930 = vmatprep.subr.mxu0 0.0
        %4931 = vmatpush1.msra.mxu0 0.0
        %4932 = vmatprep.subr.mxu0 0.0
        %4933 = vmatpush1.msra.mxu0 0.0
        %4934 = vmatprep.subr.mxu0 0.0
        %4935 = vmatpush1.msra.mxu0 0.0
        %4936 = vmatprep.subr.mxu0 0.0
        %4937 = vmatpush1.msra.mxu0 0.0
        %4938 = vmatprep.subr.mxu0 0.0
        %4939 = vmatpush1.msra.mxu0 0.0
        %4940 = vmatprep.subr.mxu0 %v4873
        %4941 = vmatpush1.msra.mxu0 %v4872
        %4942 = vmatprep.subr.mxu0 %v4871
        %4943 = vmatpush1.msra.mxu0 %v4870
        %4944 = vmatprep.subr.mxu0 %v4869
        %4945 = vmatpush1.msra.mxu0 %v4868
        %4946 = vmatprep.subr.mxu0 %v4867
        %4947 = vmatpush1.msra.mxu0 %v4866
        %4948 = vmatprep.subr.mxu0 0.0
        %4949 = vmatpush2.msra.mxu0 0.0
        %4950 = vmatprep.subr.mxu0 0.0
        %4951 = vmatpush2.msra.mxu0 0.0
        %4952 = vmatprep.subr.mxu0 0.0
        %4953 = vmatpush2.msra.mxu0 0.0
        %4954 = vmatprep.subr.mxu0 0.0
        %4955 = vmatpush2.msra.mxu0 0.0
        %4956 = vmatprep.subr.mxu0 0.0
        %4957 = vmatpush2.msra.mxu0 0.0
        %4958 = vmatprep.subr.mxu0 0.0
        %4959 = vmatpush2.msra.mxu0 0.0
        %4960 = vmatprep.subr.mxu0 0.0
        %4961 = vmatpush2.msra.mxu0 0.0
        %4962 = vmatprep.subr.mxu0 0.0
        %4963 = vmatpush2.msra.mxu0 0.0
        %4964 = vmatprep.subr.mxu0 0.0
        %4965 = vmatpush2.msra.mxu0 0.0
        %4966 = vmatprep.subr.mxu0 0.0
        %4967 = vmatpush2.msra.mxu0 0.0
        %4968 = vmatprep.subr.mxu0 0.0
        %4969 = vmatpush2.msra.mxu0 0.0
        %4970 = vmatprep.subr.mxu0 0.0
        %4971 = vmatpush2.msra.mxu0 0.0
        %4972 = vmatprep.subr.mxu0 0.0
        %4973 = vmatpush2.msra.mxu0 0.0
        %4974 = vmatprep.subr.mxu0 0.0
        %4975 = vmatpush2.msra.mxu0 0.0
        %4976 = vmatprep.subr.mxu0 0.0
        %4977 = vmatpush2.msra.mxu0 0.0
        %4978 = vmatprep.subr.mxu0 0.0
        %4979 = vmatpush2.msra.mxu0 0.0
        %4980 = vmatprep.mubr.f32.mxu0 0.0
        %4981 = vmatmul.mubr.f32.gmra.mxu0 %v4905
        %v4982 = vpop.f32.mrf.mxu0
        %v4983 = vadd.f32 %v4887, %v4982
        %v4984 = vpop.f32.mrf.mxu0
        %v4985 = vadd.f32 %v4887, %v4984
        %4986 = vmatprep.mubr.f32.mxu0 0.0
        %4987 = vmatmul.mubr.f32.gmra.mxu0 %v4908
        %v4988 = vpop.f32.mrf.mxu0
        %v4989 = vadd.f32 %v4892, %v4988
        %v4990 = vpop.f32.mrf.mxu0
        %v4991 = vadd.f32 %v4892, %v4990
        %4992 = vmatprep.mubr.f32.mxu0 0.0
        %4993 = vmatmul.mubr.f32.gmra.mxu0 %v4911
        %v4994 = vpop.f32.mrf.mxu0
        %v4995 = vadd.f32 %v4897, %v4994
        %v4996 = vpop.f32.mrf.mxu0
        %v4997 = vadd.f32 %v4897, %v4996
        %4998 = vmatprep.mubr.f32.mxu0 0.0
        %4999 = vmatmul.mubr.f32.gmra.mxu0 %v4914
        %v5000 = vpop.f32.mrf.mxu0
        %v5001 = vadd.f32 %v4902, %v5000
        %v5002 = vpop.f32.mrf.mxu0
        %v5003 = vadd.f32 %v4902, %v5002
        %5004 = vdwg.mxu0
        %v5005 = vld [vmem:[#allocation8] sm:$0xff]
        %v5007 = vsel %vm446, %v5005, 0
        %5009 = vmatprep.subr.mxu0 0.0
        %5010 = vmatpush1.msra.mxu0 0.0
        %5011 = vmatprep.subr.mxu0 0.0
        %5012 = vmatpush1.msra.mxu0 0.0
        %5013 = vmatprep.subr.mxu0 0.0
        %5014 = vmatpush1.msra.mxu0 0.0
        %5015 = vmatprep.subr.mxu0 0.0
        %5016 = vmatpush1.msra.mxu0 0.0
        %5017 = vmatprep.subr.mxu0 0.0
        %5018 = vmatpush1.msra.mxu0 0.0
        %5019 = vmatprep.subr.mxu0 0.0
        %5020 = vmatpush1.msra.mxu0 0.0
        %5021 = vmatprep.subr.mxu0 0.0
        %5022 = vmatpush1.msra.mxu0 0.0
        %5023 = vmatprep.subr.mxu0 0.0
        %5024 = vmatpush1.msra.mxu0 0.0
        %5025 = vmatprep.subr.mxu0 0.0
        %5026 = vmatpush1.msra.mxu0 0.0
        %5027 = vmatprep.subr.mxu0 0.0
        %5028 = vmatpush1.msra.mxu0 0.0
        %5029 = vmatprep.subr.mxu0 0.0
        %5030 = vmatpush1.msra.mxu0 0.0
        %5031 = vmatprep.subr.mxu0 0.0
        %5032 = vmatpush1.msra.mxu0 0.0
        %5033 = vmatprep.subr.mxu0 %v5003
        %5034 = vmatpush1.msra.mxu0 %v5001
        %5035 = vmatprep.subr.mxu0 %v4997
        %5036 = vmatpush1.msra.mxu0 %v4995
        %5037 = vmatprep.subr.mxu0 %v4991
        %5038 = vmatpush1.msra.mxu0 %v4989
        %5039 = vmatprep.subr.mxu0 %v4985
        %5040 = vmatpush1.msra.mxu0 %v4983
        %5041 = vmatprep.subr.mxu0 0.0
        %5042 = vmatpush2.msra.mxu0 0.0
        %5043 = vmatprep.subr.mxu0 0.0
        %5044 = vmatpush2.msra.mxu0 0.0
        %5045 = vmatprep.subr.mxu0 0.0
        %5046 = vmatpush2.msra.mxu0 0.0
        %5047 = vmatprep.subr.mxu0 0.0
        %5048 = vmatpush2.msra.mxu0 0.0
        %5049 = vmatprep.subr.mxu0 0.0
        %5050 = vmatpush2.msra.mxu0 0.0
        %5051 = vmatprep.subr.mxu0 0.0
        %5052 = vmatpush2.msra.mxu0 0.0
        %5053 = vmatprep.subr.mxu0 0.0
        %5054 = vmatpush2.msra.mxu0 0.0
        %5055 = vmatprep.subr.mxu0 0.0
        %5056 = vmatpush2.msra.mxu0 0.0
        %5057 = vmatprep.subr.mxu0 0.0
        %5058 = vmatpush2.msra.mxu0 0.0
        %5059 = vmatprep.subr.mxu0 0.0
        %5060 = vmatpush2.msra.mxu0 0.0
        %5061 = vmatprep.subr.mxu0 0.0
        %5062 = vmatpush2.msra.mxu0 0.0
        %5063 = vmatprep.subr.mxu0 0.0
        %5064 = vmatpush2.msra.mxu0 0.0
        %5065 = vmatprep.subr.mxu0 0.0
        %5066 = vmatpush2.msra.mxu0 0.0
        %5067 = vmatprep.subr.mxu0 0.0
        %5068 = vmatpush2.msra.mxu0 0.0
        %5069 = vmatprep.subr.mxu0 0.0
        %5070 = vmatpush2.msra.mxu0 0.0
        %5071 = vmatprep.subr.mxu0 0.0
        %5072 = vmatpush2.msra.mxu0 0.0
        %5073 = vmatprep.mubr.f32.mxu0 0.0
        %5074 = vmatmul.mubr.f32.gmra.mxu0 %v5007
        %v5075 = vpop.f32.mrf.mxu0
        %v5076 = vadd.f32 0.0, %v5075
        %v5077 = vpop.f32.mrf.mxu0
        %v5078 = vadd.f32 0.0, %v5077
        %5079 = vdwg.mxu0
        %v5080 = vadd.f32 %v5076, %v5078
        %5081 = vadd.xlane.f32.xlu0 %v5080
        %v5082 = vpop.xlane.xlu0 %5081
        %v5083 = vrcp.pop 256.0
        %v5084 = vmul.f32 %v5082, %v5083
        %v5085 = vld [vmem:[%s6] sm:$0xff]
        %v5086 = vadd.f32 %v5084, %v5085
        %v5087 = vmax.f32 %v5086, 0.0
        %v5088 = vld [vmem:[%s7] sm:$0xff]
        %v5089 = vld [vmem:[%s7 + $0x8] sm:$0xff]
        %v5090 = vld [vmem:[%s7 + $0x10] sm:$0xff]
        %v5091 = vld [vmem:[%s7 + $0x18] sm:$0xff]
        %5093 = vset.pattern.permute.xlu0 0
        %5094 = vperm.xlu0 %5093, %v5087
        %v5095 = vpop.permute.xlu0 %5094
        %v5097 = vld [vmem:[%s8] sm:$0xff]
        %v5098 = vld [vmem:[%s8 + $0x8] sm:$0xff]
        %v5099 = vld [vmem:[%s8 + $0x10] sm:$0xff]
        %v5100 = vld [vmem:[%s8 + $0x18] sm:$0xff]
        %5102 = vset.pattern.permute.xlu0 0
        %5103 = vperm.xlu0 %5102, %v5097
        %v5104 = vpop.permute.xlu0 %5103
        %5107 = vset.pattern.permute.xlu0 0
        %5108 = vperm.xlu0 %5107, %v5098
        %v5109 = vpop.permute.xlu0 %5108
        %5112 = vset.pattern.permute.xlu0 0
        %5113 = vperm.xlu0 %5112, %v5099
        %v5114 = vpop.permute.xlu0 %5113
        %5117 = vset.pattern.permute.xlu0 0
        %5118 = vperm.xlu0 %5117, %v5100
        %v5119 = vpop.permute.xlu0 %5118
        %vm5121 = vcmask 64512
        %v5123 = vsel %vm5121, %v5088, 0
        %v5126 = vsel %vm5121, %v5089, 0
        %v5129 = vsel %vm5121, %v5090, 0
        %v5132 = vsel %vm5121, %v5091, 0
        %5134 = vmatprep.subr.mxu0 0.0
        %5135 = vmatpush1.msra.mxu0 0.0
        %5136 = vmatprep.subr.mxu0 0.0
        %5137 = vmatpush1.msra.mxu0 0.0
        %5138 = vmatprep.subr.mxu0 0.0
        %5139 = vmatpush1.msra.mxu0 0.0
        %5140 = vmatprep.subr.mxu0 0.0
        %5141 = vmatpush1.msra.mxu0 0.0
        %5142 = vmatprep.subr.mxu0 0.0
        %5143 = vmatpush1.msra.mxu0 0.0
        %5144 = vmatprep.subr.mxu0 0.0
        %5145 = vmatpush1.msra.mxu0 0.0
        %5146 = vmatprep.subr.mxu0 0.0
        %5147 = vmatpush1.msra.mxu0 0.0
        %5148 = vmatprep.subr.mxu0 0.0
        %5149 = vmatpush1.msra.mxu0 0.0
        %5150 = vmatprep.subr.mxu0 0.0
        %5151 = vmatpush1.msra.mxu0 0.0
        %5152 = vmatprep.subr.mxu0 0.0
        %5153 = vmatpush1.msra.mxu0 0.0
        %5154 = vmatprep.subr.mxu0 0.0
        %5155 = vmatpush1.msra.mxu0 0.0
        %5156 = vmatprep.subr.mxu0 0.0
        %5157 = vmatpush1.msra.mxu0 0.0
        %5158 = vmatprep.subr.mxu0 0.0
        %5159 = vmatpush1.msra.mxu0 0.0
        %5160 = vmatprep.subr.mxu0 0.0
        %5161 = vmatpush1.msra.mxu0 0.0
        %5162 = vmatprep.subr.mxu0 0.0
        %5163 = vmatpush1.msra.mxu0 0.0
        %5164 = vmatprep.subr.mxu0 %v5095
        %5165 = vmatpush1.msra.mxu0 %v5095
        %5166 = vmatprep.subr.mxu0 0.0
        %5167 = vmatpush2.msra.mxu0 0.0
        %5168 = vmatprep.subr.mxu0 0.0
        %5169 = vmatpush2.msra.mxu0 0.0
        %5170 = vmatprep.subr.mxu0 0.0
        %5171 = vmatpush2.msra.mxu0 0.0
        %5172 = vmatprep.subr.mxu0 0.0
        %5173 = vmatpush2.msra.mxu0 0.0
        %5174 = vmatprep.subr.mxu0 0.0
        %5175 = vmatpush2.msra.mxu0 0.0
        %5176 = vmatprep.subr.mxu0 0.0
        %5177 = vmatpush2.msra.mxu0 0.0
        %5178 = vmatprep.subr.mxu0 0.0
        %5179 = vmatpush2.msra.mxu0 0.0
        %5180 = vmatprep.subr.mxu0 0.0
        %5181 = vmatpush2.msra.mxu0 0.0
        %5182 = vmatprep.subr.mxu0 0.0
        %5183 = vmatpush2.msra.mxu0 0.0
        %5184 = vmatprep.subr.mxu0 0.0
        %5185 = vmatpush2.msra.mxu0 0.0
        %5186 = vmatprep.subr.mxu0 0.0
        %5187 = vmatpush2.msra.mxu0 0.0
        %5188 = vmatprep.subr.mxu0 0.0
        %5189 = vmatpush2.msra.mxu0 0.0
        %5190 = vmatprep.subr.mxu0 0.0
        %5191 = vmatpush2.msra.mxu0 0.0
        %5192 = vmatprep.subr.mxu0 0.0
        %5193 = vmatpush2.msra.mxu0 0.0
        %5194 = vmatprep.subr.mxu0 0.0
        %5195 = vmatpush2.msra.mxu0 0.0
        %5196 = vmatprep.subr.mxu0 0.0
        %5197 = vmatpush2.msra.mxu0 0.0
        %5198 = vmatprep.mubr.f32.mxu0 0.0
        %5199 = vmatmul.mubr.f32.gmra.mxu0 %v5123
        %v5200 = vpop.f32.mrf.mxu0
        %v5201 = vadd.f32 %v5104, %v5200
        %v5202 = vpop.f32.mrf.mxu0
        %v5203 = vadd.f32 %v5104, %v5202
        %5204 = vmatprep.mubr.f32.mxu0 0.0
        %5205 = vmatmul.mubr.f32.gmra.mxu0 %v5126
        %v5206 = vpop.f32.mrf.mxu0
        %v5207 = vadd.f32 %v5109, %v5206
        %v5208 = vpop.f32.mrf.mxu0
        %v5209 = vadd.f32 %v5109, %v5208
        %5210 = vmatprep.mubr.f32.mxu0 0.0
        %5211 = vmatmul.mubr.f32.gmra.mxu0 %v5129
        %v5212 = vpop.f32.mrf.mxu0
        %v5213 = vadd.f32 %v5114, %v5212
        %v5214 = vpop.f32.mrf.mxu0
        %v5215 = vadd.f32 %v5114, %v5214
        %5216 = vmatprep.mubr.f32.mxu0 0.0
        %5217 = vmatmul.mubr.f32.gmra.mxu0 %v5132
        %v5218 = vpop.f32.mrf.mxu0
        %v5219 = vadd.f32 %v5119, %v5218
        %v5220 = vpop.f32.mrf.mxu0
        %v5221 = vadd.f32 %v5119, %v5220
        %5222 = vdwg.mxu0
        %v5223 = vsub.f32 0.0, %v5201
        %v5224 = vsub.f32 0.0, %v5203
        %v5225 = vsub.f32 0.0, %v5207
        %v5226 = vsub.f32 0.0, %v5209
        %v5227 = vsub.f32 0.0, %v5213
        %v5228 = vsub.f32 0.0, %v5215
        %v5229 = vsub.f32 0.0, %v5219
        %v5230 = vsub.f32 0.0, %v5221
        %v5231 = vmul.f32 %v5223, 1.442695
        %v5232 = vpow.pop %v5231
        %v5233 = vmul.f32 %v5224, 1.442695
        %v5234 = vpow.pop %v5233
        %v5235 = vmul.f32 %v5225, 1.442695
        %v5236 = vpow.pop %v5235
        %v5237 = vmul.f32 %v5226, 1.442695
        %v5238 = vpow.pop %v5237
        %v5239 = vmul.f32 %v5227, 1.442695
        %v5240 = vpow.pop %v5239
        %v5241 = vmul.f32 %v5228, 1.442695
        %v5242 = vpow.pop %v5241
        %v5243 = vmul.f32 %v5229, 1.442695
        %v5244 = vpow.pop %v5243
        %v5245 = vmul.f32 %v5230, 1.442695
        %v5246 = vpow.pop %v5245
        %v5247 = vadd.f32 %v5232, 1.0
        %v5248 = vadd.f32 %v5234, 1.0
        %v5249 = vadd.f32 %v5236, 1.0
        %v5250 = vadd.f32 %v5238, 1.0
        %v5251 = vadd.f32 %v5240, 1.0
        %v5252 = vadd.f32 %v5242, 1.0
        %v5253 = vadd.f32 %v5244, 1.0
        %v5254 = vadd.f32 %v5246, 1.0
        %v5255 = vrcp.pop %v5247
        %v5256 = vmul.f32 1.0, %v5255
        %v5257 = vrcp.pop %v5248
        %v5258 = vmul.f32 1.0, %v5257
        %v5259 = vrcp.pop %v5249
        %v5260 = vmul.f32 1.0, %v5259
        %v5261 = vrcp.pop %v5250
        %v5262 = vmul.f32 1.0, %v5261
        %v5263 = vrcp.pop %v5251
        %v5264 = vmul.f32 1.0, %v5263
        %v5265 = vrcp.pop %v5252
        %v5266 = vmul.f32 1.0, %v5265
        %v5267 = vrcp.pop %v5253
        %v5268 = vmul.f32 1.0, %v5267
        %v5269 = vrcp.pop %v5254
        %v5270 = vmul.f32 1.0, %v5269
        %v5271 = vmul.f32 %v4983, %v5256
        %v5272 = vmul.f32 %v4985, %v5258
        %v5273 = vmul.f32 %v4989, %v5260
        %v5274 = vmul.f32 %v4991, %v5262
        %v5275 = vmul.f32 %v4995, %v5264
        %v5276 = vmul.f32 %v4997, %v5266
        %v5277 = vmul.f32 %v5001, %v5268
        %v5278 = vmul.f32 %v5003, %v5270
        %v5279 = vmul.f32 %v5271, 0.1
        %v5280 = vmul.f32 %v5272, 0.1
        %v5281 = vmul.f32 %v5273, 0.1
        %v5282 = vmul.f32 %v5274, 0.1
        %v5283 = vmul.f32 %v5275, 0.1
        %v5284 = vmul.f32 %v5276, 0.1
        %v5285 = vmul.f32 %v5277, 0.1
        %v5286 = vmul.f32 %v5278, 0.1
        %v5287 = vadd.f32 %v4729, %v5279
        %v5288 = vadd.f32 %v4730, %v5280
        %v5289 = vadd.f32 %v4731, %v5281
        %v5290 = vadd.f32 %v4732, %v5282
        %v5291 = vadd.f32 %v4733, %v5283
        %v5292 = vadd.f32 %v4734, %v5284
        %v5293 = vadd.f32 %v4735, %v5285
        %v5294 = vadd.f32 %v4736, %v5286
        %s5295 = scalar_lea.vmem [#allocation5], 576
        %v5296 = vld [vmem:[%s5295] sm:$0xff]
        %v5297 = vld [vmem:[%s5295 + $0x8] sm:$0xff]
        %v5298 = vld [vmem:[%s5295 + $0x10] sm:$0xff]
        %v5299 = vld [vmem:[%s5295 + $0x18] sm:$0xff]
        %v5301 = vsel %vm446, %v5296, 0
        %v5304 = vsel %vm446, %v5297, 0
        %v5307 = vsel %vm446, %v5298, 0
        %v5310 = vsel %vm446, %v5299, 0
        %5312 = vmatprep.subr.mxu0 0.0
        %5313 = vmatpush1.msra.mxu0 0.0
        %5314 = vmatprep.subr.mxu0 0.0
        %5315 = vmatpush1.msra.mxu0 0.0
        %5316 = vmatprep.subr.mxu0 0.0
        %5317 = vmatpush1.msra.mxu0 0.0
        %5318 = vmatprep.subr.mxu0 0.0
        %5319 = vmatpush1.msra.mxu0 0.0
        %5320 = vmatprep.subr.mxu0 0.0
        %5321 = vmatpush1.msra.mxu0 0.0
        %5322 = vmatprep.subr.mxu0 0.0
        %5323 = vmatpush1.msra.mxu0 0.0
        %5324 = vmatprep.subr.mxu0 0.0
        %5325 = vmatpush1.msra.mxu0 0.0
        %5326 = vmatprep.subr.mxu0 0.0
        %5327 = vmatpush1.msra.mxu0 0.0
        %5328 = vmatprep.subr.mxu0 0.0
        %5329 = vmatpush1.msra.mxu0 0.0
        %5330 = vmatprep.subr.mxu0 0.0
        %5331 = vmatpush1.msra.mxu0 0.0
        %5332 = vmatprep.subr.mxu0 0.0
        %5333 = vmatpush1.msra.mxu0 0.0
        %5334 = vmatprep.subr.mxu0 0.0
        %5335 = vmatpush1.msra.mxu0 0.0
        %5336 = vmatprep.subr.mxu0 %v5294
        %5337 = vmatpush1.msra.mxu0 %v5293
        %5338 = vmatprep.subr.mxu0 %v5292
        %5339 = vmatpush1.msra.mxu0 %v5291
        %5340 = vmatprep.subr.mxu0 %v5290
        %5341 = vmatpush1.msra.mxu0 %v5289
        %5342 = vmatprep.subr.mxu0 %v5288
        %5343 = vmatpush1.msra.mxu0 %v5287
        %5344 = vmatprep.subr.mxu0 0.0
        %5345 = vmatpush2.msra.mxu0 0.0
        %5346 = vmatprep.subr.mxu0 0.0
        %5347 = vmatpush2.msra.mxu0 0.0
        %5348 = vmatprep.subr.mxu0 0.0
        %5349 = vmatpush2.msra.mxu0 0.0
        %5350 = vmatprep.subr.mxu0 0.0
        %5351 = vmatpush2.msra.mxu0 0.0
        %5352 = vmatprep.subr.mxu0 0.0
        %5353 = vmatpush2.msra.mxu0 0.0
        %5354 = vmatprep.subr.mxu0 0.0
        %5355 = vmatpush2.msra.mxu0 0.0
        %5356 = vmatprep.subr.mxu0 0.0
        %5357 = vmatpush2.msra.mxu0 0.0
        %5358 = vmatprep.subr.mxu0 0.0
        %5359 = vmatpush2.msra.mxu0 0.0
        %5360 = vmatprep.subr.mxu0 0.0
        %5361 = vmatpush2.msra.mxu0 0.0
        %5362 = vmatprep.subr.mxu0 0.0
        %5363 = vmatpush2.msra.mxu0 0.0
        %5364 = vmatprep.subr.mxu0 0.0
        %5365 = vmatpush2.msra.mxu0 0.0
        %5366 = vmatprep.subr.mxu0 0.0
        %5367 = vmatpush2.msra.mxu0 0.0
        %5368 = vmatprep.subr.mxu0 0.0
        %5369 = vmatpush2.msra.mxu0 0.0
        %5370 = vmatprep.subr.mxu0 0.0
        %5371 = vmatpush2.msra.mxu0 0.0
        %5372 = vmatprep.subr.mxu0 0.0
        %5373 = vmatpush2.msra.mxu0 0.0
        %5374 = vmatprep.subr.mxu0 0.0
        %5375 = vmatpush2.msra.mxu0 0.0
        %5376 = vmatprep.mubr.f32.mxu0 0.0
        %5377 = vmatmul.mubr.f32.gmra.mxu0 %v5301
        %v5378 = vpop.f32.mrf.mxu0
        %v5379 = vadd.f32 0.0, %v5378
        %v5380 = vpop.f32.mrf.mxu0
        %v5381 = vadd.f32 0.0, %v5380
        %5382 = vmatprep.mubr.f32.mxu0 0.0
        %5383 = vmatmul.mubr.f32.gmra.mxu0 %v5304
        %v5384 = vpop.f32.mrf.mxu0
        %v5385 = vadd.f32 0.0, %v5384
        %v5386 = vpop.f32.mrf.mxu0
        %v5387 = vadd.f32 0.0, %v5386
        %5388 = vmatprep.mubr.f32.mxu0 0.0
        %5389 = vmatmul.mubr.f32.gmra.mxu0 %v5307
        %v5390 = vpop.f32.mrf.mxu0
        %v5391 = vadd.f32 0.0, %v5390
        %v5392 = vpop.f32.mrf.mxu0
        %v5393 = vadd.f32 0.0, %v5392
        %5394 = vmatprep.mubr.f32.mxu0 0.0
        %5395 = vmatmul.mubr.f32.gmra.mxu0 %v5310
        %v5396 = vpop.f32.mrf.mxu0
        %v5397 = vadd.f32 0.0, %v5396
        %v5398 = vpop.f32.mrf.mxu0
        %v5399 = vadd.f32 0.0, %v5398
        %5400 = vdwg.mxu0
        %s5401 = scalar_lea.vmem [#allocation5], 608
        %v5402 = vld [vmem:[%s5401] sm:$0xff]
        %v5403 = vld [vmem:[%s5401 + $0x8] sm:$0xff]
        %v5404 = vld [vmem:[%s5401 + $0x10] sm:$0xff]
        %v5405 = vld [vmem:[%s5401 + $0x18] sm:$0xff]
        %v5407 = vsel %vm446, %v5402, 0
        %v5410 = vsel %vm446, %v5403, 0
        %v5413 = vsel %vm446, %v5404, 0
        %v5416 = vsel %vm446, %v5405, 0
        %5418 = vmatprep.subr.mxu0 0.0
        %5419 = vmatpush1.msra.mxu0 0.0
        %5420 = vmatprep.subr.mxu0 0.0
        %5421 = vmatpush1.msra.mxu0 0.0
        %5422 = vmatprep.subr.mxu0 0.0
        %5423 = vmatpush1.msra.mxu0 0.0
        %5424 = vmatprep.subr.mxu0 0.0
        %5425 = vmatpush1.msra.mxu0 0.0
        %5426 = vmatprep.subr.mxu0 0.0
        %5427 = vmatpush1.msra.mxu0 0.0
        %5428 = vmatprep.subr.mxu0 0.0
        %5429 = vmatpush1.msra.mxu0 0.0
        %5430 = vmatprep.subr.mxu0 0.0
        %5431 = vmatpush1.msra.mxu0 0.0
        %5432 = vmatprep.subr.mxu0 0.0
        %5433 = vmatpush1.msra.mxu0 0.0
        %5434 = vmatprep.subr.mxu0 0.0
        %5435 = vmatpush1.msra.mxu0 0.0
        %5436 = vmatprep.subr.mxu0 0.0
        %5437 = vmatpush1.msra.mxu0 0.0
        %5438 = vmatprep.subr.mxu0 0.0
        %5439 = vmatpush1.msra.mxu0 0.0
        %5440 = vmatprep.subr.mxu0 0.0
        %5441 = vmatpush1.msra.mxu0 0.0
        %5442 = vmatprep.subr.mxu0 %v5294
        %5443 = vmatpush1.msra.mxu0 %v5293
        %5444 = vmatprep.subr.mxu0 %v5292
        %5445 = vmatpush1.msra.mxu0 %v5291
        %5446 = vmatprep.subr.mxu0 %v5290
        %5447 = vmatpush1.msra.mxu0 %v5289
        %5448 = vmatprep.subr.mxu0 %v5288
        %5449 = vmatpush1.msra.mxu0 %v5287
        %5450 = vmatprep.subr.mxu0 0.0
        %5451 = vmatpush2.msra.mxu0 0.0
        %5452 = vmatprep.subr.mxu0 0.0
        %5453 = vmatpush2.msra.mxu0 0.0
        %5454 = vmatprep.subr.mxu0 0.0
        %5455 = vmatpush2.msra.mxu0 0.0
        %5456 = vmatprep.subr.mxu0 0.0
        %5457 = vmatpush2.msra.mxu0 0.0
        %5458 = vmatprep.subr.mxu0 0.0
        %5459 = vmatpush2.msra.mxu0 0.0
        %5460 = vmatprep.subr.mxu0 0.0
        %5461 = vmatpush2.msra.mxu0 0.0
        %5462 = vmatprep.subr.mxu0 0.0
        %5463 = vmatpush2.msra.mxu0 0.0
        %5464 = vmatprep.subr.mxu0 0.0
        %5465 = vmatpush2.msra.mxu0 0.0
        %5466 = vmatprep.subr.mxu0 0.0
        %5467 = vmatpush2.msra.mxu0 0.0
        %5468 = vmatprep.subr.mxu0 0.0
        %5469 = vmatpush2.msra.mxu0 0.0
        %5470 = vmatprep.subr.mxu0 0.0
        %5471 = vmatpush2.msra.mxu0 0.0
        %5472 = vmatprep.subr.mxu0 0.0
        %5473 = vmatpush2.msra.mxu0 0.0
        %5474 = vmatprep.subr.mxu0 0.0
        %5475 = vmatpush2.msra.mxu0 0.0
        %5476 = vmatprep.subr.mxu0 0.0
        %5477 = vmatpush2.msra.mxu0 0.0
        %5478 = vmatprep.subr.mxu0 0.0
        %5479 = vmatpush2.msra.mxu0 0.0
        %5480 = vmatprep.subr.mxu0 0.0
        %5481 = vmatpush2.msra.mxu0 0.0
        %5482 = vmatprep.mubr.f32.mxu0 0.0
        %5483 = vmatmul.mubr.f32.gmra.mxu0 %v5407
        %v5484 = vpop.f32.mrf.mxu0
        %v5485 = vadd.f32 0.0, %v5484
        %v5486 = vpop.f32.mrf.mxu0
        %v5487 = vadd.f32 0.0, %v5486
        %5488 = vmatprep.mubr.f32.mxu0 0.0
        %5489 = vmatmul.mubr.f32.gmra.mxu0 %v5410
        %v5490 = vpop.f32.mrf.mxu0
        %v5491 = vadd.f32 0.0, %v5490
        %v5492 = vpop.f32.mrf.mxu0
        %v5493 = vadd.f32 0.0, %v5492
        %5494 = vmatprep.mubr.f32.mxu0 0.0
        %5495 = vmatmul.mubr.f32.gmra.mxu0 %v5413
        %v5496 = vpop.f32.mrf.mxu0
        %v5497 = vadd.f32 0.0, %v5496
        %v5498 = vpop.f32.mrf.mxu0
        %v5499 = vadd.f32 0.0, %v5498
        %5500 = vmatprep.mubr.f32.mxu0 0.0
        %5501 = vmatmul.mubr.f32.gmra.mxu0 %v5416
        %v5502 = vpop.f32.mrf.mxu0
        %v5503 = vadd.f32 0.0, %v5502
        %v5504 = vpop.f32.mrf.mxu0
        %v5505 = vadd.f32 0.0, %v5504
        %5506 = vdwg.mxu0
        %5507 = vmatprep.subr.mxu0 %v750
        %5508 = vmatpush1.msra.mxu0 %v749
        %5509 = vmatprep.subr.mxu0 %v748
        %5510 = vmatpush1.msra.mxu0 %v747
        %5511 = vmatprep.subr.mxu0 %v746
        %5512 = vmatpush1.msra.mxu0 %v745
        %5513 = vmatprep.subr.mxu0 %v744
        %5514 = vmatpush1.msra.mxu0 %v743
        %5515 = vmatprep.subr.mxu0 %v742
        %5516 = vmatpush1.msra.mxu0 %v741
        %5517 = vmatprep.subr.mxu0 %v740
        %5518 = vmatpush1.msra.mxu0 %v739
        %5519 = vmatprep.subr.mxu0 %v738
        %5520 = vmatpush1.msra.mxu0 %v737
        %5521 = vmatprep.subr.mxu0 %v736
        %5522 = vmatpush1.msra.mxu0 %v735
        %5523 = vmatprep.subr.mxu0 %v734
        %5524 = vmatpush1.msra.mxu0 %v733
        %5525 = vmatprep.subr.mxu0 %v732
        %5526 = vmatpush1.msra.mxu0 %v731
        %5527 = vmatprep.subr.mxu0 %v730
        %5528 = vmatpush1.msra.mxu0 %v729
        %5529 = vmatprep.subr.mxu0 %v728
        %5530 = vmatpush1.msra.mxu0 %v727
        %5531 = vmatprep.subr.mxu0 %v726
        %5532 = vmatpush1.msra.mxu0 %v725
        %5533 = vmatprep.subr.mxu0 %v724
        %5534 = vmatpush1.msra.mxu0 %v723
        %5535 = vmatprep.subr.mxu0 %v722
        %5536 = vmatpush1.msra.mxu0 %v721
        %5537 = vmatprep.subr.mxu0 %v720
        %5538 = vmatpush1.msra.mxu0 %v719
        %5539 = vmatprep.subr.mxu0 %v782
        %5540 = vmatpush2.msra.mxu0 %v781
        %5541 = vmatprep.subr.mxu0 %v780
        %5542 = vmatpush2.msra.mxu0 %v779
        %5543 = vmatprep.subr.mxu0 %v778
        %5544 = vmatpush2.msra.mxu0 %v777
        %5545 = vmatprep.subr.mxu0 %v776
        %5546 = vmatpush2.msra.mxu0 %v775
        %5547 = vmatprep.subr.mxu0 %v774
        %5548 = vmatpush2.msra.mxu0 %v773
        %5549 = vmatprep.subr.mxu0 %v772
        %5550 = vmatpush2.msra.mxu0 %v771
        %5551 = vmatprep.subr.mxu0 %v770
        %5552 = vmatpush2.msra.mxu0 %v769
        %5553 = vmatprep.subr.mxu0 %v768
        %5554 = vmatpush2.msra.mxu0 %v767
        %5555 = vmatprep.subr.mxu0 %v766
        %5556 = vmatpush2.msra.mxu0 %v765
        %5557 = vmatprep.subr.mxu0 %v764
        %5558 = vmatpush2.msra.mxu0 %v763
        %5559 = vmatprep.subr.mxu0 %v762
        %5560 = vmatpush2.msra.mxu0 %v761
        %5561 = vmatprep.subr.mxu0 %v760
        %5562 = vmatpush2.msra.mxu0 %v759
        %5563 = vmatprep.subr.mxu0 %v758
        %5564 = vmatpush2.msra.mxu0 %v757
        %5565 = vmatprep.subr.mxu0 %v756
        %5566 = vmatpush2.msra.mxu0 %v755
        %5567 = vmatprep.subr.mxu0 %v754
        %5568 = vmatpush2.msra.mxu0 %v753
        %5569 = vmatprep.subr.mxu0 %v752
        %5570 = vmatpush2.msra.mxu0 %v751
        %5571 = vmatprep.mubr.f32.mxu0 %v5487
        %5572 = vmatmul.mubr.f32.gmra.mxu0 %v5485
        %v5573 = vpop.f32.mrf.mxu0
        %v5574 = vadd.f32 0.0, %v5573
        %v5575 = vpop.f32.mrf.mxu0
        %v5576 = vadd.f32 0.0, %v5575
        %5577 = vmatprep.mubr.f32.mxu0 %v5493
        %5578 = vmatmul.mubr.f32.gmra.mxu0 %v5491
        %v5579 = vpop.f32.mrf.mxu0
        %v5580 = vadd.f32 0.0, %v5579
        %v5581 = vpop.f32.mrf.mxu0
        %v5582 = vadd.f32 0.0, %v5581
        %5583 = vmatprep.mubr.f32.mxu0 %v5499
        %5584 = vmatmul.mubr.f32.gmra.mxu0 %v5497
        %v5585 = vpop.f32.mrf.mxu0
        %v5586 = vadd.f32 0.0, %v5585
        %v5587 = vpop.f32.mrf.mxu0
        %v5588 = vadd.f32 0.0, %v5587
        %5589 = vmatprep.mubr.f32.mxu0 %v5505
        %5590 = vmatmul.mubr.f32.gmra.mxu0 %v5503
        %v5591 = vpop.f32.mrf.mxu0
        %v5592 = vadd.f32 0.0, %v5591
        %v5593 = vpop.f32.mrf.mxu0
        %v5594 = vadd.f32 0.0, %v5593
        %5595 = vdwg.mxu0
        %5596 = vmatprep.subr.mxu0 %v579
        %5597 = vmatpush1.msra.mxu0 %v578
        %5598 = vmatprep.subr.mxu0 %v577
        %5599 = vmatpush1.msra.mxu0 %v576
        %5600 = vmatprep.subr.mxu0 %v575
        %5601 = vmatpush1.msra.mxu0 %v574
        %5602 = vmatprep.subr.mxu0 %v573
        %5603 = vmatpush1.msra.mxu0 %v572
        %5604 = vmatprep.subr.mxu0 %v571
        %5605 = vmatpush1.msra.mxu0 %v570
        %5606 = vmatprep.subr.mxu0 %v569
        %5607 = vmatpush1.msra.mxu0 %v568
        %5608 = vmatprep.subr.mxu0 %v567
        %5609 = vmatpush1.msra.mxu0 %v566
        %5610 = vmatprep.subr.mxu0 %v565
        %5611 = vmatpush1.msra.mxu0 %v564
        %5612 = vmatprep.subr.mxu0 %v563
        %5613 = vmatpush1.msra.mxu0 %v562
        %5614 = vmatprep.subr.mxu0 %v561
        %5615 = vmatpush1.msra.mxu0 %v560
        %5616 = vmatprep.subr.mxu0 %v559
        %5617 = vmatpush1.msra.mxu0 %v558
        %5618 = vmatprep.subr.mxu0 %v557
        %5619 = vmatpush1.msra.mxu0 %v556
        %5620 = vmatprep.subr.mxu0 %v555
        %5621 = vmatpush1.msra.mxu0 %v554
        %5622 = vmatprep.subr.mxu0 %v553
        %5623 = vmatpush1.msra.mxu0 %v552
        %5624 = vmatprep.subr.mxu0 %v551
        %5625 = vmatpush1.msra.mxu0 %v550
        %5626 = vmatprep.subr.mxu0 %v549
        %5627 = vmatpush1.msra.mxu0 %v548
        %5628 = vmatprep.subr.mxu0 %v611
        %5629 = vmatpush2.msra.mxu0 %v610
        %5630 = vmatprep.subr.mxu0 %v609
        %5631 = vmatpush2.msra.mxu0 %v608
        %5632 = vmatprep.subr.mxu0 %v607
        %5633 = vmatpush2.msra.mxu0 %v606
        %5634 = vmatprep.subr.mxu0 %v605
        %5635 = vmatpush2.msra.mxu0 %v604
        %5636 = vmatprep.subr.mxu0 %v603
        %5637 = vmatpush2.msra.mxu0 %v602
        %5638 = vmatprep.subr.mxu0 %v601
        %5639 = vmatpush2.msra.mxu0 %v600
        %5640 = vmatprep.subr.mxu0 %v599
        %5641 = vmatpush2.msra.mxu0 %v598
        %5642 = vmatprep.subr.mxu0 %v597
        %5643 = vmatpush2.msra.mxu0 %v596
        %5644 = vmatprep.subr.mxu0 %v595
        %5645 = vmatpush2.msra.mxu0 %v594
        %5646 = vmatprep.subr.mxu0 %v593
        %5647 = vmatpush2.msra.mxu0 %v592
        %5648 = vmatprep.subr.mxu0 %v591
        %5649 = vmatpush2.msra.mxu0 %v590
        %5650 = vmatprep.subr.mxu0 %v589
        %5651 = vmatpush2.msra.mxu0 %v588
        %5652 = vmatprep.subr.mxu0 %v587
        %5653 = vmatpush2.msra.mxu0 %v586
        %5654 = vmatprep.subr.mxu0 %v585
        %5655 = vmatpush2.msra.mxu0 %v584
        %5656 = vmatprep.subr.mxu0 %v583
        %5657 = vmatpush2.msra.mxu0 %v582
        %5658 = vmatprep.subr.mxu0 %v581
        %5659 = vmatpush2.msra.mxu0 %v580
        %5660 = vmatprep.mubr.f32.mxu0 %v5381
        %5661 = vmatmul.mubr.f32.gmra.mxu0 %v5379
        %v5662 = vpop.f32.mrf.mxu0
        %v5663 = vadd.f32 %v5574, %v5662
        %v5664 = vpop.f32.mrf.mxu0
        %v5665 = vadd.f32 %v5576, %v5664
        %5666 = vmatprep.mubr.f32.mxu0 %v5387
        %5667 = vmatmul.mubr.f32.gmra.mxu0 %v5385
        %v5668 = vpop.f32.mrf.mxu0
        %v5669 = vadd.f32 %v5580, %v5668
        %v5670 = vpop.f32.mrf.mxu0
        %v5671 = vadd.f32 %v5582, %v5670
        %5672 = vmatprep.mubr.f32.mxu0 %v5393
        %5673 = vmatmul.mubr.f32.gmra.mxu0 %v5391
        %v5674 = vpop.f32.mrf.mxu0
        %v5675 = vadd.f32 %v5586, %v5674
        %v5676 = vpop.f32.mrf.mxu0
        %v5677 = vadd.f32 %v5588, %v5676
        %5678 = vmatprep.mubr.f32.mxu0 %v5399
        %5679 = vmatmul.mubr.f32.gmra.mxu0 %v5397
        %v5680 = vpop.f32.mrf.mxu0
        %v5681 = vadd.f32 %v5592, %v5680
        %v5682 = vpop.f32.mrf.mxu0
        %v5683 = vadd.f32 %v5594, %v5682
        %5684 = vdwg.mxu0
        %s5685 = scalar_lea.vmem [#allocation5], 640
        %v5686 = vld [vmem:[%s5685] sm:$0xff]
        %v5687 = vld [vmem:[%s5685 + $0x8] sm:$0xff]
        %v5688 = vld [vmem:[%s5685 + $0x10] sm:$0xff]
        %v5689 = vld [vmem:[%s5685 + $0x18] sm:$0xff]
        %v5691 = vsel %vm446, %v5686, 0
        %v5694 = vsel %vm446, %v5687, 0
        %v5697 = vsel %vm446, %v5688, 0
        %v5700 = vsel %vm446, %v5689, 0
        %5702 = vmatprep.subr.mxu0 0.0
        %5703 = vmatpush1.msra.mxu0 0.0
        %5704 = vmatprep.subr.mxu0 0.0
        %5705 = vmatpush1.msra.mxu0 0.0
        %5706 = vmatprep.subr.mxu0 0.0
        %5707 = vmatpush1.msra.mxu0 0.0
        %5708 = vmatprep.subr.mxu0 0.0
        %5709 = vmatpush1.msra.mxu0 0.0
        %5710 = vmatprep.subr.mxu0 0.0
        %5711 = vmatpush1.msra.mxu0 0.0
        %5712 = vmatprep.subr.mxu0 0.0
        %5713 = vmatpush1.msra.mxu0 0.0
        %5714 = vmatprep.subr.mxu0 0.0
        %5715 = vmatpush1.msra.mxu0 0.0
        %5716 = vmatprep.subr.mxu0 0.0
        %5717 = vmatpush1.msra.mxu0 0.0
        %5718 = vmatprep.subr.mxu0 0.0
        %5719 = vmatpush1.msra.mxu0 0.0
        %5720 = vmatprep.subr.mxu0 0.0
        %5721 = vmatpush1.msra.mxu0 0.0
        %5722 = vmatprep.subr.mxu0 0.0
        %5723 = vmatpush1.msra.mxu0 0.0
        %5724 = vmatprep.subr.mxu0 0.0
        %5725 = vmatpush1.msra.mxu0 0.0
        %5726 = vmatprep.subr.mxu0 %v5294
        %5727 = vmatpush1.msra.mxu0 %v5293
        %5728 = vmatprep.subr.mxu0 %v5292
        %5729 = vmatpush1.msra.mxu0 %v5291
        %5730 = vmatprep.subr.mxu0 %v5290
        %5731 = vmatpush1.msra.mxu0 %v5289
        %5732 = vmatprep.subr.mxu0 %v5288
        %5733 = vmatpush1.msra.mxu0 %v5287
        %5734 = vmatprep.subr.mxu0 0.0
        %5735 = vmatpush2.msra.mxu0 0.0
        %5736 = vmatprep.subr.mxu0 0.0
        %5737 = vmatpush2.msra.mxu0 0.0
        %5738 = vmatprep.subr.mxu0 0.0
        %5739 = vmatpush2.msra.mxu0 0.0
        %5740 = vmatprep.subr.mxu0 0.0
        %5741 = vmatpush2.msra.mxu0 0.0
        %5742 = vmatprep.subr.mxu0 0.0
        %5743 = vmatpush2.msra.mxu0 0.0
        %5744 = vmatprep.subr.mxu0 0.0
        %5745 = vmatpush2.msra.mxu0 0.0
        %5746 = vmatprep.subr.mxu0 0.0
        %5747 = vmatpush2.msra.mxu0 0.0
        %5748 = vmatprep.subr.mxu0 0.0
        %5749 = vmatpush2.msra.mxu0 0.0
        %5750 = vmatprep.subr.mxu0 0.0
        %5751 = vmatpush2.msra.mxu0 0.0
        %5752 = vmatprep.subr.mxu0 0.0
        %5753 = vmatpush2.msra.mxu0 0.0
        %5754 = vmatprep.subr.mxu0 0.0
        %5755 = vmatpush2.msra.mxu0 0.0
        %5756 = vmatprep.subr.mxu0 0.0
        %5757 = vmatpush2.msra.mxu0 0.0
        %5758 = vmatprep.subr.mxu0 0.0
        %5759 = vmatpush2.msra.mxu0 0.0
        %5760 = vmatprep.subr.mxu0 0.0
        %5761 = vmatpush2.msra.mxu0 0.0
        %5762 = vmatprep.subr.mxu0 0.0
        %5763 = vmatpush2.msra.mxu0 0.0
        %5764 = vmatprep.subr.mxu0 0.0
        %5765 = vmatpush2.msra.mxu0 0.0
        %5766 = vmatprep.mubr.f32.mxu0 0.0
        %5767 = vmatmul.mubr.f32.gmra.mxu0 %v5691
        %v5768 = vpop.f32.mrf.mxu0
        %v5769 = vadd.f32 0.0, %v5768
        %v5770 = vpop.f32.mrf.mxu0
        %v5771 = vadd.f32 0.0, %v5770
        %5772 = vmatprep.mubr.f32.mxu0 0.0
        %5773 = vmatmul.mubr.f32.gmra.mxu0 %v5694
        %v5774 = vpop.f32.mrf.mxu0
        %v5775 = vadd.f32 0.0, %v5774
        %v5776 = vpop.f32.mrf.mxu0
        %v5777 = vadd.f32 0.0, %v5776
        %5778 = vmatprep.mubr.f32.mxu0 0.0
        %5779 = vmatmul.mubr.f32.gmra.mxu0 %v5697
        %v5780 = vpop.f32.mrf.mxu0
        %v5781 = vadd.f32 0.0, %v5780
        %v5782 = vpop.f32.mrf.mxu0
        %v5783 = vadd.f32 0.0, %v5782
        %5784 = vmatprep.mubr.f32.mxu0 0.0
        %5785 = vmatmul.mubr.f32.gmra.mxu0 %v5700
        %v5786 = vpop.f32.mrf.mxu0
        %v5787 = vadd.f32 0.0, %v5786
        %v5788 = vpop.f32.mrf.mxu0
        %v5789 = vadd.f32 0.0, %v5788
        %5790 = vdwg.mxu0
        %5791 = vmatprep.subr.mxu0 %v1099
        %5792 = vmatpush1.msra.mxu0 %v1098
        %5793 = vmatprep.subr.mxu0 %v1097
        %5794 = vmatpush1.msra.mxu0 %v1096
        %5795 = vmatprep.subr.mxu0 %v1095
        %5796 = vmatpush1.msra.mxu0 %v1094
        %5797 = vmatprep.subr.mxu0 %v1093
        %5798 = vmatpush1.msra.mxu0 %v1092
        %5799 = vmatprep.subr.mxu0 %v1091
        %5800 = vmatpush1.msra.mxu0 %v1090
        %5801 = vmatprep.subr.mxu0 %v1089
        %5802 = vmatpush1.msra.mxu0 %v1088
        %5803 = vmatprep.subr.mxu0 %v1087
        %5804 = vmatpush1.msra.mxu0 %v1086
        %5805 = vmatprep.subr.mxu0 %v1085
        %5806 = vmatpush1.msra.mxu0 %v1084
        %5807 = vmatprep.subr.mxu0 %v1083
        %5808 = vmatpush1.msra.mxu0 %v1082
        %5809 = vmatprep.subr.mxu0 %v1081
        %5810 = vmatpush1.msra.mxu0 %v1080
        %5811 = vmatprep.subr.mxu0 %v1079
        %5812 = vmatpush1.msra.mxu0 %v1078
        %5813 = vmatprep.subr.mxu0 %v1077
        %5814 = vmatpush1.msra.mxu0 %v1076
        %5815 = vmatprep.subr.mxu0 %v1075
        %5816 = vmatpush1.msra.mxu0 %v1074
        %5817 = vmatprep.subr.mxu0 %v1073
        %5818 = vmatpush1.msra.mxu0 %v1072
        %5819 = vmatprep.subr.mxu0 %v1071
        %5820 = vmatpush1.msra.mxu0 %v1070
        %5821 = vmatprep.subr.mxu0 %v1069
        %5822 = vmatpush1.msra.mxu0 %v1068
        %5823 = vmatprep.subr.mxu0 %v1131
        %5824 = vmatpush2.msra.mxu0 %v1130
        %5825 = vmatprep.subr.mxu0 %v1129
        %5826 = vmatpush2.msra.mxu0 %v1128
        %5827 = vmatprep.subr.mxu0 %v1127
        %5828 = vmatpush2.msra.mxu0 %v1126
        %5829 = vmatprep.subr.mxu0 %v1125
        %5830 = vmatpush2.msra.mxu0 %v1124
        %5831 = vmatprep.subr.mxu0 %v1123
        %5832 = vmatpush2.msra.mxu0 %v1122
        %5833 = vmatprep.subr.mxu0 %v1121
        %5834 = vmatpush2.msra.mxu0 %v1120
        %5835 = vmatprep.subr.mxu0 %v1119
        %5836 = vmatpush2.msra.mxu0 %v1118
        %5837 = vmatprep.subr.mxu0 %v1117
        %5838 = vmatpush2.msra.mxu0 %v1116
        %5839 = vmatprep.subr.mxu0 %v1115
        %5840 = vmatpush2.msra.mxu0 %v1114
        %5841 = vmatprep.subr.mxu0 %v1113
        %5842 = vmatpush2.msra.mxu0 %v1112
        %5843 = vmatprep.subr.mxu0 %v1111
        %5844 = vmatpush2.msra.mxu0 %v1110
        %5845 = vmatprep.subr.mxu0 %v1109
        %5846 = vmatpush2.msra.mxu0 %v1108
        %5847 = vmatprep.subr.mxu0 %v1107
        %5848 = vmatpush2.msra.mxu0 %v1106
        %5849 = vmatprep.subr.mxu0 %v1105
        %5850 = vmatpush2.msra.mxu0 %v1104
        %5851 = vmatprep.subr.mxu0 %v1103
        %5852 = vmatpush2.msra.mxu0 %v1102
        %5853 = vmatprep.subr.mxu0 %v1101
        %5854 = vmatpush2.msra.mxu0 %v1100
        %5855 = vmatprep.mubr.f32.mxu0 %v5771
        %5856 = vmatmul.mubr.f32.gmra.mxu0 %v5769
        %v5857 = vpop.f32.mrf.mxu0
        %v5858 = vadd.f32 0.0, %v5857
        %v5859 = vpop.f32.mrf.mxu0
        %v5860 = vadd.f32 0.0, %v5859
        %5861 = vmatprep.mubr.f32.mxu0 %v5777
        %5862 = vmatmul.mubr.f32.gmra.mxu0 %v5775
        %v5863 = vpop.f32.mrf.mxu0
        %v5864 = vadd.f32 0.0, %v5863
        %v5865 = vpop.f32.mrf.mxu0
        %v5866 = vadd.f32 0.0, %v5865
        %5867 = vmatprep.mubr.f32.mxu0 %v5783
        %5868 = vmatmul.mubr.f32.gmra.mxu0 %v5781
        %v5869 = vpop.f32.mrf.mxu0
        %v5870 = vadd.f32 0.0, %v5869
        %v5871 = vpop.f32.mrf.mxu0
        %v5872 = vadd.f32 0.0, %v5871
        %5873 = vmatprep.mubr.f32.mxu0 %v5789
        %5874 = vmatmul.mubr.f32.gmra.mxu0 %v5787
        %v5875 = vpop.f32.mrf.mxu0
        %v5876 = vadd.f32 0.0, %v5875
        %v5877 = vpop.f32.mrf.mxu0
        %v5878 = vadd.f32 0.0, %v5877
        %5879 = vdwg.mxu0
        %v5880 = vadd.f32 %v5663, %v5858
        %v5881 = vadd.f32 %v5665, %v5860
        %v5882 = vadd.f32 %v5669, %v5864
        %v5883 = vadd.f32 %v5671, %v5866
        %v5884 = vadd.f32 %v5675, %v5870
        %v5885 = vadd.f32 %v5677, %v5872
        %v5886 = vadd.f32 %v5681, %v5876
        %v5887 = vadd.f32 %v5683, %v5878
        %s5888 = scalar_lea.vmem [#allocation5], 672
        %v5889 = vld [vmem:[%s5888] sm:$0xff]
        %v5890 = vld [vmem:[%s5888 + $0x8] sm:$0xff]
        %v5891 = vld [vmem:[%s5888 + $0x10] sm:$0xff]
        %v5892 = vld [vmem:[%s5888 + $0x18] sm:$0xff]
        %v5894 = vsel %vm446, %v5889, 0
        %v5897 = vsel %vm446, %v5890, 0
        %v5900 = vsel %vm446, %v5891, 0
        %v5903 = vsel %vm446, %v5892, 0
        %5905 = vmatprep.subr.mxu0 0.0
        %5906 = vmatpush1.msra.mxu0 0.0
        %5907 = vmatprep.subr.mxu0 0.0
        %5908 = vmatpush1.msra.mxu0 0.0
        %5909 = vmatprep.subr.mxu0 0.0
        %5910 = vmatpush1.msra.mxu0 0.0
        %5911 = vmatprep.subr.mxu0 0.0
        %5912 = vmatpush1.msra.mxu0 0.0
        %5913 = vmatprep.subr.mxu0 0.0
        %5914 = vmatpush1.msra.mxu0 0.0
        %5915 = vmatprep.subr.mxu0 0.0
        %5916 = vmatpush1.msra.mxu0 0.0
        %5917 = vmatprep.subr.mxu0 0.0
        %5918 = vmatpush1.msra.mxu0 0.0
        %5919 = vmatprep.subr.mxu0 0.0
        %5920 = vmatpush1.msra.mxu0 0.0
        %5921 = vmatprep.subr.mxu0 0.0
        %5922 = vmatpush1.msra.mxu0 0.0
        %5923 = vmatprep.subr.mxu0 0.0
        %5924 = vmatpush1.msra.mxu0 0.0
        %5925 = vmatprep.subr.mxu0 0.0
        %5926 = vmatpush1.msra.mxu0 0.0
        %5927 = vmatprep.subr.mxu0 0.0
        %5928 = vmatpush1.msra.mxu0 0.0
        %5929 = vmatprep.subr.mxu0 %v5294
        %5930 = vmatpush1.msra.mxu0 %v5293
        %5931 = vmatprep.subr.mxu0 %v5292
        %5932 = vmatpush1.msra.mxu0 %v5291
        %5933 = vmatprep.subr.mxu0 %v5290
        %5934 = vmatpush1.msra.mxu0 %v5289
        %5935 = vmatprep.subr.mxu0 %v5288
        %5936 = vmatpush1.msra.mxu0 %v5287
        %5937 = vmatprep.subr.mxu0 0.0
        %5938 = vmatpush2.msra.mxu0 0.0
        %5939 = vmatprep.subr.mxu0 0.0
        %5940 = vmatpush2.msra.mxu0 0.0
        %5941 = vmatprep.subr.mxu0 0.0
        %5942 = vmatpush2.msra.mxu0 0.0
        %5943 = vmatprep.subr.mxu0 0.0
        %5944 = vmatpush2.msra.mxu0 0.0
        %5945 = vmatprep.subr.mxu0 0.0
        %5946 = vmatpush2.msra.mxu0 0.0
        %5947 = vmatprep.subr.mxu0 0.0
        %5948 = vmatpush2.msra.mxu0 0.0
        %5949 = vmatprep.subr.mxu0 0.0
        %5950 = vmatpush2.msra.mxu0 0.0
        %5951 = vmatprep.subr.mxu0 0.0
        %5952 = vmatpush2.msra.mxu0 0.0
        %5953 = vmatprep.subr.mxu0 0.0
        %5954 = vmatpush2.msra.mxu0 0.0
        %5955 = vmatprep.subr.mxu0 0.0
        %5956 = vmatpush2.msra.mxu0 0.0
        %5957 = vmatprep.subr.mxu0 0.0
        %5958 = vmatpush2.msra.mxu0 0.0
        %5959 = vmatprep.subr.mxu0 0.0
        %5960 = vmatpush2.msra.mxu0 0.0
        %5961 = vmatprep.subr.mxu0 0.0
        %5962 = vmatpush2.msra.mxu0 0.0
        %5963 = vmatprep.subr.mxu0 0.0
        %5964 = vmatpush2.msra.mxu0 0.0
        %5965 = vmatprep.subr.mxu0 0.0
        %5966 = vmatpush2.msra.mxu0 0.0
        %5967 = vmatprep.subr.mxu0 0.0
        %5968 = vmatpush2.msra.mxu0 0.0
        %5969 = vmatprep.mubr.f32.mxu0 0.0
        %5970 = vmatmul.mubr.f32.gmra.mxu0 %v5894
        %v5971 = vpop.f32.mrf.mxu0
        %v5972 = vadd.f32 0.0, %v5971
        %v5973 = vpop.f32.mrf.mxu0
        %v5974 = vadd.f32 0.0, %v5973
        %5975 = vmatprep.mubr.f32.mxu0 0.0
        %5976 = vmatmul.mubr.f32.gmra.mxu0 %v5897
        %v5977 = vpop.f32.mrf.mxu0
        %v5978 = vadd.f32 0.0, %v5977
        %v5979 = vpop.f32.mrf.mxu0
        %v5980 = vadd.f32 0.0, %v5979
        %5981 = vmatprep.mubr.f32.mxu0 0.0
        %5982 = vmatmul.mubr.f32.gmra.mxu0 %v5900
        %v5983 = vpop.f32.mrf.mxu0
        %v5984 = vadd.f32 0.0, %v5983
        %v5985 = vpop.f32.mrf.mxu0
        %v5986 = vadd.f32 0.0, %v5985
        %5987 = vmatprep.mubr.f32.mxu0 0.0
        %5988 = vmatmul.mubr.f32.gmra.mxu0 %v5903
        %v5989 = vpop.f32.mrf.mxu0
        %v5990 = vadd.f32 0.0, %v5989
        %v5991 = vpop.f32.mrf.mxu0
        %v5992 = vadd.f32 0.0, %v5991
        %5993 = vdwg.mxu0
        %5994 = vmatprep.subr.mxu0 %v1367
        %5995 = vmatpush1.msra.mxu0 %v1366
        %5996 = vmatprep.subr.mxu0 %v1365
        %5997 = vmatpush1.msra.mxu0 %v1364
        %5998 = vmatprep.subr.mxu0 %v1363
        %5999 = vmatpush1.msra.mxu0 %v1362
        %6000 = vmatprep.subr.mxu0 %v1361
        %6001 = vmatpush1.msra.mxu0 %v1360
        %6002 = vmatprep.subr.mxu0 %v1359
        %6003 = vmatpush1.msra.mxu0 %v1358
        %6004 = vmatprep.subr.mxu0 %v1357
        %6005 = vmatpush1.msra.mxu0 %v1356
        %6006 = vmatprep.subr.mxu0 %v1355
        %6007 = vmatpush1.msra.mxu0 %v1354
        %6008 = vmatprep.subr.mxu0 %v1353
        %6009 = vmatpush1.msra.mxu0 %v1352
        %6010 = vmatprep.subr.mxu0 %v1351
        %6011 = vmatpush1.msra.mxu0 %v1350
        %6012 = vmatprep.subr.mxu0 %v1349
        %6013 = vmatpush1.msra.mxu0 %v1348
        %6014 = vmatprep.subr.mxu0 %v1347
        %6015 = vmatpush1.msra.mxu0 %v1346
        %6016 = vmatprep.subr.mxu0 %v1345
        %6017 = vmatpush1.msra.mxu0 %v1344
        %6018 = vmatprep.subr.mxu0 %v1343
        %6019 = vmatpush1.msra.mxu0 %v1342
        %6020 = vmatprep.subr.mxu0 %v1341
        %6021 = vmatpush1.msra.mxu0 %v1340
        %6022 = vmatprep.subr.mxu0 %v1339
        %6023 = vmatpush1.msra.mxu0 %v1338
        %6024 = vmatprep.subr.mxu0 %v1337
        %6025 = vmatpush1.msra.mxu0 %v1336
        %6026 = vmatprep.subr.mxu0 %v1399
        %6027 = vmatpush2.msra.mxu0 %v1398
        %6028 = vmatprep.subr.mxu0 %v1397
        %6029 = vmatpush2.msra.mxu0 %v1396
        %6030 = vmatprep.subr.mxu0 %v1395
        %6031 = vmatpush2.msra.mxu0 %v1394
        %6032 = vmatprep.subr.mxu0 %v1393
        %6033 = vmatpush2.msra.mxu0 %v1392
        %6034 = vmatprep.subr.mxu0 %v1391
        %6035 = vmatpush2.msra.mxu0 %v1390
        %6036 = vmatprep.subr.mxu0 %v1389
        %6037 = vmatpush2.msra.mxu0 %v1388
        %6038 = vmatprep.subr.mxu0 %v1387
        %6039 = vmatpush2.msra.mxu0 %v1386
        %6040 = vmatprep.subr.mxu0 %v1385
        %6041 = vmatpush2.msra.mxu0 %v1384
        %6042 = vmatprep.subr.mxu0 %v1383
        %6043 = vmatpush2.msra.mxu0 %v1382
        %6044 = vmatprep.subr.mxu0 %v1381
        %6045 = vmatpush2.msra.mxu0 %v1380
        %6046 = vmatprep.subr.mxu0 %v1379
        %6047 = vmatpush2.msra.mxu0 %v1378
        %6048 = vmatprep.subr.mxu0 %v1377
        %6049 = vmatpush2.msra.mxu0 %v1376
        %6050 = vmatprep.subr.mxu0 %v1375
        %6051 = vmatpush2.msra.mxu0 %v1374
        %6052 = vmatprep.subr.mxu0 %v1373
        %6053 = vmatpush2.msra.mxu0 %v1372
        %6054 = vmatprep.subr.mxu0 %v1371
        %6055 = vmatpush2.msra.mxu0 %v1370
        %6056 = vmatprep.subr.mxu0 %v1369
        %6057 = vmatpush2.msra.mxu0 %v1368
        %6058 = vmatprep.mubr.f32.mxu0 %v5974
        %6059 = vmatmul.mubr.f32.gmra.mxu0 %v5972
        %v6060 = vpop.f32.mrf.mxu0
        %v6061 = vadd.f32 0.0, %v6060
        %v6062 = vpop.f32.mrf.mxu0
        %v6063 = vadd.f32 0.0, %v6062
        %6064 = vmatprep.mubr.f32.mxu0 %v5980
        %6065 = vmatmul.mubr.f32.gmra.mxu0 %v5978
        %v6066 = vpop.f32.mrf.mxu0
        %v6067 = vadd.f32 0.0, %v6066
        %v6068 = vpop.f32.mrf.mxu0
        %v6069 = vadd.f32 0.0, %v6068
        %6070 = vmatprep.mubr.f32.mxu0 %v5986
        %6071 = vmatmul.mubr.f32.gmra.mxu0 %v5984
        %v6072 = vpop.f32.mrf.mxu0
        %v6073 = vadd.f32 0.0, %v6072
        %v6074 = vpop.f32.mrf.mxu0
        %v6075 = vadd.f32 0.0, %v6074
        %6076 = vmatprep.mubr.f32.mxu0 %v5992
        %6077 = vmatmul.mubr.f32.gmra.mxu0 %v5990
        %v6078 = vpop.f32.mrf.mxu0
        %v6079 = vadd.f32 0.0, %v6078
        %v6080 = vpop.f32.mrf.mxu0
        %v6081 = vadd.f32 0.0, %v6080
        %6082 = vdwg.mxu0
        %v6083 = vadd.f32 %v5880, %v6061
        %v6084 = vadd.f32 %v5881, %v6063
        %v6085 = vadd.f32 %v5882, %v6067
        %v6086 = vadd.f32 %v5883, %v6069
        %v6087 = vadd.f32 %v5884, %v6073
        %v6088 = vadd.f32 %v5885, %v6075
        %v6089 = vadd.f32 %v5886, %v6079
        %v6090 = vadd.f32 %v5887, %v6081
        %s6091 = scalar_lea.vmem [#allocation5], 704
        %v6092 = vld [vmem:[%s6091] sm:$0xff]
        %v6093 = vld [vmem:[%s6091 + $0x8] sm:$0xff]
        %v6094 = vld [vmem:[%s6091 + $0x10] sm:$0xff]
        %v6095 = vld [vmem:[%s6091 + $0x18] sm:$0xff]
        %v6097 = vsel %vm446, %v6092, 0
        %v6100 = vsel %vm446, %v6093, 0
        %v6103 = vsel %vm446, %v6094, 0
        %v6106 = vsel %vm446, %v6095, 0
        %6108 = vmatprep.subr.mxu0 0.0
        %6109 = vmatpush1.msra.mxu0 0.0
        %6110 = vmatprep.subr.mxu0 0.0
        %6111 = vmatpush1.msra.mxu0 0.0
        %6112 = vmatprep.subr.mxu0 0.0
        %6113 = vmatpush1.msra.mxu0 0.0
        %6114 = vmatprep.subr.mxu0 0.0
        %6115 = vmatpush1.msra.mxu0 0.0
        %6116 = vmatprep.subr.mxu0 0.0
        %6117 = vmatpush1.msra.mxu0 0.0
        %6118 = vmatprep.subr.mxu0 0.0
        %6119 = vmatpush1.msra.mxu0 0.0
        %6120 = vmatprep.subr.mxu0 0.0
        %6121 = vmatpush1.msra.mxu0 0.0
        %6122 = vmatprep.subr.mxu0 0.0
        %6123 = vmatpush1.msra.mxu0 0.0
        %6124 = vmatprep.subr.mxu0 0.0
        %6125 = vmatpush1.msra.mxu0 0.0
        %6126 = vmatprep.subr.mxu0 0.0
        %6127 = vmatpush1.msra.mxu0 0.0
        %6128 = vmatprep.subr.mxu0 0.0
        %6129 = vmatpush1.msra.mxu0 0.0
        %6130 = vmatprep.subr.mxu0 0.0
        %6131 = vmatpush1.msra.mxu0 0.0
        %6132 = vmatprep.subr.mxu0 %v5294
        %6133 = vmatpush1.msra.mxu0 %v5293
        %6134 = vmatprep.subr.mxu0 %v5292
        %6135 = vmatpush1.msra.mxu0 %v5291
        %6136 = vmatprep.subr.mxu0 %v5290
        %6137 = vmatpush1.msra.mxu0 %v5289
        %6138 = vmatprep.subr.mxu0 %v5288
        %6139 = vmatpush1.msra.mxu0 %v5287
        %6140 = vmatprep.subr.mxu0 0.0
        %6141 = vmatpush2.msra.mxu0 0.0
        %6142 = vmatprep.subr.mxu0 0.0
        %6143 = vmatpush2.msra.mxu0 0.0
        %6144 = vmatprep.subr.mxu0 0.0
        %6145 = vmatpush2.msra.mxu0 0.0
        %6146 = vmatprep.subr.mxu0 0.0
        %6147 = vmatpush2.msra.mxu0 0.0
        %6148 = vmatprep.subr.mxu0 0.0
        %6149 = vmatpush2.msra.mxu0 0.0
        %6150 = vmatprep.subr.mxu0 0.0
        %6151 = vmatpush2.msra.mxu0 0.0
        %6152 = vmatprep.subr.mxu0 0.0
        %6153 = vmatpush2.msra.mxu0 0.0
        %6154 = vmatprep.subr.mxu0 0.0
        %6155 = vmatpush2.msra.mxu0 0.0
        %6156 = vmatprep.subr.mxu0 0.0
        %6157 = vmatpush2.msra.mxu0 0.0
        %6158 = vmatprep.subr.mxu0 0.0
        %6159 = vmatpush2.msra.mxu0 0.0
        %6160 = vmatprep.subr.mxu0 0.0
        %6161 = vmatpush2.msra.mxu0 0.0
        %6162 = vmatprep.subr.mxu0 0.0
        %6163 = vmatpush2.msra.mxu0 0.0
        %6164 = vmatprep.subr.mxu0 0.0
        %6165 = vmatpush2.msra.mxu0 0.0
        %6166 = vmatprep.subr.mxu0 0.0
        %6167 = vmatpush2.msra.mxu0 0.0
        %6168 = vmatprep.subr.mxu0 0.0
        %6169 = vmatpush2.msra.mxu0 0.0
        %6170 = vmatprep.subr.mxu0 0.0
        %6171 = vmatpush2.msra.mxu0 0.0
        %6172 = vmatprep.mubr.f32.mxu0 0.0
        %6173 = vmatmul.mubr.f32.gmra.mxu0 %v6097
        %v6174 = vpop.f32.mrf.mxu0
        %v6175 = vadd.f32 0.0, %v6174
        %v6176 = vpop.f32.mrf.mxu0
        %v6177 = vadd.f32 0.0, %v6176
        %6178 = vmatprep.mubr.f32.mxu0 0.0
        %6179 = vmatmul.mubr.f32.gmra.mxu0 %v6100
        %v6180 = vpop.f32.mrf.mxu0
        %v6181 = vadd.f32 0.0, %v6180
        %v6182 = vpop.f32.mrf.mxu0
        %v6183 = vadd.f32 0.0, %v6182
        %6184 = vmatprep.mubr.f32.mxu0 0.0
        %6185 = vmatmul.mubr.f32.gmra.mxu0 %v6103
        %v6186 = vpop.f32.mrf.mxu0
        %v6187 = vadd.f32 0.0, %v6186
        %v6188 = vpop.f32.mrf.mxu0
        %v6189 = vadd.f32 0.0, %v6188
        %6190 = vmatprep.mubr.f32.mxu0 0.0
        %6191 = vmatmul.mubr.f32.gmra.mxu0 %v6106
        %v6192 = vpop.f32.mrf.mxu0
        %v6193 = vadd.f32 0.0, %v6192
        %v6194 = vpop.f32.mrf.mxu0
        %v6195 = vadd.f32 0.0, %v6194
        %6196 = vdwg.mxu0
        %6197 = vmatprep.subr.mxu0 %v1635
        %6198 = vmatpush1.msra.mxu0 %v1634
        %6199 = vmatprep.subr.mxu0 %v1633
        %6200 = vmatpush1.msra.mxu0 %v1632
        %6201 = vmatprep.subr.mxu0 %v1631
        %6202 = vmatpush1.msra.mxu0 %v1630
        %6203 = vmatprep.subr.mxu0 %v1629
        %6204 = vmatpush1.msra.mxu0 %v1628
        %6205 = vmatprep.subr.mxu0 %v1627
        %6206 = vmatpush1.msra.mxu0 %v1626
        %6207 = vmatprep.subr.mxu0 %v1625
        %6208 = vmatpush1.msra.mxu0 %v1624
        %6209 = vmatprep.subr.mxu0 %v1623
        %6210 = vmatpush1.msra.mxu0 %v1622
        %6211 = vmatprep.subr.mxu0 %v1621
        %6212 = vmatpush1.msra.mxu0 %v1620
        %6213 = vmatprep.subr.mxu0 %v1619
        %6214 = vmatpush1.msra.mxu0 %v1618
        %6215 = vmatprep.subr.mxu0 %v1617
        %6216 = vmatpush1.msra.mxu0 %v1616
        %6217 = vmatprep.subr.mxu0 %v1615
        %6218 = vmatpush1.msra.mxu0 %v1614
        %6219 = vmatprep.subr.mxu0 %v1613
        %6220 = vmatpush1.msra.mxu0 %v1612
        %6221 = vmatprep.subr.mxu0 %v1611
        %6222 = vmatpush1.msra.mxu0 %v1610
        %6223 = vmatprep.subr.mxu0 %v1609
        %6224 = vmatpush1.msra.mxu0 %v1608
        %6225 = vmatprep.subr.mxu0 %v1607
        %6226 = vmatpush1.msra.mxu0 %v1606
        %6227 = vmatprep.subr.mxu0 %v1605
        %6228 = vmatpush1.msra.mxu0 %v1604
        %6229 = vmatprep.subr.mxu0 %v1667
        %6230 = vmatpush2.msra.mxu0 %v1666
        %6231 = vmatprep.subr.mxu0 %v1665
        %6232 = vmatpush2.msra.mxu0 %v1664
        %6233 = vmatprep.subr.mxu0 %v1663
        %6234 = vmatpush2.msra.mxu0 %v1662
        %6235 = vmatprep.subr.mxu0 %v1661
        %6236 = vmatpush2.msra.mxu0 %v1660
        %6237 = vmatprep.subr.mxu0 %v1659
        %6238 = vmatpush2.msra.mxu0 %v1658
        %6239 = vmatprep.subr.mxu0 %v1657
        %6240 = vmatpush2.msra.mxu0 %v1656
        %6241 = vmatprep.subr.mxu0 %v1655
        %6242 = vmatpush2.msra.mxu0 %v1654
        %6243 = vmatprep.subr.mxu0 %v1653
        %6244 = vmatpush2.msra.mxu0 %v1652
        %6245 = vmatprep.subr.mxu0 %v1651
        %6246 = vmatpush2.msra.mxu0 %v1650
        %6247 = vmatprep.subr.mxu0 %v1649
        %6248 = vmatpush2.msra.mxu0 %v1648
        %6249 = vmatprep.subr.mxu0 %v1647
        %6250 = vmatpush2.msra.mxu0 %v1646
        %6251 = vmatprep.subr.mxu0 %v1645
        %6252 = vmatpush2.msra.mxu0 %v1644
        %6253 = vmatprep.subr.mxu0 %v1643
        %6254 = vmatpush2.msra.mxu0 %v1642
        %6255 = vmatprep.subr.mxu0 %v1641
        %6256 = vmatpush2.msra.mxu0 %v1640
        %6257 = vmatprep.subr.mxu0 %v1639
        %6258 = vmatpush2.msra.mxu0 %v1638
        %6259 = vmatprep.subr.mxu0 %v1637
        %6260 = vmatpush2.msra.mxu0 %v1636
        %6261 = vmatprep.mubr.f32.mxu0 %v6177
        %6262 = vmatmul.mubr.f32.gmra.mxu0 %v6175
        %v6263 = vpop.f32.mrf.mxu0
        %v6264 = vadd.f32 0.0, %v6263
        %v6265 = vpop.f32.mrf.mxu0
        %v6266 = vadd.f32 0.0, %v6265
        %6267 = vmatprep.mubr.f32.mxu0 %v6183
        %6268 = vmatmul.mubr.f32.gmra.mxu0 %v6181
        %v6269 = vpop.f32.mrf.mxu0
        %v6270 = vadd.f32 0.0, %v6269
        %v6271 = vpop.f32.mrf.mxu0
        %v6272 = vadd.f32 0.0, %v6271
        %6273 = vmatprep.mubr.f32.mxu0 %v6189
        %6274 = vmatmul.mubr.f32.gmra.mxu0 %v6187
        %v6275 = vpop.f32.mrf.mxu0
        %v6276 = vadd.f32 0.0, %v6275
        %v6277 = vpop.f32.mrf.mxu0
        %v6278 = vadd.f32 0.0, %v6277
        %6279 = vmatprep.mubr.f32.mxu0 %v6195
        %6280 = vmatmul.mubr.f32.gmra.mxu0 %v6193
        %v6281 = vpop.f32.mrf.mxu0
        %v6282 = vadd.f32 0.0, %v6281
        %v6283 = vpop.f32.mrf.mxu0
        %v6284 = vadd.f32 0.0, %v6283
        %6285 = vdwg.mxu0
        %v6286 = vadd.f32 %v6083, %v6264
        %v6287 = vadd.f32 %v6084, %v6266
        %v6288 = vadd.f32 %v6085, %v6270
        %v6289 = vadd.f32 %v6086, %v6272
        %v6290 = vadd.f32 %v6087, %v6276
        %v6291 = vadd.f32 %v6088, %v6278
        %v6292 = vadd.f32 %v6089, %v6282
        %v6293 = vadd.f32 %v6090, %v6284
        %s6294 = scalar_lea.vmem [#allocation5], 736
        %v6295 = vld [vmem:[%s6294] sm:$0xff]
        %v6296 = vld [vmem:[%s6294 + $0x8] sm:$0xff]
        %v6297 = vld [vmem:[%s6294 + $0x10] sm:$0xff]
        %v6298 = vld [vmem:[%s6294 + $0x18] sm:$0xff]
        %v6300 = vsel %vm446, %v6295, 0
        %v6303 = vsel %vm446, %v6296, 0
        %v6306 = vsel %vm446, %v6297, 0
        %v6309 = vsel %vm446, %v6298, 0
        %6311 = vmatprep.subr.mxu0 0.0
        %6312 = vmatpush1.msra.mxu0 0.0
        %6313 = vmatprep.subr.mxu0 0.0
        %6314 = vmatpush1.msra.mxu0 0.0
        %6315 = vmatprep.subr.mxu0 0.0
        %6316 = vmatpush1.msra.mxu0 0.0
        %6317 = vmatprep.subr.mxu0 0.0
        %6318 = vmatpush1.msra.mxu0 0.0
        %6319 = vmatprep.subr.mxu0 0.0
        %6320 = vmatpush1.msra.mxu0 0.0
        %6321 = vmatprep.subr.mxu0 0.0
        %6322 = vmatpush1.msra.mxu0 0.0
        %6323 = vmatprep.subr.mxu0 0.0
        %6324 = vmatpush1.msra.mxu0 0.0
        %6325 = vmatprep.subr.mxu0 0.0
        %6326 = vmatpush1.msra.mxu0 0.0
        %6327 = vmatprep.subr.mxu0 0.0
        %6328 = vmatpush1.msra.mxu0 0.0
        %6329 = vmatprep.subr.mxu0 0.0
        %6330 = vmatpush1.msra.mxu0 0.0
        %6331 = vmatprep.subr.mxu0 0.0
        %6332 = vmatpush1.msra.mxu0 0.0
        %6333 = vmatprep.subr.mxu0 0.0
        %6334 = vmatpush1.msra.mxu0 0.0
        %6335 = vmatprep.subr.mxu0 %v5294
        %6336 = vmatpush1.msra.mxu0 %v5293
        %6337 = vmatprep.subr.mxu0 %v5292
        %6338 = vmatpush1.msra.mxu0 %v5291
        %6339 = vmatprep.subr.mxu0 %v5290
        %6340 = vmatpush1.msra.mxu0 %v5289
        %6341 = vmatprep.subr.mxu0 %v5288
        %6342 = vmatpush1.msra.mxu0 %v5287
        %6343 = vmatprep.subr.mxu0 0.0
        %6344 = vmatpush2.msra.mxu0 0.0
        %6345 = vmatprep.subr.mxu0 0.0
        %6346 = vmatpush2.msra.mxu0 0.0
        %6347 = vmatprep.subr.mxu0 0.0
        %6348 = vmatpush2.msra.mxu0 0.0
        %6349 = vmatprep.subr.mxu0 0.0
        %6350 = vmatpush2.msra.mxu0 0.0
        %6351 = vmatprep.subr.mxu0 0.0
        %6352 = vmatpush2.msra.mxu0 0.0
        %6353 = vmatprep.subr.mxu0 0.0
        %6354 = vmatpush2.msra.mxu0 0.0
        %6355 = vmatprep.subr.mxu0 0.0
        %6356 = vmatpush2.msra.mxu0 0.0
        %6357 = vmatprep.subr.mxu0 0.0
        %6358 = vmatpush2.msra.mxu0 0.0
        %6359 = vmatprep.subr.mxu0 0.0
        %6360 = vmatpush2.msra.mxu0 0.0
        %6361 = vmatprep.subr.mxu0 0.0
        %6362 = vmatpush2.msra.mxu0 0.0
        %6363 = vmatprep.subr.mxu0 0.0
        %6364 = vmatpush2.msra.mxu0 0.0
        %6365 = vmatprep.subr.mxu0 0.0
        %6366 = vmatpush2.msra.mxu0 0.0
        %6367 = vmatprep.subr.mxu0 0.0
        %6368 = vmatpush2.msra.mxu0 0.0
        %6369 = vmatprep.subr.mxu0 0.0
        %6370 = vmatpush2.msra.mxu0 0.0
        %6371 = vmatprep.subr.mxu0 0.0
        %6372 = vmatpush2.msra.mxu0 0.0
        %6373 = vmatprep.subr.mxu0 0.0
        %6374 = vmatpush2.msra.mxu0 0.0
        %6375 = vmatprep.mubr.f32.mxu0 0.0
        %6376 = vmatmul.mubr.f32.gmra.mxu0 %v6300
        %v6377 = vpop.f32.mrf.mxu0
        %v6378 = vadd.f32 0.0, %v6377
        %v6379 = vpop.f32.mrf.mxu0
        %v6380 = vadd.f32 0.0, %v6379
        %6381 = vmatprep.mubr.f32.mxu0 0.0
        %6382 = vmatmul.mubr.f32.gmra.mxu0 %v6303
        %v6383 = vpop.f32.mrf.mxu0
        %v6384 = vadd.f32 0.0, %v6383
        %v6385 = vpop.f32.mrf.mxu0
        %v6386 = vadd.f32 0.0, %v6385
        %6387 = vmatprep.mubr.f32.mxu0 0.0
        %6388 = vmatmul.mubr.f32.gmra.mxu0 %v6306
        %v6389 = vpop.f32.mrf.mxu0
        %v6390 = vadd.f32 0.0, %v6389
        %v6391 = vpop.f32.mrf.mxu0
        %v6392 = vadd.f32 0.0, %v6391
        %6393 = vmatprep.mubr.f32.mxu0 0.0
        %6394 = vmatmul.mubr.f32.gmra.mxu0 %v6309
        %v6395 = vpop.f32.mrf.mxu0
        %v6396 = vadd.f32 0.0, %v6395
        %v6397 = vpop.f32.mrf.mxu0
        %v6398 = vadd.f32 0.0, %v6397
        %6399 = vdwg.mxu0
        %6400 = vmatprep.subr.mxu0 %v1903
        %6401 = vmatpush1.msra.mxu0 %v1902
        %6402 = vmatprep.subr.mxu0 %v1901
        %6403 = vmatpush1.msra.mxu0 %v1900
        %6404 = vmatprep.subr.mxu0 %v1899
        %6405 = vmatpush1.msra.mxu0 %v1898
        %6406 = vmatprep.subr.mxu0 %v1897
        %6407 = vmatpush1.msra.mxu0 %v1896
        %6408 = vmatprep.subr.mxu0 %v1895
        %6409 = vmatpush1.msra.mxu0 %v1894
        %6410 = vmatprep.subr.mxu0 %v1893
        %6411 = vmatpush1.msra.mxu0 %v1892
        %6412 = vmatprep.subr.mxu0 %v1891
        %6413 = vmatpush1.msra.mxu0 %v1890
        %6414 = vmatprep.subr.mxu0 %v1889
        %6415 = vmatpush1.msra.mxu0 %v1888
        %6416 = vmatprep.subr.mxu0 %v1887
        %6417 = vmatpush1.msra.mxu0 %v1886
        %6418 = vmatprep.subr.mxu0 %v1885
        %6419 = vmatpush1.msra.mxu0 %v1884
        %6420 = vmatprep.subr.mxu0 %v1883
        %6421 = vmatpush1.msra.mxu0 %v1882
        %6422 = vmatprep.subr.mxu0 %v1881
        %6423 = vmatpush1.msra.mxu0 %v1880
        %6424 = vmatprep.subr.mxu0 %v1879
        %6425 = vmatpush1.msra.mxu0 %v1878
        %6426 = vmatprep.subr.mxu0 %v1877
        %6427 = vmatpush1.msra.mxu0 %v1876
        %6428 = vmatprep.subr.mxu0 %v1875
        %6429 = vmatpush1.msra.mxu0 %v1874
        %6430 = vmatprep.subr.mxu0 %v1873
        %6431 = vmatpush1.msra.mxu0 %v1872
        %6432 = vmatprep.subr.mxu0 %v1935
        %6433 = vmatpush2.msra.mxu0 %v1934
        %6434 = vmatprep.subr.mxu0 %v1933
        %6435 = vmatpush2.msra.mxu0 %v1932
        %6436 = vmatprep.subr.mxu0 %v1931
        %6437 = vmatpush2.msra.mxu0 %v1930
        %6438 = vmatprep.subr.mxu0 %v1929
        %6439 = vmatpush2.msra.mxu0 %v1928
        %6440 = vmatprep.subr.mxu0 %v1927
        %6441 = vmatpush2.msra.mxu0 %v1926
        %6442 = vmatprep.subr.mxu0 %v1925
        %6443 = vmatpush2.msra.mxu0 %v1924
        %6444 = vmatprep.subr.mxu0 %v1923
        %6445 = vmatpush2.msra.mxu0 %v1922
        %6446 = vmatprep.subr.mxu0 %v1921
        %6447 = vmatpush2.msra.mxu0 %v1920
        %6448 = vmatprep.subr.mxu0 %v1919
        %6449 = vmatpush2.msra.mxu0 %v1918
        %6450 = vmatprep.subr.mxu0 %v1917
        %6451 = vmatpush2.msra.mxu0 %v1916
        %6452 = vmatprep.subr.mxu0 %v1915
        %6453 = vmatpush2.msra.mxu0 %v1914
        %6454 = vmatprep.subr.mxu0 %v1913
        %6455 = vmatpush2.msra.mxu0 %v1912
        %6456 = vmatprep.subr.mxu0 %v1911
        %6457 = vmatpush2.msra.mxu0 %v1910
        %6458 = vmatprep.subr.mxu0 %v1909
        %6459 = vmatpush2.msra.mxu0 %v1908
        %6460 = vmatprep.subr.mxu0 %v1907
        %6461 = vmatpush2.msra.mxu0 %v1906
        %6462 = vmatprep.subr.mxu0 %v1905
        %6463 = vmatpush2.msra.mxu0 %v1904
        %6464 = vmatprep.mubr.f32.mxu0 %v6380
        %6465 = vmatmul.mubr.f32.gmra.mxu0 %v6378
        %v6466 = vpop.f32.mrf.mxu0
        %v6467 = vadd.f32 0.0, %v6466
        %v6468 = vpop.f32.mrf.mxu0
        %v6469 = vadd.f32 0.0, %v6468
        %6470 = vmatprep.mubr.f32.mxu0 %v6386
        %6471 = vmatmul.mubr.f32.gmra.mxu0 %v6384
        %v6472 = vpop.f32.mrf.mxu0
        %v6473 = vadd.f32 0.0, %v6472
        %v6474 = vpop.f32.mrf.mxu0
        %v6475 = vadd.f32 0.0, %v6474
        %6476 = vmatprep.mubr.f32.mxu0 %v6392
        %6477 = vmatmul.mubr.f32.gmra.mxu0 %v6390
        %v6478 = vpop.f32.mrf.mxu0
        %v6479 = vadd.f32 0.0, %v6478
        %v6480 = vpop.f32.mrf.mxu0
        %v6481 = vadd.f32 0.0, %v6480
        %6482 = vmatprep.mubr.f32.mxu0 %v6398
        %6483 = vmatmul.mubr.f32.gmra.mxu0 %v6396
        %v6484 = vpop.f32.mrf.mxu0
        %v6485 = vadd.f32 0.0, %v6484
        %v6486 = vpop.f32.mrf.mxu0
        %v6487 = vadd.f32 0.0, %v6486
        %6488 = vdwg.mxu0
        %v6489 = vadd.f32 %v6286, %v6467
        %v6490 = vadd.f32 %v6287, %v6469
        %v6491 = vadd.f32 %v6288, %v6473
        %v6492 = vadd.f32 %v6289, %v6475
        %v6493 = vadd.f32 %v6290, %v6479
        %v6494 = vadd.f32 %v6291, %v6481
        %v6495 = vadd.f32 %v6292, %v6485
        %v6496 = vadd.f32 %v6293, %v6487
        %s6497 = scalar_lea.vmem [#allocation5], 768
        %v6498 = vld [vmem:[%s6497] sm:$0xff]
        %v6499 = vld [vmem:[%s6497 + $0x8] sm:$0xff]
        %v6500 = vld [vmem:[%s6497 + $0x10] sm:$0xff]
        %v6501 = vld [vmem:[%s6497 + $0x18] sm:$0xff]
        %v6503 = vsel %vm446, %v6498, 0
        %v6506 = vsel %vm446, %v6499, 0
        %v6509 = vsel %vm446, %v6500, 0
        %v6512 = vsel %vm446, %v6501, 0
        %6514 = vmatprep.subr.mxu0 0.0
        %6515 = vmatpush1.msra.mxu0 0.0
        %6516 = vmatprep.subr.mxu0 0.0
        %6517 = vmatpush1.msra.mxu0 0.0
        %6518 = vmatprep.subr.mxu0 0.0
        %6519 = vmatpush1.msra.mxu0 0.0
        %6520 = vmatprep.subr.mxu0 0.0
        %6521 = vmatpush1.msra.mxu0 0.0
        %6522 = vmatprep.subr.mxu0 0.0
        %6523 = vmatpush1.msra.mxu0 0.0
        %6524 = vmatprep.subr.mxu0 0.0
        %6525 = vmatpush1.msra.mxu0 0.0
        %6526 = vmatprep.subr.mxu0 0.0
        %6527 = vmatpush1.msra.mxu0 0.0
        %6528 = vmatprep.subr.mxu0 0.0
        %6529 = vmatpush1.msra.mxu0 0.0
        %6530 = vmatprep.subr.mxu0 0.0
        %6531 = vmatpush1.msra.mxu0 0.0
        %6532 = vmatprep.subr.mxu0 0.0
        %6533 = vmatpush1.msra.mxu0 0.0
        %6534 = vmatprep.subr.mxu0 0.0
        %6535 = vmatpush1.msra.mxu0 0.0
        %6536 = vmatprep.subr.mxu0 0.0
        %6537 = vmatpush1.msra.mxu0 0.0
        %6538 = vmatprep.subr.mxu0 %v5294
        %6539 = vmatpush1.msra.mxu0 %v5293
        %6540 = vmatprep.subr.mxu0 %v5292
        %6541 = vmatpush1.msra.mxu0 %v5291
        %6542 = vmatprep.subr.mxu0 %v5290
        %6543 = vmatpush1.msra.mxu0 %v5289
        %6544 = vmatprep.subr.mxu0 %v5288
        %6545 = vmatpush1.msra.mxu0 %v5287
        %6546 = vmatprep.subr.mxu0 0.0
        %6547 = vmatpush2.msra.mxu0 0.0
        %6548 = vmatprep.subr.mxu0 0.0
        %6549 = vmatpush2.msra.mxu0 0.0
        %6550 = vmatprep.subr.mxu0 0.0
        %6551 = vmatpush2.msra.mxu0 0.0
        %6552 = vmatprep.subr.mxu0 0.0
        %6553 = vmatpush2.msra.mxu0 0.0
        %6554 = vmatprep.subr.mxu0 0.0
        %6555 = vmatpush2.msra.mxu0 0.0
        %6556 = vmatprep.subr.mxu0 0.0
        %6557 = vmatpush2.msra.mxu0 0.0
        %6558 = vmatprep.subr.mxu0 0.0
        %6559 = vmatpush2.msra.mxu0 0.0
        %6560 = vmatprep.subr.mxu0 0.0
        %6561 = vmatpush2.msra.mxu0 0.0
        %6562 = vmatprep.subr.mxu0 0.0
        %6563 = vmatpush2.msra.mxu0 0.0
        %6564 = vmatprep.subr.mxu0 0.0
        %6565 = vmatpush2.msra.mxu0 0.0
        %6566 = vmatprep.subr.mxu0 0.0
        %6567 = vmatpush2.msra.mxu0 0.0
        %6568 = vmatprep.subr.mxu0 0.0
        %6569 = vmatpush2.msra.mxu0 0.0
        %6570 = vmatprep.subr.mxu0 0.0
        %6571 = vmatpush2.msra.mxu0 0.0
        %6572 = vmatprep.subr.mxu0 0.0
        %6573 = vmatpush2.msra.mxu0 0.0
        %6574 = vmatprep.subr.mxu0 0.0
        %6575 = vmatpush2.msra.mxu0 0.0
        %6576 = vmatprep.subr.mxu0 0.0
        %6577 = vmatpush2.msra.mxu0 0.0
        %6578 = vmatprep.mubr.f32.mxu0 0.0
        %6579 = vmatmul.mubr.f32.gmra.mxu0 %v6503
        %v6580 = vpop.f32.mrf.mxu0
        %v6581 = vadd.f32 0.0, %v6580
        %v6582 = vpop.f32.mrf.mxu0
        %v6583 = vadd.f32 0.0, %v6582
        %6584 = vmatprep.mubr.f32.mxu0 0.0
        %6585 = vmatmul.mubr.f32.gmra.mxu0 %v6506
        %v6586 = vpop.f32.mrf.mxu0
        %v6587 = vadd.f32 0.0, %v6586
        %v6588 = vpop.f32.mrf.mxu0
        %v6589 = vadd.f32 0.0, %v6588
        %6590 = vmatprep.mubr.f32.mxu0 0.0
        %6591 = vmatmul.mubr.f32.gmra.mxu0 %v6509
        %v6592 = vpop.f32.mrf.mxu0
        %v6593 = vadd.f32 0.0, %v6592
        %v6594 = vpop.f32.mrf.mxu0
        %v6595 = vadd.f32 0.0, %v6594
        %6596 = vmatprep.mubr.f32.mxu0 0.0
        %6597 = vmatmul.mubr.f32.gmra.mxu0 %v6512
        %v6598 = vpop.f32.mrf.mxu0
        %v6599 = vadd.f32 0.0, %v6598
        %v6600 = vpop.f32.mrf.mxu0
        %v6601 = vadd.f32 0.0, %v6600
        %6602 = vdwg.mxu0
        %6603 = vmatprep.subr.mxu0 %v2171
        %6604 = vmatpush1.msra.mxu0 %v2170
        %6605 = vmatprep.subr.mxu0 %v2169
        %6606 = vmatpush1.msra.mxu0 %v2168
        %6607 = vmatprep.subr.mxu0 %v2167
        %6608 = vmatpush1.msra.mxu0 %v2166
        %6609 = vmatprep.subr.mxu0 %v2165
        %6610 = vmatpush1.msra.mxu0 %v2164
        %6611 = vmatprep.subr.mxu0 %v2163
        %6612 = vmatpush1.msra.mxu0 %v2162
        %6613 = vmatprep.subr.mxu0 %v2161
        %6614 = vmatpush1.msra.mxu0 %v2160
        %6615 = vmatprep.subr.mxu0 %v2159
        %6616 = vmatpush1.msra.mxu0 %v2158
        %6617 = vmatprep.subr.mxu0 %v2157
        %6618 = vmatpush1.msra.mxu0 %v2156
        %6619 = vmatprep.subr.mxu0 %v2155
        %6620 = vmatpush1.msra.mxu0 %v2154
        %6621 = vmatprep.subr.mxu0 %v2153
        %6622 = vmatpush1.msra.mxu0 %v2152
        %6623 = vmatprep.subr.mxu0 %v2151
        %6624 = vmatpush1.msra.mxu0 %v2150
        %6625 = vmatprep.subr.mxu0 %v2149
        %6626 = vmatpush1.msra.mxu0 %v2148
        %6627 = vmatprep.subr.mxu0 %v2147
        %6628 = vmatpush1.msra.mxu0 %v2146
        %6629 = vmatprep.subr.mxu0 %v2145
        %6630 = vmatpush1.msra.mxu0 %v2144
        %6631 = vmatprep.subr.mxu0 %v2143
        %6632 = vmatpush1.msra.mxu0 %v2142
        %6633 = vmatprep.subr.mxu0 %v2141
        %6634 = vmatpush1.msra.mxu0 %v2140
        %6635 = vmatprep.subr.mxu0 %v2203
        %6636 = vmatpush2.msra.mxu0 %v2202
        %6637 = vmatprep.subr.mxu0 %v2201
        %6638 = vmatpush2.msra.mxu0 %v2200
        %6639 = vmatprep.subr.mxu0 %v2199
        %6640 = vmatpush2.msra.mxu0 %v2198
        %6641 = vmatprep.subr.mxu0 %v2197
        %6642 = vmatpush2.msra.mxu0 %v2196
        %6643 = vmatprep.subr.mxu0 %v2195
        %6644 = vmatpush2.msra.mxu0 %v2194
        %6645 = vmatprep.subr.mxu0 %v2193
        %6646 = vmatpush2.msra.mxu0 %v2192
        %6647 = vmatprep.subr.mxu0 %v2191
        %6648 = vmatpush2.msra.mxu0 %v2190
        %6649 = vmatprep.subr.mxu0 %v2189
        %6650 = vmatpush2.msra.mxu0 %v2188
        %6651 = vmatprep.subr.mxu0 %v2187
        %6652 = vmatpush2.msra.mxu0 %v2186
        %6653 = vmatprep.subr.mxu0 %v2185
        %6654 = vmatpush2.msra.mxu0 %v2184
        %6655 = vmatprep.subr.mxu0 %v2183
        %6656 = vmatpush2.msra.mxu0 %v2182
        %6657 = vmatprep.subr.mxu0 %v2181
        %6658 = vmatpush2.msra.mxu0 %v2180
        %6659 = vmatprep.subr.mxu0 %v2179
        %6660 = vmatpush2.msra.mxu0 %v2178
        %6661 = vmatprep.subr.mxu0 %v2177
        %6662 = vmatpush2.msra.mxu0 %v2176
        %6663 = vmatprep.subr.mxu0 %v2175
        %6664 = vmatpush2.msra.mxu0 %v2174
        %6665 = vmatprep.subr.mxu0 %v2173
        %6666 = vmatpush2.msra.mxu0 %v2172
        %6667 = vmatprep.mubr.f32.mxu0 %v6583
        %6668 = vmatmul.mubr.f32.gmra.mxu0 %v6581
        %v6669 = vpop.f32.mrf.mxu0
        %v6670 = vadd.f32 0.0, %v6669
        %v6671 = vpop.f32.mrf.mxu0
        %v6672 = vadd.f32 0.0, %v6671
        %6673 = vmatprep.mubr.f32.mxu0 %v6589
        %6674 = vmatmul.mubr.f32.gmra.mxu0 %v6587
        %v6675 = vpop.f32.mrf.mxu0
        %v6676 = vadd.f32 0.0, %v6675
        %v6677 = vpop.f32.mrf.mxu0
        %v6678 = vadd.f32 0.0, %v6677
        %6679 = vmatprep.mubr.f32.mxu0 %v6595
        %6680 = vmatmul.mubr.f32.gmra.mxu0 %v6593
        %v6681 = vpop.f32.mrf.mxu0
        %v6682 = vadd.f32 0.0, %v6681
        %v6683 = vpop.f32.mrf.mxu0
        %v6684 = vadd.f32 0.0, %v6683
        %6685 = vmatprep.mubr.f32.mxu0 %v6601
        %6686 = vmatmul.mubr.f32.gmra.mxu0 %v6599
        %v6687 = vpop.f32.mrf.mxu0
        %v6688 = vadd.f32 0.0, %v6687
        %v6689 = vpop.f32.mrf.mxu0
        %v6690 = vadd.f32 0.0, %v6689
        %6691 = vdwg.mxu0
        %v6692 = vadd.f32 %v6489, %v6670
        %v6693 = vadd.f32 %v6490, %v6672
        %v6694 = vadd.f32 %v6491, %v6676
        %v6695 = vadd.f32 %v6492, %v6678
        %v6696 = vadd.f32 %v6493, %v6682
        %v6697 = vadd.f32 %v6494, %v6684
        %v6698 = vadd.f32 %v6495, %v6688
        %v6699 = vadd.f32 %v6496, %v6690
        %s6700 = scalar_lea.vmem [#allocation5], 800
        %v6701 = vld [vmem:[%s6700] sm:$0xff]
        %v6702 = vld [vmem:[%s6700 + $0x8] sm:$0xff]
        %v6703 = vld [vmem:[%s6700 + $0x10] sm:$0xff]
        %v6704 = vld [vmem:[%s6700 + $0x18] sm:$0xff]
        %v6706 = vsel %vm446, %v6701, 0
        %v6709 = vsel %vm446, %v6702, 0
        %v6712 = vsel %vm446, %v6703, 0
        %v6715 = vsel %vm446, %v6704, 0
        %6717 = vmatprep.subr.mxu0 0.0
        %6718 = vmatpush1.msra.mxu0 0.0
        %6719 = vmatprep.subr.mxu0 0.0
        %6720 = vmatpush1.msra.mxu0 0.0
        %6721 = vmatprep.subr.mxu0 0.0
        %6722 = vmatpush1.msra.mxu0 0.0
        %6723 = vmatprep.subr.mxu0 0.0
        %6724 = vmatpush1.msra.mxu0 0.0
        %6725 = vmatprep.subr.mxu0 0.0
        %6726 = vmatpush1.msra.mxu0 0.0
        %6727 = vmatprep.subr.mxu0 0.0
        %6728 = vmatpush1.msra.mxu0 0.0
        %6729 = vmatprep.subr.mxu0 0.0
        %6730 = vmatpush1.msra.mxu0 0.0
        %6731 = vmatprep.subr.mxu0 0.0
        %6732 = vmatpush1.msra.mxu0 0.0
        %6733 = vmatprep.subr.mxu0 0.0
        %6734 = vmatpush1.msra.mxu0 0.0
        %6735 = vmatprep.subr.mxu0 0.0
        %6736 = vmatpush1.msra.mxu0 0.0
        %6737 = vmatprep.subr.mxu0 0.0
        %6738 = vmatpush1.msra.mxu0 0.0
        %6739 = vmatprep.subr.mxu0 0.0
        %6740 = vmatpush1.msra.mxu0 0.0
        %6741 = vmatprep.subr.mxu0 %v5294
        %6742 = vmatpush1.msra.mxu0 %v5293
        %6743 = vmatprep.subr.mxu0 %v5292
        %6744 = vmatpush1.msra.mxu0 %v5291
        %6745 = vmatprep.subr.mxu0 %v5290
        %6746 = vmatpush1.msra.mxu0 %v5289
        %6747 = vmatprep.subr.mxu0 %v5288
        %6748 = vmatpush1.msra.mxu0 %v5287
        %6749 = vmatprep.subr.mxu0 0.0
        %6750 = vmatpush2.msra.mxu0 0.0
        %6751 = vmatprep.subr.mxu0 0.0
        %6752 = vmatpush2.msra.mxu0 0.0
        %6753 = vmatprep.subr.mxu0 0.0
        %6754 = vmatpush2.msra.mxu0 0.0
        %6755 = vmatprep.subr.mxu0 0.0
        %6756 = vmatpush2.msra.mxu0 0.0
        %6757 = vmatprep.subr.mxu0 0.0
        %6758 = vmatpush2.msra.mxu0 0.0
        %6759 = vmatprep.subr.mxu0 0.0
        %6760 = vmatpush2.msra.mxu0 0.0
        %6761 = vmatprep.subr.mxu0 0.0
        %6762 = vmatpush2.msra.mxu0 0.0
        %6763 = vmatprep.subr.mxu0 0.0
        %6764 = vmatpush2.msra.mxu0 0.0
        %6765 = vmatprep.subr.mxu0 0.0
        %6766 = vmatpush2.msra.mxu0 0.0
        %6767 = vmatprep.subr.mxu0 0.0
        %6768 = vmatpush2.msra.mxu0 0.0
        %6769 = vmatprep.subr.mxu0 0.0
        %6770 = vmatpush2.msra.mxu0 0.0
        %6771 = vmatprep.subr.mxu0 0.0
        %6772 = vmatpush2.msra.mxu0 0.0
        %6773 = vmatprep.subr.mxu0 0.0
        %6774 = vmatpush2.msra.mxu0 0.0
        %6775 = vmatprep.subr.mxu0 0.0
        %6776 = vmatpush2.msra.mxu0 0.0
        %6777 = vmatprep.subr.mxu0 0.0
        %6778 = vmatpush2.msra.mxu0 0.0
        %6779 = vmatprep.subr.mxu0 0.0
        %6780 = vmatpush2.msra.mxu0 0.0
        %6781 = vmatprep.mubr.f32.mxu0 0.0
        %6782 = vmatmul.mubr.f32.gmra.mxu0 %v6706
        %v6783 = vpop.f32.mrf.mxu0
        %v6784 = vadd.f32 0.0, %v6783
        %v6785 = vpop.f32.mrf.mxu0
        %v6786 = vadd.f32 0.0, %v6785
        %6787 = vmatprep.mubr.f32.mxu0 0.0
        %6788 = vmatmul.mubr.f32.gmra.mxu0 %v6709
        %v6789 = vpop.f32.mrf.mxu0
        %v6790 = vadd.f32 0.0, %v6789
        %v6791 = vpop.f32.mrf.mxu0
        %v6792 = vadd.f32 0.0, %v6791
        %6793 = vmatprep.mubr.f32.mxu0 0.0
        %6794 = vmatmul.mubr.f32.gmra.mxu0 %v6712
        %v6795 = vpop.f32.mrf.mxu0
        %v6796 = vadd.f32 0.0, %v6795
        %v6797 = vpop.f32.mrf.mxu0
        %v6798 = vadd.f32 0.0, %v6797
        %6799 = vmatprep.mubr.f32.mxu0 0.0
        %6800 = vmatmul.mubr.f32.gmra.mxu0 %v6715
        %v6801 = vpop.f32.mrf.mxu0
        %v6802 = vadd.f32 0.0, %v6801
        %v6803 = vpop.f32.mrf.mxu0
        %v6804 = vadd.f32 0.0, %v6803
        %6805 = vdwg.mxu0
        %6806 = vmatprep.subr.mxu0 %v2439
        %6807 = vmatpush1.msra.mxu0 %v2438
        %6808 = vmatprep.subr.mxu0 %v2437
        %6809 = vmatpush1.msra.mxu0 %v2436
        %6810 = vmatprep.subr.mxu0 %v2435
        %6811 = vmatpush1.msra.mxu0 %v2434
        %6812 = vmatprep.subr.mxu0 %v2433
        %6813 = vmatpush1.msra.mxu0 %v2432
        %6814 = vmatprep.subr.mxu0 %v2431
        %6815 = vmatpush1.msra.mxu0 %v2430
        %6816 = vmatprep.subr.mxu0 %v2429
        %6817 = vmatpush1.msra.mxu0 %v2428
        %6818 = vmatprep.subr.mxu0 %v2427
        %6819 = vmatpush1.msra.mxu0 %v2426
        %6820 = vmatprep.subr.mxu0 %v2425
        %6821 = vmatpush1.msra.mxu0 %v2424
        %6822 = vmatprep.subr.mxu0 %v2423
        %6823 = vmatpush1.msra.mxu0 %v2422
        %6824 = vmatprep.subr.mxu0 %v2421
        %6825 = vmatpush1.msra.mxu0 %v2420
        %6826 = vmatprep.subr.mxu0 %v2419
        %6827 = vmatpush1.msra.mxu0 %v2418
        %6828 = vmatprep.subr.mxu0 %v2417
        %6829 = vmatpush1.msra.mxu0 %v2416
        %6830 = vmatprep.subr.mxu0 %v2415
        %6831 = vmatpush1.msra.mxu0 %v2414
        %6832 = vmatprep.subr.mxu0 %v2413
        %6833 = vmatpush1.msra.mxu0 %v2412
        %6834 = vmatprep.subr.mxu0 %v2411
        %6835 = vmatpush1.msra.mxu0 %v2410
        %6836 = vmatprep.subr.mxu0 %v2409
        %6837 = vmatpush1.msra.mxu0 %v2408
        %6838 = vmatprep.subr.mxu0 %v2471
        %6839 = vmatpush2.msra.mxu0 %v2470
        %6840 = vmatprep.subr.mxu0 %v2469
        %6841 = vmatpush2.msra.mxu0 %v2468
        %6842 = vmatprep.subr.mxu0 %v2467
        %6843 = vmatpush2.msra.mxu0 %v2466
        %6844 = vmatprep.subr.mxu0 %v2465
        %6845 = vmatpush2.msra.mxu0 %v2464
        %6846 = vmatprep.subr.mxu0 %v2463
        %6847 = vmatpush2.msra.mxu0 %v2462
        %6848 = vmatprep.subr.mxu0 %v2461
        %6849 = vmatpush2.msra.mxu0 %v2460
        %6850 = vmatprep.subr.mxu0 %v2459
        %6851 = vmatpush2.msra.mxu0 %v2458
        %6852 = vmatprep.subr.mxu0 %v2457
        %6853 = vmatpush2.msra.mxu0 %v2456
        %6854 = vmatprep.subr.mxu0 %v2455
        %6855 = vmatpush2.msra.mxu0 %v2454
        %6856 = vmatprep.subr.mxu0 %v2453
        %6857 = vmatpush2.msra.mxu0 %v2452
        %6858 = vmatprep.subr.mxu0 %v2451
        %6859 = vmatpush2.msra.mxu0 %v2450
        %6860 = vmatprep.subr.mxu0 %v2449
        %6861 = vmatpush2.msra.mxu0 %v2448
        %6862 = vmatprep.subr.mxu0 %v2447
        %6863 = vmatpush2.msra.mxu0 %v2446
        %6864 = vmatprep.subr.mxu0 %v2445
        %6865 = vmatpush2.msra.mxu0 %v2444
        %6866 = vmatprep.subr.mxu0 %v2443
        %6867 = vmatpush2.msra.mxu0 %v2442
        %6868 = vmatprep.subr.mxu0 %v2441
        %6869 = vmatpush2.msra.mxu0 %v2440
        %6870 = vmatprep.mubr.f32.mxu0 %v6786
        %6871 = vmatmul.mubr.f32.gmra.mxu0 %v6784
        %v6872 = vpop.f32.mrf.mxu0
        %v6873 = vadd.f32 0.0, %v6872
        %v6874 = vpop.f32.mrf.mxu0
        %v6875 = vadd.f32 0.0, %v6874
        %6876 = vmatprep.mubr.f32.mxu0 %v6792
        %6877 = vmatmul.mubr.f32.gmra.mxu0 %v6790
        %v6878 = vpop.f32.mrf.mxu0
        %v6879 = vadd.f32 0.0, %v6878
        %v6880 = vpop.f32.mrf.mxu0
        %v6881 = vadd.f32 0.0, %v6880
        %6882 = vmatprep.mubr.f32.mxu0 %v6798
        %6883 = vmatmul.mubr.f32.gmra.mxu0 %v6796
        %v6884 = vpop.f32.mrf.mxu0
        %v6885 = vadd.f32 0.0, %v6884
        %v6886 = vpop.f32.mrf.mxu0
        %v6887 = vadd.f32 0.0, %v6886
        %6888 = vmatprep.mubr.f32.mxu0 %v6804
        %6889 = vmatmul.mubr.f32.gmra.mxu0 %v6802
        %v6890 = vpop.f32.mrf.mxu0
        %v6891 = vadd.f32 0.0, %v6890
        %v6892 = vpop.f32.mrf.mxu0
        %v6893 = vadd.f32 0.0, %v6892
        %6894 = vdwg.mxu0
        %v6895 = vadd.f32 %v6692, %v6873
        %v6896 = vadd.f32 %v6693, %v6875
        %v6897 = vadd.f32 %v6694, %v6879
        %v6898 = vadd.f32 %v6695, %v6881
        %v6899 = vadd.f32 %v6696, %v6885
        %v6900 = vadd.f32 %v6697, %v6887
        %v6901 = vadd.f32 %v6698, %v6891
        %v6902 = vadd.f32 %v6699, %v6893
        %s6903 = scalar_lea.vmem [#allocation5], 832
        %v6904 = vld [vmem:[%s6903] sm:$0xff]
        %v6905 = vld [vmem:[%s6903 + $0x8] sm:$0xff]
        %v6906 = vld [vmem:[%s6903 + $0x10] sm:$0xff]
        %v6907 = vld [vmem:[%s6903 + $0x18] sm:$0xff]
        %v6909 = vsel %vm446, %v6904, 0
        %v6912 = vsel %vm446, %v6905, 0
        %v6915 = vsel %vm446, %v6906, 0
        %v6918 = vsel %vm446, %v6907, 0
        %6920 = vmatprep.subr.mxu0 0.0
        %6921 = vmatpush1.msra.mxu0 0.0
        %6922 = vmatprep.subr.mxu0 0.0
        %6923 = vmatpush1.msra.mxu0 0.0
        %6924 = vmatprep.subr.mxu0 0.0
        %6925 = vmatpush1.msra.mxu0 0.0
        %6926 = vmatprep.subr.mxu0 0.0
        %6927 = vmatpush1.msra.mxu0 0.0
        %6928 = vmatprep.subr.mxu0 0.0
        %6929 = vmatpush1.msra.mxu0 0.0
        %6930 = vmatprep.subr.mxu0 0.0
        %6931 = vmatpush1.msra.mxu0 0.0
        %6932 = vmatprep.subr.mxu0 0.0
        %6933 = vmatpush1.msra.mxu0 0.0
        %6934 = vmatprep.subr.mxu0 0.0
        %6935 = vmatpush1.msra.mxu0 0.0
        %6936 = vmatprep.subr.mxu0 0.0
        %6937 = vmatpush1.msra.mxu0 0.0
        %6938 = vmatprep.subr.mxu0 0.0
        %6939 = vmatpush1.msra.mxu0 0.0
        %6940 = vmatprep.subr.mxu0 0.0
        %6941 = vmatpush1.msra.mxu0 0.0
        %6942 = vmatprep.subr.mxu0 0.0
        %6943 = vmatpush1.msra.mxu0 0.0
        %6944 = vmatprep.subr.mxu0 %v5294
        %6945 = vmatpush1.msra.mxu0 %v5293
        %6946 = vmatprep.subr.mxu0 %v5292
        %6947 = vmatpush1.msra.mxu0 %v5291
        %6948 = vmatprep.subr.mxu0 %v5290
        %6949 = vmatpush1.msra.mxu0 %v5289
        %6950 = vmatprep.subr.mxu0 %v5288
        %6951 = vmatpush1.msra.mxu0 %v5287
        %6952 = vmatprep.subr.mxu0 0.0
        %6953 = vmatpush2.msra.mxu0 0.0
        %6954 = vmatprep.subr.mxu0 0.0
        %6955 = vmatpush2.msra.mxu0 0.0
        %6956 = vmatprep.subr.mxu0 0.0
        %6957 = vmatpush2.msra.mxu0 0.0
        %6958 = vmatprep.subr.mxu0 0.0
        %6959 = vmatpush2.msra.mxu0 0.0
        %6960 = vmatprep.subr.mxu0 0.0
        %6961 = vmatpush2.msra.mxu0 0.0
        %6962 = vmatprep.subr.mxu0 0.0
        %6963 = vmatpush2.msra.mxu0 0.0
        %6964 = vmatprep.subr.mxu0 0.0
        %6965 = vmatpush2.msra.mxu0 0.0
        %6966 = vmatprep.subr.mxu0 0.0
        %6967 = vmatpush2.msra.mxu0 0.0
        %6968 = vmatprep.subr.mxu0 0.0
        %6969 = vmatpush2.msra.mxu0 0.0
        %6970 = vmatprep.subr.mxu0 0.0
        %6971 = vmatpush2.msra.mxu0 0.0
        %6972 = vmatprep.subr.mxu0 0.0
        %6973 = vmatpush2.msra.mxu0 0.0
        %6974 = vmatprep.subr.mxu0 0.0
        %6975 = vmatpush2.msra.mxu0 0.0
        %6976 = vmatprep.subr.mxu0 0.0
        %6977 = vmatpush2.msra.mxu0 0.0
        %6978 = vmatprep.subr.mxu0 0.0
        %6979 = vmatpush2.msra.mxu0 0.0
        %6980 = vmatprep.subr.mxu0 0.0
        %6981 = vmatpush2.msra.mxu0 0.0
        %6982 = vmatprep.subr.mxu0 0.0
        %6983 = vmatpush2.msra.mxu0 0.0
        %6984 = vmatprep.mubr.f32.mxu0 0.0
        %6985 = vmatmul.mubr.f32.gmra.mxu0 %v6909
        %v6986 = vpop.f32.mrf.mxu0
        %v6987 = vadd.f32 0.0, %v6986
        %v6988 = vpop.f32.mrf.mxu0
        %v6989 = vadd.f32 0.0, %v6988
        %6990 = vmatprep.mubr.f32.mxu0 0.0
        %6991 = vmatmul.mubr.f32.gmra.mxu0 %v6912
        %v6992 = vpop.f32.mrf.mxu0
        %v6993 = vadd.f32 0.0, %v6992
        %v6994 = vpop.f32.mrf.mxu0
        %v6995 = vadd.f32 0.0, %v6994
        %6996 = vmatprep.mubr.f32.mxu0 0.0
        %6997 = vmatmul.mubr.f32.gmra.mxu0 %v6915
        %v6998 = vpop.f32.mrf.mxu0
        %v6999 = vadd.f32 0.0, %v6998
        %v7000 = vpop.f32.mrf.mxu0
        %v7001 = vadd.f32 0.0, %v7000
        %7002 = vmatprep.mubr.f32.mxu0 0.0
        %7003 = vmatmul.mubr.f32.gmra.mxu0 %v6918
        %v7004 = vpop.f32.mrf.mxu0
        %v7005 = vadd.f32 0.0, %v7004
        %v7006 = vpop.f32.mrf.mxu0
        %v7007 = vadd.f32 0.0, %v7006
        %7008 = vdwg.mxu0
        %7009 = vmatprep.subr.mxu0 %v2707
        %7010 = vmatpush1.msra.mxu0 %v2706
        %7011 = vmatprep.subr.mxu0 %v2705
        %7012 = vmatpush1.msra.mxu0 %v2704
        %7013 = vmatprep.subr.mxu0 %v2703
        %7014 = vmatpush1.msra.mxu0 %v2702
        %7015 = vmatprep.subr.mxu0 %v2701
        %7016 = vmatpush1.msra.mxu0 %v2700
        %7017 = vmatprep.subr.mxu0 %v2699
        %7018 = vmatpush1.msra.mxu0 %v2698
        %7019 = vmatprep.subr.mxu0 %v2697
        %7020 = vmatpush1.msra.mxu0 %v2696
        %7021 = vmatprep.subr.mxu0 %v2695
        %7022 = vmatpush1.msra.mxu0 %v2694
        %7023 = vmatprep.subr.mxu0 %v2693
        %7024 = vmatpush1.msra.mxu0 %v2692
        %7025 = vmatprep.subr.mxu0 %v2691
        %7026 = vmatpush1.msra.mxu0 %v2690
        %7027 = vmatprep.subr.mxu0 %v2689
        %7028 = vmatpush1.msra.mxu0 %v2688
        %7029 = vmatprep.subr.mxu0 %v2687
        %7030 = vmatpush1.msra.mxu0 %v2686
        %7031 = vmatprep.subr.mxu0 %v2685
        %7032 = vmatpush1.msra.mxu0 %v2684
        %7033 = vmatprep.subr.mxu0 %v2683
        %7034 = vmatpush1.msra.mxu0 %v2682
        %7035 = vmatprep.subr.mxu0 %v2681
        %7036 = vmatpush1.msra.mxu0 %v2680
        %7037 = vmatprep.subr.mxu0 %v2679
        %7038 = vmatpush1.msra.mxu0 %v2678
        %7039 = vmatprep.subr.mxu0 %v2677
        %7040 = vmatpush1.msra.mxu0 %v2676
        %7041 = vmatprep.subr.mxu0 %v2739
        %7042 = vmatpush2.msra.mxu0 %v2738
        %7043 = vmatprep.subr.mxu0 %v2737
        %7044 = vmatpush2.msra.mxu0 %v2736
        %7045 = vmatprep.subr.mxu0 %v2735
        %7046 = vmatpush2.msra.mxu0 %v2734
        %7047 = vmatprep.subr.mxu0 %v2733
        %7048 = vmatpush2.msra.mxu0 %v2732
        %7049 = vmatprep.subr.mxu0 %v2731
        %7050 = vmatpush2.msra.mxu0 %v2730
        %7051 = vmatprep.subr.mxu0 %v2729
        %7052 = vmatpush2.msra.mxu0 %v2728
        %7053 = vmatprep.subr.mxu0 %v2727
        %7054 = vmatpush2.msra.mxu0 %v2726
        %7055 = vmatprep.subr.mxu0 %v2725
        %7056 = vmatpush2.msra.mxu0 %v2724
        %7057 = vmatprep.subr.mxu0 %v2723
        %7058 = vmatpush2.msra.mxu0 %v2722
        %7059 = vmatprep.subr.mxu0 %v2721
        %7060 = vmatpush2.msra.mxu0 %v2720
        %7061 = vmatprep.subr.mxu0 %v2719
        %7062 = vmatpush2.msra.mxu0 %v2718
        %7063 = vmatprep.subr.mxu0 %v2717
        %7064 = vmatpush2.msra.mxu0 %v2716
        %7065 = vmatprep.subr.mxu0 %v2715
        %7066 = vmatpush2.msra.mxu0 %v2714
        %7067 = vmatprep.subr.mxu0 %v2713
        %7068 = vmatpush2.msra.mxu0 %v2712
        %7069 = vmatprep.subr.mxu0 %v2711
        %7070 = vmatpush2.msra.mxu0 %v2710
        %7071 = vmatprep.subr.mxu0 %v2709
        %7072 = vmatpush2.msra.mxu0 %v2708
        %7073 = vmatprep.mubr.f32.mxu0 %v6989
        %7074 = vmatmul.mubr.f32.gmra.mxu0 %v6987
        %v7075 = vpop.f32.mrf.mxu0
        %v7076 = vadd.f32 0.0, %v7075
        %v7077 = vpop.f32.mrf.mxu0
        %v7078 = vadd.f32 0.0, %v7077
        %7079 = vmatprep.mubr.f32.mxu0 %v6995
        %7080 = vmatmul.mubr.f32.gmra.mxu0 %v6993
        %v7081 = vpop.f32.mrf.mxu0
        %v7082 = vadd.f32 0.0, %v7081
        %v7083 = vpop.f32.mrf.mxu0
        %v7084 = vadd.f32 0.0, %v7083
        %7085 = vmatprep.mubr.f32.mxu0 %v7001
        %7086 = vmatmul.mubr.f32.gmra.mxu0 %v6999
        %v7087 = vpop.f32.mrf.mxu0
        %v7088 = vadd.f32 0.0, %v7087
        %v7089 = vpop.f32.mrf.mxu0
        %v7090 = vadd.f32 0.0, %v7089
        %7091 = vmatprep.mubr.f32.mxu0 %v7007
        %7092 = vmatmul.mubr.f32.gmra.mxu0 %v7005
        %v7093 = vpop.f32.mrf.mxu0
        %v7094 = vadd.f32 0.0, %v7093
        %v7095 = vpop.f32.mrf.mxu0
        %v7096 = vadd.f32 0.0, %v7095
        %7097 = vdwg.mxu0
        %v7098 = vadd.f32 %v6895, %v7076
        %v7099 = vadd.f32 %v6896, %v7078
        %v7100 = vadd.f32 %v6897, %v7082
        %v7101 = vadd.f32 %v6898, %v7084
        %v7102 = vadd.f32 %v6899, %v7088
        %v7103 = vadd.f32 %v6900, %v7090
        %v7104 = vadd.f32 %v6901, %v7094
        %v7105 = vadd.f32 %v6902, %v7096
        %s7106 = scalar_lea.vmem %s2, 64
        %v7107 = vld [vmem:[%s7106] sm:$0xff]
        %v7108 = vld [vmem:[%s7106 + $0x8] sm:$0xff]
        %v7109 = vld [vmem:[%s7106 + $0x10] sm:$0xff]
        %v7110 = vld [vmem:[%s7106 + $0x18] sm:$0xff]
        %7112 = vset.pattern.permute.xlu0 0
        %7113 = vperm.xlu0 %7112, %v7107
        %v7114 = vpop.permute.xlu0 %7113
        %7117 = vset.pattern.permute.xlu0 0
        %7118 = vperm.xlu0 %7117, %v7108
        %v7119 = vpop.permute.xlu0 %7118
        %7122 = vset.pattern.permute.xlu0 0
        %7123 = vperm.xlu0 %7122, %v7109
        %v7124 = vpop.permute.xlu0 %7123
        %7127 = vset.pattern.permute.xlu0 0
        %7128 = vperm.xlu0 %7127, %v7110
        %v7129 = vpop.permute.xlu0 %7128
        %v7131 = vadd.f32 %v7098, %v7114
        %v7132 = vadd.f32 %v7099, %v7114
        %v7133 = vadd.f32 %v7100, %v7119
        %v7134 = vadd.f32 %v7101, %v7119
        %v7135 = vadd.f32 %v7102, %v7124
        %v7136 = vadd.f32 %v7103, %v7124
        %v7137 = vadd.f32 %v7104, %v7129
        %v7138 = vadd.f32 %v7105, %v7129
        %v7139 = vmax.f32 %v7131, 0.0
        %v7140 = vmax.f32 %v7132, 0.0
        %v7141 = vmax.f32 %v7133, 0.0
        %v7142 = vmax.f32 %v7134, 0.0
        %v7143 = vmax.f32 %v7135, 0.0
        %v7144 = vmax.f32 %v7136, 0.0
        %v7145 = vmax.f32 %v7137, 0.0
        %v7146 = vmax.f32 %v7138, 0.0
        %s7147 = scalar_lea.vmem [#allocation5], 864
        %v7148 = vld [vmem:[%s7147] sm:$0xff]
        %v7149 = vld [vmem:[%s7147 + $0x8] sm:$0xff]
        %v7150 = vld [vmem:[%s7147 + $0x10] sm:$0xff]
        %v7151 = vld [vmem:[%s7147 + $0x18] sm:$0xff]
        %v7153 = vsel %vm446, %v7148, 0
        %v7156 = vsel %vm446, %v7149, 0
        %v7159 = vsel %vm446, %v7150, 0
        %v7162 = vsel %vm446, %v7151, 0
        %7164 = vmatprep.subr.mxu0 0.0
        %7165 = vmatpush1.msra.mxu0 0.0
        %7166 = vmatprep.subr.mxu0 0.0
        %7167 = vmatpush1.msra.mxu0 0.0
        %7168 = vmatprep.subr.mxu0 0.0
        %7169 = vmatpush1.msra.mxu0 0.0
        %7170 = vmatprep.subr.mxu0 0.0
        %7171 = vmatpush1.msra.mxu0 0.0
        %7172 = vmatprep.subr.mxu0 0.0
        %7173 = vmatpush1.msra.mxu0 0.0
        %7174 = vmatprep.subr.mxu0 0.0
        %7175 = vmatpush1.msra.mxu0 0.0
        %7176 = vmatprep.subr.mxu0 0.0
        %7177 = vmatpush1.msra.mxu0 0.0
        %7178 = vmatprep.subr.mxu0 0.0
        %7179 = vmatpush1.msra.mxu0 0.0
        %7180 = vmatprep.subr.mxu0 0.0
        %7181 = vmatpush1.msra.mxu0 0.0
        %7182 = vmatprep.subr.mxu0 0.0
        %7183 = vmatpush1.msra.mxu0 0.0
        %7184 = vmatprep.subr.mxu0 0.0
        %7185 = vmatpush1.msra.mxu0 0.0
        %7186 = vmatprep.subr.mxu0 0.0
        %7187 = vmatpush1.msra.mxu0 0.0
        %7188 = vmatprep.subr.mxu0 %v7146
        %7189 = vmatpush1.msra.mxu0 %v7145
        %7190 = vmatprep.subr.mxu0 %v7144
        %7191 = vmatpush1.msra.mxu0 %v7143
        %7192 = vmatprep.subr.mxu0 %v7142
        %7193 = vmatpush1.msra.mxu0 %v7141
        %7194 = vmatprep.subr.mxu0 %v7140
        %7195 = vmatpush1.msra.mxu0 %v7139
        %7196 = vmatprep.subr.mxu0 0.0
        %7197 = vmatpush2.msra.mxu0 0.0
        %7198 = vmatprep.subr.mxu0 0.0
        %7199 = vmatpush2.msra.mxu0 0.0
        %7200 = vmatprep.subr.mxu0 0.0
        %7201 = vmatpush2.msra.mxu0 0.0
        %7202 = vmatprep.subr.mxu0 0.0
        %7203 = vmatpush2.msra.mxu0 0.0
        %7204 = vmatprep.subr.mxu0 0.0
        %7205 = vmatpush2.msra.mxu0 0.0
        %7206 = vmatprep.subr.mxu0 0.0
        %7207 = vmatpush2.msra.mxu0 0.0
        %7208 = vmatprep.subr.mxu0 0.0
        %7209 = vmatpush2.msra.mxu0 0.0
        %7210 = vmatprep.subr.mxu0 0.0
        %7211 = vmatpush2.msra.mxu0 0.0
        %7212 = vmatprep.subr.mxu0 0.0
        %7213 = vmatpush2.msra.mxu0 0.0
        %7214 = vmatprep.subr.mxu0 0.0
        %7215 = vmatpush2.msra.mxu0 0.0
        %7216 = vmatprep.subr.mxu0 0.0
        %7217 = vmatpush2.msra.mxu0 0.0
        %7218 = vmatprep.subr.mxu0 0.0
        %7219 = vmatpush2.msra.mxu0 0.0
        %7220 = vmatprep.subr.mxu0 0.0
        %7221 = vmatpush2.msra.mxu0 0.0
        %7222 = vmatprep.subr.mxu0 0.0
        %7223 = vmatpush2.msra.mxu0 0.0
        %7224 = vmatprep.subr.mxu0 0.0
        %7225 = vmatpush2.msra.mxu0 0.0
        %7226 = vmatprep.subr.mxu0 0.0
        %7227 = vmatpush2.msra.mxu0 0.0
        %7228 = vmatprep.mubr.f32.mxu0 0.0
        %7229 = vmatmul.mubr.f32.gmra.mxu0 %v7153
        %v7230 = vpop.f32.mrf.mxu0
        %v7231 = vadd.f32 0.0, %v7230
        %v7232 = vpop.f32.mrf.mxu0
        %v7233 = vadd.f32 0.0, %v7232
        %7234 = vmatprep.mubr.f32.mxu0 0.0
        %7235 = vmatmul.mubr.f32.gmra.mxu0 %v7156
        %v7236 = vpop.f32.mrf.mxu0
        %v7237 = vadd.f32 0.0, %v7236
        %v7238 = vpop.f32.mrf.mxu0
        %v7239 = vadd.f32 0.0, %v7238
        %7240 = vmatprep.mubr.f32.mxu0 0.0
        %7241 = vmatmul.mubr.f32.gmra.mxu0 %v7159
        %v7242 = vpop.f32.mrf.mxu0
        %v7243 = vadd.f32 0.0, %v7242
        %v7244 = vpop.f32.mrf.mxu0
        %v7245 = vadd.f32 0.0, %v7244
        %7246 = vmatprep.mubr.f32.mxu0 0.0
        %7247 = vmatmul.mubr.f32.gmra.mxu0 %v7162
        %v7248 = vpop.f32.mrf.mxu0
        %v7249 = vadd.f32 0.0, %v7248
        %v7250 = vpop.f32.mrf.mxu0
        %v7251 = vadd.f32 0.0, %v7250
        %7252 = vdwg.mxu0
        %s7253 = scalar_lea.vmem [#allocation5], 896
        %v7254 = vld [vmem:[%s7253] sm:$0xff]
        %v7255 = vld [vmem:[%s7253 + $0x8] sm:$0xff]
        %v7256 = vld [vmem:[%s7253 + $0x10] sm:$0xff]
        %v7257 = vld [vmem:[%s7253 + $0x18] sm:$0xff]
        %v7259 = vsel %vm446, %v7254, 0
        %v7262 = vsel %vm446, %v7255, 0
        %v7265 = vsel %vm446, %v7256, 0
        %v7268 = vsel %vm446, %v7257, 0
        %7270 = vmatprep.subr.mxu0 0.0
        %7271 = vmatpush1.msra.mxu0 0.0
        %7272 = vmatprep.subr.mxu0 0.0
        %7273 = vmatpush1.msra.mxu0 0.0
        %7274 = vmatprep.subr.mxu0 0.0
        %7275 = vmatpush1.msra.mxu0 0.0
        %7276 = vmatprep.subr.mxu0 0.0
        %7277 = vmatpush1.msra.mxu0 0.0
        %7278 = vmatprep.subr.mxu0 0.0
        %7279 = vmatpush1.msra.mxu0 0.0
        %7280 = vmatprep.subr.mxu0 0.0
        %7281 = vmatpush1.msra.mxu0 0.0
        %7282 = vmatprep.subr.mxu0 0.0
        %7283 = vmatpush1.msra.mxu0 0.0
        %7284 = vmatprep.subr.mxu0 0.0
        %7285 = vmatpush1.msra.mxu0 0.0
        %7286 = vmatprep.subr.mxu0 0.0
        %7287 = vmatpush1.msra.mxu0 0.0
        %7288 = vmatprep.subr.mxu0 0.0
        %7289 = vmatpush1.msra.mxu0 0.0
        %7290 = vmatprep.subr.mxu0 0.0
        %7291 = vmatpush1.msra.mxu0 0.0
        %7292 = vmatprep.subr.mxu0 0.0
        %7293 = vmatpush1.msra.mxu0 0.0
        %7294 = vmatprep.subr.mxu0 %v7146
        %7295 = vmatpush1.msra.mxu0 %v7145
        %7296 = vmatprep.subr.mxu0 %v7144
        %7297 = vmatpush1.msra.mxu0 %v7143
        %7298 = vmatprep.subr.mxu0 %v7142
        %7299 = vmatpush1.msra.mxu0 %v7141
        %7300 = vmatprep.subr.mxu0 %v7140
        %7301 = vmatpush1.msra.mxu0 %v7139
        %7302 = vmatprep.subr.mxu0 0.0
        %7303 = vmatpush2.msra.mxu0 0.0
        %7304 = vmatprep.subr.mxu0 0.0
        %7305 = vmatpush2.msra.mxu0 0.0
        %7306 = vmatprep.subr.mxu0 0.0
        %7307 = vmatpush2.msra.mxu0 0.0
        %7308 = vmatprep.subr.mxu0 0.0
        %7309 = vmatpush2.msra.mxu0 0.0
        %7310 = vmatprep.subr.mxu0 0.0
        %7311 = vmatpush2.msra.mxu0 0.0
        %7312 = vmatprep.subr.mxu0 0.0
        %7313 = vmatpush2.msra.mxu0 0.0
        %7314 = vmatprep.subr.mxu0 0.0
        %7315 = vmatpush2.msra.mxu0 0.0
        %7316 = vmatprep.subr.mxu0 0.0
        %7317 = vmatpush2.msra.mxu0 0.0
        %7318 = vmatprep.subr.mxu0 0.0
        %7319 = vmatpush2.msra.mxu0 0.0
        %7320 = vmatprep.subr.mxu0 0.0
        %7321 = vmatpush2.msra.mxu0 0.0
        %7322 = vmatprep.subr.mxu0 0.0
        %7323 = vmatpush2.msra.mxu0 0.0
        %7324 = vmatprep.subr.mxu0 0.0
        %7325 = vmatpush2.msra.mxu0 0.0
        %7326 = vmatprep.subr.mxu0 0.0
        %7327 = vmatpush2.msra.mxu0 0.0
        %7328 = vmatprep.subr.mxu0 0.0
        %7329 = vmatpush2.msra.mxu0 0.0
        %7330 = vmatprep.subr.mxu0 0.0
        %7331 = vmatpush2.msra.mxu0 0.0
        %7332 = vmatprep.subr.mxu0 0.0
        %7333 = vmatpush2.msra.mxu0 0.0
        %7334 = vmatprep.mubr.f32.mxu0 0.0
        %7335 = vmatmul.mubr.f32.gmra.mxu0 %v7259
        %v7336 = vpop.f32.mrf.mxu0
        %v7337 = vadd.f32 0.0, %v7336
        %v7338 = vpop.f32.mrf.mxu0
        %v7339 = vadd.f32 0.0, %v7338
        %7340 = vmatprep.mubr.f32.mxu0 0.0
        %7341 = vmatmul.mubr.f32.gmra.mxu0 %v7262
        %v7342 = vpop.f32.mrf.mxu0
        %v7343 = vadd.f32 0.0, %v7342
        %v7344 = vpop.f32.mrf.mxu0
        %v7345 = vadd.f32 0.0, %v7344
        %7346 = vmatprep.mubr.f32.mxu0 0.0
        %7347 = vmatmul.mubr.f32.gmra.mxu0 %v7265
        %v7348 = vpop.f32.mrf.mxu0
        %v7349 = vadd.f32 0.0, %v7348
        %v7350 = vpop.f32.mrf.mxu0
        %v7351 = vadd.f32 0.0, %v7350
        %7352 = vmatprep.mubr.f32.mxu0 0.0
        %7353 = vmatmul.mubr.f32.gmra.mxu0 %v7268
        %v7354 = vpop.f32.mrf.mxu0
        %v7355 = vadd.f32 0.0, %v7354
        %v7356 = vpop.f32.mrf.mxu0
        %v7357 = vadd.f32 0.0, %v7356
        %7358 = vdwg.mxu0
        %7359 = vmatprep.subr.mxu0 %v750
        %7360 = vmatpush1.msra.mxu0 %v749
        %7361 = vmatprep.subr.mxu0 %v748
        %7362 = vmatpush1.msra.mxu0 %v747
        %7363 = vmatprep.subr.mxu0 %v746
        %7364 = vmatpush1.msra.mxu0 %v745
        %7365 = vmatprep.subr.mxu0 %v744
        %7366 = vmatpush1.msra.mxu0 %v743
        %7367 = vmatprep.subr.mxu0 %v742
        %7368 = vmatpush1.msra.mxu0 %v741
        %7369 = vmatprep.subr.mxu0 %v740
        %7370 = vmatpush1.msra.mxu0 %v739
        %7371 = vmatprep.subr.mxu0 %v738
        %7372 = vmatpush1.msra.mxu0 %v737
        %7373 = vmatprep.subr.mxu0 %v736
        %7374 = vmatpush1.msra.mxu0 %v735
        %7375 = vmatprep.subr.mxu0 %v734
        %7376 = vmatpush1.msra.mxu0 %v733
        %7377 = vmatprep.subr.mxu0 %v732
        %7378 = vmatpush1.msra.mxu0 %v731
        %7379 = vmatprep.subr.mxu0 %v730
        %7380 = vmatpush1.msra.mxu0 %v729
        %7381 = vmatprep.subr.mxu0 %v728
        %7382 = vmatpush1.msra.mxu0 %v727
        %7383 = vmatprep.subr.mxu0 %v726
        %7384 = vmatpush1.msra.mxu0 %v725
        %7385 = vmatprep.subr.mxu0 %v724
        %7386 = vmatpush1.msra.mxu0 %v723
        %7387 = vmatprep.subr.mxu0 %v722
        %7388 = vmatpush1.msra.mxu0 %v721
        %7389 = vmatprep.subr.mxu0 %v720
        %7390 = vmatpush1.msra.mxu0 %v719
        %7391 = vmatprep.subr.mxu0 %v782
        %7392 = vmatpush2.msra.mxu0 %v781
        %7393 = vmatprep.subr.mxu0 %v780
        %7394 = vmatpush2.msra.mxu0 %v779
        %7395 = vmatprep.subr.mxu0 %v778
        %7396 = vmatpush2.msra.mxu0 %v777
        %7397 = vmatprep.subr.mxu0 %v776
        %7398 = vmatpush2.msra.mxu0 %v775
        %7399 = vmatprep.subr.mxu0 %v774
        %7400 = vmatpush2.msra.mxu0 %v773
        %7401 = vmatprep.subr.mxu0 %v772
        %7402 = vmatpush2.msra.mxu0 %v771
        %7403 = vmatprep.subr.mxu0 %v770
        %7404 = vmatpush2.msra.mxu0 %v769
        %7405 = vmatprep.subr.mxu0 %v768
        %7406 = vmatpush2.msra.mxu0 %v767
        %7407 = vmatprep.subr.mxu0 %v766
        %7408 = vmatpush2.msra.mxu0 %v765
        %7409 = vmatprep.subr.mxu0 %v764
        %7410 = vmatpush2.msra.mxu0 %v763
        %7411 = vmatprep.subr.mxu0 %v762
        %7412 = vmatpush2.msra.mxu0 %v761
        %7413 = vmatprep.subr.mxu0 %v760
        %7414 = vmatpush2.msra.mxu0 %v759
        %7415 = vmatprep.subr.mxu0 %v758
        %7416 = vmatpush2.msra.mxu0 %v757
        %7417 = vmatprep.subr.mxu0 %v756
        %7418 = vmatpush2.msra.mxu0 %v755
        %7419 = vmatprep.subr.mxu0 %v754
        %7420 = vmatpush2.msra.mxu0 %v753
        %7421 = vmatprep.subr.mxu0 %v752
        %7422 = vmatpush2.msra.mxu0 %v751
        %7423 = vmatprep.mubr.f32.mxu0 %v7339
        %7424 = vmatmul.mubr.f32.gmra.mxu0 %v7337
        %v7425 = vpop.f32.mrf.mxu0
        %v7426 = vadd.f32 0.0, %v7425
        %v7427 = vpop.f32.mrf.mxu0
        %v7428 = vadd.f32 0.0, %v7427
        %7429 = vmatprep.mubr.f32.mxu0 %v7345
        %7430 = vmatmul.mubr.f32.gmra.mxu0 %v7343
        %v7431 = vpop.f32.mrf.mxu0
        %v7432 = vadd.f32 0.0, %v7431
        %v7433 = vpop.f32.mrf.mxu0
        %v7434 = vadd.f32 0.0, %v7433
        %7435 = vmatprep.mubr.f32.mxu0 %v7351
        %7436 = vmatmul.mubr.f32.gmra.mxu0 %v7349
        %v7437 = vpop.f32.mrf.mxu0
        %v7438 = vadd.f32 0.0, %v7437
        %v7439 = vpop.f32.mrf.mxu0
        %v7440 = vadd.f32 0.0, %v7439
        %7441 = vmatprep.mubr.f32.mxu0 %v7357
        %7442 = vmatmul.mubr.f32.gmra.mxu0 %v7355
        %v7443 = vpop.f32.mrf.mxu0
        %v7444 = vadd.f32 0.0, %v7443
        %v7445 = vpop.f32.mrf.mxu0
        %v7446 = vadd.f32 0.0, %v7445
        %7447 = vdwg.mxu0
        %7448 = vmatprep.subr.mxu0 %v579
        %7449 = vmatpush1.msra.mxu0 %v578
        %7450 = vmatprep.subr.mxu0 %v577
        %7451 = vmatpush1.msra.mxu0 %v576
        %7452 = vmatprep.subr.mxu0 %v575
        %7453 = vmatpush1.msra.mxu0 %v574
        %7454 = vmatprep.subr.mxu0 %v573
        %7455 = vmatpush1.msra.mxu0 %v572
        %7456 = vmatprep.subr.mxu0 %v571
        %7457 = vmatpush1.msra.mxu0 %v570
        %7458 = vmatprep.subr.mxu0 %v569
        %7459 = vmatpush1.msra.mxu0 %v568
        %7460 = vmatprep.subr.mxu0 %v567
        %7461 = vmatpush1.msra.mxu0 %v566
        %7462 = vmatprep.subr.mxu0 %v565
        %7463 = vmatpush1.msra.mxu0 %v564
        %7464 = vmatprep.subr.mxu0 %v563
        %7465 = vmatpush1.msra.mxu0 %v562
        %7466 = vmatprep.subr.mxu0 %v561
        %7467 = vmatpush1.msra.mxu0 %v560
        %7468 = vmatprep.subr.mxu0 %v559
        %7469 = vmatpush1.msra.mxu0 %v558
        %7470 = vmatprep.subr.mxu0 %v557
        %7471 = vmatpush1.msra.mxu0 %v556
        %7472 = vmatprep.subr.mxu0 %v555
        %7473 = vmatpush1.msra.mxu0 %v554
        %7474 = vmatprep.subr.mxu0 %v553
        %7475 = vmatpush1.msra.mxu0 %v552
        %7476 = vmatprep.subr.mxu0 %v551
        %7477 = vmatpush1.msra.mxu0 %v550
        %7478 = vmatprep.subr.mxu0 %v549
        %7479 = vmatpush1.msra.mxu0 %v548
        %7480 = vmatprep.subr.mxu0 %v611
        %7481 = vmatpush2.msra.mxu0 %v610
        %7482 = vmatprep.subr.mxu0 %v609
        %7483 = vmatpush2.msra.mxu0 %v608
        %7484 = vmatprep.subr.mxu0 %v607
        %7485 = vmatpush2.msra.mxu0 %v606
        %7486 = vmatprep.subr.mxu0 %v605
        %7487 = vmatpush2.msra.mxu0 %v604
        %7488 = vmatprep.subr.mxu0 %v603
        %7489 = vmatpush2.msra.mxu0 %v602
        %7490 = vmatprep.subr.mxu0 %v601
        %7491 = vmatpush2.msra.mxu0 %v600
        %7492 = vmatprep.subr.mxu0 %v599
        %7493 = vmatpush2.msra.mxu0 %v598
        %7494 = vmatprep.subr.mxu0 %v597
        %7495 = vmatpush2.msra.mxu0 %v596
        %7496 = vmatprep.subr.mxu0 %v595
        %7497 = vmatpush2.msra.mxu0 %v594
        %7498 = vmatprep.subr.mxu0 %v593
        %7499 = vmatpush2.msra.mxu0 %v592
        %7500 = vmatprep.subr.mxu0 %v591
        %7501 = vmatpush2.msra.mxu0 %v590
        %7502 = vmatprep.subr.mxu0 %v589
        %7503 = vmatpush2.msra.mxu0 %v588
        %7504 = vmatprep.subr.mxu0 %v587
        %7505 = vmatpush2.msra.mxu0 %v586
        %7506 = vmatprep.subr.mxu0 %v585
        %7507 = vmatpush2.msra.mxu0 %v584
        %7508 = vmatprep.subr.mxu0 %v583
        %7509 = vmatpush2.msra.mxu0 %v582
        %7510 = vmatprep.subr.mxu0 %v581
        %7511 = vmatpush2.msra.mxu0 %v580
        %7512 = vmatprep.mubr.f32.mxu0 %v7233
        %7513 = vmatmul.mubr.f32.gmra.mxu0 %v7231
        %v7514 = vpop.f32.mrf.mxu0
        %v7515 = vadd.f32 %v7426, %v7514
        %v7516 = vpop.f32.mrf.mxu0
        %v7517 = vadd.f32 %v7428, %v7516
        %7518 = vmatprep.mubr.f32.mxu0 %v7239
        %7519 = vmatmul.mubr.f32.gmra.mxu0 %v7237
        %v7520 = vpop.f32.mrf.mxu0
        %v7521 = vadd.f32 %v7432, %v7520
        %v7522 = vpop.f32.mrf.mxu0
        %v7523 = vadd.f32 %v7434, %v7522
        %7524 = vmatprep.mubr.f32.mxu0 %v7245
        %7525 = vmatmul.mubr.f32.gmra.mxu0 %v7243
        %v7526 = vpop.f32.mrf.mxu0
        %v7527 = vadd.f32 %v7438, %v7526
        %v7528 = vpop.f32.mrf.mxu0
        %v7529 = vadd.f32 %v7440, %v7528
        %7530 = vmatprep.mubr.f32.mxu0 %v7251
        %7531 = vmatmul.mubr.f32.gmra.mxu0 %v7249
        %v7532 = vpop.f32.mrf.mxu0
        %v7533 = vadd.f32 %v7444, %v7532
        %v7534 = vpop.f32.mrf.mxu0
        %v7535 = vadd.f32 %v7446, %v7534
        %7536 = vdwg.mxu0
        %s7537 = scalar_lea.vmem [#allocation5], 928
        %v7538 = vld [vmem:[%s7537] sm:$0xff]
        %v7539 = vld [vmem:[%s7537 + $0x8] sm:$0xff]
        %v7540 = vld [vmem:[%s7537 + $0x10] sm:$0xff]
        %v7541 = vld [vmem:[%s7537 + $0x18] sm:$0xff]
        %v7543 = vsel %vm446, %v7538, 0
        %v7546 = vsel %vm446, %v7539, 0
        %v7549 = vsel %vm446, %v7540, 0
        %v7552 = vsel %vm446, %v7541, 0
        %7554 = vmatprep.subr.mxu0 0.0
        %7555 = vmatpush1.msra.mxu0 0.0
        %7556 = vmatprep.subr.mxu0 0.0
        %7557 = vmatpush1.msra.mxu0 0.0
        %7558 = vmatprep.subr.mxu0 0.0
        %7559 = vmatpush1.msra.mxu0 0.0
        %7560 = vmatprep.subr.mxu0 0.0
        %7561 = vmatpush1.msra.mxu0 0.0
        %7562 = vmatprep.subr.mxu0 0.0
        %7563 = vmatpush1.msra.mxu0 0.0
        %7564 = vmatprep.subr.mxu0 0.0
        %7565 = vmatpush1.msra.mxu0 0.0
        %7566 = vmatprep.subr.mxu0 0.0
        %7567 = vmatpush1.msra.mxu0 0.0
        %7568 = vmatprep.subr.mxu0 0.0
        %7569 = vmatpush1.msra.mxu0 0.0
        %7570 = vmatprep.subr.mxu0 0.0
        %7571 = vmatpush1.msra.mxu0 0.0
        %7572 = vmatprep.subr.mxu0 0.0
        %7573 = vmatpush1.msra.mxu0 0.0
        %7574 = vmatprep.subr.mxu0 0.0
        %7575 = vmatpush1.msra.mxu0 0.0
        %7576 = vmatprep.subr.mxu0 0.0
        %7577 = vmatpush1.msra.mxu0 0.0
        %7578 = vmatprep.subr.mxu0 %v7146
        %7579 = vmatpush1.msra.mxu0 %v7145
        %7580 = vmatprep.subr.mxu0 %v7144
        %7581 = vmatpush1.msra.mxu0 %v7143
        %7582 = vmatprep.subr.mxu0 %v7142
        %7583 = vmatpush1.msra.mxu0 %v7141
        %7584 = vmatprep.subr.mxu0 %v7140
        %7585 = vmatpush1.msra.mxu0 %v7139
        %7586 = vmatprep.subr.mxu0 0.0
        %7587 = vmatpush2.msra.mxu0 0.0
        %7588 = vmatprep.subr.mxu0 0.0
        %7589 = vmatpush2.msra.mxu0 0.0
        %7590 = vmatprep.subr.mxu0 0.0
        %7591 = vmatpush2.msra.mxu0 0.0
        %7592 = vmatprep.subr.mxu0 0.0
        %7593 = vmatpush2.msra.mxu0 0.0
        %7594 = vmatprep.subr.mxu0 0.0
        %7595 = vmatpush2.msra.mxu0 0.0
        %7596 = vmatprep.subr.mxu0 0.0
        %7597 = vmatpush2.msra.mxu0 0.0
        %7598 = vmatprep.subr.mxu0 0.0
        %7599 = vmatpush2.msra.mxu0 0.0
        %7600 = vmatprep.subr.mxu0 0.0
        %7601 = vmatpush2.msra.mxu0 0.0
        %7602 = vmatprep.subr.mxu0 0.0
        %7603 = vmatpush2.msra.mxu0 0.0
        %7604 = vmatprep.subr.mxu0 0.0
        %7605 = vmatpush2.msra.mxu0 0.0
        %7606 = vmatprep.subr.mxu0 0.0
        %7607 = vmatpush2.msra.mxu0 0.0
        %7608 = vmatprep.subr.mxu0 0.0
        %7609 = vmatpush2.msra.mxu0 0.0
        %7610 = vmatprep.subr.mxu0 0.0
        %7611 = vmatpush2.msra.mxu0 0.0
        %7612 = vmatprep.subr.mxu0 0.0
        %7613 = vmatpush2.msra.mxu0 0.0
        %7614 = vmatprep.subr.mxu0 0.0
        %7615 = vmatpush2.msra.mxu0 0.0
        %7616 = vmatprep.subr.mxu0 0.0
        %7617 = vmatpush2.msra.mxu0 0.0
        %7618 = vmatprep.mubr.f32.mxu0 0.0
        %7619 = vmatmul.mubr.f32.gmra.mxu0 %v7543
        %v7620 = vpop.f32.mrf.mxu0
        %v7621 = vadd.f32 0.0, %v7620
        %v7622 = vpop.f32.mrf.mxu0
        %v7623 = vadd.f32 0.0, %v7622
        %7624 = vmatprep.mubr.f32.mxu0 0.0
        %7625 = vmatmul.mubr.f32.gmra.mxu0 %v7546
        %v7626 = vpop.f32.mrf.mxu0
        %v7627 = vadd.f32 0.0, %v7626
        %v7628 = vpop.f32.mrf.mxu0
        %v7629 = vadd.f32 0.0, %v7628
        %7630 = vmatprep.mubr.f32.mxu0 0.0
        %7631 = vmatmul.mubr.f32.gmra.mxu0 %v7549
        %v7632 = vpop.f32.mrf.mxu0
        %v7633 = vadd.f32 0.0, %v7632
        %v7634 = vpop.f32.mrf.mxu0
        %v7635 = vadd.f32 0.0, %v7634
        %7636 = vmatprep.mubr.f32.mxu0 0.0
        %7637 = vmatmul.mubr.f32.gmra.mxu0 %v7552
        %v7638 = vpop.f32.mrf.mxu0
        %v7639 = vadd.f32 0.0, %v7638
        %v7640 = vpop.f32.mrf.mxu0
        %v7641 = vadd.f32 0.0, %v7640
        %7642 = vdwg.mxu0
        %7643 = vmatprep.subr.mxu0 %v1099
        %7644 = vmatpush1.msra.mxu0 %v1098
        %7645 = vmatprep.subr.mxu0 %v1097
        %7646 = vmatpush1.msra.mxu0 %v1096
        %7647 = vmatprep.subr.mxu0 %v1095
        %7648 = vmatpush1.msra.mxu0 %v1094
        %7649 = vmatprep.subr.mxu0 %v1093
        %7650 = vmatpush1.msra.mxu0 %v1092
        %7651 = vmatprep.subr.mxu0 %v1091
        %7652 = vmatpush1.msra.mxu0 %v1090
        %7653 = vmatprep.subr.mxu0 %v1089
        %7654 = vmatpush1.msra.mxu0 %v1088
        %7655 = vmatprep.subr.mxu0 %v1087
        %7656 = vmatpush1.msra.mxu0 %v1086
        %7657 = vmatprep.subr.mxu0 %v1085
        %7658 = vmatpush1.msra.mxu0 %v1084
        %7659 = vmatprep.subr.mxu0 %v1083
        %7660 = vmatpush1.msra.mxu0 %v1082
        %7661 = vmatprep.subr.mxu0 %v1081
        %7662 = vmatpush1.msra.mxu0 %v1080
        %7663 = vmatprep.subr.mxu0 %v1079
        %7664 = vmatpush1.msra.mxu0 %v1078
        %7665 = vmatprep.subr.mxu0 %v1077
        %7666 = vmatpush1.msra.mxu0 %v1076
        %7667 = vmatprep.subr.mxu0 %v1075
        %7668 = vmatpush1.msra.mxu0 %v1074
        %7669 = vmatprep.subr.mxu0 %v1073
        %7670 = vmatpush1.msra.mxu0 %v1072
        %7671 = vmatprep.subr.mxu0 %v1071
        %7672 = vmatpush1.msra.mxu0 %v1070
        %7673 = vmatprep.subr.mxu0 %v1069
        %7674 = vmatpush1.msra.mxu0 %v1068
        %7675 = vmatprep.subr.mxu0 %v1131
        %7676 = vmatpush2.msra.mxu0 %v1130
        %7677 = vmatprep.subr.mxu0 %v1129
        %7678 = vmatpush2.msra.mxu0 %v1128
        %7679 = vmatprep.subr.mxu0 %v1127
        %7680 = vmatpush2.msra.mxu0 %v1126
        %7681 = vmatprep.subr.mxu0 %v1125
        %7682 = vmatpush2.msra.mxu0 %v1124
        %7683 = vmatprep.subr.mxu0 %v1123
        %7684 = vmatpush2.msra.mxu0 %v1122
        %7685 = vmatprep.subr.mxu0 %v1121
        %7686 = vmatpush2.msra.mxu0 %v1120
        %7687 = vmatprep.subr.mxu0 %v1119
        %7688 = vmatpush2.msra.mxu0 %v1118
        %7689 = vmatprep.subr.mxu0 %v1117
        %7690 = vmatpush2.msra.mxu0 %v1116
        %7691 = vmatprep.subr.mxu0 %v1115
        %7692 = vmatpush2.msra.mxu0 %v1114
        %7693 = vmatprep.subr.mxu0 %v1113
        %7694 = vmatpush2.msra.mxu0 %v1112
        %7695 = vmatprep.subr.mxu0 %v1111
        %7696 = vmatpush2.msra.mxu0 %v1110
        %7697 = vmatprep.subr.mxu0 %v1109
        %7698 = vmatpush2.msra.mxu0 %v1108
        %7699 = vmatprep.subr.mxu0 %v1107
        %7700 = vmatpush2.msra.mxu0 %v1106
        %7701 = vmatprep.subr.mxu0 %v1105
        %7702 = vmatpush2.msra.mxu0 %v1104
        %7703 = vmatprep.subr.mxu0 %v1103
        %7704 = vmatpush2.msra.mxu0 %v1102
        %7705 = vmatprep.subr.mxu0 %v1101
        %7706 = vmatpush2.msra.mxu0 %v1100
        %7707 = vmatprep.mubr.f32.mxu0 %v7623
        %7708 = vmatmul.mubr.f32.gmra.mxu0 %v7621
        %v7709 = vpop.f32.mrf.mxu0
        %v7710 = vadd.f32 0.0, %v7709
        %v7711 = vpop.f32.mrf.mxu0
        %v7712 = vadd.f32 0.0, %v7711
        %7713 = vmatprep.mubr.f32.mxu0 %v7629
        %7714 = vmatmul.mubr.f32.gmra.mxu0 %v7627
        %v7715 = vpop.f32.mrf.mxu0
        %v7716 = vadd.f32 0.0, %v7715
        %v7717 = vpop.f32.mrf.mxu0
        %v7718 = vadd.f32 0.0, %v7717
        %7719 = vmatprep.mubr.f32.mxu0 %v7635
        %7720 = vmatmul.mubr.f32.gmra.mxu0 %v7633
        %v7721 = vpop.f32.mrf.mxu0
        %v7722 = vadd.f32 0.0, %v7721
        %v7723 = vpop.f32.mrf.mxu0
        %v7724 = vadd.f32 0.0, %v7723
        %7725 = vmatprep.mubr.f32.mxu0 %v7641
        %7726 = vmatmul.mubr.f32.gmra.mxu0 %v7639
        %v7727 = vpop.f32.mrf.mxu0
        %v7728 = vadd.f32 0.0, %v7727
        %v7729 = vpop.f32.mrf.mxu0
        %v7730 = vadd.f32 0.0, %v7729
        %7731 = vdwg.mxu0
        %v7732 = vadd.f32 %v7515, %v7710
        %v7733 = vadd.f32 %v7517, %v7712
        %v7734 = vadd.f32 %v7521, %v7716
        %v7735 = vadd.f32 %v7523, %v7718
        %v7736 = vadd.f32 %v7527, %v7722
        %v7737 = vadd.f32 %v7529, %v7724
        %v7738 = vadd.f32 %v7533, %v7728
        %v7739 = vadd.f32 %v7535, %v7730
        %s7740 = scalar_lea.vmem [#allocation5], 960
        %v7741 = vld [vmem:[%s7740] sm:$0xff]
        %v7742 = vld [vmem:[%s7740 + $0x8] sm:$0xff]
        %v7743 = vld [vmem:[%s7740 + $0x10] sm:$0xff]
        %v7744 = vld [vmem:[%s7740 + $0x18] sm:$0xff]
        %v7746 = vsel %vm446, %v7741, 0
        %v7749 = vsel %vm446, %v7742, 0
        %v7752 = vsel %vm446, %v7743, 0
        %v7755 = vsel %vm446, %v7744, 0
        %7757 = vmatprep.subr.mxu0 0.0
        %7758 = vmatpush1.msra.mxu0 0.0
        %7759 = vmatprep.subr.mxu0 0.0
        %7760 = vmatpush1.msra.mxu0 0.0
        %7761 = vmatprep.subr.mxu0 0.0
        %7762 = vmatpush1.msra.mxu0 0.0
        %7763 = vmatprep.subr.mxu0 0.0
        %7764 = vmatpush1.msra.mxu0 0.0
        %7765 = vmatprep.subr.mxu0 0.0
        %7766 = vmatpush1.msra.mxu0 0.0
        %7767 = vmatprep.subr.mxu0 0.0
        %7768 = vmatpush1.msra.mxu0 0.0
        %7769 = vmatprep.subr.mxu0 0.0
        %7770 = vmatpush1.msra.mxu0 0.0
        %7771 = vmatprep.subr.mxu0 0.0
        %7772 = vmatpush1.msra.mxu0 0.0
        %7773 = vmatprep.subr.mxu0 0.0
        %7774 = vmatpush1.msra.mxu0 0.0
        %7775 = vmatprep.subr.mxu0 0.0
        %7776 = vmatpush1.msra.mxu0 0.0
        %7777 = vmatprep.subr.mxu0 0.0
        %7778 = vmatpush1.msra.mxu0 0.0
        %7779 = vmatprep.subr.mxu0 0.0
        %7780 = vmatpush1.msra.mxu0 0.0
        %7781 = vmatprep.subr.mxu0 %v7146
        %7782 = vmatpush1.msra.mxu0 %v7145
        %7783 = vmatprep.subr.mxu0 %v7144
        %7784 = vmatpush1.msra.mxu0 %v7143
        %7785 = vmatprep.subr.mxu0 %v7142
        %7786 = vmatpush1.msra.mxu0 %v7141
        %7787 = vmatprep.subr.mxu0 %v7140
        %7788 = vmatpush1.msra.mxu0 %v7139
        %7789 = vmatprep.subr.mxu0 0.0
        %7790 = vmatpush2.msra.mxu0 0.0
        %7791 = vmatprep.subr.mxu0 0.0
        %7792 = vmatpush2.msra.mxu0 0.0
        %7793 = vmatprep.subr.mxu0 0.0
        %7794 = vmatpush2.msra.mxu0 0.0
        %7795 = vmatprep.subr.mxu0 0.0
        %7796 = vmatpush2.msra.mxu0 0.0
        %7797 = vmatprep.subr.mxu0 0.0
        %7798 = vmatpush2.msra.mxu0 0.0
        %7799 = vmatprep.subr.mxu0 0.0
        %7800 = vmatpush2.msra.mxu0 0.0
        %7801 = vmatprep.subr.mxu0 0.0
        %7802 = vmatpush2.msra.mxu0 0.0
        %7803 = vmatprep.subr.mxu0 0.0
        %7804 = vmatpush2.msra.mxu0 0.0
        %7805 = vmatprep.subr.mxu0 0.0
        %7806 = vmatpush2.msra.mxu0 0.0
        %7807 = vmatprep.subr.mxu0 0.0
        %7808 = vmatpush2.msra.mxu0 0.0
        %7809 = vmatprep.subr.mxu0 0.0
        %7810 = vmatpush2.msra.mxu0 0.0
        %7811 = vmatprep.subr.mxu0 0.0
        %7812 = vmatpush2.msra.mxu0 0.0
        %7813 = vmatprep.subr.mxu0 0.0
        %7814 = vmatpush2.msra.mxu0 0.0
        %7815 = vmatprep.subr.mxu0 0.0
        %7816 = vmatpush2.msra.mxu0 0.0
        %7817 = vmatprep.subr.mxu0 0.0
        %7818 = vmatpush2.msra.mxu0 0.0
        %7819 = vmatprep.subr.mxu0 0.0
        %7820 = vmatpush2.msra.mxu0 0.0
        %7821 = vmatprep.mubr.f32.mxu0 0.0
        %7822 = vmatmul.mubr.f32.gmra.mxu0 %v7746
        %v7823 = vpop.f32.mrf.mxu0
        %v7824 = vadd.f32 0.0, %v7823
        %v7825 = vpop.f32.mrf.mxu0
        %v7826 = vadd.f32 0.0, %v7825
        %7827 = vmatprep.mubr.f32.mxu0 0.0
        %7828 = vmatmul.mubr.f32.gmra.mxu0 %v7749
        %v7829 = vpop.f32.mrf.mxu0
        %v7830 = vadd.f32 0.0, %v7829
        %v7831 = vpop.f32.mrf.mxu0
        %v7832 = vadd.f32 0.0, %v7831
        %7833 = vmatprep.mubr.f32.mxu0 0.0
        %7834 = vmatmul.mubr.f32.gmra.mxu0 %v7752
        %v7835 = vpop.f32.mrf.mxu0
        %v7836 = vadd.f32 0.0, %v7835
        %v7837 = vpop.f32.mrf.mxu0
        %v7838 = vadd.f32 0.0, %v7837
        %7839 = vmatprep.mubr.f32.mxu0 0.0
        %7840 = vmatmul.mubr.f32.gmra.mxu0 %v7755
        %v7841 = vpop.f32.mrf.mxu0
        %v7842 = vadd.f32 0.0, %v7841
        %v7843 = vpop.f32.mrf.mxu0
        %v7844 = vadd.f32 0.0, %v7843
        %7845 = vdwg.mxu0
        %7846 = vmatprep.subr.mxu0 %v1367
        %7847 = vmatpush1.msra.mxu0 %v1366
        %7848 = vmatprep.subr.mxu0 %v1365
        %7849 = vmatpush1.msra.mxu0 %v1364
        %7850 = vmatprep.subr.mxu0 %v1363
        %7851 = vmatpush1.msra.mxu0 %v1362
        %7852 = vmatprep.subr.mxu0 %v1361
        %7853 = vmatpush1.msra.mxu0 %v1360
        %7854 = vmatprep.subr.mxu0 %v1359
        %7855 = vmatpush1.msra.mxu0 %v1358
        %7856 = vmatprep.subr.mxu0 %v1357
        %7857 = vmatpush1.msra.mxu0 %v1356
        %7858 = vmatprep.subr.mxu0 %v1355
        %7859 = vmatpush1.msra.mxu0 %v1354
        %7860 = vmatprep.subr.mxu0 %v1353
        %7861 = vmatpush1.msra.mxu0 %v1352
        %7862 = vmatprep.subr.mxu0 %v1351
        %7863 = vmatpush1.msra.mxu0 %v1350
        %7864 = vmatprep.subr.mxu0 %v1349
        %7865 = vmatpush1.msra.mxu0 %v1348
        %7866 = vmatprep.subr.mxu0 %v1347
        %7867 = vmatpush1.msra.mxu0 %v1346
        %7868 = vmatprep.subr.mxu0 %v1345
        %7869 = vmatpush1.msra.mxu0 %v1344
        %7870 = vmatprep.subr.mxu0 %v1343
        %7871 = vmatpush1.msra.mxu0 %v1342
        %7872 = vmatprep.subr.mxu0 %v1341
        %7873 = vmatpush1.msra.mxu0 %v1340
        %7874 = vmatprep.subr.mxu0 %v1339
        %7875 = vmatpush1.msra.mxu0 %v1338
        %7876 = vmatprep.subr.mxu0 %v1337
        %7877 = vmatpush1.msra.mxu0 %v1336
        %7878 = vmatprep.subr.mxu0 %v1399
        %7879 = vmatpush2.msra.mxu0 %v1398
        %7880 = vmatprep.subr.mxu0 %v1397
        %7881 = vmatpush2.msra.mxu0 %v1396
        %7882 = vmatprep.subr.mxu0 %v1395
        %7883 = vmatpush2.msra.mxu0 %v1394
        %7884 = vmatprep.subr.mxu0 %v1393
        %7885 = vmatpush2.msra.mxu0 %v1392
        %7886 = vmatprep.subr.mxu0 %v1391
        %7887 = vmatpush2.msra.mxu0 %v1390
        %7888 = vmatprep.subr.mxu0 %v1389
        %7889 = vmatpush2.msra.mxu0 %v1388
        %7890 = vmatprep.subr.mxu0 %v1387
        %7891 = vmatpush2.msra.mxu0 %v1386
        %7892 = vmatprep.subr.mxu0 %v1385
        %7893 = vmatpush2.msra.mxu0 %v1384
        %7894 = vmatprep.subr.mxu0 %v1383
        %7895 = vmatpush2.msra.mxu0 %v1382
        %7896 = vmatprep.subr.mxu0 %v1381
        %7897 = vmatpush2.msra.mxu0 %v1380
        %7898 = vmatprep.subr.mxu0 %v1379
        %7899 = vmatpush2.msra.mxu0 %v1378
        %7900 = vmatprep.subr.mxu0 %v1377
        %7901 = vmatpush2.msra.mxu0 %v1376
        %7902 = vmatprep.subr.mxu0 %v1375
        %7903 = vmatpush2.msra.mxu0 %v1374
        %7904 = vmatprep.subr.mxu0 %v1373
        %7905 = vmatpush2.msra.mxu0 %v1372
        %7906 = vmatprep.subr.mxu0 %v1371
        %7907 = vmatpush2.msra.mxu0 %v1370
        %7908 = vmatprep.subr.mxu0 %v1369
        %7909 = vmatpush2.msra.mxu0 %v1368
        %7910 = vmatprep.mubr.f32.mxu0 %v7826
        %7911 = vmatmul.mubr.f32.gmra.mxu0 %v7824
        %v7912 = vpop.f32.mrf.mxu0
        %v7913 = vadd.f32 0.0, %v7912
        %v7914 = vpop.f32.mrf.mxu0
        %v7915 = vadd.f32 0.0, %v7914
        %7916 = vmatprep.mubr.f32.mxu0 %v7832
        %7917 = vmatmul.mubr.f32.gmra.mxu0 %v7830
        %v7918 = vpop.f32.mrf.mxu0
        %v7919 = vadd.f32 0.0, %v7918
        %v7920 = vpop.f32.mrf.mxu0
        %v7921 = vadd.f32 0.0, %v7920
        %7922 = vmatprep.mubr.f32.mxu0 %v7838
        %7923 = vmatmul.mubr.f32.gmra.mxu0 %v7836
        %v7924 = vpop.f32.mrf.mxu0
        %v7925 = vadd.f32 0.0, %v7924
        %v7926 = vpop.f32.mrf.mxu0
        %v7927 = vadd.f32 0.0, %v7926
        %7928 = vmatprep.mubr.f32.mxu0 %v7844
        %7929 = vmatmul.mubr.f32.gmra.mxu0 %v7842
        %v7930 = vpop.f32.mrf.mxu0
        %v7931 = vadd.f32 0.0, %v7930
        %v7932 = vpop.f32.mrf.mxu0
        %v7933 = vadd.f32 0.0, %v7932
        %7934 = vdwg.mxu0
        %v7935 = vadd.f32 %v7732, %v7913
        %v7936 = vadd.f32 %v7733, %v7915
        %v7937 = vadd.f32 %v7734, %v7919
        %v7938 = vadd.f32 %v7735, %v7921
        %v7939 = vadd.f32 %v7736, %v7925
        %v7940 = vadd.f32 %v7737, %v7927
        %v7941 = vadd.f32 %v7738, %v7931
        %v7942 = vadd.f32 %v7739, %v7933
        %s7943 = scalar_lea.vmem [#allocation5], 992
        %v7944 = vld [vmem:[%s7943] sm:$0xff]
        %v7945 = vld [vmem:[%s7943 + $0x8] sm:$0xff]
        %v7946 = vld [vmem:[%s7943 + $0x10] sm:$0xff]
        %v7947 = vld [vmem:[%s7943 + $0x18] sm:$0xff]
        %v7949 = vsel %vm446, %v7944, 0
        %v7952 = vsel %vm446, %v7945, 0
        %v7955 = vsel %vm446, %v7946, 0
        %v7958 = vsel %vm446, %v7947, 0
        %7960 = vmatprep.subr.mxu0 0.0
        %7961 = vmatpush1.msra.mxu0 0.0
        %7962 = vmatprep.subr.mxu0 0.0
        %7963 = vmatpush1.msra.mxu0 0.0
        %7964 = vmatprep.subr.mxu0 0.0
        %7965 = vmatpush1.msra.mxu0 0.0
        %7966 = vmatprep.subr.mxu0 0.0
        %7967 = vmatpush1.msra.mxu0 0.0
        %7968 = vmatprep.subr.mxu0 0.0
        %7969 = vmatpush1.msra.mxu0 0.0
        %7970 = vmatprep.subr.mxu0 0.0
        %7971 = vmatpush1.msra.mxu0 0.0
        %7972 = vmatprep.subr.mxu0 0.0
        %7973 = vmatpush1.msra.mxu0 0.0
        %7974 = vmatprep.subr.mxu0 0.0
        %7975 = vmatpush1.msra.mxu0 0.0
        %7976 = vmatprep.subr.mxu0 0.0
        %7977 = vmatpush1.msra.mxu0 0.0
        %7978 = vmatprep.subr.mxu0 0.0
        %7979 = vmatpush1.msra.mxu0 0.0
        %7980 = vmatprep.subr.mxu0 0.0
        %7981 = vmatpush1.msra.mxu0 0.0
        %7982 = vmatprep.subr.mxu0 0.0
        %7983 = vmatpush1.msra.mxu0 0.0
        %7984 = vmatprep.subr.mxu0 %v7146
        %7985 = vmatpush1.msra.mxu0 %v7145
        %7986 = vmatprep.subr.mxu0 %v7144
        %7987 = vmatpush1.msra.mxu0 %v7143
        %7988 = vmatprep.subr.mxu0 %v7142
        %7989 = vmatpush1.msra.mxu0 %v7141
        %7990 = vmatprep.subr.mxu0 %v7140
        %7991 = vmatpush1.msra.mxu0 %v7139
        %7992 = vmatprep.subr.mxu0 0.0
        %7993 = vmatpush2.msra.mxu0 0.0
        %7994 = vmatprep.subr.mxu0 0.0
        %7995 = vmatpush2.msra.mxu0 0.0
        %7996 = vmatprep.subr.mxu0 0.0
        %7997 = vmatpush2.msra.mxu0 0.0
        %7998 = vmatprep.subr.mxu0 0.0
        %7999 = vmatpush2.msra.mxu0 0.0
        %8000 = vmatprep.subr.mxu0 0.0
        %8001 = vmatpush2.msra.mxu0 0.0
        %8002 = vmatprep.subr.mxu0 0.0
        %8003 = vmatpush2.msra.mxu0 0.0
        %8004 = vmatprep.subr.mxu0 0.0
        %8005 = vmatpush2.msra.mxu0 0.0
        %8006 = vmatprep.subr.mxu0 0.0
        %8007 = vmatpush2.msra.mxu0 0.0
        %8008 = vmatprep.subr.mxu0 0.0
        %8009 = vmatpush2.msra.mxu0 0.0
        %8010 = vmatprep.subr.mxu0 0.0
        %8011 = vmatpush2.msra.mxu0 0.0
        %8012 = vmatprep.subr.mxu0 0.0
        %8013 = vmatpush2.msra.mxu0 0.0
        %8014 = vmatprep.subr.mxu0 0.0
        %8015 = vmatpush2.msra.mxu0 0.0
        %8016 = vmatprep.subr.mxu0 0.0
        %8017 = vmatpush2.msra.mxu0 0.0
        %8018 = vmatprep.subr.mxu0 0.0
        %8019 = vmatpush2.msra.mxu0 0.0
        %8020 = vmatprep.subr.mxu0 0.0
        %8021 = vmatpush2.msra.mxu0 0.0
        %8022 = vmatprep.subr.mxu0 0.0
        %8023 = vmatpush2.msra.mxu0 0.0
        %8024 = vmatprep.mubr.f32.mxu0 0.0
        %8025 = vmatmul.mubr.f32.gmra.mxu0 %v7949
        %v8026 = vpop.f32.mrf.mxu0
        %v8027 = vadd.f32 0.0, %v8026
        %v8028 = vpop.f32.mrf.mxu0
        %v8029 = vadd.f32 0.0, %v8028
        %8030 = vmatprep.mubr.f32.mxu0 0.0
        %8031 = vmatmul.mubr.f32.gmra.mxu0 %v7952
        %v8032 = vpop.f32.mrf.mxu0
        %v8033 = vadd.f32 0.0, %v8032
        %v8034 = vpop.f32.mrf.mxu0
        %v8035 = vadd.f32 0.0, %v8034
        %8036 = vmatprep.mubr.f32.mxu0 0.0
        %8037 = vmatmul.mubr.f32.gmra.mxu0 %v7955
        %v8038 = vpop.f32.mrf.mxu0
        %v8039 = vadd.f32 0.0, %v8038
        %v8040 = vpop.f32.mrf.mxu0
        %v8041 = vadd.f32 0.0, %v8040
        %8042 = vmatprep.mubr.f32.mxu0 0.0
        %8043 = vmatmul.mubr.f32.gmra.mxu0 %v7958
        %v8044 = vpop.f32.mrf.mxu0
        %v8045 = vadd.f32 0.0, %v8044
        %v8046 = vpop.f32.mrf.mxu0
        %v8047 = vadd.f32 0.0, %v8046
        %8048 = vdwg.mxu0
        %8049 = vmatprep.subr.mxu0 %v1635
        %8050 = vmatpush1.msra.mxu0 %v1634
        %8051 = vmatprep.subr.mxu0 %v1633
        %8052 = vmatpush1.msra.mxu0 %v1632
        %8053 = vmatprep.subr.mxu0 %v1631
        %8054 = vmatpush1.msra.mxu0 %v1630
        %8055 = vmatprep.subr.mxu0 %v1629
        %8056 = vmatpush1.msra.mxu0 %v1628
        %8057 = vmatprep.subr.mxu0 %v1627
        %8058 = vmatpush1.msra.mxu0 %v1626
        %8059 = vmatprep.subr.mxu0 %v1625
        %8060 = vmatpush1.msra.mxu0 %v1624
        %8061 = vmatprep.subr.mxu0 %v1623
        %8062 = vmatpush1.msra.mxu0 %v1622
        %8063 = vmatprep.subr.mxu0 %v1621
        %8064 = vmatpush1.msra.mxu0 %v1620
        %8065 = vmatprep.subr.mxu0 %v1619
        %8066 = vmatpush1.msra.mxu0 %v1618
        %8067 = vmatprep.subr.mxu0 %v1617
        %8068 = vmatpush1.msra.mxu0 %v1616
        %8069 = vmatprep.subr.mxu0 %v1615
        %8070 = vmatpush1.msra.mxu0 %v1614
        %8071 = vmatprep.subr.mxu0 %v1613
        %8072 = vmatpush1.msra.mxu0 %v1612
        %8073 = vmatprep.subr.mxu0 %v1611
        %8074 = vmatpush1.msra.mxu0 %v1610
        %8075 = vmatprep.subr.mxu0 %v1609
        %8076 = vmatpush1.msra.mxu0 %v1608
        %8077 = vmatprep.subr.mxu0 %v1607
        %8078 = vmatpush1.msra.mxu0 %v1606
        %8079 = vmatprep.subr.mxu0 %v1605
        %8080 = vmatpush1.msra.mxu0 %v1604
        %8081 = vmatprep.subr.mxu0 %v1667
        %8082 = vmatpush2.msra.mxu0 %v1666
        %8083 = vmatprep.subr.mxu0 %v1665
        %8084 = vmatpush2.msra.mxu0 %v1664
        %8085 = vmatprep.subr.mxu0 %v1663
        %8086 = vmatpush2.msra.mxu0 %v1662
        %8087 = vmatprep.subr.mxu0 %v1661
        %8088 = vmatpush2.msra.mxu0 %v1660
        %8089 = vmatprep.subr.mxu0 %v1659
        %8090 = vmatpush2.msra.mxu0 %v1658
        %8091 = vmatprep.subr.mxu0 %v1657
        %8092 = vmatpush2.msra.mxu0 %v1656
        %8093 = vmatprep.subr.mxu0 %v1655
        %8094 = vmatpush2.msra.mxu0 %v1654
        %8095 = vmatprep.subr.mxu0 %v1653
        %8096 = vmatpush2.msra.mxu0 %v1652
        %8097 = vmatprep.subr.mxu0 %v1651
        %8098 = vmatpush2.msra.mxu0 %v1650
        %8099 = vmatprep.subr.mxu0 %v1649
        %8100 = vmatpush2.msra.mxu0 %v1648
        %8101 = vmatprep.subr.mxu0 %v1647
        %8102 = vmatpush2.msra.mxu0 %v1646
        %8103 = vmatprep.subr.mxu0 %v1645
        %8104 = vmatpush2.msra.mxu0 %v1644
        %8105 = vmatprep.subr.mxu0 %v1643
        %8106 = vmatpush2.msra.mxu0 %v1642
        %8107 = vmatprep.subr.mxu0 %v1641
        %8108 = vmatpush2.msra.mxu0 %v1640
        %8109 = vmatprep.subr.mxu0 %v1639
        %8110 = vmatpush2.msra.mxu0 %v1638
        %8111 = vmatprep.subr.mxu0 %v1637
        %8112 = vmatpush2.msra.mxu0 %v1636
        %8113 = vmatprep.mubr.f32.mxu0 %v8029
        %8114 = vmatmul.mubr.f32.gmra.mxu0 %v8027
        %v8115 = vpop.f32.mrf.mxu0
        %v8116 = vadd.f32 0.0, %v8115
        %v8117 = vpop.f32.mrf.mxu0
        %v8118 = vadd.f32 0.0, %v8117
        %8119 = vmatprep.mubr.f32.mxu0 %v8035
        %8120 = vmatmul.mubr.f32.gmra.mxu0 %v8033
        %v8121 = vpop.f32.mrf.mxu0
        %v8122 = vadd.f32 0.0, %v8121
        %v8123 = vpop.f32.mrf.mxu0
        %v8124 = vadd.f32 0.0, %v8123
        %8125 = vmatprep.mubr.f32.mxu0 %v8041
        %8126 = vmatmul.mubr.f32.gmra.mxu0 %v8039
        %v8127 = vpop.f32.mrf.mxu0
        %v8128 = vadd.f32 0.0, %v8127
        %v8129 = vpop.f32.mrf.mxu0
        %v8130 = vadd.f32 0.0, %v8129
        %8131 = vmatprep.mubr.f32.mxu0 %v8047
        %8132 = vmatmul.mubr.f32.gmra.mxu0 %v8045
        %v8133 = vpop.f32.mrf.mxu0
        %v8134 = vadd.f32 0.0, %v8133
        %v8135 = vpop.f32.mrf.mxu0
        %v8136 = vadd.f32 0.0, %v8135
        %8137 = vdwg.mxu0
        %v8138 = vadd.f32 %v7935, %v8116
        %v8139 = vadd.f32 %v7936, %v8118
        %v8140 = vadd.f32 %v7937, %v8122
        %v8141 = vadd.f32 %v7938, %v8124
        %v8142 = vadd.f32 %v7939, %v8128
        %v8143 = vadd.f32 %v7940, %v8130
        %v8144 = vadd.f32 %v7941, %v8134
        %v8145 = vadd.f32 %v7942, %v8136
        %s8146 = scalar_lea.vmem [#allocation5], 1024
        %v8147 = vld [vmem:[%s8146] sm:$0xff]
        %v8148 = vld [vmem:[%s8146 + $0x8] sm:$0xff]
        %v8149 = vld [vmem:[%s8146 + $0x10] sm:$0xff]
        %v8150 = vld [vmem:[%s8146 + $0x18] sm:$0xff]
        %v8152 = vsel %vm446, %v8147, 0
        %v8155 = vsel %vm446, %v8148, 0
        %v8158 = vsel %vm446, %v8149, 0
        %v8161 = vsel %vm446, %v8150, 0
        %8163 = vmatprep.subr.mxu0 0.0
        %8164 = vmatpush1.msra.mxu0 0.0
        %8165 = vmatprep.subr.mxu0 0.0
        %8166 = vmatpush1.msra.mxu0 0.0
        %8167 = vmatprep.subr.mxu0 0.0
        %8168 = vmatpush1.msra.mxu0 0.0
        %8169 = vmatprep.subr.mxu0 0.0
        %8170 = vmatpush1.msra.mxu0 0.0
        %8171 = vmatprep.subr.mxu0 0.0
        %8172 = vmatpush1.msra.mxu0 0.0
        %8173 = vmatprep.subr.mxu0 0.0
        %8174 = vmatpush1.msra.mxu0 0.0
        %8175 = vmatprep.subr.mxu0 0.0
        %8176 = vmatpush1.msra.mxu0 0.0
        %8177 = vmatprep.subr.mxu0 0.0
        %8178 = vmatpush1.msra.mxu0 0.0
        %8179 = vmatprep.subr.mxu0 0.0
        %8180 = vmatpush1.msra.mxu0 0.0
        %8181 = vmatprep.subr.mxu0 0.0
        %8182 = vmatpush1.msra.mxu0 0.0
        %8183 = vmatprep.subr.mxu0 0.0
        %8184 = vmatpush1.msra.mxu0 0.0
        %8185 = vmatprep.subr.mxu0 0.0
        %8186 = vmatpush1.msra.mxu0 0.0
        %8187 = vmatprep.subr.mxu0 %v7146
        %8188 = vmatpush1.msra.mxu0 %v7145
        %8189 = vmatprep.subr.mxu0 %v7144
        %8190 = vmatpush1.msra.mxu0 %v7143
        %8191 = vmatprep.subr.mxu0 %v7142
        %8192 = vmatpush1.msra.mxu0 %v7141
        %8193 = vmatprep.subr.mxu0 %v7140
        %8194 = vmatpush1.msra.mxu0 %v7139
        %8195 = vmatprep.subr.mxu0 0.0
        %8196 = vmatpush2.msra.mxu0 0.0
        %8197 = vmatprep.subr.mxu0 0.0
        %8198 = vmatpush2.msra.mxu0 0.0
        %8199 = vmatprep.subr.mxu0 0.0
        %8200 = vmatpush2.msra.mxu0 0.0
        %8201 = vmatprep.subr.mxu0 0.0
        %8202 = vmatpush2.msra.mxu0 0.0
        %8203 = vmatprep.subr.mxu0 0.0
        %8204 = vmatpush2.msra.mxu0 0.0
        %8205 = vmatprep.subr.mxu0 0.0
        %8206 = vmatpush2.msra.mxu0 0.0
        %8207 = vmatprep.subr.mxu0 0.0
        %8208 = vmatpush2.msra.mxu0 0.0
        %8209 = vmatprep.subr.mxu0 0.0
        %8210 = vmatpush2.msra.mxu0 0.0
        %8211 = vmatprep.subr.mxu0 0.0
        %8212 = vmatpush2.msra.mxu0 0.0
        %8213 = vmatprep.subr.mxu0 0.0
        %8214 = vmatpush2.msra.mxu0 0.0
        %8215 = vmatprep.subr.mxu0 0.0
        %8216 = vmatpush2.msra.mxu0 0.0
        %8217 = vmatprep.subr.mxu0 0.0
        %8218 = vmatpush2.msra.mxu0 0.0
        %8219 = vmatprep.subr.mxu0 0.0
        %8220 = vmatpush2.msra.mxu0 0.0
        %8221 = vmatprep.subr.mxu0 0.0
        %8222 = vmatpush2.msra.mxu0 0.0
        %8223 = vmatprep.subr.mxu0 0.0
        %8224 = vmatpush2.msra.mxu0 0.0
        %8225 = vmatprep.subr.mxu0 0.0
        %8226 = vmatpush2.msra.mxu0 0.0
        %8227 = vmatprep.mubr.f32.mxu0 0.0
        %8228 = vmatmul.mubr.f32.gmra.mxu0 %v8152
        %v8229 = vpop.f32.mrf.mxu0
        %v8230 = vadd.f32 0.0, %v8229
        %v8231 = vpop.f32.mrf.mxu0
        %v8232 = vadd.f32 0.0, %v8231
        %8233 = vmatprep.mubr.f32.mxu0 0.0
        %8234 = vmatmul.mubr.f32.gmra.mxu0 %v8155
        %v8235 = vpop.f32.mrf.mxu0
        %v8236 = vadd.f32 0.0, %v8235
        %v8237 = vpop.f32.mrf.mxu0
        %v8238 = vadd.f32 0.0, %v8237
        %8239 = vmatprep.mubr.f32.mxu0 0.0
        %8240 = vmatmul.mubr.f32.gmra.mxu0 %v8158
        %v8241 = vpop.f32.mrf.mxu0
        %v8242 = vadd.f32 0.0, %v8241
        %v8243 = vpop.f32.mrf.mxu0
        %v8244 = vadd.f32 0.0, %v8243
        %8245 = vmatprep.mubr.f32.mxu0 0.0
        %8246 = vmatmul.mubr.f32.gmra.mxu0 %v8161
        %v8247 = vpop.f32.mrf.mxu0
        %v8248 = vadd.f32 0.0, %v8247
        %v8249 = vpop.f32.mrf.mxu0
        %v8250 = vadd.f32 0.0, %v8249
        %8251 = vdwg.mxu0
        %8252 = vmatprep.subr.mxu0 %v1903
        %8253 = vmatpush1.msra.mxu0 %v1902
        %8254 = vmatprep.subr.mxu0 %v1901
        %8255 = vmatpush1.msra.mxu0 %v1900
        %8256 = vmatprep.subr.mxu0 %v1899
        %8257 = vmatpush1.msra.mxu0 %v1898
        %8258 = vmatprep.subr.mxu0 %v1897
        %8259 = vmatpush1.msra.mxu0 %v1896
        %8260 = vmatprep.subr.mxu0 %v1895
        %8261 = vmatpush1.msra.mxu0 %v1894
        %8262 = vmatprep.subr.mxu0 %v1893
        %8263 = vmatpush1.msra.mxu0 %v1892
        %8264 = vmatprep.subr.mxu0 %v1891
        %8265 = vmatpush1.msra.mxu0 %v1890
        %8266 = vmatprep.subr.mxu0 %v1889
        %8267 = vmatpush1.msra.mxu0 %v1888
        %8268 = vmatprep.subr.mxu0 %v1887
        %8269 = vmatpush1.msra.mxu0 %v1886
        %8270 = vmatprep.subr.mxu0 %v1885
        %8271 = vmatpush1.msra.mxu0 %v1884
        %8272 = vmatprep.subr.mxu0 %v1883
        %8273 = vmatpush1.msra.mxu0 %v1882
        %8274 = vmatprep.subr.mxu0 %v1881
        %8275 = vmatpush1.msra.mxu0 %v1880
        %8276 = vmatprep.subr.mxu0 %v1879
        %8277 = vmatpush1.msra.mxu0 %v1878
        %8278 = vmatprep.subr.mxu0 %v1877
        %8279 = vmatpush1.msra.mxu0 %v1876
        %8280 = vmatprep.subr.mxu0 %v1875
        %8281 = vmatpush1.msra.mxu0 %v1874
        %8282 = vmatprep.subr.mxu0 %v1873
        %8283 = vmatpush1.msra.mxu0 %v1872
        %8284 = vmatprep.subr.mxu0 %v1935
        %8285 = vmatpush2.msra.mxu0 %v1934
        %8286 = vmatprep.subr.mxu0 %v1933
        %8287 = vmatpush2.msra.mxu0 %v1932
        %8288 = vmatprep.subr.mxu0 %v1931
        %8289 = vmatpush2.msra.mxu0 %v1930
        %8290 = vmatprep.subr.mxu0 %v1929
        %8291 = vmatpush2.msra.mxu0 %v1928
        %8292 = vmatprep.subr.mxu0 %v1927
        %8293 = vmatpush2.msra.mxu0 %v1926
        %8294 = vmatprep.subr.mxu0 %v1925
        %8295 = vmatpush2.msra.mxu0 %v1924
        %8296 = vmatprep.subr.mxu0 %v1923
        %8297 = vmatpush2.msra.mxu0 %v1922
        %8298 = vmatprep.subr.mxu0 %v1921
        %8299 = vmatpush2.msra.mxu0 %v1920
        %8300 = vmatprep.subr.mxu0 %v1919
        %8301 = vmatpush2.msra.mxu0 %v1918
        %8302 = vmatprep.subr.mxu0 %v1917
        %8303 = vmatpush2.msra.mxu0 %v1916
        %8304 = vmatprep.subr.mxu0 %v1915
        %8305 = vmatpush2.msra.mxu0 %v1914
        %8306 = vmatprep.subr.mxu0 %v1913
        %8307 = vmatpush2.msra.mxu0 %v1912
        %8308 = vmatprep.subr.mxu0 %v1911
        %8309 = vmatpush2.msra.mxu0 %v1910
        %8310 = vmatprep.subr.mxu0 %v1909
        %8311 = vmatpush2.msra.mxu0 %v1908
        %8312 = vmatprep.subr.mxu0 %v1907
        %8313 = vmatpush2.msra.mxu0 %v1906
        %8314 = vmatprep.subr.mxu0 %v1905
        %8315 = vmatpush2.msra.mxu0 %v1904
        %8316 = vmatprep.mubr.f32.mxu0 %v8232
        %8317 = vmatmul.mubr.f32.gmra.mxu0 %v8230
        %v8318 = vpop.f32.mrf.mxu0
        %v8319 = vadd.f32 0.0, %v8318
        %v8320 = vpop.f32.mrf.mxu0
        %v8321 = vadd.f32 0.0, %v8320
        %8322 = vmatprep.mubr.f32.mxu0 %v8238
        %8323 = vmatmul.mubr.f32.gmra.mxu0 %v8236
        %v8324 = vpop.f32.mrf.mxu0
        %v8325 = vadd.f32 0.0, %v8324
        %v8326 = vpop.f32.mrf.mxu0
        %v8327 = vadd.f32 0.0, %v8326
        %8328 = vmatprep.mubr.f32.mxu0 %v8244
        %8329 = vmatmul.mubr.f32.gmra.mxu0 %v8242
        %v8330 = vpop.f32.mrf.mxu0
        %v8331 = vadd.f32 0.0, %v8330
        %v8332 = vpop.f32.mrf.mxu0
        %v8333 = vadd.f32 0.0, %v8332
        %8334 = vmatprep.mubr.f32.mxu0 %v8250
        %8335 = vmatmul.mubr.f32.gmra.mxu0 %v8248
        %v8336 = vpop.f32.mrf.mxu0
        %v8337 = vadd.f32 0.0, %v8336
        %v8338 = vpop.f32.mrf.mxu0
        %v8339 = vadd.f32 0.0, %v8338
        %8340 = vdwg.mxu0
        %v8341 = vadd.f32 %v8138, %v8319
        %v8342 = vadd.f32 %v8139, %v8321
        %v8343 = vadd.f32 %v8140, %v8325
        %v8344 = vadd.f32 %v8141, %v8327
        %v8345 = vadd.f32 %v8142, %v8331
        %v8346 = vadd.f32 %v8143, %v8333
        %v8347 = vadd.f32 %v8144, %v8337
        %v8348 = vadd.f32 %v8145, %v8339
        %s8349 = scalar_lea.vmem [#allocation5], 1056
        %v8350 = vld [vmem:[%s8349] sm:$0xff]
        %v8351 = vld [vmem:[%s8349 + $0x8] sm:$0xff]
        %v8352 = vld [vmem:[%s8349 + $0x10] sm:$0xff]
        %v8353 = vld [vmem:[%s8349 + $0x18] sm:$0xff]
        %v8355 = vsel %vm446, %v8350, 0
        %v8358 = vsel %vm446, %v8351, 0
        %v8361 = vsel %vm446, %v8352, 0
        %v8364 = vsel %vm446, %v8353, 0
        %8366 = vmatprep.subr.mxu0 0.0
        %8367 = vmatpush1.msra.mxu0 0.0
        %8368 = vmatprep.subr.mxu0 0.0
        %8369 = vmatpush1.msra.mxu0 0.0
        %8370 = vmatprep.subr.mxu0 0.0
        %8371 = vmatpush1.msra.mxu0 0.0
        %8372 = vmatprep.subr.mxu0 0.0
        %8373 = vmatpush1.msra.mxu0 0.0
        %8374 = vmatprep.subr.mxu0 0.0
        %8375 = vmatpush1.msra.mxu0 0.0
        %8376 = vmatprep.subr.mxu0 0.0
        %8377 = vmatpush1.msra.mxu0 0.0
        %8378 = vmatprep.subr.mxu0 0.0
        %8379 = vmatpush1.msra.mxu0 0.0
        %8380 = vmatprep.subr.mxu0 0.0
        %8381 = vmatpush1.msra.mxu0 0.0
        %8382 = vmatprep.subr.mxu0 0.0
        %8383 = vmatpush1.msra.mxu0 0.0
        %8384 = vmatprep.subr.mxu0 0.0
        %8385 = vmatpush1.msra.mxu0 0.0
        %8386 = vmatprep.subr.mxu0 0.0
        %8387 = vmatpush1.msra.mxu0 0.0
        %8388 = vmatprep.subr.mxu0 0.0
        %8389 = vmatpush1.msra.mxu0 0.0
        %8390 = vmatprep.subr.mxu0 %v7146
        %8391 = vmatpush1.msra.mxu0 %v7145
        %8392 = vmatprep.subr.mxu0 %v7144
        %8393 = vmatpush1.msra.mxu0 %v7143
        %8394 = vmatprep.subr.mxu0 %v7142
        %8395 = vmatpush1.msra.mxu0 %v7141
        %8396 = vmatprep.subr.mxu0 %v7140
        %8397 = vmatpush1.msra.mxu0 %v7139
        %8398 = vmatprep.subr.mxu0 0.0
        %8399 = vmatpush2.msra.mxu0 0.0
        %8400 = vmatprep.subr.mxu0 0.0
        %8401 = vmatpush2.msra.mxu0 0.0
        %8402 = vmatprep.subr.mxu0 0.0
        %8403 = vmatpush2.msra.mxu0 0.0
        %8404 = vmatprep.subr.mxu0 0.0
        %8405 = vmatpush2.msra.mxu0 0.0
        %8406 = vmatprep.subr.mxu0 0.0
        %8407 = vmatpush2.msra.mxu0 0.0
        %8408 = vmatprep.subr.mxu0 0.0
        %8409 = vmatpush2.msra.mxu0 0.0
        %8410 = vmatprep.subr.mxu0 0.0
        %8411 = vmatpush2.msra.mxu0 0.0
        %8412 = vmatprep.subr.mxu0 0.0
        %8413 = vmatpush2.msra.mxu0 0.0
        %8414 = vmatprep.subr.mxu0 0.0
        %8415 = vmatpush2.msra.mxu0 0.0
        %8416 = vmatprep.subr.mxu0 0.0
        %8417 = vmatpush2.msra.mxu0 0.0
        %8418 = vmatprep.subr.mxu0 0.0
        %8419 = vmatpush2.msra.mxu0 0.0
        %8420 = vmatprep.subr.mxu0 0.0
        %8421 = vmatpush2.msra.mxu0 0.0
        %8422 = vmatprep.subr.mxu0 0.0
        %8423 = vmatpush2.msra.mxu0 0.0
        %8424 = vmatprep.subr.mxu0 0.0
        %8425 = vmatpush2.msra.mxu0 0.0
        %8426 = vmatprep.subr.mxu0 0.0
        %8427 = vmatpush2.msra.mxu0 0.0
        %8428 = vmatprep.subr.mxu0 0.0
        %8429 = vmatpush2.msra.mxu0 0.0
        %8430 = vmatprep.mubr.f32.mxu0 0.0
        %8431 = vmatmul.mubr.f32.gmra.mxu0 %v8355
        %v8432 = vpop.f32.mrf.mxu0
        %v8433 = vadd.f32 0.0, %v8432
        %v8434 = vpop.f32.mrf.mxu0
        %v8435 = vadd.f32 0.0, %v8434
        %8436 = vmatprep.mubr.f32.mxu0 0.0
        %8437 = vmatmul.mubr.f32.gmra.mxu0 %v8358
        %v8438 = vpop.f32.mrf.mxu0
        %v8439 = vadd.f32 0.0, %v8438
        %v8440 = vpop.f32.mrf.mxu0
        %v8441 = vadd.f32 0.0, %v8440
        %8442 = vmatprep.mubr.f32.mxu0 0.0
        %8443 = vmatmul.mubr.f32.gmra.mxu0 %v8361
        %v8444 = vpop.f32.mrf.mxu0
        %v8445 = vadd.f32 0.0, %v8444
        %v8446 = vpop.f32.mrf.mxu0
        %v8447 = vadd.f32 0.0, %v8446
        %8448 = vmatprep.mubr.f32.mxu0 0.0
        %8449 = vmatmul.mubr.f32.gmra.mxu0 %v8364
        %v8450 = vpop.f32.mrf.mxu0
        %v8451 = vadd.f32 0.0, %v8450
        %v8452 = vpop.f32.mrf.mxu0
        %v8453 = vadd.f32 0.0, %v8452
        %8454 = vdwg.mxu0
        %8455 = vmatprep.subr.mxu0 %v2171
        %8456 = vmatpush1.msra.mxu0 %v2170
        %8457 = vmatprep.subr.mxu0 %v2169
        %8458 = vmatpush1.msra.mxu0 %v2168
        %8459 = vmatprep.subr.mxu0 %v2167
        %8460 = vmatpush1.msra.mxu0 %v2166
        %8461 = vmatprep.subr.mxu0 %v2165
        %8462 = vmatpush1.msra.mxu0 %v2164
        %8463 = vmatprep.subr.mxu0 %v2163
        %8464 = vmatpush1.msra.mxu0 %v2162
        %8465 = vmatprep.subr.mxu0 %v2161
        %8466 = vmatpush1.msra.mxu0 %v2160
        %8467 = vmatprep.subr.mxu0 %v2159
        %8468 = vmatpush1.msra.mxu0 %v2158
        %8469 = vmatprep.subr.mxu0 %v2157
        %8470 = vmatpush1.msra.mxu0 %v2156
        %8471 = vmatprep.subr.mxu0 %v2155
        %8472 = vmatpush1.msra.mxu0 %v2154
        %8473 = vmatprep.subr.mxu0 %v2153
        %8474 = vmatpush1.msra.mxu0 %v2152
        %8475 = vmatprep.subr.mxu0 %v2151
        %8476 = vmatpush1.msra.mxu0 %v2150
        %8477 = vmatprep.subr.mxu0 %v2149
        %8478 = vmatpush1.msra.mxu0 %v2148
        %8479 = vmatprep.subr.mxu0 %v2147
        %8480 = vmatpush1.msra.mxu0 %v2146
        %8481 = vmatprep.subr.mxu0 %v2145
        %8482 = vmatpush1.msra.mxu0 %v2144
        %8483 = vmatprep.subr.mxu0 %v2143
        %8484 = vmatpush1.msra.mxu0 %v2142
        %8485 = vmatprep.subr.mxu0 %v2141
        %8486 = vmatpush1.msra.mxu0 %v2140
        %8487 = vmatprep.subr.mxu0 %v2203
        %8488 = vmatpush2.msra.mxu0 %v2202
        %8489 = vmatprep.subr.mxu0 %v2201
        %8490 = vmatpush2.msra.mxu0 %v2200
        %8491 = vmatprep.subr.mxu0 %v2199
        %8492 = vmatpush2.msra.mxu0 %v2198
        %8493 = vmatprep.subr.mxu0 %v2197
        %8494 = vmatpush2.msra.mxu0 %v2196
        %8495 = vmatprep.subr.mxu0 %v2195
        %8496 = vmatpush2.msra.mxu0 %v2194
        %8497 = vmatprep.subr.mxu0 %v2193
        %8498 = vmatpush2.msra.mxu0 %v2192
        %8499 = vmatprep.subr.mxu0 %v2191
        %8500 = vmatpush2.msra.mxu0 %v2190
        %8501 = vmatprep.subr.mxu0 %v2189
        %8502 = vmatpush2.msra.mxu0 %v2188
        %8503 = vmatprep.subr.mxu0 %v2187
        %8504 = vmatpush2.msra.mxu0 %v2186
        %8505 = vmatprep.subr.mxu0 %v2185
        %8506 = vmatpush2.msra.mxu0 %v2184
        %8507 = vmatprep.subr.mxu0 %v2183
        %8508 = vmatpush2.msra.mxu0 %v2182
        %8509 = vmatprep.subr.mxu0 %v2181
        %8510 = vmatpush2.msra.mxu0 %v2180
        %8511 = vmatprep.subr.mxu0 %v2179
        %8512 = vmatpush2.msra.mxu0 %v2178
        %8513 = vmatprep.subr.mxu0 %v2177
        %8514 = vmatpush2.msra.mxu0 %v2176
        %8515 = vmatprep.subr.mxu0 %v2175
        %8516 = vmatpush2.msra.mxu0 %v2174
        %8517 = vmatprep.subr.mxu0 %v2173
        %8518 = vmatpush2.msra.mxu0 %v2172
        %8519 = vmatprep.mubr.f32.mxu0 %v8435
        %8520 = vmatmul.mubr.f32.gmra.mxu0 %v8433
        %v8521 = vpop.f32.mrf.mxu0
        %v8522 = vadd.f32 0.0, %v8521
        %v8523 = vpop.f32.mrf.mxu0
        %v8524 = vadd.f32 0.0, %v8523
        %8525 = vmatprep.mubr.f32.mxu0 %v8441
        %8526 = vmatmul.mubr.f32.gmra.mxu0 %v8439
        %v8527 = vpop.f32.mrf.mxu0
        %v8528 = vadd.f32 0.0, %v8527
        %v8529 = vpop.f32.mrf.mxu0
        %v8530 = vadd.f32 0.0, %v8529
        %8531 = vmatprep.mubr.f32.mxu0 %v8447
        %8532 = vmatmul.mubr.f32.gmra.mxu0 %v8445
        %v8533 = vpop.f32.mrf.mxu0
        %v8534 = vadd.f32 0.0, %v8533
        %v8535 = vpop.f32.mrf.mxu0
        %v8536 = vadd.f32 0.0, %v8535
        %8537 = vmatprep.mubr.f32.mxu0 %v8453
        %8538 = vmatmul.mubr.f32.gmra.mxu0 %v8451
        %v8539 = vpop.f32.mrf.mxu0
        %v8540 = vadd.f32 0.0, %v8539
        %v8541 = vpop.f32.mrf.mxu0
        %v8542 = vadd.f32 0.0, %v8541
        %8543 = vdwg.mxu0
        %v8544 = vadd.f32 %v8341, %v8522
        %v8545 = vadd.f32 %v8342, %v8524
        %v8546 = vadd.f32 %v8343, %v8528
        %v8547 = vadd.f32 %v8344, %v8530
        %v8548 = vadd.f32 %v8345, %v8534
        %v8549 = vadd.f32 %v8346, %v8536
        %v8550 = vadd.f32 %v8347, %v8540
        %v8551 = vadd.f32 %v8348, %v8542
        %s8552 = scalar_lea.vmem [#allocation5], 1088
        %v8553 = vld [vmem:[%s8552] sm:$0xff]
        %v8554 = vld [vmem:[%s8552 + $0x8] sm:$0xff]
        %v8555 = vld [vmem:[%s8552 + $0x10] sm:$0xff]
        %v8556 = vld [vmem:[%s8552 + $0x18] sm:$0xff]
        %v8558 = vsel %vm446, %v8553, 0
        %v8561 = vsel %vm446, %v8554, 0
        %v8564 = vsel %vm446, %v8555, 0
        %v8567 = vsel %vm446, %v8556, 0
        %8569 = vmatprep.subr.mxu0 0.0
        %8570 = vmatpush1.msra.mxu0 0.0
        %8571 = vmatprep.subr.mxu0 0.0
        %8572 = vmatpush1.msra.mxu0 0.0
        %8573 = vmatprep.subr.mxu0 0.0
        %8574 = vmatpush1.msra.mxu0 0.0
        %8575 = vmatprep.subr.mxu0 0.0
        %8576 = vmatpush1.msra.mxu0 0.0
        %8577 = vmatprep.subr.mxu0 0.0
        %8578 = vmatpush1.msra.mxu0 0.0
        %8579 = vmatprep.subr.mxu0 0.0
        %8580 = vmatpush1.msra.mxu0 0.0
        %8581 = vmatprep.subr.mxu0 0.0
        %8582 = vmatpush1.msra.mxu0 0.0
        %8583 = vmatprep.subr.mxu0 0.0
        %8584 = vmatpush1.msra.mxu0 0.0
        %8585 = vmatprep.subr.mxu0 0.0
        %8586 = vmatpush1.msra.mxu0 0.0
        %8587 = vmatprep.subr.mxu0 0.0
        %8588 = vmatpush1.msra.mxu0 0.0
        %8589 = vmatprep.subr.mxu0 0.0
        %8590 = vmatpush1.msra.mxu0 0.0
        %8591 = vmatprep.subr.mxu0 0.0
        %8592 = vmatpush1.msra.mxu0 0.0
        %8593 = vmatprep.subr.mxu0 %v7146
        %8594 = vmatpush1.msra.mxu0 %v7145
        %8595 = vmatprep.subr.mxu0 %v7144
        %8596 = vmatpush1.msra.mxu0 %v7143
        %8597 = vmatprep.subr.mxu0 %v7142
        %8598 = vmatpush1.msra.mxu0 %v7141
        %8599 = vmatprep.subr.mxu0 %v7140
        %8600 = vmatpush1.msra.mxu0 %v7139
        %8601 = vmatprep.subr.mxu0 0.0
        %8602 = vmatpush2.msra.mxu0 0.0
        %8603 = vmatprep.subr.mxu0 0.0
        %8604 = vmatpush2.msra.mxu0 0.0
        %8605 = vmatprep.subr.mxu0 0.0
        %8606 = vmatpush2.msra.mxu0 0.0
        %8607 = vmatprep.subr.mxu0 0.0
        %8608 = vmatpush2.msra.mxu0 0.0
        %8609 = vmatprep.subr.mxu0 0.0
        %8610 = vmatpush2.msra.mxu0 0.0
        %8611 = vmatprep.subr.mxu0 0.0
        %8612 = vmatpush2.msra.mxu0 0.0
        %8613 = vmatprep.subr.mxu0 0.0
        %8614 = vmatpush2.msra.mxu0 0.0
        %8615 = vmatprep.subr.mxu0 0.0
        %8616 = vmatpush2.msra.mxu0 0.0
        %8617 = vmatprep.subr.mxu0 0.0
        %8618 = vmatpush2.msra.mxu0 0.0
        %8619 = vmatprep.subr.mxu0 0.0
        %8620 = vmatpush2.msra.mxu0 0.0
        %8621 = vmatprep.subr.mxu0 0.0
        %8622 = vmatpush2.msra.mxu0 0.0
        %8623 = vmatprep.subr.mxu0 0.0
        %8624 = vmatpush2.msra.mxu0 0.0
        %8625 = vmatprep.subr.mxu0 0.0
        %8626 = vmatpush2.msra.mxu0 0.0
        %8627 = vmatprep.subr.mxu0 0.0
        %8628 = vmatpush2.msra.mxu0 0.0
        %8629 = vmatprep.subr.mxu0 0.0
        %8630 = vmatpush2.msra.mxu0 0.0
        %8631 = vmatprep.subr.mxu0 0.0
        %8632 = vmatpush2.msra.mxu0 0.0
        %8633 = vmatprep.mubr.f32.mxu0 0.0
        %8634 = vmatmul.mubr.f32.gmra.mxu0 %v8558
        %v8635 = vpop.f32.mrf.mxu0
        %v8636 = vadd.f32 0.0, %v8635
        %v8637 = vpop.f32.mrf.mxu0
        %v8638 = vadd.f32 0.0, %v8637
        %8639 = vmatprep.mubr.f32.mxu0 0.0
        %8640 = vmatmul.mubr.f32.gmra.mxu0 %v8561
        %v8641 = vpop.f32.mrf.mxu0
        %v8642 = vadd.f32 0.0, %v8641
        %v8643 = vpop.f32.mrf.mxu0
        %v8644 = vadd.f32 0.0, %v8643
        %8645 = vmatprep.mubr.f32.mxu0 0.0
        %8646 = vmatmul.mubr.f32.gmra.mxu0 %v8564
        %v8647 = vpop.f32.mrf.mxu0
        %v8648 = vadd.f32 0.0, %v8647
        %v8649 = vpop.f32.mrf.mxu0
        %v8650 = vadd.f32 0.0, %v8649
        %8651 = vmatprep.mubr.f32.mxu0 0.0
        %8652 = vmatmul.mubr.f32.gmra.mxu0 %v8567
        %v8653 = vpop.f32.mrf.mxu0
        %v8654 = vadd.f32 0.0, %v8653
        %v8655 = vpop.f32.mrf.mxu0
        %v8656 = vadd.f32 0.0, %v8655
        %8657 = vdwg.mxu0
        %8658 = vmatprep.subr.mxu0 %v2439
        %8659 = vmatpush1.msra.mxu0 %v2438
        %8660 = vmatprep.subr.mxu0 %v2437
        %8661 = vmatpush1.msra.mxu0 %v2436
        %8662 = vmatprep.subr.mxu0 %v2435
        %8663 = vmatpush1.msra.mxu0 %v2434
        %8664 = vmatprep.subr.mxu0 %v2433
        %8665 = vmatpush1.msra.mxu0 %v2432
        %8666 = vmatprep.subr.mxu0 %v2431
        %8667 = vmatpush1.msra.mxu0 %v2430
        %8668 = vmatprep.subr.mxu0 %v2429
        %8669 = vmatpush1.msra.mxu0 %v2428
        %8670 = vmatprep.subr.mxu0 %v2427
        %8671 = vmatpush1.msra.mxu0 %v2426
        %8672 = vmatprep.subr.mxu0 %v2425
        %8673 = vmatpush1.msra.mxu0 %v2424
        %8674 = vmatprep.subr.mxu0 %v2423
        %8675 = vmatpush1.msra.mxu0 %v2422
        %8676 = vmatprep.subr.mxu0 %v2421
        %8677 = vmatpush1.msra.mxu0 %v2420
        %8678 = vmatprep.subr.mxu0 %v2419
        %8679 = vmatpush1.msra.mxu0 %v2418
        %8680 = vmatprep.subr.mxu0 %v2417
        %8681 = vmatpush1.msra.mxu0 %v2416
        %8682 = vmatprep.subr.mxu0 %v2415
        %8683 = vmatpush1.msra.mxu0 %v2414
        %8684 = vmatprep.subr.mxu0 %v2413
        %8685 = vmatpush1.msra.mxu0 %v2412
        %8686 = vmatprep.subr.mxu0 %v2411
        %8687 = vmatpush1.msra.mxu0 %v2410
        %8688 = vmatprep.subr.mxu0 %v2409
        %8689 = vmatpush1.msra.mxu0 %v2408
        %8690 = vmatprep.subr.mxu0 %v2471
        %8691 = vmatpush2.msra.mxu0 %v2470
        %8692 = vmatprep.subr.mxu0 %v2469
        %8693 = vmatpush2.msra.mxu0 %v2468
        %8694 = vmatprep.subr.mxu0 %v2467
        %8695 = vmatpush2.msra.mxu0 %v2466
        %8696 = vmatprep.subr.mxu0 %v2465
        %8697 = vmatpush2.msra.mxu0 %v2464
        %8698 = vmatprep.subr.mxu0 %v2463
        %8699 = vmatpush2.msra.mxu0 %v2462
        %8700 = vmatprep.subr.mxu0 %v2461
        %8701 = vmatpush2.msra.mxu0 %v2460
        %8702 = vmatprep.subr.mxu0 %v2459
        %8703 = vmatpush2.msra.mxu0 %v2458
        %8704 = vmatprep.subr.mxu0 %v2457
        %8705 = vmatpush2.msra.mxu0 %v2456
        %8706 = vmatprep.subr.mxu0 %v2455
        %8707 = vmatpush2.msra.mxu0 %v2454
        %8708 = vmatprep.subr.mxu0 %v2453
        %8709 = vmatpush2.msra.mxu0 %v2452
        %8710 = vmatprep.subr.mxu0 %v2451
        %8711 = vmatpush2.msra.mxu0 %v2450
        %8712 = vmatprep.subr.mxu0 %v2449
        %8713 = vmatpush2.msra.mxu0 %v2448
        %8714 = vmatprep.subr.mxu0 %v2447
        %8715 = vmatpush2.msra.mxu0 %v2446
        %8716 = vmatprep.subr.mxu0 %v2445
        %8717 = vmatpush2.msra.mxu0 %v2444
        %8718 = vmatprep.subr.mxu0 %v2443
        %8719 = vmatpush2.msra.mxu0 %v2442
        %8720 = vmatprep.subr.mxu0 %v2441
        %8721 = vmatpush2.msra.mxu0 %v2440
        %8722 = vmatprep.mubr.f32.mxu0 %v8638
        %8723 = vmatmul.mubr.f32.gmra.mxu0 %v8636
        %v8724 = vpop.f32.mrf.mxu0
        %v8725 = vadd.f32 0.0, %v8724
        %v8726 = vpop.f32.mrf.mxu0
        %v8727 = vadd.f32 0.0, %v8726
        %8728 = vmatprep.mubr.f32.mxu0 %v8644
        %8729 = vmatmul.mubr.f32.gmra.mxu0 %v8642
        %v8730 = vpop.f32.mrf.mxu0
        %v8731 = vadd.f32 0.0, %v8730
        %v8732 = vpop.f32.mrf.mxu0
        %v8733 = vadd.f32 0.0, %v8732
        %8734 = vmatprep.mubr.f32.mxu0 %v8650
        %8735 = vmatmul.mubr.f32.gmra.mxu0 %v8648
        %v8736 = vpop.f32.mrf.mxu0
        %v8737 = vadd.f32 0.0, %v8736
        %v8738 = vpop.f32.mrf.mxu0
        %v8739 = vadd.f32 0.0, %v8738
        %8740 = vmatprep.mubr.f32.mxu0 %v8656
        %8741 = vmatmul.mubr.f32.gmra.mxu0 %v8654
        %v8742 = vpop.f32.mrf.mxu0
        %v8743 = vadd.f32 0.0, %v8742
        %v8744 = vpop.f32.mrf.mxu0
        %v8745 = vadd.f32 0.0, %v8744
        %8746 = vdwg.mxu0
        %v8747 = vadd.f32 %v8544, %v8725
        %v8748 = vadd.f32 %v8545, %v8727
        %v8749 = vadd.f32 %v8546, %v8731
        %v8750 = vadd.f32 %v8547, %v8733
        %v8751 = vadd.f32 %v8548, %v8737
        %v8752 = vadd.f32 %v8549, %v8739
        %v8753 = vadd.f32 %v8550, %v8743
        %v8754 = vadd.f32 %v8551, %v8745
        %s8755 = scalar_lea.vmem [#allocation5], 1120
        %v8756 = vld [vmem:[%s8755] sm:$0xff]
        %v8757 = vld [vmem:[%s8755 + $0x8] sm:$0xff]
        %v8758 = vld [vmem:[%s8755 + $0x10] sm:$0xff]
        %v8759 = vld [vmem:[%s8755 + $0x18] sm:$0xff]
        %v8761 = vsel %vm446, %v8756, 0
        %v8764 = vsel %vm446, %v8757, 0
        %v8767 = vsel %vm446, %v8758, 0
        %v8770 = vsel %vm446, %v8759, 0
        %8772 = vmatprep.subr.mxu0 0.0
        %8773 = vmatpush1.msra.mxu0 0.0
        %8774 = vmatprep.subr.mxu0 0.0
        %8775 = vmatpush1.msra.mxu0 0.0
        %8776 = vmatprep.subr.mxu0 0.0
        %8777 = vmatpush1.msra.mxu0 0.0
        %8778 = vmatprep.subr.mxu0 0.0
        %8779 = vmatpush1.msra.mxu0 0.0
        %8780 = vmatprep.subr.mxu0 0.0
        %8781 = vmatpush1.msra.mxu0 0.0
        %8782 = vmatprep.subr.mxu0 0.0
        %8783 = vmatpush1.msra.mxu0 0.0
        %8784 = vmatprep.subr.mxu0 0.0
        %8785 = vmatpush1.msra.mxu0 0.0
        %8786 = vmatprep.subr.mxu0 0.0
        %8787 = vmatpush1.msra.mxu0 0.0
        %8788 = vmatprep.subr.mxu0 0.0
        %8789 = vmatpush1.msra.mxu0 0.0
        %8790 = vmatprep.subr.mxu0 0.0
        %8791 = vmatpush1.msra.mxu0 0.0
        %8792 = vmatprep.subr.mxu0 0.0
        %8793 = vmatpush1.msra.mxu0 0.0
        %8794 = vmatprep.subr.mxu0 0.0
        %8795 = vmatpush1.msra.mxu0 0.0
        %8796 = vmatprep.subr.mxu0 %v7146
        %8797 = vmatpush1.msra.mxu0 %v7145
        %8798 = vmatprep.subr.mxu0 %v7144
        %8799 = vmatpush1.msra.mxu0 %v7143
        %8800 = vmatprep.subr.mxu0 %v7142
        %8801 = vmatpush1.msra.mxu0 %v7141
        %8802 = vmatprep.subr.mxu0 %v7140
        %8803 = vmatpush1.msra.mxu0 %v7139
        %8804 = vmatprep.subr.mxu0 0.0
        %8805 = vmatpush2.msra.mxu0 0.0
        %8806 = vmatprep.subr.mxu0 0.0
        %8807 = vmatpush2.msra.mxu0 0.0
        %8808 = vmatprep.subr.mxu0 0.0
        %8809 = vmatpush2.msra.mxu0 0.0
        %8810 = vmatprep.subr.mxu0 0.0
        %8811 = vmatpush2.msra.mxu0 0.0
        %8812 = vmatprep.subr.mxu0 0.0
        %8813 = vmatpush2.msra.mxu0 0.0
        %8814 = vmatprep.subr.mxu0 0.0
        %8815 = vmatpush2.msra.mxu0 0.0
        %8816 = vmatprep.subr.mxu0 0.0
        %8817 = vmatpush2.msra.mxu0 0.0
        %8818 = vmatprep.subr.mxu0 0.0
        %8819 = vmatpush2.msra.mxu0 0.0
        %8820 = vmatprep.subr.mxu0 0.0
        %8821 = vmatpush2.msra.mxu0 0.0
        %8822 = vmatprep.subr.mxu0 0.0
        %8823 = vmatpush2.msra.mxu0 0.0
        %8824 = vmatprep.subr.mxu0 0.0
        %8825 = vmatpush2.msra.mxu0 0.0
        %8826 = vmatprep.subr.mxu0 0.0
        %8827 = vmatpush2.msra.mxu0 0.0
        %8828 = vmatprep.subr.mxu0 0.0
        %8829 = vmatpush2.msra.mxu0 0.0
        %8830 = vmatprep.subr.mxu0 0.0
        %8831 = vmatpush2.msra.mxu0 0.0
        %8832 = vmatprep.subr.mxu0 0.0
        %8833 = vmatpush2.msra.mxu0 0.0
        %8834 = vmatprep.subr.mxu0 0.0
        %8835 = vmatpush2.msra.mxu0 0.0
        %8836 = vmatprep.mubr.f32.mxu0 0.0
        %8837 = vmatmul.mubr.f32.gmra.mxu0 %v8761
        %v8838 = vpop.f32.mrf.mxu0
        %v8839 = vadd.f32 0.0, %v8838
        %v8840 = vpop.f32.mrf.mxu0
        %v8841 = vadd.f32 0.0, %v8840
        %8842 = vmatprep.mubr.f32.mxu0 0.0
        %8843 = vmatmul.mubr.f32.gmra.mxu0 %v8764
        %v8844 = vpop.f32.mrf.mxu0
        %v8845 = vadd.f32 0.0, %v8844
        %v8846 = vpop.f32.mrf.mxu0
        %v8847 = vadd.f32 0.0, %v8846
        %8848 = vmatprep.mubr.f32.mxu0 0.0
        %8849 = vmatmul.mubr.f32.gmra.mxu0 %v8767
        %v8850 = vpop.f32.mrf.mxu0
        %v8851 = vadd.f32 0.0, %v8850
        %v8852 = vpop.f32.mrf.mxu0
        %v8853 = vadd.f32 0.0, %v8852
        %8854 = vmatprep.mubr.f32.mxu0 0.0
        %8855 = vmatmul.mubr.f32.gmra.mxu0 %v8770
        %v8856 = vpop.f32.mrf.mxu0
        %v8857 = vadd.f32 0.0, %v8856
        %v8858 = vpop.f32.mrf.mxu0
        %v8859 = vadd.f32 0.0, %v8858
        %8860 = vdwg.mxu0
        %8861 = vmatprep.subr.mxu0 %v2707
        %8862 = vmatpush1.msra.mxu0 %v2706
        %8863 = vmatprep.subr.mxu0 %v2705
        %8864 = vmatpush1.msra.mxu0 %v2704
        %8865 = vmatprep.subr.mxu0 %v2703
        %8866 = vmatpush1.msra.mxu0 %v2702
        %8867 = vmatprep.subr.mxu0 %v2701
        %8868 = vmatpush1.msra.mxu0 %v2700
        %8869 = vmatprep.subr.mxu0 %v2699
        %8870 = vmatpush1.msra.mxu0 %v2698
        %8871 = vmatprep.subr.mxu0 %v2697
        %8872 = vmatpush1.msra.mxu0 %v2696
        %8873 = vmatprep.subr.mxu0 %v2695
        %8874 = vmatpush1.msra.mxu0 %v2694
        %8875 = vmatprep.subr.mxu0 %v2693
        %8876 = vmatpush1.msra.mxu0 %v2692
        %8877 = vmatprep.subr.mxu0 %v2691
        %8878 = vmatpush1.msra.mxu0 %v2690
        %8879 = vmatprep.subr.mxu0 %v2689
        %8880 = vmatpush1.msra.mxu0 %v2688
        %8881 = vmatprep.subr.mxu0 %v2687
        %8882 = vmatpush1.msra.mxu0 %v2686
        %8883 = vmatprep.subr.mxu0 %v2685
        %8884 = vmatpush1.msra.mxu0 %v2684
        %8885 = vmatprep.subr.mxu0 %v2683
        %8886 = vmatpush1.msra.mxu0 %v2682
        %8887 = vmatprep.subr.mxu0 %v2681
        %8888 = vmatpush1.msra.mxu0 %v2680
        %8889 = vmatprep.subr.mxu0 %v2679
        %8890 = vmatpush1.msra.mxu0 %v2678
        %8891 = vmatprep.subr.mxu0 %v2677
        %8892 = vmatpush1.msra.mxu0 %v2676
        %8893 = vmatprep.subr.mxu0 %v2739
        %8894 = vmatpush2.msra.mxu0 %v2738
        %8895 = vmatprep.subr.mxu0 %v2737
        %8896 = vmatpush2.msra.mxu0 %v2736
        %8897 = vmatprep.subr.mxu0 %v2735
        %8898 = vmatpush2.msra.mxu0 %v2734
        %8899 = vmatprep.subr.mxu0 %v2733
        %8900 = vmatpush2.msra.mxu0 %v2732
        %8901 = vmatprep.subr.mxu0 %v2731
        %8902 = vmatpush2.msra.mxu0 %v2730
        %8903 = vmatprep.subr.mxu0 %v2729
        %8904 = vmatpush2.msra.mxu0 %v2728
        %8905 = vmatprep.subr.mxu0 %v2727
        %8906 = vmatpush2.msra.mxu0 %v2726
        %8907 = vmatprep.subr.mxu0 %v2725
        %8908 = vmatpush2.msra.mxu0 %v2724
        %8909 = vmatprep.subr.mxu0 %v2723
        %8910 = vmatpush2.msra.mxu0 %v2722
        %8911 = vmatprep.subr.mxu0 %v2721
        %8912 = vmatpush2.msra.mxu0 %v2720
        %8913 = vmatprep.subr.mxu0 %v2719
        %8914 = vmatpush2.msra.mxu0 %v2718
        %8915 = vmatprep.subr.mxu0 %v2717
        %8916 = vmatpush2.msra.mxu0 %v2716
        %8917 = vmatprep.subr.mxu0 %v2715
        %8918 = vmatpush2.msra.mxu0 %v2714
        %8919 = vmatprep.subr.mxu0 %v2713
        %8920 = vmatpush2.msra.mxu0 %v2712
        %8921 = vmatprep.subr.mxu0 %v2711
        %8922 = vmatpush2.msra.mxu0 %v2710
        %8923 = vmatprep.subr.mxu0 %v2709
        %8924 = vmatpush2.msra.mxu0 %v2708
        %8925 = vmatprep.mubr.f32.mxu0 %v8841
        %8926 = vmatmul.mubr.f32.gmra.mxu0 %v8839
        %v8927 = vpop.f32.mrf.mxu0
        %v8928 = vadd.f32 0.0, %v8927
        %v8929 = vpop.f32.mrf.mxu0
        %v8930 = vadd.f32 0.0, %v8929
        %8931 = vmatprep.mubr.f32.mxu0 %v8847
        %8932 = vmatmul.mubr.f32.gmra.mxu0 %v8845
        %v8933 = vpop.f32.mrf.mxu0
        %v8934 = vadd.f32 0.0, %v8933
        %v8935 = vpop.f32.mrf.mxu0
        %v8936 = vadd.f32 0.0, %v8935
        %8937 = vmatprep.mubr.f32.mxu0 %v8853
        %8938 = vmatmul.mubr.f32.gmra.mxu0 %v8851
        %v8939 = vpop.f32.mrf.mxu0
        %v8940 = vadd.f32 0.0, %v8939
        %v8941 = vpop.f32.mrf.mxu0
        %v8942 = vadd.f32 0.0, %v8941
        %8943 = vmatprep.mubr.f32.mxu0 %v8859
        %8944 = vmatmul.mubr.f32.gmra.mxu0 %v8857
        %v8945 = vpop.f32.mrf.mxu0
        %v8946 = vadd.f32 0.0, %v8945
        %v8947 = vpop.f32.mrf.mxu0
        %v8948 = vadd.f32 0.0, %v8947
        %8949 = vdwg.mxu0
        %v8950 = vadd.f32 %v8747, %v8928
        %v8951 = vadd.f32 %v8748, %v8930
        %v8952 = vadd.f32 %v8749, %v8934
        %v8953 = vadd.f32 %v8750, %v8936
        %v8954 = vadd.f32 %v8751, %v8940
        %v8955 = vadd.f32 %v8752, %v8942
        %v8956 = vadd.f32 %v8753, %v8946
        %v8957 = vadd.f32 %v8754, %v8948
        %s8958 = scalar_lea.vmem %s2, 96
        %v8959 = vld [vmem:[%s8958] sm:$0xff]
        %v8960 = vld [vmem:[%s8958 + $0x8] sm:$0xff]
        %v8961 = vld [vmem:[%s8958 + $0x10] sm:$0xff]
        %v8962 = vld [vmem:[%s8958 + $0x18] sm:$0xff]
        %8964 = vset.pattern.permute.xlu0 0
        %8965 = vperm.xlu0 %8964, %v8959
        %v8966 = vpop.permute.xlu0 %8965
        %8969 = vset.pattern.permute.xlu0 0
        %8970 = vperm.xlu0 %8969, %v8960
        %v8971 = vpop.permute.xlu0 %8970
        %8974 = vset.pattern.permute.xlu0 0
        %8975 = vperm.xlu0 %8974, %v8961
        %v8976 = vpop.permute.xlu0 %8975
        %8979 = vset.pattern.permute.xlu0 0
        %8980 = vperm.xlu0 %8979, %v8962
        %v8981 = vpop.permute.xlu0 %8980
        %v8983 = vadd.f32 %v8950, %v8966
        %v8984 = vadd.f32 %v8951, %v8966
        %v8985 = vadd.f32 %v8952, %v8971
        %v8986 = vadd.f32 %v8953, %v8971
        %v8987 = vadd.f32 %v8954, %v8976
        %v8988 = vadd.f32 %v8955, %v8976
        %v8989 = vadd.f32 %v8956, %v8981
        %v8990 = vadd.f32 %v8957, %v8981
        %v8991 = vmul.f32 %v8983, 0.1
        %v8992 = vmul.f32 %v8984, 0.1
        %v8993 = vmul.f32 %v8985, 0.1
        %v8994 = vmul.f32 %v8986, 0.1
        %v8995 = vmul.f32 %v8987, 0.1
        %v8996 = vmul.f32 %v8988, 0.1
        %v8997 = vmul.f32 %v8989, 0.1
        %v8998 = vmul.f32 %v8990, 0.1
        %v8999 = vadd.f32 %v5287, %v8991
        %v9000 = vadd.f32 %v5288, %v8992
        %v9001 = vadd.f32 %v5289, %v8993
        %v9002 = vadd.f32 %v5290, %v8994
        %v9003 = vadd.f32 %v5291, %v8995
        %v9004 = vadd.f32 %v5292, %v8996
        %v9005 = vadd.f32 %v5293, %v8997
        %v9006 = vadd.f32 %v5294, %v8998
        %s9007 = scalar_lea.vmem [#allocation7], 64
        %v9008 = vld [vmem:[%s9007] sm:$0xff]
        %v9009 = vld [vmem:[%s9007 + $0x8] sm:$0xff]
        %v9010 = vld [vmem:[%s9007 + $0x10] sm:$0xff]
        %v9011 = vld [vmem:[%s9007 + $0x18] sm:$0xff]
        %s9012 = scalar_lea.vmem %s4, 64
        %v9013 = vld [vmem:[%s9012] sm:$0xff]
        %v9014 = vld [vmem:[%s9012 + $0x8] sm:$0xff]
        %v9015 = vld [vmem:[%s9012 + $0x10] sm:$0xff]
        %v9016 = vld [vmem:[%s9012 + $0x18] sm:$0xff]
        %9018 = vset.pattern.permute.xlu0 0
        %9019 = vperm.xlu0 %9018, %v9013
        %v9020 = vpop.permute.xlu0 %9019
        %9023 = vset.pattern.permute.xlu0 0
        %9024 = vperm.xlu0 %9023, %v9014
        %v9025 = vpop.permute.xlu0 %9024
        %9028 = vset.pattern.permute.xlu0 0
        %9029 = vperm.xlu0 %9028, %v9015
        %v9030 = vpop.permute.xlu0 %9029
        %9033 = vset.pattern.permute.xlu0 0
        %9034 = vperm.xlu0 %9033, %v9016
        %v9035 = vpop.permute.xlu0 %9034
        %v9038 = vsel %vm446, %v9008, 0
        %v9041 = vsel %vm446, %v9009, 0
        %v9044 = vsel %vm446, %v9010, 0
        %v9047 = vsel %vm446, %v9011, 0
        %9049 = vmatprep.subr.mxu0 0.0
        %9050 = vmatpush1.msra.mxu0 0.0
        %9051 = vmatprep.subr.mxu0 0.0
        %9052 = vmatpush1.msra.mxu0 0.0
        %9053 = vmatprep.subr.mxu0 0.0
        %9054 = vmatpush1.msra.mxu0 0.0
        %9055 = vmatprep.subr.mxu0 0.0
        %9056 = vmatpush1.msra.mxu0 0.0
        %9057 = vmatprep.subr.mxu0 0.0
        %9058 = vmatpush1.msra.mxu0 0.0
        %9059 = vmatprep.subr.mxu0 0.0
        %9060 = vmatpush1.msra.mxu0 0.0
        %9061 = vmatprep.subr.mxu0 0.0
        %9062 = vmatpush1.msra.mxu0 0.0
        %9063 = vmatprep.subr.mxu0 0.0
        %9064 = vmatpush1.msra.mxu0 0.0
        %9065 = vmatprep.subr.mxu0 0.0
        %9066 = vmatpush1.msra.mxu0 0.0
        %9067 = vmatprep.subr.mxu0 0.0
        %9068 = vmatpush1.msra.mxu0 0.0
        %9069 = vmatprep.subr.mxu0 0.0
        %9070 = vmatpush1.msra.mxu0 0.0
        %9071 = vmatprep.subr.mxu0 0.0
        %9072 = vmatpush1.msra.mxu0 0.0
        %9073 = vmatprep.subr.mxu0 %v9006
        %9074 = vmatpush1.msra.mxu0 %v9005
        %9075 = vmatprep.subr.mxu0 %v9004
        %9076 = vmatpush1.msra.mxu0 %v9003
        %9077 = vmatprep.subr.mxu0 %v9002
        %9078 = vmatpush1.msra.mxu0 %v9001
        %9079 = vmatprep.subr.mxu0 %v9000
        %9080 = vmatpush1.msra.mxu0 %v8999
        %9081 = vmatprep.subr.mxu0 0.0
        %9082 = vmatpush2.msra.mxu0 0.0
        %9083 = vmatprep.subr.mxu0 0.0
        %9084 = vmatpush2.msra.mxu0 0.0
        %9085 = vmatprep.subr.mxu0 0.0
        %9086 = vmatpush2.msra.mxu0 0.0
        %9087 = vmatprep.subr.mxu0 0.0
        %9088 = vmatpush2.msra.mxu0 0.0
        %9089 = vmatprep.subr.mxu0 0.0
        %9090 = vmatpush2.msra.mxu0 0.0
        %9091 = vmatprep.subr.mxu0 0.0
        %9092 = vmatpush2.msra.mxu0 0.0
        %9093 = vmatprep.subr.mxu0 0.0
        %9094 = vmatpush2.msra.mxu0 0.0
        %9095 = vmatprep.subr.mxu0 0.0
        %9096 = vmatpush2.msra.mxu0 0.0
        %9097 = vmatprep.subr.mxu0 0.0
        %9098 = vmatpush2.msra.mxu0 0.0
        %9099 = vmatprep.subr.mxu0 0.0
        %9100 = vmatpush2.msra.mxu0 0.0
        %9101 = vmatprep.subr.mxu0 0.0
        %9102 = vmatpush2.msra.mxu0 0.0
        %9103 = vmatprep.subr.mxu0 0.0
        %9104 = vmatpush2.msra.mxu0 0.0
        %9105 = vmatprep.subr.mxu0 0.0
        %9106 = vmatpush2.msra.mxu0 0.0
        %9107 = vmatprep.subr.mxu0 0.0
        %9108 = vmatpush2.msra.mxu0 0.0
        %9109 = vmatprep.subr.mxu0 0.0
        %9110 = vmatpush2.msra.mxu0 0.0
        %9111 = vmatprep.subr.mxu0 0.0
        %9112 = vmatpush2.msra.mxu0 0.0
        %9113 = vmatprep.mubr.f32.mxu0 0.0
        %9114 = vmatmul.mubr.f32.gmra.mxu0 %v9038
        %v9115 = vpop.f32.mrf.mxu0
        %v9116 = vadd.f32 %v9020, %v9115
        %v9117 = vpop.f32.mrf.mxu0
        %v9118 = vadd.f32 %v9020, %v9117
        %9119 = vmatprep.mubr.f32.mxu0 0.0
        %9120 = vmatmul.mubr.f32.gmra.mxu0 %v9041
        %v9121 = vpop.f32.mrf.mxu0
        %v9122 = vadd.f32 %v9025, %v9121
        %v9123 = vpop.f32.mrf.mxu0
        %v9124 = vadd.f32 %v9025, %v9123
        %9125 = vmatprep.mubr.f32.mxu0 0.0
        %9126 = vmatmul.mubr.f32.gmra.mxu0 %v9044
        %v9127 = vpop.f32.mrf.mxu0
        %v9128 = vadd.f32 %v9030, %v9127
        %v9129 = vpop.f32.mrf.mxu0
        %v9130 = vadd.f32 %v9030, %v9129
        %9131 = vmatprep.mubr.f32.mxu0 0.0
        %9132 = vmatmul.mubr.f32.gmra.mxu0 %v9047
        %v9133 = vpop.f32.mrf.mxu0
        %v9134 = vadd.f32 %v9035, %v9133
        %v9135 = vpop.f32.mrf.mxu0
        %v9136 = vadd.f32 %v9035, %v9135
        %9137 = vdwg.mxu0
        %v9138 = vmax.f32 %v9116, 0.0
        %v9139 = vmax.f32 %v9118, 0.0
        %v9140 = vmax.f32 %v9122, 0.0
        %v9141 = vmax.f32 %v9124, 0.0
        %v9142 = vmax.f32 %v9128, 0.0
        %v9143 = vmax.f32 %v9130, 0.0
        %v9144 = vmax.f32 %v9134, 0.0
        %v9145 = vmax.f32 %v9136, 0.0
        %s9146 = scalar_lea.vmem [#allocation7], 96
        %v9147 = vld [vmem:[%s9146] sm:$0xff]
        %v9148 = vld [vmem:[%s9146 + $0x8] sm:$0xff]
        %v9149 = vld [vmem:[%s9146 + $0x10] sm:$0xff]
        %v9150 = vld [vmem:[%s9146 + $0x18] sm:$0xff]
        %s9151 = scalar_lea.vmem %s4, 96
        %v9152 = vld [vmem:[%s9151] sm:$0xff]
        %v9153 = vld [vmem:[%s9151 + $0x8] sm:$0xff]
        %v9154 = vld [vmem:[%s9151 + $0x10] sm:$0xff]
        %v9155 = vld [vmem:[%s9151 + $0x18] sm:$0xff]
        %9157 = vset.pattern.permute.xlu0 0
        %9158 = vperm.xlu0 %9157, %v9152
        %v9159 = vpop.permute.xlu0 %9158
        %9162 = vset.pattern.permute.xlu0 0
        %9163 = vperm.xlu0 %9162, %v9153
        %v9164 = vpop.permute.xlu0 %9163
        %9167 = vset.pattern.permute.xlu0 0
        %9168 = vperm.xlu0 %9167, %v9154
        %v9169 = vpop.permute.xlu0 %9168
        %9172 = vset.pattern.permute.xlu0 0
        %9173 = vperm.xlu0 %9172, %v9155
        %v9174 = vpop.permute.xlu0 %9173
        %v9177 = vsel %vm446, %v9147, 0
        %v9180 = vsel %vm446, %v9148, 0
        %v9183 = vsel %vm446, %v9149, 0
        %v9186 = vsel %vm446, %v9150, 0
        %9188 = vmatprep.subr.mxu0 0.0
        %9189 = vmatpush1.msra.mxu0 0.0
        %9190 = vmatprep.subr.mxu0 0.0
        %9191 = vmatpush1.msra.mxu0 0.0
        %9192 = vmatprep.subr.mxu0 0.0
        %9193 = vmatpush1.msra.mxu0 0.0
        %9194 = vmatprep.subr.mxu0 0.0
        %9195 = vmatpush1.msra.mxu0 0.0
        %9196 = vmatprep.subr.mxu0 0.0
        %9197 = vmatpush1.msra.mxu0 0.0
        %9198 = vmatprep.subr.mxu0 0.0
        %9199 = vmatpush1.msra.mxu0 0.0
        %9200 = vmatprep.subr.mxu0 0.0
        %9201 = vmatpush1.msra.mxu0 0.0
        %9202 = vmatprep.subr.mxu0 0.0
        %9203 = vmatpush1.msra.mxu0 0.0
        %9204 = vmatprep.subr.mxu0 0.0
        %9205 = vmatpush1.msra.mxu0 0.0
        %9206 = vmatprep.subr.mxu0 0.0
        %9207 = vmatpush1.msra.mxu0 0.0
        %9208 = vmatprep.subr.mxu0 0.0
        %9209 = vmatpush1.msra.mxu0 0.0
        %9210 = vmatprep.subr.mxu0 0.0
        %9211 = vmatpush1.msra.mxu0 0.0
        %9212 = vmatprep.subr.mxu0 %v9145
        %9213 = vmatpush1.msra.mxu0 %v9144
        %9214 = vmatprep.subr.mxu0 %v9143
        %9215 = vmatpush1.msra.mxu0 %v9142
        %9216 = vmatprep.subr.mxu0 %v9141
        %9217 = vmatpush1.msra.mxu0 %v9140
        %9218 = vmatprep.subr.mxu0 %v9139
        %9219 = vmatpush1.msra.mxu0 %v9138
        %9220 = vmatprep.subr.mxu0 0.0
        %9221 = vmatpush2.msra.mxu0 0.0
        %9222 = vmatprep.subr.mxu0 0.0
        %9223 = vmatpush2.msra.mxu0 0.0
        %9224 = vmatprep.subr.mxu0 0.0
        %9225 = vmatpush2.msra.mxu0 0.0
        %9226 = vmatprep.subr.mxu0 0.0
        %9227 = vmatpush2.msra.mxu0 0.0
        %9228 = vmatprep.subr.mxu0 0.0
        %9229 = vmatpush2.msra.mxu0 0.0
        %9230 = vmatprep.subr.mxu0 0.0
        %9231 = vmatpush2.msra.mxu0 0.0
        %9232 = vmatprep.subr.mxu0 0.0
        %9233 = vmatpush2.msra.mxu0 0.0
        %9234 = vmatprep.subr.mxu0 0.0
        %9235 = vmatpush2.msra.mxu0 0.0
        %9236 = vmatprep.subr.mxu0 0.0
        %9237 = vmatpush2.msra.mxu0 0.0
        %9238 = vmatprep.subr.mxu0 0.0
        %9239 = vmatpush2.msra.mxu0 0.0
        %9240 = vmatprep.subr.mxu0 0.0
        %9241 = vmatpush2.msra.mxu0 0.0
        %9242 = vmatprep.subr.mxu0 0.0
        %9243 = vmatpush2.msra.mxu0 0.0
        %9244 = vmatprep.subr.mxu0 0.0
        %9245 = vmatpush2.msra.mxu0 0.0
        %9246 = vmatprep.subr.mxu0 0.0
        %9247 = vmatpush2.msra.mxu0 0.0
        %9248 = vmatprep.subr.mxu0 0.0
        %9249 = vmatpush2.msra.mxu0 0.0
        %9250 = vmatprep.subr.mxu0 0.0
        %9251 = vmatpush2.msra.mxu0 0.0
        %9252 = vmatprep.mubr.f32.mxu0 0.0
        %9253 = vmatmul.mubr.f32.gmra.mxu0 %v9177
        %v9254 = vpop.f32.mrf.mxu0
        %v9255 = vadd.f32 %v9159, %v9254
        %v9256 = vpop.f32.mrf.mxu0
        %v9257 = vadd.f32 %v9159, %v9256
        %9258 = vmatprep.mubr.f32.mxu0 0.0
        %9259 = vmatmul.mubr.f32.gmra.mxu0 %v9180
        %v9260 = vpop.f32.mrf.mxu0
        %v9261 = vadd.f32 %v9164, %v9260
        %v9262 = vpop.f32.mrf.mxu0
        %v9263 = vadd.f32 %v9164, %v9262
        %9264 = vmatprep.mubr.f32.mxu0 0.0
        %9265 = vmatmul.mubr.f32.gmra.mxu0 %v9183
        %v9266 = vpop.f32.mrf.mxu0
        %v9267 = vadd.f32 %v9169, %v9266
        %v9268 = vpop.f32.mrf.mxu0
        %v9269 = vadd.f32 %v9169, %v9268
        %9270 = vmatprep.mubr.f32.mxu0 0.0
        %9271 = vmatmul.mubr.f32.gmra.mxu0 %v9186
        %v9272 = vpop.f32.mrf.mxu0
        %v9273 = vadd.f32 %v9174, %v9272
        %v9274 = vpop.f32.mrf.mxu0
        %v9275 = vadd.f32 %v9174, %v9274
        %9276 = vdwg.mxu0
        %s9277 = scalar_lea.vmem [#allocation8], 8
        %v9278 = vld [vmem:[%s9277] sm:$0xff]
        %v9280 = vsel %vm446, %v9278, 0
        %9282 = vmatprep.subr.mxu0 0.0
        %9283 = vmatpush1.msra.mxu0 0.0
        %9284 = vmatprep.subr.mxu0 0.0
        %9285 = vmatpush1.msra.mxu0 0.0
        %9286 = vmatprep.subr.mxu0 0.0
        %9287 = vmatpush1.msra.mxu0 0.0
        %9288 = vmatprep.subr.mxu0 0.0
        %9289 = vmatpush1.msra.mxu0 0.0
        %9290 = vmatprep.subr.mxu0 0.0
        %9291 = vmatpush1.msra.mxu0 0.0
        %9292 = vmatprep.subr.mxu0 0.0
        %9293 = vmatpush1.msra.mxu0 0.0
        %9294 = vmatprep.subr.mxu0 0.0
        %9295 = vmatpush1.msra.mxu0 0.0
        %9296 = vmatprep.subr.mxu0 0.0
        %9297 = vmatpush1.msra.mxu0 0.0
        %9298 = vmatprep.subr.mxu0 0.0
        %9299 = vmatpush1.msra.mxu0 0.0
        %9300 = vmatprep.subr.mxu0 0.0
        %9301 = vmatpush1.msra.mxu0 0.0
        %9302 = vmatprep.subr.mxu0 0.0
        %9303 = vmatpush1.msra.mxu0 0.0
        %9304 = vmatprep.subr.mxu0 0.0
        %9305 = vmatpush1.msra.mxu0 0.0
        %9306 = vmatprep.subr.mxu0 %v9275
        %9307 = vmatpush1.msra.mxu0 %v9273
        %9308 = vmatprep.subr.mxu0 %v9269
        %9309 = vmatpush1.msra.mxu0 %v9267
        %9310 = vmatprep.subr.mxu0 %v9263
        %9311 = vmatpush1.msra.mxu0 %v9261
        %9312 = vmatprep.subr.mxu0 %v9257
        %9313 = vmatpush1.msra.mxu0 %v9255
        %9314 = vmatprep.subr.mxu0 0.0
        %9315 = vmatpush2.msra.mxu0 0.0
        %9316 = vmatprep.subr.mxu0 0.0
        %9317 = vmatpush2.msra.mxu0 0.0
        %9318 = vmatprep.subr.mxu0 0.0
        %9319 = vmatpush2.msra.mxu0 0.0
        %9320 = vmatprep.subr.mxu0 0.0
        %9321 = vmatpush2.msra.mxu0 0.0
        %9322 = vmatprep.subr.mxu0 0.0
        %9323 = vmatpush2.msra.mxu0 0.0
        %9324 = vmatprep.subr.mxu0 0.0
        %9325 = vmatpush2.msra.mxu0 0.0
        %9326 = vmatprep.subr.mxu0 0.0
        %9327 = vmatpush2.msra.mxu0 0.0
        %9328 = vmatprep.subr.mxu0 0.0
        %9329 = vmatpush2.msra.mxu0 0.0
        %9330 = vmatprep.subr.mxu0 0.0
        %9331 = vmatpush2.msra.mxu0 0.0
        %9332 = vmatprep.subr.mxu0 0.0
        %9333 = vmatpush2.msra.mxu0 0.0
        %9334 = vmatprep.subr.mxu0 0.0
        %9335 = vmatpush2.msra.mxu0 0.0
        %9336 = vmatprep.subr.mxu0 0.0
        %9337 = vmatpush2.msra.mxu0 0.0
        %9338 = vmatprep.subr.mxu0 0.0
        %9339 = vmatpush2.msra.mxu0 0.0
        %9340 = vmatprep.subr.mxu0 0.0
        %9341 = vmatpush2.msra.mxu0 0.0
        %9342 = vmatprep.subr.mxu0 0.0
        %9343 = vmatpush2.msra.mxu0 0.0
        %9344 = vmatprep.subr.mxu0 0.0
        %9345 = vmatpush2.msra.mxu0 0.0
        %9346 = vmatprep.mubr.f32.mxu0 0.0
        %9347 = vmatmul.mubr.f32.gmra.mxu0 %v9280
        %v9348 = vpop.f32.mrf.mxu0
        %v9349 = vadd.f32 0.0, %v9348
        %v9350 = vpop.f32.mrf.mxu0
        %v9351 = vadd.f32 0.0, %v9350
        %9352 = vdwg.mxu0
        %v9353 = vadd.f32 %v9349, %v9351
        %9354 = vadd.xlane.f32.xlu0 %v9353
        %v9355 = vpop.xlane.xlu0 %9354
        %v9356 = vmul.f32 %v9355, %v5083
        %s9357 = scalar_lea.vmem %s6, 8
        %v9358 = vld [vmem:[%s9357] sm:$0xff]
        %v9359 = vadd.f32 %v9356, %v9358
        %v9360 = vmax.f32 %v9359, 0.0
        %s9361 = scalar_lea.vmem %s7, 32
        %v9362 = vld [vmem:[%s9361] sm:$0xff]
        %v9363 = vld [vmem:[%s9361 + $0x8] sm:$0xff]
        %v9364 = vld [vmem:[%s9361 + $0x10] sm:$0xff]
        %v9365 = vld [vmem:[%s9361 + $0x18] sm:$0xff]
        %9367 = vset.pattern.permute.xlu0 0
        %9368 = vperm.xlu0 %9367, %v9360
        %v9369 = vpop.permute.xlu0 %9368
        %s9371 = scalar_lea.vmem %s8, 32
        %v9372 = vld [vmem:[%s9371] sm:$0xff]
        %v9373 = vld [vmem:[%s9371 + $0x8] sm:$0xff]
        %v9374 = vld [vmem:[%s9371 + $0x10] sm:$0xff]
        %v9375 = vld [vmem:[%s9371 + $0x18] sm:$0xff]
        %9377 = vset.pattern.permute.xlu0 0
        %9378 = vperm.xlu0 %9377, %v9372
        %v9379 = vpop.permute.xlu0 %9378
        %9382 = vset.pattern.permute.xlu0 0
        %9383 = vperm.xlu0 %9382, %v9373
        %v9384 = vpop.permute.xlu0 %9383
        %9387 = vset.pattern.permute.xlu0 0
        %9388 = vperm.xlu0 %9387, %v9374
        %v9389 = vpop.permute.xlu0 %9388
        %9392 = vset.pattern.permute.xlu0 0
        %9393 = vperm.xlu0 %9392, %v9375
        %v9394 = vpop.permute.xlu0 %9393
        %v9397 = vsel %vm5121, %v9362, 0
        %v9400 = vsel %vm5121, %v9363, 0
        %v9403 = vsel %vm5121, %v9364, 0
        %v9406 = vsel %vm5121, %v9365, 0
        %9408 = vmatprep.subr.mxu0 0.0
        %9409 = vmatpush1.msra.mxu0 0.0
        %9410 = vmatprep.subr.mxu0 0.0
        %9411 = vmatpush1.msra.mxu0 0.0
        %9412 = vmatprep.subr.mxu0 0.0
        %9413 = vmatpush1.msra.mxu0 0.0
        %9414 = vmatprep.subr.mxu0 0.0
        %9415 = vmatpush1.msra.mxu0 0.0
        %9416 = vmatprep.subr.mxu0 0.0
        %9417 = vmatpush1.msra.mxu0 0.0
        %9418 = vmatprep.subr.mxu0 0.0
        %9419 = vmatpush1.msra.mxu0 0.0
        %9420 = vmatprep.subr.mxu0 0.0
        %9421 = vmatpush1.msra.mxu0 0.0
        %9422 = vmatprep.subr.mxu0 0.0
        %9423 = vmatpush1.msra.mxu0 0.0
        %9424 = vmatprep.subr.mxu0 0.0
        %9425 = vmatpush1.msra.mxu0 0.0
        %9426 = vmatprep.subr.mxu0 0.0
        %9427 = vmatpush1.msra.mxu0 0.0
        %9428 = vmatprep.subr.mxu0 0.0
        %9429 = vmatpush1.msra.mxu0 0.0
        %9430 = vmatprep.subr.mxu0 0.0
        %9431 = vmatpush1.msra.mxu0 0.0
        %9432 = vmatprep.subr.mxu0 0.0
        %9433 = vmatpush1.msra.mxu0 0.0
        %9434 = vmatprep.subr.mxu0 0.0
        %9435 = vmatpush1.msra.mxu0 0.0
        %9436 = vmatprep.subr.mxu0 0.0
        %9437 = vmatpush1.msra.mxu0 0.0
        %9438 = vmatprep.subr.mxu0 %v9369
        %9439 = vmatpush1.msra.mxu0 %v9369
        %9440 = vmatprep.subr.mxu0 0.0
        %9441 = vmatpush2.msra.mxu0 0.0
        %9442 = vmatprep.subr.mxu0 0.0
        %9443 = vmatpush2.msra.mxu0 0.0
        %9444 = vmatprep.subr.mxu0 0.0
        %9445 = vmatpush2.msra.mxu0 0.0
        %9446 = vmatprep.subr.mxu0 0.0
        %9447 = vmatpush2.msra.mxu0 0.0
        %9448 = vmatprep.subr.mxu0 0.0
        %9449 = vmatpush2.msra.mxu0 0.0
        %9450 = vmatprep.subr.mxu0 0.0
        %9451 = vmatpush2.msra.mxu0 0.0
        %9452 = vmatprep.subr.mxu0 0.0
        %9453 = vmatpush2.msra.mxu0 0.0
        %9454 = vmatprep.subr.mxu0 0.0
        %9455 = vmatpush2.msra.mxu0 0.0
        %9456 = vmatprep.subr.mxu0 0.0
        %9457 = vmatpush2.msra.mxu0 0.0
        %9458 = vmatprep.subr.mxu0 0.0
        %9459 = vmatpush2.msra.mxu0 0.0
        %9460 = vmatprep.subr.mxu0 0.0
        %9461 = vmatpush2.msra.mxu0 0.0
        %9462 = vmatprep.subr.mxu0 0.0
        %9463 = vmatpush2.msra.mxu0 0.0
        %9464 = vmatprep.subr.mxu0 0.0
        %9465 = vmatpush2.msra.mxu0 0.0
        %9466 = vmatprep.subr.mxu0 0.0
        %9467 = vmatpush2.msra.mxu0 0.0
        %9468 = vmatprep.subr.mxu0 0.0
        %9469 = vmatpush2.msra.mxu0 0.0
        %9470 = vmatprep.subr.mxu0 0.0
        %9471 = vmatpush2.msra.mxu0 0.0
        %9472 = vmatprep.mubr.f32.mxu0 0.0
        %9473 = vmatmul.mubr.f32.gmra.mxu0 %v9397
        %v9474 = vpop.f32.mrf.mxu0
        %v9475 = vadd.f32 %v9379, %v9474
        %v9476 = vpop.f32.mrf.mxu0
        %v9477 = vadd.f32 %v9379, %v9476
        %9478 = vmatprep.mubr.f32.mxu0 0.0
        %9479 = vmatmul.mubr.f32.gmra.mxu0 %v9400
        %v9480 = vpop.f32.mrf.mxu0
        %v9481 = vadd.f32 %v9384, %v9480
        %v9482 = vpop.f32.mrf.mxu0
        %v9483 = vadd.f32 %v9384, %v9482
        %9484 = vmatprep.mubr.f32.mxu0 0.0
        %9485 = vmatmul.mubr.f32.gmra.mxu0 %v9403
        %v9486 = vpop.f32.mrf.mxu0
        %v9487 = vadd.f32 %v9389, %v9486
        %v9488 = vpop.f32.mrf.mxu0
        %v9489 = vadd.f32 %v9389, %v9488
        %9490 = vmatprep.mubr.f32.mxu0 0.0
        %9491 = vmatmul.mubr.f32.gmra.mxu0 %v9406
        %v9492 = vpop.f32.mrf.mxu0
        %v9493 = vadd.f32 %v9394, %v9492
        %v9494 = vpop.f32.mrf.mxu0
        %v9495 = vadd.f32 %v9394, %v9494
        %9496 = vdwg.mxu0
        %v9497 = vsub.f32 0.0, %v9475
        %v9498 = vsub.f32 0.0, %v9477
        %v9499 = vsub.f32 0.0, %v9481
        %v9500 = vsub.f32 0.0, %v9483
        %v9501 = vsub.f32 0.0, %v9487
        %v9502 = vsub.f32 0.0, %v9489
        %v9503 = vsub.f32 0.0, %v9493
        %v9504 = vsub.f32 0.0, %v9495
        %v9505 = vmul.f32 %v9497, 1.442695
        %v9506 = vpow.pop %v9505
        %v9507 = vmul.f32 %v9498, 1.442695
        %v9508 = vpow.pop %v9507
        %v9509 = vmul.f32 %v9499, 1.442695
        %v9510 = vpow.pop %v9509
        %v9511 = vmul.f32 %v9500, 1.442695
        %v9512 = vpow.pop %v9511
        %v9513 = vmul.f32 %v9501, 1.442695
        %v9514 = vpow.pop %v9513
        %v9515 = vmul.f32 %v9502, 1.442695
        %v9516 = vpow.pop %v9515
        %v9517 = vmul.f32 %v9503, 1.442695
        %v9518 = vpow.pop %v9517
        %v9519 = vmul.f32 %v9504, 1.442695
        %v9520 = vpow.pop %v9519
        %v9521 = vadd.f32 %v9506, 1.0
        %v9522 = vadd.f32 %v9508, 1.0
        %v9523 = vadd.f32 %v9510, 1.0
        %v9524 = vadd.f32 %v9512, 1.0
        %v9525 = vadd.f32 %v9514, 1.0
        %v9526 = vadd.f32 %v9516, 1.0
        %v9527 = vadd.f32 %v9518, 1.0
        %v9528 = vadd.f32 %v9520, 1.0
        %v9529 = vrcp.pop %v9521
        %v9530 = vmul.f32 1.0, %v9529
        %v9531 = vrcp.pop %v9522
        %v9532 = vmul.f32 1.0, %v9531
        %v9533 = vrcp.pop %v9523
        %v9534 = vmul.f32 1.0, %v9533
        %v9535 = vrcp.pop %v9524
        %v9536 = vmul.f32 1.0, %v9535
        %v9537 = vrcp.pop %v9525
        %v9538 = vmul.f32 1.0, %v9537
        %v9539 = vrcp.pop %v9526
        %v9540 = vmul.f32 1.0, %v9539
        %v9541 = vrcp.pop %v9527
        %v9542 = vmul.f32 1.0, %v9541
        %v9543 = vrcp.pop %v9528
        %v9544 = vmul.f32 1.0, %v9543
        %v9545 = vmul.f32 %v9255, %v9530
        %v9546 = vmul.f32 %v9257, %v9532
        %v9547 = vmul.f32 %v9261, %v9534
        %v9548 = vmul.f32 %v9263, %v9536
        %v9549 = vmul.f32 %v9267, %v9538
        %v9550 = vmul.f32 %v9269, %v9540
        %v9551 = vmul.f32 %v9273, %v9542
        %v9552 = vmul.f32 %v9275, %v9544
        %v9553 = vmul.f32 %v9545, 0.1
        %v9554 = vmul.f32 %v9546, 0.1
        %v9555 = vmul.f32 %v9547, 0.1
        %v9556 = vmul.f32 %v9548, 0.1
        %v9557 = vmul.f32 %v9549, 0.1
        %v9558 = vmul.f32 %v9550, 0.1
        %v9559 = vmul.f32 %v9551, 0.1
        %v9560 = vmul.f32 %v9552, 0.1
        %v9561 = vadd.f32 %v8999, %v9553
        %v9562 = vadd.f32 %v9000, %v9554
        %v9563 = vadd.f32 %v9001, %v9555
        %v9564 = vadd.f32 %v9002, %v9556
        %v9565 = vadd.f32 %v9003, %v9557
        %v9566 = vadd.f32 %v9004, %v9558
        %v9567 = vadd.f32 %v9005, %v9559
        %v9568 = vadd.f32 %v9006, %v9560
        %v9569 = vadd.f32 %v9561, %v434
        %v9570 = vadd.f32 %v9562, %v435
        %v9571 = vadd.f32 %v9563, %v436
        %v9572 = vadd.f32 %v9564, %v437
        %v9573 = vadd.f32 %v9565, %v438
        %v9574 = vadd.f32 %v9566, %v439
        %v9575 = vadd.f32 %v9567, %v440
        %v9576 = vadd.f32 %v9568, %v441
        %9577 = vst [vmem:[%s433] sm:$0xff] %v9569
        %9578 = vst [vmem:[%s433 + $0x8] sm:$0xff] %v9570
        %9579 = vst [vmem:[%s433 + $0x10] sm:$0xff] %v9571
        %9580 = vst [vmem:[%s433 + $0x18] sm:$0xff] %v9572
        %9581 = vst [vmem:[%s433 + $0x20] sm:$0xff] %v9573
        %9582 = vst [vmem:[%s433 + $0x28] sm:$0xff] %v9574
        %9583 = vst [vmem:[%s433 + $0x30] sm:$0xff] %v9575
        %9584 = vst [vmem:[%s433 + $0x38] sm:$0xff] %v9576
        %s9585 = sand.u32 %s250, 1
        %s9586 = scalar_lea.sflag [#allocation4], %s9585
        %s9587 = sand.u32 %s250, 1
        %s9588 = smul.addr %s9587, 64
        %s9589 = scalar_lea.vmem [#allocation11], %s9588
        // Predicated region
        $region81: #{tpu_custom_call.1} parent=59 // pred_check
          %p9590 = pneg %p260
        $region82: #{tpu_custom_call.1} parent=59 // pred_check_branch
          %9592 = sbr.rel (%p9590) target = $region84
        $region83: #{tpu_custom_call.1} parent=59 // pred_region
          %s9594 = ssub.s32 1024, 1024
          %9595 = vsyncadd %s9586, %s9594
          %s9596 = smul.addr %s27, 8
          %s9597 = smul.addr %s9596, 128
          %s9598 = scalar_lea.hbm %s10, %s9597
          %s9599 = sshll.u32 %s9589, 4
          %s9600 = int_to_ptr.vmem [resolvable:$true] %s9599
          %9605 = dma.vmem_to_hbm [thread:$0]  %s9600, 1024, %s9598, %s9586, 256, 256, 16
        $region84: #{tpu_custom_call.1} parent=59 // pred_fallthru
          _
      $region60: #{tpu_custom_call.1} parent=5 // pred_fallthru
        _
      %p9606 = scmp.le.s32.totalorder 2, %s22
      // Predicated region
      $region85: #{tpu_custom_call.1} parent=5 // pred_check
        %p9607 = pneg %p9606
      $region86: #{tpu_custom_call.1} parent=5 // pred_check_branch
        %9609 = sbr.rel (%p9607) target = $region88
      $region87: #{tpu_custom_call.1} parent=5 // pred_region
        %s9610 = ssub.s32 %s22, 2
        // Predicated region
        $region89: #{tpu_custom_call.1} parent=87 // pred_check
          %p9611 = pneg %p266
        $region90: #{tpu_custom_call.1} parent=87 // pred_check_branch
          %9613 = sbr.rel (%p9611) target = $region92
        $region91: #{tpu_custom_call.1} parent=87 // pred_region
          %s9614 = sand.u32 %s251, 1
          %s9615 = scalar_lea.sflag [#allocation4], %s9614
          %s9616 = sand.u32 %s251, 1
          %s9617 = smul.addr %s9616, 64
          %s9618 = scalar_lea.vmem [#allocation11], %s9617
          %9619 = dma.done %s9615, 1024
        $region92: #{tpu_custom_call.1} parent=87 // pred_fallthru
          _
      $region88: #{tpu_custom_call.1} parent=5 // pred_fallthru
        _
    $region6: #{tpu_custom_call.1} parent=1 // loop_footer
      %s26 = sadd.s32 1, %s22
    $region7: #{tpu_custom_call.1} parent=1 // loop_footer_branch
      %21 = sbr.rel target = $region3
    $region8: #{tpu_custom_call.1} parent=1 // loop_exit
      _
    %9620 = vsyncpa [#allocation3], 1
    %s9621 = scalar_lea.sflag [#allocation3], 1
    %9622 = vsyncpa %s9621, 1
    %9623 = vsyncpa [#allocation6], 1
    %9624 = vsyncpa [#allocation9], 1
    %9625 = vsyncpa [#allocation4], 1
    %s9626 = scalar_lea.sflag [#allocation4], 1
    %9627 = vsyncpa %s9626, 1

</llo_original>
